<compile_context>
chip_gen: v7x
topology: tpu7x:2x2x1
jax: 0.10.0
libtpu: 0.0.40
codegen_flags: <defaults>
</compile_context>

<pallas_src>
import functools
import numpy as np
import jax
import jax.numpy as jnp
from jax.experimental import pallas as pl
from jax.experimental.pallas import tpu as pltpu


# ----------------------- host-side precomputation (one time) -----------------------

def build_dense_bias_mask(rel_table, H, W, ws, shift, heads, neg=-1e9):
    """Dense per-head bias+mask in raster-token order: (heads, L, L) bf16, L = H*W.

    bm[h, p, q] = rel_bias[h, i_p, i_q] + shift_mask[w_p, i_p, i_q] if raster tokens
    p and q land in the same (cyclically shifted) window, else `neg` (exp -> 0).
    Reproduces roll + windows_partition + WindowAttention(bias, mask) +
    windows_reverse + roll-back of the reference as a single constant tensor.
    """
    N = ws * ws
    L = H * W
    nWx = W // ws

    # --- relative position bias table lookup (matches WindowAttention) ---
    coords = np.stack(np.meshgrid(np.arange(ws), np.arange(ws), indexing="ij"))
    cf = coords.reshape(2, -1)                                                   # (2, N)
    rel = (cf[:, :, None] - cf[:, None, :]).transpose(1, 2, 0).astype(np.int64)  # (N,N,2)
    rel[:, :, 0] += ws - 1
    rel[:, :, 1] += ws - 1
    rel[:, :, 0] *= 2 * ws - 1
    idx_flat = rel.sum(-1).reshape(-1)                                           # (N*N,)
    bias = jnp.asarray(rel_table)[idx_flat].reshape(N, N, heads).transpose(2, 0, 1)

    # --- shifted-window mask (nW, N, N); zeros when shift == 0 ---
    if shift > 0:
        img = np.zeros((H, W), np.float32)
        cnt = 0
        sl3 = (slice(0, -ws), slice(-ws, -shift), slice(-shift, None))
        for hs in sl3:
            for wsl in sl3:
                img[hs, wsl] = cnt
                cnt += 1
        mw = img.reshape(H // ws, ws, W // ws, ws).transpose(0, 2, 1, 3).reshape(-1, N)
        am = mw[:, None, :] - mw[:, :, None]
        mask = np.where(am != 0, -100.0, 0.0).astype(np.float32)                 # (nW,N,N)
    else:
        mask = np.zeros((L // N, N, N), np.float32)

    # --- raster token -> (window, within-window index) after cyclic shift ---
    ys, xs = np.meshgrid(np.arange(H), np.arange(W), indexing="ij")
    yr = (ys - shift) % H
    xr = (xs - shift) % W
    win = ((yr // ws) * nWx + (xr // ws)).reshape(L)          # window id per raster token
    wid = ((yr % ws) * ws + (xr % ws)).reshape(L)             # index inside window
    same = (win[:, None] == win[None, :])                     # (L, L) bool

    bias_pq = bias[:, wid[:, None], wid[None, :]]                               # (h,L,L)
    mask_pq = jnp.asarray(mask[win[:, None], wid[:, None], wid[None, :]])       # (L,L)
    bm = jnp.where(jnp.asarray(same)[None], bias_pq + mask_pq[None], neg)
    # bf16: -1e9 and -100 both still make exp underflow to 0 after the bf16 round.
    return bm.astype(jnp.bfloat16)


def _prep_block_weights(bp, C, scale):
    """Transpose weights for channel-major (W^T @ X) matmuls, fold the 1/sqrt(dh)
    query scale into the Q rows, bf16 matmul weights, f32 biases / LN params."""
    bf = jnp.bfloat16
    row_scale = np.ones((3 * C, 1), np.float32)
    row_scale[:C] = scale                                   # only the Q rows
    row_scale = jnp.asarray(row_scale)
    qkv_wT = (jnp.asarray(bp["qkv_w"]).T * row_scale).astype(bf)     # (3C, C)
    qkv_b = jnp.asarray(bp["qkv_b"]).reshape(-1, 1) * row_scale      # (3C, 1) f32
    col = lambda v: jnp.asarray(v).reshape(-1, 1)
    return [
        qkv_wT, qkv_b,
        jnp.asarray(bp["proj_w"]).T.astype(bf), col(bp["proj_b"]),
        col(bp["ln1_g"]), col(bp["ln1_b"]),
        jnp.asarray(bp["fc1_w"]).T.astype(bf), col(bp["fc1_b"]),
        jnp.asarray(bp["fc2_w"]).T.astype(bf), col(bp["fc2_b"]),
        col(bp["ln2_g"]), col(bp["ln2_b"]),
    ]


# ----------------------------- fused SwinT forward -----------------------------

_NW = 12  # per-block weight / bias tensors


def swin_t_forward(x_nchw, params, bias_masks, heads):
    """SwinT.forward (downsample=False): 2 Swin blocks + 1x1 conv, ONE pallas_call."""
    B, C, H, W = x_nchw.shape
    L = H * W
    Cout = params["conv_w"].shape[1]
    dh = C // heads
    scale = float(dh) ** -0.5
    bf = jnp.bfloat16
    f32 = jnp.float32
    eps = 1e-5

    # channel-major "tokens-in-lanes": (B, C, L) is a pure reshape of NCHW.
    x_cl = x_nchw.reshape(B, C, L)

    bm0 = bias_masks[0].astype(bf)
    bm1 = bias_masks[1].astype(bf)
    w0 = _prep_block_weights(params["blocks"][0], C, scale)
    w1 = _prep_block_weights(params["blocks"][1], C, scale)
    conv_wT = jnp.asarray(params["conv_w"]).T.astype(bf)       # (Cout, C)
    conv_b = jnp.asarray(params["conv_b"]).reshape(-1, 1)      # (Cout, 1)

    def kernel(*refs):
        x_ref = refs[0]
        bm0_ref, w0_refs = refs[1], refs[2:2 + _NW]
        bm1_ref, w1_refs = refs[2 + _NW], refs[3 + _NW:3 + 2 * _NW]
        cw_ref, cb_ref = refs[3 + 2 * _NW], refs[4 + 2 * _NW]
        o_ref = refs[5 + 2 * _NW]

        ones_row = jnp.ones((1, L), bf)   # hoisted; row-sums via MXU, (1, L) oriented

        def gelu_tanh(t):                 # tanh approximation -> EUP slot
            c = 0.7978845608028654        # sqrt(2/pi)
            return 0.5 * t * (1.0 + jnp.tanh(c * (t + 0.044715 * (t * t * t))))

        def ln_residual(res, t, g_ref, b_ref):
            # post-norm (matches reference): res + LN(t); LN over channels (sublanes)
            mu = jnp.mean(t, axis=0, keepdims=True)
            var = jnp.mean((t - mu) ** 2, axis=0, keepdims=True)
            return res + ((t - mu) * jax.lax.rsqrt(var + eps) * g_ref[...] + b_ref[...])

        def swin_block(xc, bm_ref, wr):
            (qkv_w, qkv_b, pw, pb, g1, b1, fw1, fb1, fw2, fb2, g2, b2) = wr
            xb = xc.astype(bf)
            # qkv: (3C, L) f32; the 1/sqrt(dh) scale is already folded into W_q / b_q.
            qkv = jnp.dot(qkv_w[...], xb, preferred_element_type=f32) + qkv_b[...]
            # queries to token-major once (one small transpose); K/V stay (dh, L).
            q_t = jnp.transpose(qkv[:C, :])                               # (L, C) f32

            heads_out = []
            for h in range(heads):                                        # unrolled
                qh = q_t[:, h * dh:(h + 1) * dh].astype(bf)               # (L, dh)
                kh = qkv[C + h * dh:C + (h + 1) * dh, :].astype(bf)       # (dh, L)
                vh = qkv[2 * C + h * dh:2 * C + (h + 1) * dh, :].astype(bf)
                s = jnp.dot(qh, kh, preferred_element_type=f32)           # (L, L)
                s = s + bm_ref[h].astype(f32)      # rel-pos bias + shifted-window mask
                s = s - jnp.max(s, axis=-1, keepdims=True)
                p = jnp.exp(s).astype(bf)          # UNnormalized probabilities, bf16
                # deferred softmax normalization: scale the (dh, L) output, not p.
                oh = jax.lax.dot_general(vh, p, (((1,), (1,)), ((), ())),
                                         preferred_element_type=f32)      # (dh, L)
                rs = jax.lax.dot_general(ones_row, p, (((1,), (1,)), ((), ())),
                                         preferred_element_type=f32)      # (1, L)
                heads_out.append(oh * pl.reciprocal(rs, approx=True))
            attn = jnp.concatenate(heads_out, axis=0)        # (C, L) f32 head concat
            attn = jnp.dot(pw[...], attn.astype(bf),
                           preferred_element_type=f32) + pb[...]
            y1 = ln_residual(xc, attn, g1, b1)

            t = jnp.dot(fw1[...], y1.astype(bf), preferred_element_type=f32) + fb1[...]
            t = gelu_tanh(t)
            t = jnp.dot(fw2[...], t.astype(bf), preferred_element_type=f32) + fb2[...]
            return ln_residual(y1, t, g2, b2)

        y = swin_block(x_ref[0], bm0_ref, w0_refs)           # block 0: shift = 0
        y = swin_block(y, bm1_ref, w1_refs)                  # block 1: shift = ws//2
        # fused 1x1 conv: (Cout, C) @ (C, L)  -> lane-dense (Cout, 256) store
        out = jnp.dot(cw_ref[...], y.astype(bf), preferred_element_type=f32) + cb_ref[...]
        o_ref[0] = out.astype(o_ref.dtype)

    def const_spec(arr):
        nd = arr.ndim
        return pl.BlockSpec(arr.shape, lambda i, nd=nd: (0,) * nd)

    in_specs = ([pl.BlockSpec((1, C, L), lambda i: (i, 0, 0)), const_spec(bm0)]
                + [const_spec(a) for a in w0]
                + [const_spec(bm1)]
                + [const_spec(a) for a in w1]
                + [const_spec(conv_wT), const_spec(conv_b)])

    y = pl.pallas_call(
        kernel,
        out_shape=jax.ShapeDtypeStruct((B, Cout, L), jnp.float32),
        grid_spec=pltpu.PrefetchScalarGridSpec(
            num_scalar_prefetch=0,
            grid=(B,),                       # one step per batch element
            in_specs=in_specs,
            out_specs=pl.BlockSpec((1, Cout, L), lambda i: (i, 0, 0)),
        ),
        compiler_params=pltpu.CompilerParams(dimension_semantics=("parallel",)),
    )(x_cl, bm0, *w0, bm1, *w1, conv_wT, conv_b)

    return y.reshape(B, Cout, H, W)          # NCHW like nn.Conv2d, no transpose


# ----------------------------- parameter init -----------------------------

def init_params(key, C, Cout, heads, ws, mlp_ratio):
    hidden = int(C * mlp_ratio)
    keys = iter(jax.random.split(key, 24))

    def rnd(shape):
        return jax.random.normal(next(keys), shape, jnp.float32) * 0.02

    blocks = []
    for _ in range(2):
        blocks.append(dict(
            qkv_w=rnd((C, 3 * C)), qkv_b=rnd((3 * C,)),
            proj_w=rnd((C, C)), proj_b=rnd((C,)),
            rel_table=rnd(((2 * ws - 1) ** 2, heads)),
            fc1_w=rnd((C, hidden)), fc1_b=rnd((hidden,)),
            fc2_w=rnd((hidden, C)), fc2_b=rnd((C,)),
            ln1_g=jnp.ones((C,), jnp.float32), ln1_b=jnp.zeros((C,), jnp.float32),
            ln2_g=jnp.ones((C,), jnp.float32), ln2_b=jnp.zeros((C,), jnp.float32),
        ))
    return dict(blocks=blocks, conv_w=rnd((C, Cout)), conv_b=rnd((Cout,)))


if __name__ == "__main__":
    B, Cin, Cout, H, W = 2, 16, 32, 16, 16
    ws, heads, mlp_ratio = 4, 4, 4.0

    key = jax.random.PRNGKey(0)
    kx, kp = jax.random.split(key)
    x = jax.random.normal(kx, (B, Cin, H, W), jnp.float32)
    params = init_params(kp, Cin, Cout, heads, ws, mlp_ratio)

    # one-time precompute: dense (heads, L, L) bf16 bias+mask per block (shift 0, ws//2)
    bias_masks = (
        build_dense_bias_mask(params["blocks"][0]["rel_table"], H, W, ws, 0, heads),
        build_dense_bias_mask(params["blocks"][1]["rel_table"], H, W, ws, ws // 2, heads),
    )

    fwd = jax.jit(functools.partial(swin_t_forward, params=params,
                                    bias_masks=bias_masks, heads=heads))
    y = fwd(x)
    jax.block_until_ready(y)
    assert y.shape == (B, Cout, H, W), y.shape
    assert bool(jnp.all(jnp.isfinite(y)))
    print("KERNEL_OK")
</pallas_src>

<mosaic_0001>
module attributes {stable_mosaic.version = 11 : i64} {
  func.func @kernel(%arg0: i32, %arg1: memref<1x16x256xf32, #tpu.memory_space<vmem>>, %arg2: memref<4x256x256xbf16, #tpu.memory_space<vmem>>, %arg3: memref<48x16xbf16, #tpu.memory_space<vmem>>, %arg4: memref<48x1xf32, #tpu.memory_space<vmem>>, %arg5: memref<16x16xbf16, #tpu.memory_space<vmem>>, %arg6: memref<16x1xf32, #tpu.memory_space<vmem>>, %arg7: memref<16x1xf32, #tpu.memory_space<vmem>>, %arg8: memref<16x1xf32, #tpu.memory_space<vmem>>, %arg9: memref<64x16xbf16, #tpu.memory_space<vmem>>, %arg10: memref<64x1xf32, #tpu.memory_space<vmem>>, %arg11: memref<16x64xbf16, #tpu.memory_space<vmem>>, %arg12: memref<16x1xf32, #tpu.memory_space<vmem>>, %arg13: memref<16x1xf32, #tpu.memory_space<vmem>>, %arg14: memref<16x1xf32, #tpu.memory_space<vmem>>, %arg15: memref<4x256x256xbf16, #tpu.memory_space<vmem>>, %arg16: memref<48x16xbf16, #tpu.memory_space<vmem>>, %arg17: memref<48x1xf32, #tpu.memory_space<vmem>>, %arg18: memref<16x16xbf16, #tpu.memory_space<vmem>>, %arg19: memref<16x1xf32, #tpu.memory_space<vmem>>, %arg20: memref<16x1xf32, #tpu.memory_space<vmem>>, %arg21: memref<16x1xf32, #tpu.memory_space<vmem>>, %arg22: memref<64x16xbf16, #tpu.memory_space<vmem>>, %arg23: memref<64x1xf32, #tpu.memory_space<vmem>>, %arg24: memref<16x64xbf16, #tpu.memory_space<vmem>>, %arg25: memref<16x1xf32, #tpu.memory_space<vmem>>, %arg26: memref<16x1xf32, #tpu.memory_space<vmem>>, %arg27: memref<16x1xf32, #tpu.memory_space<vmem>>, %arg28: memref<32x16xbf16, #tpu.memory_space<vmem>>, %arg29: memref<32x1xf32, #tpu.memory_space<vmem>>, %arg30: memref<1x32x256xf32, #tpu.memory_space<vmem>>) attributes {dimension_semantics = [#tpu.dimension_semantics<parallel>], iteration_bounds = array<i64: 2>, scalar_prefetch = 0 : i64, scratch_operands = 0 : i64, tpu.core_type = #tpu.core_type<tc>, window_params = [{transform_indices = @transform_0, window_bounds = array<i64: 1, 16, 256>}, {pipeline_mode = #tpu.pipeline_mode<synchronous>, transform_indices = @transform_1, window_bounds = array<i64: 4, 256, 256>}, {pipeline_mode = #tpu.pipeline_mode<synchronous>, transform_indices = @transform_2, window_bounds = array<i64: 48, 16>}, {pipeline_mode = #tpu.pipeline_mode<synchronous>, transform_indices = @transform_3, window_bounds = array<i64: 48, 1>}, {pipeline_mode = #tpu.pipeline_mode<synchronous>, transform_indices = @transform_4, window_bounds = array<i64: 16, 16>}, {pipeline_mode = #tpu.pipeline_mode<synchronous>, transform_indices = @transform_5, window_bounds = array<i64: 16, 1>}, {pipeline_mode = #tpu.pipeline_mode<synchronous>, transform_indices = @transform_6, window_bounds = array<i64: 16, 1>}, {pipeline_mode = #tpu.pipeline_mode<synchronous>, transform_indices = @transform_7, window_bounds = array<i64: 16, 1>}, {pipeline_mode = #tpu.pipeline_mode<synchronous>, transform_indices = @transform_8, window_bounds = array<i64: 64, 16>}, {pipeline_mode = #tpu.pipeline_mode<synchronous>, transform_indices = @transform_9, window_bounds = array<i64: 64, 1>}, {pipeline_mode = #tpu.pipeline_mode<synchronous>, transform_indices = @transform_10, window_bounds = array<i64: 16, 64>}, {pipeline_mode = #tpu.pipeline_mode<synchronous>, transform_indices = @transform_11, window_bounds = array<i64: 16, 1>}, {pipeline_mode = #tpu.pipeline_mode<synchronous>, transform_indices = @transform_12, window_bounds = array<i64: 16, 1>}, {pipeline_mode = #tpu.pipeline_mode<synchronous>, transform_indices = @transform_13, window_bounds = array<i64: 16, 1>}, {pipeline_mode = #tpu.pipeline_mode<synchronous>, transform_indices = @transform_14, window_bounds = array<i64: 4, 256, 256>}, {pipeline_mode = #tpu.pipeline_mode<synchronous>, transform_indices = @transform_15, window_bounds = array<i64: 48, 16>}, {pipeline_mode = #tpu.pipeline_mode<synchronous>, transform_indices = @transform_16, window_bounds = array<i64: 48, 1>}, {pipeline_mode = #tpu.pipeline_mode<synchronous>, transform_indices = @transform_17, window_bounds = array<i64: 16, 16>}, {pipeline_mode = #tpu.pipeline_mode<synchronous>, transform_indices = @transform_18, window_bounds = array<i64: 16, 1>}, {pipeline_mode = #tpu.pipeline_mode<synchronous>, transform_indices = @transform_19, window_bounds = array<i64: 16, 1>}, {pipeline_mode = #tpu.pipeline_mode<synchronous>, transform_indices = @transform_20, window_bounds = array<i64: 16, 1>}, {pipeline_mode = #tpu.pipeline_mode<synchronous>, transform_indices = @transform_21, window_bounds = array<i64: 64, 16>}, {pipeline_mode = #tpu.pipeline_mode<synchronous>, transform_indices = @transform_22, window_bounds = array<i64: 64, 1>}, {pipeline_mode = #tpu.pipeline_mode<synchronous>, transform_indices = @transform_23, window_bounds = array<i64: 16, 64>}, {pipeline_mode = #tpu.pipeline_mode<synchronous>, transform_indices = @transform_24, window_bounds = array<i64: 16, 1>}, {pipeline_mode = #tpu.pipeline_mode<synchronous>, transform_indices = @transform_25, window_bounds = array<i64: 16, 1>}, {pipeline_mode = #tpu.pipeline_mode<synchronous>, transform_indices = @transform_26, window_bounds = array<i64: 16, 1>}, {pipeline_mode = #tpu.pipeline_mode<synchronous>, transform_indices = @transform_27, window_bounds = array<i64: 32, 16>}, {pipeline_mode = #tpu.pipeline_mode<synchronous>, transform_indices = @transform_28, window_bounds = array<i64: 32, 1>}, {transform_indices = @transform_29, window_bounds = array<i64: 1, 32, 256>}]} {
    %cst = arith.constant 1.000000e+00 : bf16
    %0 = vector.broadcast %cst : bf16 to vector<1x256xbf16>
    %c0 = arith.constant 0 : index
    %c0_0 = arith.constant 0 : index
    %c0_1 = arith.constant 0 : index
    %1 = vector.load %arg1[%c0, %c0_0, %c0_1] : memref<1x16x256xf32, #tpu.memory_space<vmem>>, vector<1x16x256xf32>
    %2 = vector.shape_cast %1 : vector<1x16x256xf32> to vector<16x256xf32>
    %3 = arith.truncf %2 : vector<16x256xf32> to vector<16x256xbf16>
    %c0_2 = arith.constant 0 : index
    %c0_3 = arith.constant 0 : index
    %4 = vector.load %arg3[%c0_2, %c0_3] : memref<48x16xbf16, #tpu.memory_space<vmem>>, vector<48x16xbf16>
    %cst_4 = arith.constant dense<0.000000e+00> : vector<48x256xf32>
    %5 = tpu.matmul %4, %3, %cst_4 {dimension_numbers = #tpu.dot_dimension_numbers<[1], [0], [0], [1], [0, 0, 1, 1], [], []>} : vector<48x16xbf16>, vector<16x256xbf16>, vector<48x256xf32> -> vector<48x256xf32>
    %c0_5 = arith.constant 0 : index
    %c0_6 = arith.constant 0 : index
    %6 = vector.load %arg4[%c0_5, %c0_6] : memref<48x1xf32, #tpu.memory_space<vmem>>, vector<48x1xf32>
    %7 = vector.broadcast %6 : vector<48x1xf32> to vector<48x256xf32>
    %8 = arith.addf %5, %7 : vector<48x256xf32>
    %9 = vector.extract_strided_slice %8 {offsets = [0, 0], sizes = [16, 256], strides = [1, 1]} : vector<48x256xf32> to vector<16x256xf32>
    %10 = tpu.transpose %9, [1, 0] : vector<16x256xf32> -> vector<256x16xf32>
    %11 = vector.extract_strided_slice %10 {offsets = [0, 0], sizes = [256, 4], strides = [1, 1]} : vector<256x16xf32> to vector<256x4xf32>
    %12 = arith.truncf %11 : vector<256x4xf32> to vector<256x4xbf16>
    %13 = vector.extract_strided_slice %8 {offsets = [16, 0], sizes = [4, 256], strides = [1, 1]} : vector<48x256xf32> to vector<4x256xf32>
    %14 = arith.truncf %13 : vector<4x256xf32> to vector<4x256xbf16>
    %15 = vector.extract_strided_slice %8 {offsets = [32, 0], sizes = [4, 256], strides = [1, 1]} : vector<48x256xf32> to vector<4x256xf32>
    %16 = arith.truncf %15 : vector<4x256xf32> to vector<4x256xbf16>
    %cst_7 = arith.constant dense<0.000000e+00> : vector<256x256xf32>
    %17 = tpu.matmul %12, %14, %cst_7 {dimension_numbers = #tpu.dot_dimension_numbers<[1], [0], [0], [1], [0, 0, 1, 1], [], []>} : vector<256x4xbf16>, vector<4x256xbf16>, vector<256x256xf32> -> vector<256x256xf32>
    %c0_8 = arith.constant 0 : index
    %c0_9 = arith.constant 0 : index
    %c0_10 = arith.constant 0 : index
    %18 = vector.load %arg2[%c0_8, %c0_9, %c0_10] : memref<4x256x256xbf16, #tpu.memory_space<vmem>>, vector<1x256x256xbf16>
    %19 = vector.shape_cast %18 : vector<1x256x256xbf16> to vector<256x256xbf16>
    %20 = arith.extf %19 : vector<256x256xbf16> to vector<256x256xf32>
    %21 = arith.addf %17, %20 : vector<256x256xf32>
    %cst_11 = arith.constant dense<0xFF800000> : vector<256xf32>
    %22 = vector.multi_reduction <maximumf>, %21, %cst_11 [1] : vector<256x256xf32> to vector<256xf32>
    %23 = vector.shape_cast %22 : vector<256xf32> to vector<256x1xf32>
    %24 = vector.broadcast %23 : vector<256x1xf32> to vector<256x256xf32>
    %25 = arith.subf %21, %24 : vector<256x256xf32>
    %26 = math.exp %25 : vector<256x256xf32>
    %27 = arith.truncf %26 : vector<256x256xf32> to vector<256x256xbf16>
    %cst_12 = arith.constant dense<0.000000e+00> : vector<4x256xf32>
    %28 = tpu.matmul %16, %27, %cst_12 {dimension_numbers = #tpu.dot_dimension_numbers<[1], [1], [0], [0], [0, 0, 1, 0], [], []>} : vector<4x256xbf16>, vector<256x256xbf16>, vector<4x256xf32> -> vector<4x256xf32>
    %cst_13 = arith.constant dense<0.000000e+00> : vector<1x256xf32>
    %29 = tpu.matmul %0, %27, %cst_13 {dimension_numbers = #tpu.dot_dimension_numbers<[1], [1], [0], [0], [0, 0, 1, 0], [], []>} : vector<1x256xbf16>, vector<256x256xbf16>, vector<1x256xf32> -> vector<1x256xf32>
    %30 = tpu.reciprocal %29 {approx = true} : vector<1x256xf32> -> vector<1x256xf32>
    %31 = vector.broadcast %30 : vector<1x256xf32> to vector<4x256xf32>
    %32 = arith.mulf %28, %31 : vector<4x256xf32>
    %33 = vector.extract_strided_slice %10 {offsets = [0, 4], sizes = [256, 4], strides = [1, 1]} : vector<256x16xf32> to vector<256x4xf32>
    %34 = arith.truncf %33 : vector<256x4xf32> to vector<256x4xbf16>
    %35 = vector.extract_strided_slice %8 {offsets = [20, 0], sizes = [4, 256], strides = [1, 1]} : vector<48x256xf32> to vector<4x256xf32>
    %36 = arith.truncf %35 : vector<4x256xf32> to vector<4x256xbf16>
    %37 = vector.extract_strided_slice %8 {offsets = [36, 0], sizes = [4, 256], strides = [1, 1]} : vector<48x256xf32> to vector<4x256xf32>
    %38 = arith.truncf %37 : vector<4x256xf32> to vector<4x256xbf16>
    %cst_14 = arith.constant dense<0.000000e+00> : vector<256x256xf32>
    %39 = tpu.matmul %34, %36, %cst_14 {dimension_numbers = #tpu.dot_dimension_numbers<[1], [0], [0], [1], [0, 0, 1, 1], [], []>} : vector<256x4xbf16>, vector<4x256xbf16>, vector<256x256xf32> -> vector<256x256xf32>
    %c1 = arith.constant 1 : index
    %c0_15 = arith.constant 0 : index
    %c0_16 = arith.constant 0 : index
    %40 = vector.load %arg2[%c1, %c0_15, %c0_16] : memref<4x256x256xbf16, #tpu.memory_space<vmem>>, vector<1x256x256xbf16>
    %41 = vector.shape_cast %40 : vector<1x256x256xbf16> to vector<256x256xbf16>
    %42 = arith.extf %41 : vector<256x256xbf16> to vector<256x256xf32>
    %43 = arith.addf %39, %42 : vector<256x256xf32>
    %cst_17 = arith.constant dense<0xFF800000> : vector<256xf32>
    %44 = vector.multi_reduction <maximumf>, %43, %cst_17 [1] : vector<256x256xf32> to vector<256xf32>
    %45 = vector.shape_cast %44 : vector<256xf32> to vector<256x1xf32>
    %46 = vector.broadcast %45 : vector<256x1xf32> to vector<256x256xf32>
    %47 = arith.subf %43, %46 : vector<256x256xf32>
    %48 = math.exp %47 : vector<256x256xf32>
    %49 = arith.truncf %48 : vector<256x256xf32> to vector<256x256xbf16>
    %cst_18 = arith.constant dense<0.000000e+00> : vector<4x256xf32>
    %50 = tpu.matmul %38, %49, %cst_18 {dimension_numbers = #tpu.dot_dimension_numbers<[1], [1], [0], [0], [0, 0, 1, 0], [], []>} : vector<4x256xbf16>, vector<256x256xbf16>, vector<4x256xf32> -> vector<4x256xf32>
    %cst_19 = arith.constant dense<0.000000e+00> : vector<1x256xf32>
    %51 = tpu.matmul %0, %49, %cst_19 {dimension_numbers = #tpu.dot_dimension_numbers<[1], [1], [0], [0], [0, 0, 1, 0], [], []>} : vector<1x256xbf16>, vector<256x256xbf16>, vector<1x256xf32> -> vector<1x256xf32>
    %52 = tpu.reciprocal %51 {approx = true} : vector<1x256xf32> -> vector<1x256xf32>
    %53 = vector.broadcast %52 : vector<1x256xf32> to vector<4x256xf32>
    %54 = arith.mulf %50, %53 : vector<4x256xf32>
    %55 = vector.extract_strided_slice %10 {offsets = [0, 8], sizes = [256, 4], strides = [1, 1]} : vector<256x16xf32> to vector<256x4xf32>
    %56 = arith.truncf %55 : vector<256x4xf32> to vector<256x4xbf16>
    %57 = vector.extract_strided_slice %8 {offsets = [24, 0], sizes = [4, 256], strides = [1, 1]} : vector<48x256xf32> to vector<4x256xf32>
    %58 = arith.truncf %57 : vector<4x256xf32> to vector<4x256xbf16>
    %59 = vector.extract_strided_slice %8 {offsets = [40, 0], sizes = [4, 256], strides = [1, 1]} : vector<48x256xf32> to vector<4x256xf32>
    %60 = arith.truncf %59 : vector<4x256xf32> to vector<4x256xbf16>
    %cst_20 = arith.constant dense<0.000000e+00> : vector<256x256xf32>
    %61 = tpu.matmul %56, %58, %cst_20 {dimension_numbers = #tpu.dot_dimension_numbers<[1], [0], [0], [1], [0, 0, 1, 1], [], []>} : vector<256x4xbf16>, vector<4x256xbf16>, vector<256x256xf32> -> vector<256x256xf32>
    %c2 = arith.constant 2 : index
    %c0_21 = arith.constant 0 : index
    %c0_22 = arith.constant 0 : index
    %62 = vector.load %arg2[%c2, %c0_21, %c0_22] : memref<4x256x256xbf16, #tpu.memory_space<vmem>>, vector<1x256x256xbf16>
    %63 = vector.shape_cast %62 : vector<1x256x256xbf16> to vector<256x256xbf16>
    %64 = arith.extf %63 : vector<256x256xbf16> to vector<256x256xf32>
    %65 = arith.addf %61, %64 : vector<256x256xf32>
    %cst_23 = arith.constant dense<0xFF800000> : vector<256xf32>
    %66 = vector.multi_reduction <maximumf>, %65, %cst_23 [1] : vector<256x256xf32> to vector<256xf32>
    %67 = vector.shape_cast %66 : vector<256xf32> to vector<256x1xf32>
    %68 = vector.broadcast %67 : vector<256x1xf32> to vector<256x256xf32>
    %69 = arith.subf %65, %68 : vector<256x256xf32>
    %70 = math.exp %69 : vector<256x256xf32>
    %71 = arith.truncf %70 : vector<256x256xf32> to vector<256x256xbf16>
    %cst_24 = arith.constant dense<0.000000e+00> : vector<4x256xf32>
    %72 = tpu.matmul %60, %71, %cst_24 {dimension_numbers = #tpu.dot_dimension_numbers<[1], [1], [0], [0], [0, 0, 1, 0], [], []>} : vector<4x256xbf16>, vector<256x256xbf16>, vector<4x256xf32> -> vector<4x256xf32>
    %cst_25 = arith.constant dense<0.000000e+00> : vector<1x256xf32>
    %73 = tpu.matmul %0, %71, %cst_25 {dimension_numbers = #tpu.dot_dimension_numbers<[1], [1], [0], [0], [0, 0, 1, 0], [], []>} : vector<1x256xbf16>, vector<256x256xbf16>, vector<1x256xf32> -> vector<1x256xf32>
    %74 = tpu.reciprocal %73 {approx = true} : vector<1x256xf32> -> vector<1x256xf32>
    %75 = vector.broadcast %74 : vector<1x256xf32> to vector<4x256xf32>
    %76 = arith.mulf %72, %75 : vector<4x256xf32>
    %77 = vector.extract_strided_slice %10 {offsets = [0, 12], sizes = [256, 4], strides = [1, 1]} : vector<256x16xf32> to vector<256x4xf32>
    %78 = arith.truncf %77 : vector<256x4xf32> to vector<256x4xbf16>
    %79 = vector.extract_strided_slice %8 {offsets = [28, 0], sizes = [4, 256], strides = [1, 1]} : vector<48x256xf32> to vector<4x256xf32>
    %80 = arith.truncf %79 : vector<4x256xf32> to vector<4x256xbf16>
    %81 = vector.extract_strided_slice %8 {offsets = [44, 0], sizes = [4, 256], strides = [1, 1]} : vector<48x256xf32> to vector<4x256xf32>
    %82 = arith.truncf %81 : vector<4x256xf32> to vector<4x256xbf16>
    %cst_26 = arith.constant dense<0.000000e+00> : vector<256x256xf32>
    %83 = tpu.matmul %78, %80, %cst_26 {dimension_numbers = #tpu.dot_dimension_numbers<[1], [0], [0], [1], [0, 0, 1, 1], [], []>} : vector<256x4xbf16>, vector<4x256xbf16>, vector<256x256xf32> -> vector<256x256xf32>
    %c3 = arith.constant 3 : index
    %c0_27 = arith.constant 0 : index
    %c0_28 = arith.constant 0 : index
    %84 = vector.load %arg2[%c3, %c0_27, %c0_28] : memref<4x256x256xbf16, #tpu.memory_space<vmem>>, vector<1x256x256xbf16>
    %85 = vector.shape_cast %84 : vector<1x256x256xbf16> to vector<256x256xbf16>
    %86 = arith.extf %85 : vector<256x256xbf16> to vector<256x256xf32>
    %87 = arith.addf %83, %86 : vector<256x256xf32>
    %cst_29 = arith.constant dense<0xFF800000> : vector<256xf32>
    %88 = vector.multi_reduction <maximumf>, %87, %cst_29 [1] : vector<256x256xf32> to vector<256xf32>
    %89 = vector.shape_cast %88 : vector<256xf32> to vector<256x1xf32>
    %90 = vector.broadcast %89 : vector<256x1xf32> to vector<256x256xf32>
    %91 = arith.subf %87, %90 : vector<256x256xf32>
    %92 = math.exp %91 : vector<256x256xf32>
    %93 = arith.truncf %92 : vector<256x256xf32> to vector<256x256xbf16>
    %cst_30 = arith.constant dense<0.000000e+00> : vector<4x256xf32>
    %94 = tpu.matmul %82, %93, %cst_30 {dimension_numbers = #tpu.dot_dimension_numbers<[1], [1], [0], [0], [0, 0, 1, 0], [], []>} : vector<4x256xbf16>, vector<256x256xbf16>, vector<4x256xf32> -> vector<4x256xf32>
    %cst_31 = arith.constant dense<0.000000e+00> : vector<1x256xf32>
    %95 = tpu.matmul %0, %93, %cst_31 {dimension_numbers = #tpu.dot_dimension_numbers<[1], [1], [0], [0], [0, 0, 1, 0], [], []>} : vector<1x256xbf16>, vector<256x256xbf16>, vector<1x256xf32> -> vector<1x256xf32>
    %96 = tpu.reciprocal %95 {approx = true} : vector<1x256xf32> -> vector<1x256xf32>
    %97 = vector.broadcast %96 : vector<1x256xf32> to vector<4x256xf32>
    %98 = arith.mulf %94, %97 : vector<4x256xf32>
    %99 = tpu.concatenate %32, %54, %76, %98 in 0 : vector<4x256xf32>, vector<4x256xf32>, vector<4x256xf32>, vector<4x256xf32> -> vector<16x256xf32>
    %c0_32 = arith.constant 0 : index
    %c0_33 = arith.constant 0 : index
    %100 = vector.load %arg5[%c0_32, %c0_33] : memref<16x16xbf16, #tpu.memory_space<vmem>>, vector<16x16xbf16>
    %101 = arith.truncf %99 : vector<16x256xf32> to vector<16x256xbf16>
    %cst_34 = arith.constant dense<0.000000e+00> : vector<16x256xf32>
    %102 = tpu.matmul %100, %101, %cst_34 {dimension_numbers = #tpu.dot_dimension_numbers<[1], [0], [0], [1], [0, 0, 1, 1], [], []>} : vector<16x16xbf16>, vector<16x256xbf16>, vector<16x256xf32> -> vector<16x256xf32>
    %c0_35 = arith.constant 0 : index
    %c0_36 = arith.constant 0 : index
    %103 = vector.load %arg6[%c0_35, %c0_36] : memref<16x1xf32, #tpu.memory_space<vmem>>, vector<16x1xf32>
    %104 = vector.broadcast %103 : vector<16x1xf32> to vector<16x256xf32>
    %105 = arith.addf %102, %104 : vector<16x256xf32>
    %cst_37 = arith.constant dense<0.000000e+00> : vector<256xf32>
    %106 = vector.multi_reduction <add>, %105, %cst_37 [0] : vector<16x256xf32> to vector<256xf32>
    %107 = vector.shape_cast %106 : vector<256xf32> to vector<1x256xf32>
    %cst_38 = arith.constant 1.600000e+01 : f32
    %108 = vector.broadcast %cst_38 : f32 to vector<1x256xf32>
    %109 = arith.divf %107, %108 : vector<1x256xf32>
    %110 = vector.broadcast %109 : vector<1x256xf32> to vector<16x256xf32>
    %111 = arith.subf %105, %110 : vector<16x256xf32>
    %112 = arith.mulf %111, %111 : vector<16x256xf32>
    %cst_39 = arith.constant dense<0.000000e+00> : vector<256xf32>
    %113 = vector.multi_reduction <add>, %112, %cst_39 [0] : vector<16x256xf32> to vector<256xf32>
    %114 = vector.shape_cast %113 : vector<256xf32> to vector<1x256xf32>
    %cst_40 = arith.constant 1.600000e+01 : f32
    %115 = vector.broadcast %cst_40 : f32 to vector<1x256xf32>
    %116 = arith.divf %114, %115 : vector<1x256xf32>
    %117 = vector.broadcast %109 : vector<1x256xf32> to vector<16x256xf32>
    %118 = arith.subf %105, %117 : vector<16x256xf32>
    %cst_41 = arith.constant 9.99999974E-6 : f32
    %119 = vector.broadcast %cst_41 : f32 to vector<1x256xf32>
    %120 = arith.addf %116, %119 : vector<1x256xf32>
    %121 = math.rsqrt %120 : vector<1x256xf32>
    %122 = vector.broadcast %121 : vector<1x256xf32> to vector<16x256xf32>
    %123 = arith.mulf %118, %122 : vector<16x256xf32>
    %c0_42 = arith.constant 0 : index
    %c0_43 = arith.constant 0 : index
    %124 = vector.load %arg7[%c0_42, %c0_43] : memref<16x1xf32, #tpu.memory_space<vmem>>, vector<16x1xf32>
    %125 = vector.broadcast %124 : vector<16x1xf32> to vector<16x256xf32>
    %126 = arith.mulf %123, %125 : vector<16x256xf32>
    %c0_44 = arith.constant 0 : index
    %c0_45 = arith.constant 0 : index
    %127 = vector.load %arg8[%c0_44, %c0_45] : memref<16x1xf32, #tpu.memory_space<vmem>>, vector<16x1xf32>
    %128 = vector.broadcast %127 : vector<16x1xf32> to vector<16x256xf32>
    %129 = arith.addf %126, %128 : vector<16x256xf32>
    %130 = arith.addf %2, %129 : vector<16x256xf32>
    %c0_46 = arith.constant 0 : index
    %c0_47 = arith.constant 0 : index
    %131 = vector.load %arg9[%c0_46, %c0_47] : memref<64x16xbf16, #tpu.memory_space<vmem>>, vector<64x16xbf16>
    %132 = arith.truncf %130 : vector<16x256xf32> to vector<16x256xbf16>
    %cst_48 = arith.constant dense<0.000000e+00> : vector<64x256xf32>
    %133 = tpu.matmul %131, %132, %cst_48 {dimension_numbers = #tpu.dot_dimension_numbers<[1], [0], [0], [1], [0, 0, 1, 1], [], []>} : vector<64x16xbf16>, vector<16x256xbf16>, vector<64x256xf32> -> vector<64x256xf32>
    %c0_49 = arith.constant 0 : index
    %c0_50 = arith.constant 0 : index
    %134 = vector.load %arg10[%c0_49, %c0_50] : memref<64x1xf32, #tpu.memory_space<vmem>>, vector<64x1xf32>
    %135 = vector.broadcast %134 : vector<64x1xf32> to vector<64x256xf32>
    %136 = arith.addf %133, %135 : vector<64x256xf32>
    %cst_51 = arith.constant 5.000000e-01 : f32
    %137 = vector.broadcast %cst_51 : f32 to vector<64x256xf32>
    %138 = arith.mulf %137, %136 : vector<64x256xf32>
    %139 = arith.mulf %136, %136 : vector<64x256xf32>
    %140 = arith.mulf %139, %136 : vector<64x256xf32>
    %cst_52 = arith.constant 4.471500e-02 : f32
    %141 = vector.broadcast %cst_52 : f32 to vector<64x256xf32>
    %142 = arith.mulf %141, %140 : vector<64x256xf32>
    %143 = arith.addf %136, %142 : vector<64x256xf32>
    %cst_53 = arith.constant 0.797884583 : f32
    %144 = vector.broadcast %cst_53 : f32 to vector<64x256xf32>
    %145 = arith.mulf %144, %143 : vector<64x256xf32>
    %146 = math.tanh %145 : vector<64x256xf32>
    %cst_54 = arith.constant 1.000000e+00 : f32
    %147 = vector.broadcast %cst_54 : f32 to vector<64x256xf32>
    %148 = arith.addf %147, %146 : vector<64x256xf32>
    %149 = arith.mulf %138, %148 : vector<64x256xf32>
    %c0_55 = arith.constant 0 : index
    %c0_56 = arith.constant 0 : index
    %150 = vector.load %arg11[%c0_55, %c0_56] : memref<16x64xbf16, #tpu.memory_space<vmem>>, vector<16x64xbf16>
    %151 = arith.truncf %149 : vector<64x256xf32> to vector<64x256xbf16>
    %cst_57 = arith.constant dense<0.000000e+00> : vector<16x256xf32>
    %152 = tpu.matmul %150, %151, %cst_57 {dimension_numbers = #tpu.dot_dimension_numbers<[1], [0], [0], [1], [0, 0, 1, 1], [], []>} : vector<16x64xbf16>, vector<64x256xbf16>, vector<16x256xf32> -> vector<16x256xf32>
    %c0_58 = arith.constant 0 : index
    %c0_59 = arith.constant 0 : index
    %153 = vector.load %arg12[%c0_58, %c0_59] : memref<16x1xf32, #tpu.memory_space<vmem>>, vector<16x1xf32>
    %154 = vector.broadcast %153 : vector<16x1xf32> to vector<16x256xf32>
    %155 = arith.addf %152, %154 : vector<16x256xf32>
    %cst_60 = arith.constant dense<0.000000e+00> : vector<256xf32>
    %156 = vector.multi_reduction <add>, %155, %cst_60 [0] : vector<16x256xf32> to vector<256xf32>
    %157 = vector.shape_cast %156 : vector<256xf32> to vector<1x256xf32>
    %cst_61 = arith.constant 1.600000e+01 : f32
    %158 = vector.broadcast %cst_61 : f32 to vector<1x256xf32>
    %159 = arith.divf %157, %158 : vector<1x256xf32>
    %160 = vector.broadcast %159 : vector<1x256xf32> to vector<16x256xf32>
    %161 = arith.subf %155, %160 : vector<16x256xf32>
    %162 = arith.mulf %161, %161 : vector<16x256xf32>
    %cst_62 = arith.constant dense<0.000000e+00> : vector<256xf32>
    %163 = vector.multi_reduction <add>, %162, %cst_62 [0] : vector<16x256xf32> to vector<256xf32>
    %164 = vector.shape_cast %163 : vector<256xf32> to vector<1x256xf32>
    %cst_63 = arith.constant 1.600000e+01 : f32
    %165 = vector.broadcast %cst_63 : f32 to vector<1x256xf32>
    %166 = arith.divf %164, %165 : vector<1x256xf32>
    %167 = vector.broadcast %159 : vector<1x256xf32> to vector<16x256xf32>
    %168 = arith.subf %155, %167 : vector<16x256xf32>
    %cst_64 = arith.constant 9.99999974E-6 : f32
    %169 = vector.broadcast %cst_64 : f32 to vector<1x256xf32>
    %170 = arith.addf %166, %169 : vector<1x256xf32>
    %171 = math.rsqrt %170 : vector<1x256xf32>
    %172 = vector.broadcast %171 : vector<1x256xf32> to vector<16x256xf32>
    %173 = arith.mulf %168, %172 : vector<16x256xf32>
    %c0_65 = arith.constant 0 : index
    %c0_66 = arith.constant 0 : index
    %174 = vector.load %arg13[%c0_65, %c0_66] : memref<16x1xf32, #tpu.memory_space<vmem>>, vector<16x1xf32>
    %175 = vector.broadcast %174 : vector<16x1xf32> to vector<16x256xf32>
    %176 = arith.mulf %173, %175 : vector<16x256xf32>
    %c0_67 = arith.constant 0 : index
    %c0_68 = arith.constant 0 : index
    %177 = vector.load %arg14[%c0_67, %c0_68] : memref<16x1xf32, #tpu.memory_space<vmem>>, vector<16x1xf32>
    %178 = vector.broadcast %177 : vector<16x1xf32> to vector<16x256xf32>
    %179 = arith.addf %176, %178 : vector<16x256xf32>
    %180 = arith.addf %130, %179 : vector<16x256xf32>
    %181 = arith.truncf %180 : vector<16x256xf32> to vector<16x256xbf16>
    %c0_69 = arith.constant 0 : index
    %c0_70 = arith.constant 0 : index
    %182 = vector.load %arg16[%c0_69, %c0_70] : memref<48x16xbf16, #tpu.memory_space<vmem>>, vector<48x16xbf16>
    %cst_71 = arith.constant dense<0.000000e+00> : vector<48x256xf32>
    %183 = tpu.matmul %182, %181, %cst_71 {dimension_numbers = #tpu.dot_dimension_numbers<[1], [0], [0], [1], [0, 0, 1, 1], [], []>} : vector<48x16xbf16>, vector<16x256xbf16>, vector<48x256xf32> -> vector<48x256xf32>
    %c0_72 = arith.constant 0 : index
    %c0_73 = arith.constant 0 : index
    %184 = vector.load %arg17[%c0_72, %c0_73] : memref<48x1xf32, #tpu.memory_space<vmem>>, vector<48x1xf32>
    %185 = vector.broadcast %184 : vector<48x1xf32> to vector<48x256xf32>
    %186 = arith.addf %183, %185 : vector<48x256xf32>
    %187 = vector.extract_strided_slice %186 {offsets = [0, 0], sizes = [16, 256], strides = [1, 1]} : vector<48x256xf32> to vector<16x256xf32>
    %188 = tpu.transpose %187, [1, 0] : vector<16x256xf32> -> vector<256x16xf32>
    %189 = vector.extract_strided_slice %188 {offsets = [0, 0], sizes = [256, 4], strides = [1, 1]} : vector<256x16xf32> to vector<256x4xf32>
    %190 = arith.truncf %189 : vector<256x4xf32> to vector<256x4xbf16>
    %191 = vector.extract_strided_slice %186 {offsets = [16, 0], sizes = [4, 256], strides = [1, 1]} : vector<48x256xf32> to vector<4x256xf32>
    %192 = arith.truncf %191 : vector<4x256xf32> to vector<4x256xbf16>
    %193 = vector.extract_strided_slice %186 {offsets = [32, 0], sizes = [4, 256], strides = [1, 1]} : vector<48x256xf32> to vector<4x256xf32>
    %194 = arith.truncf %193 : vector<4x256xf32> to vector<4x256xbf16>
    %cst_74 = arith.constant dense<0.000000e+00> : vector<256x256xf32>
    %195 = tpu.matmul %190, %192, %cst_74 {dimension_numbers = #tpu.dot_dimension_numbers<[1], [0], [0], [1], [0, 0, 1, 1], [], []>} : vector<256x4xbf16>, vector<4x256xbf16>, vector<256x256xf32> -> vector<256x256xf32>
    %c0_75 = arith.constant 0 : index
    %c0_76 = arith.constant 0 : index
    %c0_77 = arith.constant 0 : index
    %196 = vector.load %arg15[%c0_75, %c0_76, %c0_77] : memref<4x256x256xbf16, #tpu.memory_space<vmem>>, vector<1x256x256xbf16>
    %197 = vector.shape_cast %196 : vector<1x256x256xbf16> to vector<256x256xbf16>
    %198 = arith.extf %197 : vector<256x256xbf16> to vector<256x256xf32>
    %199 = arith.addf %195, %198 : vector<256x256xf32>
    %cst_78 = arith.constant dense<0xFF800000> : vector<256xf32>
    %200 = vector.multi_reduction <maximumf>, %199, %cst_78 [1] : vector<256x256xf32> to vector<256xf32>
    %201 = vector.shape_cast %200 : vector<256xf32> to vector<256x1xf32>
    %202 = vector.broadcast %201 : vector<256x1xf32> to vector<256x256xf32>
    %203 = arith.subf %199, %202 : vector<256x256xf32>
    %204 = math.exp %203 : vector<256x256xf32>
    %205 = arith.truncf %204 : vector<256x256xf32> to vector<256x256xbf16>
    %cst_79 = arith.constant dense<0.000000e+00> : vector<4x256xf32>
    %206 = tpu.matmul %194, %205, %cst_79 {dimension_numbers = #tpu.dot_dimension_numbers<[1], [1], [0], [0], [0, 0, 1, 0], [], []>} : vector<4x256xbf16>, vector<256x256xbf16>, vector<4x256xf32> -> vector<4x256xf32>
    %cst_80 = arith.constant dense<0.000000e+00> : vector<1x256xf32>
    %207 = tpu.matmul %0, %205, %cst_80 {dimension_numbers = #tpu.dot_dimension_numbers<[1], [1], [0], [0], [0, 0, 1, 0], [], []>} : vector<1x256xbf16>, vector<256x256xbf16>, vector<1x256xf32> -> vector<1x256xf32>
    %208 = tpu.reciprocal %207 {approx = true} : vector<1x256xf32> -> vector<1x256xf32>
    %209 = vector.broadcast %208 : vector<1x256xf32> to vector<4x256xf32>
    %210 = arith.mulf %206, %209 : vector<4x256xf32>
    %211 = vector.extract_strided_slice %188 {offsets = [0, 4], sizes = [256, 4], strides = [1, 1]} : vector<256x16xf32> to vector<256x4xf32>
    %212 = arith.truncf %211 : vector<256x4xf32> to vector<256x4xbf16>
    %213 = vector.extract_strided_slice %186 {offsets = [20, 0], sizes = [4, 256], strides = [1, 1]} : vector<48x256xf32> to vector<4x256xf32>
    %214 = arith.truncf %213 : vector<4x256xf32> to vector<4x256xbf16>
    %215 = vector.extract_strided_slice %186 {offsets = [36, 0], sizes = [4, 256], strides = [1, 1]} : vector<48x256xf32> to vector<4x256xf32>
    %216 = arith.truncf %215 : vector<4x256xf32> to vector<4x256xbf16>
    %cst_81 = arith.constant dense<0.000000e+00> : vector<256x256xf32>
    %217 = tpu.matmul %212, %214, %cst_81 {dimension_numbers = #tpu.dot_dimension_numbers<[1], [0], [0], [1], [0, 0, 1, 1], [], []>} : vector<256x4xbf16>, vector<4x256xbf16>, vector<256x256xf32> -> vector<256x256xf32>
    %c1_82 = arith.constant 1 : index
    %c0_83 = arith.constant 0 : index
    %c0_84 = arith.constant 0 : index
    %218 = vector.load %arg15[%c1_82, %c0_83, %c0_84] : memref<4x256x256xbf16, #tpu.memory_space<vmem>>, vector<1x256x256xbf16>
    %219 = vector.shape_cast %218 : vector<1x256x256xbf16> to vector<256x256xbf16>
    %220 = arith.extf %219 : vector<256x256xbf16> to vector<256x256xf32>
    %221 = arith.addf %217, %220 : vector<256x256xf32>
    %cst_85 = arith.constant dense<0xFF800000> : vector<256xf32>
    %222 = vector.multi_reduction <maximumf>, %221, %cst_85 [1] : vector<256x256xf32> to vector<256xf32>
    %223 = vector.shape_cast %222 : vector<256xf32> to vector<256x1xf32>
    %224 = vector.broadcast %223 : vector<256x1xf32> to vector<256x256xf32>
    %225 = arith.subf %221, %224 : vector<256x256xf32>
    %226 = math.exp %225 : vector<256x256xf32>
    %227 = arith.truncf %226 : vector<256x256xf32> to vector<256x256xbf16>
    %cst_86 = arith.constant dense<0.000000e+00> : vector<4x256xf32>
    %228 = tpu.matmul %216, %227, %cst_86 {dimension_numbers = #tpu.dot_dimension_numbers<[1], [1], [0], [0], [0, 0, 1, 0], [], []>} : vector<4x256xbf16>, vector<256x256xbf16>, vector<4x256xf32> -> vector<4x256xf32>
    %cst_87 = arith.constant dense<0.000000e+00> : vector<1x256xf32>
    %229 = tpu.matmul %0, %227, %cst_87 {dimension_numbers = #tpu.dot_dimension_numbers<[1], [1], [0], [0], [0, 0, 1, 0], [], []>} : vector<1x256xbf16>, vector<256x256xbf16>, vector<1x256xf32> -> vector<1x256xf32>
    %230 = tpu.reciprocal %229 {approx = true} : vector<1x256xf32> -> vector<1x256xf32>
    %231 = vector.broadcast %230 : vector<1x256xf32> to vector<4x256xf32>
    %232 = arith.mulf %228, %231 : vector<4x256xf32>
    %233 = vector.extract_strided_slice %188 {offsets = [0, 8], sizes = [256, 4], strides = [1, 1]} : vector<256x16xf32> to vector<256x4xf32>
    %234 = arith.truncf %233 : vector<256x4xf32> to vector<256x4xbf16>
    %235 = vector.extract_strided_slice %186 {offsets = [24, 0], sizes = [4, 256], strides = [1, 1]} : vector<48x256xf32> to vector<4x256xf32>
    %236 = arith.truncf %235 : vector<4x256xf32> to vector<4x256xbf16>
    %237 = vector.extract_strided_slice %186 {offsets = [40, 0], sizes = [4, 256], strides = [1, 1]} : vector<48x256xf32> to vector<4x256xf32>
    %238 = arith.truncf %237 : vector<4x256xf32> to vector<4x256xbf16>
    %cst_88 = arith.constant dense<0.000000e+00> : vector<256x256xf32>
    %239 = tpu.matmul %234, %236, %cst_88 {dimension_numbers = #tpu.dot_dimension_numbers<[1], [0], [0], [1], [0, 0, 1, 1], [], []>} : vector<256x4xbf16>, vector<4x256xbf16>, vector<256x256xf32> -> vector<256x256xf32>
    %c2_89 = arith.constant 2 : index
    %c0_90 = arith.constant 0 : index
    %c0_91 = arith.constant 0 : index
    %240 = vector.load %arg15[%c2_89, %c0_90, %c0_91] : memref<4x256x256xbf16, #tpu.memory_space<vmem>>, vector<1x256x256xbf16>
    %241 = vector.shape_cast %240 : vector<1x256x256xbf16> to vector<256x256xbf16>
    %242 = arith.extf %241 : vector<256x256xbf16> to vector<256x256xf32>
    %243 = arith.addf %239, %242 : vector<256x256xf32>
    %cst_92 = arith.constant dense<0xFF800000> : vector<256xf32>
    %244 = vector.multi_reduction <maximumf>, %243, %cst_92 [1] : vector<256x256xf32> to vector<256xf32>
    %245 = vector.shape_cast %244 : vector<256xf32> to vector<256x1xf32>
    %246 = vector.broadcast %245 : vector<256x1xf32> to vector<256x256xf32>
    %247 = arith.subf %243, %246 : vector<256x256xf32>
    %248 = math.exp %247 : vector<256x256xf32>
    %249 = arith.truncf %248 : vector<256x256xf32> to vector<256x256xbf16>
    %cst_93 = arith.constant dense<0.000000e+00> : vector<4x256xf32>
    %250 = tpu.matmul %238, %249, %cst_93 {dimension_numbers = #tpu.dot_dimension_numbers<[1], [1], [0], [0], [0, 0, 1, 0], [], []>} : vector<4x256xbf16>, vector<256x256xbf16>, vector<4x256xf32> -> vector<4x256xf32>
    %cst_94 = arith.constant dense<0.000000e+00> : vector<1x256xf32>
    %251 = tpu.matmul %0, %249, %cst_94 {dimension_numbers = #tpu.dot_dimension_numbers<[1], [1], [0], [0], [0, 0, 1, 0], [], []>} : vector<1x256xbf16>, vector<256x256xbf16>, vector<1x256xf32> -> vector<1x256xf32>
    %252 = tpu.reciprocal %251 {approx = true} : vector<1x256xf32> -> vector<1x256xf32>
    %253 = vector.broadcast %252 : vector<1x256xf32> to vector<4x256xf32>
    %254 = arith.mulf %250, %253 : vector<4x256xf32>
    %255 = vector.extract_strided_slice %188 {offsets = [0, 12], sizes = [256, 4], strides = [1, 1]} : vector<256x16xf32> to vector<256x4xf32>
    %256 = arith.truncf %255 : vector<256x4xf32> to vector<256x4xbf16>
    %257 = vector.extract_strided_slice %186 {offsets = [28, 0], sizes = [4, 256], strides = [1, 1]} : vector<48x256xf32> to vector<4x256xf32>
    %258 = arith.truncf %257 : vector<4x256xf32> to vector<4x256xbf16>
    %259 = vector.extract_strided_slice %186 {offsets = [44, 0], sizes = [4, 256], strides = [1, 1]} : vector<48x256xf32> to vector<4x256xf32>
    %260 = arith.truncf %259 : vector<4x256xf32> to vector<4x256xbf16>
    %cst_95 = arith.constant dense<0.000000e+00> : vector<256x256xf32>
    %261 = tpu.matmul %256, %258, %cst_95 {dimension_numbers = #tpu.dot_dimension_numbers<[1], [0], [0], [1], [0, 0, 1, 1], [], []>} : vector<256x4xbf16>, vector<4x256xbf16>, vector<256x256xf32> -> vector<256x256xf32>
    %c3_96 = arith.constant 3 : index
    %c0_97 = arith.constant 0 : index
    %c0_98 = arith.constant 0 : index
    %262 = vector.load %arg15[%c3_96, %c0_97, %c0_98] : memref<4x256x256xbf16, #tpu.memory_space<vmem>>, vector<1x256x256xbf16>
    %263 = vector.shape_cast %262 : vector<1x256x256xbf16> to vector<256x256xbf16>
    %264 = arith.extf %263 : vector<256x256xbf16> to vector<256x256xf32>
    %265 = arith.addf %261, %264 : vector<256x256xf32>
    %cst_99 = arith.constant dense<0xFF800000> : vector<256xf32>
    %266 = vector.multi_reduction <maximumf>, %265, %cst_99 [1] : vector<256x256xf32> to vector<256xf32>
    %267 = vector.shape_cast %266 : vector<256xf32> to vector<256x1xf32>
    %268 = vector.broadcast %267 : vector<256x1xf32> to vector<256x256xf32>
    %269 = arith.subf %265, %268 : vector<256x256xf32>
    %270 = math.exp %269 : vector<256x256xf32>
    %271 = arith.truncf %270 : vector<256x256xf32> to vector<256x256xbf16>
    %cst_100 = arith.constant dense<0.000000e+00> : vector<4x256xf32>
    %272 = tpu.matmul %260, %271, %cst_100 {dimension_numbers = #tpu.dot_dimension_numbers<[1], [1], [0], [0], [0, 0, 1, 0], [], []>} : vector<4x256xbf16>, vector<256x256xbf16>, vector<4x256xf32> -> vector<4x256xf32>
    %cst_101 = arith.constant dense<0.000000e+00> : vector<1x256xf32>
    %273 = tpu.matmul %0, %271, %cst_101 {dimension_numbers = #tpu.dot_dimension_numbers<[1], [1], [0], [0], [0, 0, 1, 0], [], []>} : vector<1x256xbf16>, vector<256x256xbf16>, vector<1x256xf32> -> vector<1x256xf32>
    %274 = tpu.reciprocal %273 {approx = true} : vector<1x256xf32> -> vector<1x256xf32>
    %275 = vector.broadcast %274 : vector<1x256xf32> to vector<4x256xf32>
    %276 = arith.mulf %272, %275 : vector<4x256xf32>
    %277 = tpu.concatenate %210, %232, %254, %276 in 0 : vector<4x256xf32>, vector<4x256xf32>, vector<4x256xf32>, vector<4x256xf32> -> vector<16x256xf32>
    %c0_102 = arith.constant 0 : index
    %c0_103 = arith.constant 0 : index
    %278 = vector.load %arg18[%c0_102, %c0_103] : memref<16x16xbf16, #tpu.memory_space<vmem>>, vector<16x16xbf16>
    %279 = arith.truncf %277 : vector<16x256xf32> to vector<16x256xbf16>
    %cst_104 = arith.constant dense<0.000000e+00> : vector<16x256xf32>
    %280 = tpu.matmul %278, %279, %cst_104 {dimension_numbers = #tpu.dot_dimension_numbers<[1], [0], [0], [1], [0, 0, 1, 1], [], []>} : vector<16x16xbf16>, vector<16x256xbf16>, vector<16x256xf32> -> vector<16x256xf32>
    %c0_105 = arith.constant 0 : index
    %c0_106 = arith.constant 0 : index
    %281 = vector.load %arg19[%c0_105, %c0_106] : memref<16x1xf32, #tpu.memory_space<vmem>>, vector<16x1xf32>
    %282 = vector.broadcast %281 : vector<16x1xf32> to vector<16x256xf32>
    %283 = arith.addf %280, %282 : vector<16x256xf32>
    %cst_107 = arith.constant dense<0.000000e+00> : vector<256xf32>
    %284 = vector.multi_reduction <add>, %283, %cst_107 [0] : vector<16x256xf32> to vector<256xf32>
    %285 = vector.shape_cast %284 : vector<256xf32> to vector<1x256xf32>
    %cst_108 = arith.constant 1.600000e+01 : f32
    %286 = vector.broadcast %cst_108 : f32 to vector<1x256xf32>
    %287 = arith.divf %285, %286 : vector<1x256xf32>
    %288 = vector.broadcast %287 : vector<1x256xf32> to vector<16x256xf32>
    %289 = arith.subf %283, %288 : vector<16x256xf32>
    %290 = arith.mulf %289, %289 : vector<16x256xf32>
    %cst_109 = arith.constant dense<0.000000e+00> : vector<256xf32>
    %291 = vector.multi_reduction <add>, %290, %cst_109 [0] : vector<16x256xf32> to vector<256xf32>
    %292 = vector.shape_cast %291 : vector<256xf32> to vector<1x256xf32>
    %cst_110 = arith.constant 1.600000e+01 : f32
    %293 = vector.broadcast %cst_110 : f32 to vector<1x256xf32>
    %294 = arith.divf %292, %293 : vector<1x256xf32>
    %295 = vector.broadcast %287 : vector<1x256xf32> to vector<16x256xf32>
    %296 = arith.subf %283, %295 : vector<16x256xf32>
    %cst_111 = arith.constant 9.99999974E-6 : f32
    %297 = vector.broadcast %cst_111 : f32 to vector<1x256xf32>
    %298 = arith.addf %294, %297 : vector<1x256xf32>
    %299 = math.rsqrt %298 : vector<1x256xf32>
    %300 = vector.broadcast %299 : vector<1x256xf32> to vector<16x256xf32>
    %301 = arith.mulf %296, %300 : vector<16x256xf32>
    %c0_112 = arith.constant 0 : index
    %c0_113 = arith.constant 0 : index
    %302 = vector.load %arg20[%c0_112, %c0_113] : memref<16x1xf32, #tpu.memory_space<vmem>>, vector<16x1xf32>
    %303 = vector.broadcast %302 : vector<16x1xf32> to vector<16x256xf32>
    %304 = arith.mulf %301, %303 : vector<16x256xf32>
    %c0_114 = arith.constant 0 : index
    %c0_115 = arith.constant 0 : index
    %305 = vector.load %arg21[%c0_114, %c0_115] : memref<16x1xf32, #tpu.memory_space<vmem>>, vector<16x1xf32>
    %306 = vector.broadcast %305 : vector<16x1xf32> to vector<16x256xf32>
    %307 = arith.addf %304, %306 : vector<16x256xf32>
    %308 = arith.addf %180, %307 : vector<16x256xf32>
    %c0_116 = arith.constant 0 : index
    %c0_117 = arith.constant 0 : index
    %309 = vector.load %arg22[%c0_116, %c0_117] : memref<64x16xbf16, #tpu.memory_space<vmem>>, vector<64x16xbf16>
    %310 = arith.truncf %308 : vector<16x256xf32> to vector<16x256xbf16>
    %cst_118 = arith.constant dense<0.000000e+00> : vector<64x256xf32>
    %311 = tpu.matmul %309, %310, %cst_118 {dimension_numbers = #tpu.dot_dimension_numbers<[1], [0], [0], [1], [0, 0, 1, 1], [], []>} : vector<64x16xbf16>, vector<16x256xbf16>, vector<64x256xf32> -> vector<64x256xf32>
    %c0_119 = arith.constant 0 : index
    %c0_120 = arith.constant 0 : index
    %312 = vector.load %arg23[%c0_119, %c0_120] : memref<64x1xf32, #tpu.memory_space<vmem>>, vector<64x1xf32>
    %313 = vector.broadcast %312 : vector<64x1xf32> to vector<64x256xf32>
    %314 = arith.addf %311, %313 : vector<64x256xf32>
    %cst_121 = arith.constant 5.000000e-01 : f32
    %315 = vector.broadcast %cst_121 : f32 to vector<64x256xf32>
    %316 = arith.mulf %315, %314 : vector<64x256xf32>
    %317 = arith.mulf %314, %314 : vector<64x256xf32>
    %318 = arith.mulf %317, %314 : vector<64x256xf32>
    %cst_122 = arith.constant 4.471500e-02 : f32
    %319 = vector.broadcast %cst_122 : f32 to vector<64x256xf32>
    %320 = arith.mulf %319, %318 : vector<64x256xf32>
    %321 = arith.addf %314, %320 : vector<64x256xf32>
    %cst_123 = arith.constant 0.797884583 : f32
    %322 = vector.broadcast %cst_123 : f32 to vector<64x256xf32>
    %323 = arith.mulf %322, %321 : vector<64x256xf32>
    %324 = math.tanh %323 : vector<64x256xf32>
    %cst_124 = arith.constant 1.000000e+00 : f32
    %325 = vector.broadcast %cst_124 : f32 to vector<64x256xf32>
    %326 = arith.addf %325, %324 : vector<64x256xf32>
    %327 = arith.mulf %316, %326 : vector<64x256xf32>
    %c0_125 = arith.constant 0 : index
    %c0_126 = arith.constant 0 : index
    %328 = vector.load %arg24[%c0_125, %c0_126] : memref<16x64xbf16, #tpu.memory_space<vmem>>, vector<16x64xbf16>
    %329 = arith.truncf %327 : vector<64x256xf32> to vector<64x256xbf16>
    %cst_127 = arith.constant dense<0.000000e+00> : vector<16x256xf32>
    %330 = tpu.matmul %328, %329, %cst_127 {dimension_numbers = #tpu.dot_dimension_numbers<[1], [0], [0], [1], [0, 0, 1, 1], [], []>} : vector<16x64xbf16>, vector<64x256xbf16>, vector<16x256xf32> -> vector<16x256xf32>
    %c0_128 = arith.constant 0 : index
    %c0_129 = arith.constant 0 : index
    %331 = vector.load %arg25[%c0_128, %c0_129] : memref<16x1xf32, #tpu.memory_space<vmem>>, vector<16x1xf32>
    %332 = vector.broadcast %331 : vector<16x1xf32> to vector<16x256xf32>
    %333 = arith.addf %330, %332 : vector<16x256xf32>
    %cst_130 = arith.constant dense<0.000000e+00> : vector<256xf32>
    %334 = vector.multi_reduction <add>, %333, %cst_130 [0] : vector<16x256xf32> to vector<256xf32>
    %335 = vector.shape_cast %334 : vector<256xf32> to vector<1x256xf32>
    %cst_131 = arith.constant 1.600000e+01 : f32
    %336 = vector.broadcast %cst_131 : f32 to vector<1x256xf32>
    %337 = arith.divf %335, %336 : vector<1x256xf32>
    %338 = vector.broadcast %337 : vector<1x256xf32> to vector<16x256xf32>
    %339 = arith.subf %333, %338 : vector<16x256xf32>
    %340 = arith.mulf %339, %339 : vector<16x256xf32>
    %cst_132 = arith.constant dense<0.000000e+00> : vector<256xf32>
    %341 = vector.multi_reduction <add>, %340, %cst_132 [0] : vector<16x256xf32> to vector<256xf32>
    %342 = vector.shape_cast %341 : vector<256xf32> to vector<1x256xf32>
    %cst_133 = arith.constant 1.600000e+01 : f32
    %343 = vector.broadcast %cst_133 : f32 to vector<1x256xf32>
    %344 = arith.divf %342, %343 : vector<1x256xf32>
    %345 = vector.broadcast %337 : vector<1x256xf32> to vector<16x256xf32>
    %346 = arith.subf %333, %345 : vector<16x256xf32>
    %cst_134 = arith.constant 9.99999974E-6 : f32
    %347 = vector.broadcast %cst_134 : f32 to vector<1x256xf32>
    %348 = arith.addf %344, %347 : vector<1x256xf32>
    %349 = math.rsqrt %348 : vector<1x256xf32>
    %350 = vector.broadcast %349 : vector<1x256xf32> to vector<16x256xf32>
    %351 = arith.mulf %346, %350 : vector<16x256xf32>
    %c0_135 = arith.constant 0 : index
    %c0_136 = arith.constant 0 : index
    %352 = vector.load %arg26[%c0_135, %c0_136] : memref<16x1xf32, #tpu.memory_space<vmem>>, vector<16x1xf32>
    %353 = vector.broadcast %352 : vector<16x1xf32> to vector<16x256xf32>
    %354 = arith.mulf %351, %353 : vector<16x256xf32>
    %c0_137 = arith.constant 0 : index
    %c0_138 = arith.constant 0 : index
    %355 = vector.load %arg27[%c0_137, %c0_138] : memref<16x1xf32, #tpu.memory_space<vmem>>, vector<16x1xf32>
    %356 = vector.broadcast %355 : vector<16x1xf32> to vector<16x256xf32>
    %357 = arith.addf %354, %356 : vector<16x256xf32>
    %358 = arith.addf %308, %357 : vector<16x256xf32>
    %c0_139 = arith.constant 0 : index
    %c0_140 = arith.constant 0 : index
    %359 = vector.load %arg28[%c0_139, %c0_140] : memref<32x16xbf16, #tpu.memory_space<vmem>>, vector<32x16xbf16>
    %360 = arith.truncf %358 : vector<16x256xf32> to vector<16x256xbf16>
    %cst_141 = arith.constant dense<0.000000e+00> : vector<32x256xf32>
    %361 = tpu.matmul %359, %360, %cst_141 {dimension_numbers = #tpu.dot_dimension_numbers<[1], [0], [0], [1], [0, 0, 1, 1], [], []>} : vector<32x16xbf16>, vector<16x256xbf16>, vector<32x256xf32> -> vector<32x256xf32>
    %c0_142 = arith.constant 0 : index
    %c0_143 = arith.constant 0 : index
    %362 = vector.load %arg29[%c0_142, %c0_143] : memref<32x1xf32, #tpu.memory_space<vmem>>, vector<32x1xf32>
    %363 = vector.broadcast %362 : vector<32x1xf32> to vector<32x256xf32>
    %364 = arith.addf %361, %363 : vector<32x256xf32>
    %c0_144 = arith.constant 0 : index
    %c0_145 = arith.constant 0 : index
    %c0_146 = arith.constant 0 : index
    %365 = vector.load %arg30[%c0_144, %c0_145, %c0_146] : memref<1x32x256xf32, #tpu.memory_space<vmem>>, vector<1x32x256xf32>
    %366 = vector.shape_cast %365 : vector<1x32x256xf32> to vector<32x256xf32>
    %367 = vector.shape_cast %364 : vector<32x256xf32> to vector<1x32x256xf32>
    tpu.vector_store %arg30[%c0_144, %c0_145, %c0_146], %367 {strides = array<i32>} : memref<1x32x256xf32, #tpu.memory_space<vmem>>, vector<1x32x256xf32>,
    return
  }
  func.func @transform_0(%arg0: i32) -> (i32, i32, i32) {
    %c0_i32 = arith.constant 0 : i32
    %c0_i32_0 = arith.constant 0 : i32
    %c0_i32_1 = arith.constant 0 : i32
    return %arg0, %c0_i32, %c0_i32_0 : i32, i32, i32
  }
  func.func @transform_1(%arg0: i32) -> (i32, i32, i32) {
    %c0_i32 = arith.constant 0 : i32
    %c0_i32_0 = arith.constant 0 : i32
    %c0_i32_1 = arith.constant 0 : i32
    %c0_i32_2 = arith.constant 0 : i32
    return %c0_i32, %c0_i32_0, %c0_i32_1 : i32, i32, i32
  }
  func.func @transform_2(%arg0: i32) -> (i32, i32) {
    %c0_i32 = arith.constant 0 : i32
    %c0_i32_0 = arith.constant 0 : i32
    %c0_i32_1 = arith.constant 0 : i32
    return %c0_i32, %c0_i32_0 : i32, i32
  }
  func.func @transform_3(%arg0: i32) -> (i32, i32) {
    %c0_i32 = arith.constant 0 : i32
    %c0_i32_0 = arith.constant 0 : i32
    %c0_i32_1 = arith.constant 0 : i32
    return %c0_i32, %c0_i32_0 : i32, i32
  }
  func.func @transform_4(%arg0: i32) -> (i32, i32) {
    %c0_i32 = arith.constant 0 : i32
    %c0_i32_0 = arith.constant 0 : i32
    %c0_i32_1 = arith.constant 0 : i32
    return %c0_i32, %c0_i32_0 : i32, i32
  }
  func.func @transform_5(%arg0: i32) -> (i32, i32) {
    %c0_i32 = arith.constant 0 : i32
    %c0_i32_0 = arith.constant 0 : i32
    %c0_i32_1 = arith.constant 0 : i32
    return %c0_i32, %c0_i32_0 : i32, i32
  }
  func.func @transform_6(%arg0: i32) -> (i32, i32) {
    %c0_i32 = arith.constant 0 : i32
    %c0_i32_0 = arith.constant 0 : i32
    %c0_i32_1 = arith.constant 0 : i32
    return %c0_i32, %c0_i32_0 : i32, i32
  }
  func.func @transform_7(%arg0: i32) -> (i32, i32) {
    %c0_i32 = arith.constant 0 : i32
    %c0_i32_0 = arith.constant 0 : i32
    %c0_i32_1 = arith.constant 0 : i32
    return %c0_i32, %c0_i32_0 : i32, i32
  }
  func.func @transform_8(%arg0: i32) -> (i32, i32) {
    %c0_i32 = arith.constant 0 : i32
    %c0_i32_0 = arith.constant 0 : i32
    %c0_i32_1 = arith.constant 0 : i32
    return %c0_i32, %c0_i32_0 : i32, i32
  }
  func.func @transform_9(%arg0: i32) -> (i32, i32) {
    %c0_i32 = arith.constant 0 : i32
    %c0_i32_0 = arith.constant 0 : i32
    %c0_i32_1 = arith.constant 0 : i32
    return %c0_i32, %c0_i32_0 : i32, i32
  }
  func.func @transform_10(%arg0: i32) -> (i32, i32) {
    %c0_i32 = arith.constant 0 : i32
    %c0_i32_0 = arith.constant 0 : i32
    %c0_i32_1 = arith.constant 0 : i32
    return %c0_i32, %c0_i32_0 : i32, i32
  }
  func.func @transform_11(%arg0: i32) -> (i32, i32) {
    %c0_i32 = arith.constant 0 : i32
    %c0_i32_0 = arith.constant 0 : i32
    %c0_i32_1 = arith.constant 0 : i32
    return %c0_i32, %c0_i32_0 : i32, i32
  }
  func.func @transform_12(%arg0: i32) -> (i32, i32) {
    %c0_i32 = arith.constant 0 : i32
    %c0_i32_0 = arith.constant 0 : i32
    %c0_i32_1 = arith.constant 0 : i32
    return %c0_i32, %c0_i32_0 : i32, i32
  }
  func.func @transform_13(%arg0: i32) -> (i32, i32) {
    %c0_i32 = arith.constant 0 : i32
    %c0_i32_0 = arith.constant 0 : i32
    %c0_i32_1 = arith.constant 0 : i32
    return %c0_i32, %c0_i32_0 : i32, i32
  }
  func.func @transform_14(%arg0: i32) -> (i32, i32, i32) {
    %c0_i32 = arith.constant 0 : i32
    %c0_i32_0 = arith.constant 0 : i32
    %c0_i32_1 = arith.constant 0 : i32
    %c0_i32_2 = arith.constant 0 : i32
    return %c0_i32, %c0_i32_0, %c0_i32_1 : i32, i32, i32
  }
  func.func @transform_15(%arg0: i32) -> (i32, i32) {
    %c0_i32 = arith.constant 0 : i32
    %c0_i32_0 = arith.constant 0 : i32
    %c0_i32_1 = arith.constant 0 : i32
    return %c0_i32, %c0_i32_0 : i32, i32
  }
  func.func @transform_16(%arg0: i32) -> (i32, i32) {
    %c0_i32 = arith.constant 0 : i32
    %c0_i32_0 = arith.constant 0 : i32
    %c0_i32_1 = arith.constant 0 : i32
    return %c0_i32, %c0_i32_0 : i32, i32
  }
  func.func @transform_17(%arg0: i32) -> (i32, i32) {
    %c0_i32 = arith.constant 0 : i32
    %c0_i32_0 = arith.constant 0 : i32
    %c0_i32_1 = arith.constant 0 : i32
    return %c0_i32, %c0_i32_0 : i32, i32
  }
  func.func @transform_18(%arg0: i32) -> (i32, i32) {
    %c0_i32 = arith.constant 0 : i32
    %c0_i32_0 = arith.constant 0 : i32
    %c0_i32_1 = arith.constant 0 : i32
    return %c0_i32, %c0_i32_0 : i32, i32
  }
  func.func @transform_19(%arg0: i32) -> (i32, i32) {
    %c0_i32 = arith.constant 0 : i32
    %c0_i32_0 = arith.constant 0 : i32
    %c0_i32_1 = arith.constant 0 : i32
    return %c0_i32, %c0_i32_0 : i32, i32
  }
  func.func @transform_20(%arg0: i32) -> (i32, i32) {
    %c0_i32 = arith.constant 0 : i32
    %c0_i32_0 = arith.constant 0 : i32
    %c0_i32_1 = arith.constant 0 : i32
    return %c0_i32, %c0_i32_0 : i32, i32
  }
  func.func @transform_21(%arg0: i32) -> (i32, i32) {
    %c0_i32 = arith.constant 0 : i32
    %c0_i32_0 = arith.constant 0 : i32
    %c0_i32_1 = arith.constant 0 : i32
    return %c0_i32, %c0_i32_0 : i32, i32
  }
  func.func @transform_22(%arg0: i32) -> (i32, i32) {
    %c0_i32 = arith.constant 0 : i32
    %c0_i32_0 = arith.constant 0 : i32
    %c0_i32_1 = arith.constant 0 : i32
    return %c0_i32, %c0_i32_0 : i32, i32
  }
  func.func @transform_23(%arg0: i32) -> (i32, i32) {
    %c0_i32 = arith.constant 0 : i32
    %c0_i32_0 = arith.constant 0 : i32
    %c0_i32_1 = arith.constant 0 : i32
    return %c0_i32, %c0_i32_0 : i32, i32
  }
  func.func @transform_24(%arg0: i32) -> (i32, i32) {
    %c0_i32 = arith.constant 0 : i32
    %c0_i32_0 = arith.constant 0 : i32
    %c0_i32_1 = arith.constant 0 : i32
    return %c0_i32, %c0_i32_0 : i32, i32
  }
  func.func @transform_25(%arg0: i32) -> (i32, i32) {
    %c0_i32 = arith.constant 0 : i32
    %c0_i32_0 = arith.constant 0 : i32
    %c0_i32_1 = arith.constant 0 : i32
    return %c0_i32, %c0_i32_0 : i32, i32
  }
  func.func @transform_26(%arg0: i32) -> (i32, i32) {
    %c0_i32 = arith.constant 0 : i32
    %c0_i32_0 = arith.constant 0 : i32
    %c0_i32_1 = arith.constant 0 : i32
    return %c0_i32, %c0_i32_0 : i32, i32
  }
  func.func @transform_27(%arg0: i32) -> (i32, i32) {
    %c0_i32 = arith.constant 0 : i32
    %c0_i32_0 = arith.constant 0 : i32
    %c0_i32_1 = arith.constant 0 : i32
    return %c0_i32, %c0_i32_0 : i32, i32
  }
  func.func @transform_28(%arg0: i32) -> (i32, i32) {
    %c0_i32 = arith.constant 0 : i32
    %c0_i32_0 = arith.constant 0 : i32
    %c0_i32_1 = arith.constant 0 : i32
    return %c0_i32, %c0_i32_0 : i32, i32
  }
  func.func @transform_29(%arg0: i32) -> (i32, i32, i32) {
    %c0_i32 = arith.constant 0 : i32
    %c0_i32_0 = arith.constant 0 : i32
    %c0_i32_1 = arith.constant 0 : i32
    return %arg0, %c0_i32, %c0_i32_0 : i32, i32, i32
  }
}

</mosaic_0001>

<llo_original>
// kernel: swin_t_forward.1
$region0: #{swin_t_forward.1}
  #allocation0 [shape = 'u32[]', space=smem, size = 0x4, offset = 0x4, fixed_abs, tag = 'smem constant byte address 0x4 - core index']
  #allocation1 [shape = 'u32[144,128]{1,0:T(1,128)}', space=vmem, size = 0x12000, scoped, tag = 'internal scratch']
  %s0 = inlined_call_operand.smem [shape: u32[30], index: -1, kind: input, shape index: {}]
  %s1 = sld [smem:[%s0]]
  %s2 = scalar_lea.smem %s0, 1
  %s3 = sld [smem:[%s2]]
  %s4 = scalar_lea.smem %s0, 2
  %s5 = sld [smem:[%s4]]
  %s6 = scalar_lea.smem %s0, 3
  %s7 = sld [smem:[%s6]]
  %s8 = scalar_lea.smem %s0, 4
  %s9 = sld [smem:[%s8]]
  %s10 = scalar_lea.smem %s0, 5
  %s11 = sld [smem:[%s10]]
  %s12 = scalar_lea.smem %s0, 6
  %s13 = sld [smem:[%s12]]
  %s14 = scalar_lea.smem %s0, 7
  %s15 = sld [smem:[%s14]]
  %s16 = scalar_lea.smem %s0, 8
  %s17 = sld [smem:[%s16]]
  %s18 = scalar_lea.smem %s0, 9
  %s19 = sld [smem:[%s18]]
  %s20 = scalar_lea.smem %s0, 10
  %s21 = sld [smem:[%s20]]
  %s22 = scalar_lea.smem %s0, 11
  %s23 = sld [smem:[%s22]]
  %s24 = scalar_lea.smem %s0, 12
  %s25 = sld [smem:[%s24]]
  %s26 = scalar_lea.smem %s0, 13
  %s27 = sld [smem:[%s26]]
  %s28 = scalar_lea.smem %s0, 14
  %s29 = sld [smem:[%s28]]
  %s30 = scalar_lea.smem %s0, 15
  %s31 = sld [smem:[%s30]]
  %s32 = scalar_lea.smem %s0, 16
  %s33 = sld [smem:[%s32]]
  %s34 = scalar_lea.smem %s0, 17
  %s35 = sld [smem:[%s34]]
  %s36 = scalar_lea.smem %s0, 18
  %s37 = sld [smem:[%s36]]
  %s38 = scalar_lea.smem %s0, 19
  %s39 = sld [smem:[%s38]]
  %s40 = scalar_lea.smem %s0, 20
  %s41 = sld [smem:[%s40]]
  %s42 = scalar_lea.smem %s0, 21
  %s43 = sld [smem:[%s42]]
  %s44 = scalar_lea.smem %s0, 22
  %s45 = sld [smem:[%s44]]
  %s46 = scalar_lea.smem %s0, 23
  %s47 = sld [smem:[%s46]]
  %s48 = scalar_lea.smem %s0, 24
  %s49 = sld [smem:[%s48]]
  %s50 = scalar_lea.smem %s0, 25
  %s51 = sld [smem:[%s50]]
  %s52 = scalar_lea.smem %s0, 26
  %s53 = sld [smem:[%s52]]
  %s54 = scalar_lea.smem %s0, 27
  %s55 = sld [smem:[%s54]]
  %s56 = scalar_lea.smem %s0, 28
  %s57 = sld [smem:[%s56]]
  %s58 = scalar_lea.smem %s0, 29
  %s59 = sld [smem:[%s58]]
  %s60 = sld [smem:[#allocation0]]
  $region149: #{swin_t_forward.1} parent=0
    _
  %s62 = ssub.s32 1, %s60
  %s63 = scalar_select 0, %s62, %s60
  loop: start=0, step=1, limit=4
  $region2: #{swin_t_forward.1} parent=0 // loop_pre_header
    _
  $region3: #{swin_t_forward.1} parent=0 // loop_header
    %s65 = sphi 0, %s69
    %p66 = scmp.ge.s32.totalorder %s65, 4
    %s75 = sphi 0, %s77
    %s78 = sphi 0, %s75
    %s79 = sphi 0, %s78
    %s95 = sphi 0, %s79
    %s99 = sphi 0, %s99
    %s101 = sphi 0, %s99
    %s102 = sphi 0, %s101
    %s116 = sphi 0, %s102
    %s120 = sphi 0, %s120
    %s122 = sphi 0, %s120
    %s123 = sphi 0, %s122
    %s137 = sphi 0, %s123
    %s141 = sphi 0, %s141
    %s143 = sphi 0, %s141
    %s144 = sphi 0, %s143
    %s158 = sphi 0, %s144
    %s162 = sphi 0, %s162
    %s164 = sphi 0, %s162
    %s165 = sphi 0, %s164
    %s179 = sphi 0, %s165
    %s183 = sphi 0, %s183
    %s185 = sphi 0, %s183
    %s186 = sphi 0, %s185
    %s200 = sphi 0, %s186
    %s204 = sphi 0, %s204
    %s206 = sphi 0, %s204
    %s207 = sphi 0, %s206
    %s221 = sphi 0, %s207
    %s225 = sphi 0, %s225
    %s227 = sphi 0, %s225
    %s228 = sphi 0, %s227
    %s242 = sphi 0, %s228
    %s246 = sphi 0, %s246
    %s248 = sphi 0, %s246
    %s249 = sphi 0, %s248
    %s263 = sphi 0, %s249
    %s267 = sphi 0, %s267
    %s269 = sphi 0, %s267
    %s270 = sphi 0, %s269
    %s284 = sphi 0, %s270
    %s288 = sphi 0, %s288
    %s290 = sphi 0, %s288
    %s291 = sphi 0, %s290
    %s305 = sphi 0, %s291
    %s309 = sphi 0, %s309
    %s311 = sphi 0, %s309
    %s312 = sphi 0, %s311
    %s326 = sphi 0, %s312
    %s330 = sphi 0, %s330
    %s332 = sphi 0, %s330
    %s333 = sphi 0, %s332
    %s347 = sphi 0, %s333
    %s351 = sphi 0, %s351
    %s353 = sphi 0, %s351
    %s354 = sphi 0, %s353
    %s368 = sphi 0, %s354
    %s372 = sphi 0, %s372
    %s374 = sphi 0, %s372
    %s375 = sphi 0, %s374
    %s389 = sphi 0, %s375
    %s393 = sphi 0, %s393
    %s395 = sphi 0, %s393
    %s396 = sphi 0, %s395
    %s410 = sphi 0, %s396
    %s414 = sphi 0, %s414
    %s416 = sphi 0, %s414
    %s417 = sphi 0, %s416
    %s431 = sphi 0, %s417
    %s435 = sphi 0, %s435
    %s437 = sphi 0, %s435
    %s438 = sphi 0, %s437
    %s452 = sphi 0, %s438
    %s456 = sphi 0, %s456
    %s458 = sphi 0, %s456
    %s459 = sphi 0, %s458
    %s473 = sphi 0, %s459
    %s477 = sphi 0, %s477
    %s479 = sphi 0, %s477
    %s480 = sphi 0, %s479
    %s494 = sphi 0, %s480
    %s498 = sphi 0, %s498
    %s500 = sphi 0, %s498
    %s501 = sphi 0, %s500
    %s515 = sphi 0, %s501
    %s519 = sphi 0, %s519
    %s521 = sphi 0, %s519
    %s522 = sphi 0, %s521
    %s536 = sphi 0, %s522
    %s540 = sphi 0, %s540
    %s542 = sphi 0, %s540
    %s543 = sphi 0, %s542
    %s557 = sphi 0, %s543
    %s561 = sphi 0, %s561
    %s563 = sphi 0, %s561
    %s564 = sphi 0, %s563
    %s578 = sphi 0, %s564
    %s582 = sphi 0, %s582
    %s584 = sphi 0, %s582
    %s585 = sphi 0, %s584
    %s599 = sphi 0, %s585
    %s603 = sphi 0, %s603
    %s605 = sphi 0, %s603
    %s606 = sphi 0, %s605
    %s620 = sphi 0, %s606
    %s624 = sphi 0, %s624
    %s626 = sphi 0, %s624
    %s627 = sphi 0, %s626
    %s641 = sphi 0, %s627
    %s645 = sphi 0, %s645
    %s647 = sphi 0, %s645
    %s648 = sphi 0, %s647
    %s662 = sphi 0, %s648
    %s666 = sphi 0, %s666
    %s668 = sphi 0, %s666
    %s669 = sphi 0, %s668
    %s683 = sphi 0, %s669
    %s689 = sphi 0, %s691
    %s692 = sphi 0, %s689
    %s693 = sphi 0, %s692
    %s709 = sphi 0, %s693
  $region4: #{swin_t_forward.1} parent=0 // loop_header_branch
    %68 = sbr.rel (%p66) target = $region8
  $region5: #{swin_t_forward.1} parent=0 // loop_body
    %s70 = ssub.s32 %s65, 1
    %s71 = ssub.s32 %s65, 2
    %s72 = sadd.s32 %s65, 1
    %s73 = ssub.s32 %s65, %s72
    %p74 = scmp.eq.s32.totalorder %s73, 0
    %s76 = sadd.s32 %s75, 1
    %s77 = scalar_select %p74, %s75, %s76
    %p80 = pneg %p74
    %p81 = scmp.eq.s32.totalorder %s65, 1
    %p82 = por %p80, %p81
    %p83 = scmp.ne.s32.totalorder %s75, %s78
    %p84 = scmp.eq.s32.totalorder %s65, 0
    %p85 = por %p83, %p84
    %p86 = scmp.ne.s32.totalorder %s75, %s78
    %p87 = scmp.eq.s32.totalorder %s70, 1
    %p88 = por %p86, %p87
    %p89 = scmp.ne.s32.totalorder %s78, %s79
    %p90 = scmp.eq.s32.totalorder %s70, 0
    %p91 = por %p89, %p90
    %p92 = scmp.ne.s32.totalorder %s78, %s79
    %p93 = scmp.eq.s32.totalorder %s71, 1
    %p94 = por %p92, %p93
    %p96 = scmp.ne.s32.totalorder %s79, %s95
    %p97 = scmp.eq.s32.totalorder %s71, 0
    %p98 = por %p96, %p97
    %s100 = sadd.s32 %s99, 1
    %p103 = scmp.eq.s32.totalorder %s65, 1
    %p104 = scmp.ne.s32.totalorder %s99, %s101
    %p105 = scmp.eq.s32.totalorder %s65, 0
    %p106 = por %p104, %p105
    %p107 = scmp.ne.s32.totalorder %s99, %s101
    %p108 = scmp.eq.s32.totalorder %s70, 1
    %p109 = por %p107, %p108
    %p110 = scmp.ne.s32.totalorder %s101, %s102
    %p111 = scmp.eq.s32.totalorder %s70, 0
    %p112 = por %p110, %p111
    %p113 = scmp.ne.s32.totalorder %s101, %s102
    %p114 = scmp.eq.s32.totalorder %s71, 1
    %p115 = por %p113, %p114
    %p117 = scmp.ne.s32.totalorder %s102, %s116
    %p118 = scmp.eq.s32.totalorder %s71, 0
    %p119 = por %p117, %p118
    %s121 = sadd.s32 %s120, 1
    %p124 = scmp.eq.s32.totalorder %s65, 1
    %p125 = scmp.ne.s32.totalorder %s120, %s122
    %p126 = scmp.eq.s32.totalorder %s65, 0
    %p127 = por %p125, %p126
    %p128 = scmp.ne.s32.totalorder %s120, %s122
    %p129 = scmp.eq.s32.totalorder %s70, 1
    %p130 = por %p128, %p129
    %p131 = scmp.ne.s32.totalorder %s122, %s123
    %p132 = scmp.eq.s32.totalorder %s70, 0
    %p133 = por %p131, %p132
    %p134 = scmp.ne.s32.totalorder %s122, %s123
    %p135 = scmp.eq.s32.totalorder %s71, 1
    %p136 = por %p134, %p135
    %p138 = scmp.ne.s32.totalorder %s123, %s137
    %p139 = scmp.eq.s32.totalorder %s71, 0
    %p140 = por %p138, %p139
    %s142 = sadd.s32 %s141, 1
    %p145 = scmp.eq.s32.totalorder %s65, 1
    %p146 = scmp.ne.s32.totalorder %s141, %s143
    %p147 = scmp.eq.s32.totalorder %s65, 0
    %p148 = por %p146, %p147
    %p149 = scmp.ne.s32.totalorder %s141, %s143
    %p150 = scmp.eq.s32.totalorder %s70, 1
    %p151 = por %p149, %p150
    %p152 = scmp.ne.s32.totalorder %s143, %s144
    %p153 = scmp.eq.s32.totalorder %s70, 0
    %p154 = por %p152, %p153
    %p155 = scmp.ne.s32.totalorder %s143, %s144
    %p156 = scmp.eq.s32.totalorder %s71, 1
    %p157 = por %p155, %p156
    %p159 = scmp.ne.s32.totalorder %s144, %s158
    %p160 = scmp.eq.s32.totalorder %s71, 0
    %p161 = por %p159, %p160
    %s163 = sadd.s32 %s162, 1
    %p166 = scmp.eq.s32.totalorder %s65, 1
    %p167 = scmp.ne.s32.totalorder %s162, %s164
    %p168 = scmp.eq.s32.totalorder %s65, 0
    %p169 = por %p167, %p168
    %p170 = scmp.ne.s32.totalorder %s162, %s164
    %p171 = scmp.eq.s32.totalorder %s70, 1
    %p172 = por %p170, %p171
    %p173 = scmp.ne.s32.totalorder %s164, %s165
    %p174 = scmp.eq.s32.totalorder %s70, 0
    %p175 = por %p173, %p174
    %p176 = scmp.ne.s32.totalorder %s164, %s165
    %p177 = scmp.eq.s32.totalorder %s71, 1
    %p178 = por %p176, %p177
    %p180 = scmp.ne.s32.totalorder %s165, %s179
    %p181 = scmp.eq.s32.totalorder %s71, 0
    %p182 = por %p180, %p181
    %s184 = sadd.s32 %s183, 1
    %p187 = scmp.eq.s32.totalorder %s65, 1
    %p188 = scmp.ne.s32.totalorder %s183, %s185
    %p189 = scmp.eq.s32.totalorder %s65, 0
    %p190 = por %p188, %p189
    %p191 = scmp.ne.s32.totalorder %s183, %s185
    %p192 = scmp.eq.s32.totalorder %s70, 1
    %p193 = por %p191, %p192
    %p194 = scmp.ne.s32.totalorder %s185, %s186
    %p195 = scmp.eq.s32.totalorder %s70, 0
    %p196 = por %p194, %p195
    %p197 = scmp.ne.s32.totalorder %s185, %s186
    %p198 = scmp.eq.s32.totalorder %s71, 1
    %p199 = por %p197, %p198
    %p201 = scmp.ne.s32.totalorder %s186, %s200
    %p202 = scmp.eq.s32.totalorder %s71, 0
    %p203 = por %p201, %p202
    %s205 = sadd.s32 %s204, 1
    %p208 = scmp.eq.s32.totalorder %s65, 1
    %p209 = scmp.ne.s32.totalorder %s204, %s206
    %p210 = scmp.eq.s32.totalorder %s65, 0
    %p211 = por %p209, %p210
    %p212 = scmp.ne.s32.totalorder %s204, %s206
    %p213 = scmp.eq.s32.totalorder %s70, 1
    %p214 = por %p212, %p213
    %p215 = scmp.ne.s32.totalorder %s206, %s207
    %p216 = scmp.eq.s32.totalorder %s70, 0
    %p217 = por %p215, %p216
    %p218 = scmp.ne.s32.totalorder %s206, %s207
    %p219 = scmp.eq.s32.totalorder %s71, 1
    %p220 = por %p218, %p219
    %p222 = scmp.ne.s32.totalorder %s207, %s221
    %p223 = scmp.eq.s32.totalorder %s71, 0
    %p224 = por %p222, %p223
    %s226 = sadd.s32 %s225, 1
    %p229 = scmp.eq.s32.totalorder %s65, 1
    %p230 = scmp.ne.s32.totalorder %s225, %s227
    %p231 = scmp.eq.s32.totalorder %s65, 0
    %p232 = por %p230, %p231
    %p233 = scmp.ne.s32.totalorder %s225, %s227
    %p234 = scmp.eq.s32.totalorder %s70, 1
    %p235 = por %p233, %p234
    %p236 = scmp.ne.s32.totalorder %s227, %s228
    %p237 = scmp.eq.s32.totalorder %s70, 0
    %p238 = por %p236, %p237
    %p239 = scmp.ne.s32.totalorder %s227, %s228
    %p240 = scmp.eq.s32.totalorder %s71, 1
    %p241 = por %p239, %p240
    %p243 = scmp.ne.s32.totalorder %s228, %s242
    %p244 = scmp.eq.s32.totalorder %s71, 0
    %p245 = por %p243, %p244
    %s247 = sadd.s32 %s246, 1
    %p250 = scmp.eq.s32.totalorder %s65, 1
    %p251 = scmp.ne.s32.totalorder %s246, %s248
    %p252 = scmp.eq.s32.totalorder %s65, 0
    %p253 = por %p251, %p252
    %p254 = scmp.ne.s32.totalorder %s246, %s248
    %p255 = scmp.eq.s32.totalorder %s70, 1
    %p256 = por %p254, %p255
    %p257 = scmp.ne.s32.totalorder %s248, %s249
    %p258 = scmp.eq.s32.totalorder %s70, 0
    %p259 = por %p257, %p258
    %p260 = scmp.ne.s32.totalorder %s248, %s249
    %p261 = scmp.eq.s32.totalorder %s71, 1
    %p262 = por %p260, %p261
    %p264 = scmp.ne.s32.totalorder %s249, %s263
    %p265 = scmp.eq.s32.totalorder %s71, 0
    %p266 = por %p264, %p265
    %s268 = sadd.s32 %s267, 1
    %p271 = scmp.eq.s32.totalorder %s65, 1
    %p272 = scmp.ne.s32.totalorder %s267, %s269
    %p273 = scmp.eq.s32.totalorder %s65, 0
    %p274 = por %p272, %p273
    %p275 = scmp.ne.s32.totalorder %s267, %s269
    %p276 = scmp.eq.s32.totalorder %s70, 1
    %p277 = por %p275, %p276
    %p278 = scmp.ne.s32.totalorder %s269, %s270
    %p279 = scmp.eq.s32.totalorder %s70, 0
    %p280 = por %p278, %p279
    %p281 = scmp.ne.s32.totalorder %s269, %s270
    %p282 = scmp.eq.s32.totalorder %s71, 1
    %p283 = por %p281, %p282
    %p285 = scmp.ne.s32.totalorder %s270, %s284
    %p286 = scmp.eq.s32.totalorder %s71, 0
    %p287 = por %p285, %p286
    %s289 = sadd.s32 %s288, 1
    %p292 = scmp.eq.s32.totalorder %s65, 1
    %p293 = scmp.ne.s32.totalorder %s288, %s290
    %p294 = scmp.eq.s32.totalorder %s65, 0
    %p295 = por %p293, %p294
    %p296 = scmp.ne.s32.totalorder %s288, %s290
    %p297 = scmp.eq.s32.totalorder %s70, 1
    %p298 = por %p296, %p297
    %p299 = scmp.ne.s32.totalorder %s290, %s291
    %p300 = scmp.eq.s32.totalorder %s70, 0
    %p301 = por %p299, %p300
    %p302 = scmp.ne.s32.totalorder %s290, %s291
    %p303 = scmp.eq.s32.totalorder %s71, 1
    %p304 = por %p302, %p303
    %p306 = scmp.ne.s32.totalorder %s291, %s305
    %p307 = scmp.eq.s32.totalorder %s71, 0
    %p308 = por %p306, %p307
    %s310 = sadd.s32 %s309, 1
    %p313 = scmp.eq.s32.totalorder %s65, 1
    %p314 = scmp.ne.s32.totalorder %s309, %s311
    %p315 = scmp.eq.s32.totalorder %s65, 0
    %p316 = por %p314, %p315
    %p317 = scmp.ne.s32.totalorder %s309, %s311
    %p318 = scmp.eq.s32.totalorder %s70, 1
    %p319 = por %p317, %p318
    %p320 = scmp.ne.s32.totalorder %s311, %s312
    %p321 = scmp.eq.s32.totalorder %s70, 0
    %p322 = por %p320, %p321
    %p323 = scmp.ne.s32.totalorder %s311, %s312
    %p324 = scmp.eq.s32.totalorder %s71, 1
    %p325 = por %p323, %p324
    %p327 = scmp.ne.s32.totalorder %s312, %s326
    %p328 = scmp.eq.s32.totalorder %s71, 0
    %p329 = por %p327, %p328
    %s331 = sadd.s32 %s330, 1
    %p334 = scmp.eq.s32.totalorder %s65, 1
    %p335 = scmp.ne.s32.totalorder %s330, %s332
    %p336 = scmp.eq.s32.totalorder %s65, 0
    %p337 = por %p335, %p336
    %p338 = scmp.ne.s32.totalorder %s330, %s332
    %p339 = scmp.eq.s32.totalorder %s70, 1
    %p340 = por %p338, %p339
    %p341 = scmp.ne.s32.totalorder %s332, %s333
    %p342 = scmp.eq.s32.totalorder %s70, 0
    %p343 = por %p341, %p342
    %p344 = scmp.ne.s32.totalorder %s332, %s333
    %p345 = scmp.eq.s32.totalorder %s71, 1
    %p346 = por %p344, %p345
    %p348 = scmp.ne.s32.totalorder %s333, %s347
    %p349 = scmp.eq.s32.totalorder %s71, 0
    %p350 = por %p348, %p349
    %s352 = sadd.s32 %s351, 1
    %p355 = scmp.eq.s32.totalorder %s65, 1
    %p356 = scmp.ne.s32.totalorder %s351, %s353
    %p357 = scmp.eq.s32.totalorder %s65, 0
    %p358 = por %p356, %p357
    %p359 = scmp.ne.s32.totalorder %s351, %s353
    %p360 = scmp.eq.s32.totalorder %s70, 1
    %p361 = por %p359, %p360
    %p362 = scmp.ne.s32.totalorder %s353, %s354
    %p363 = scmp.eq.s32.totalorder %s70, 0
    %p364 = por %p362, %p363
    %p365 = scmp.ne.s32.totalorder %s353, %s354
    %p366 = scmp.eq.s32.totalorder %s71, 1
    %p367 = por %p365, %p366
    %p369 = scmp.ne.s32.totalorder %s354, %s368
    %p370 = scmp.eq.s32.totalorder %s71, 0
    %p371 = por %p369, %p370
    %s373 = sadd.s32 %s372, 1
    %p376 = scmp.eq.s32.totalorder %s65, 1
    %p377 = scmp.ne.s32.totalorder %s372, %s374
    %p378 = scmp.eq.s32.totalorder %s65, 0
    %p379 = por %p377, %p378
    %p380 = scmp.ne.s32.totalorder %s372, %s374
    %p381 = scmp.eq.s32.totalorder %s70, 1
    %p382 = por %p380, %p381
    %p383 = scmp.ne.s32.totalorder %s374, %s375
    %p384 = scmp.eq.s32.totalorder %s70, 0
    %p385 = por %p383, %p384
    %p386 = scmp.ne.s32.totalorder %s374, %s375
    %p387 = scmp.eq.s32.totalorder %s71, 1
    %p388 = por %p386, %p387
    %p390 = scmp.ne.s32.totalorder %s375, %s389
    %p391 = scmp.eq.s32.totalorder %s71, 0
    %p392 = por %p390, %p391
    %s394 = sadd.s32 %s393, 1
    %p397 = scmp.eq.s32.totalorder %s65, 1
    %p398 = scmp.ne.s32.totalorder %s393, %s395
    %p399 = scmp.eq.s32.totalorder %s65, 0
    %p400 = por %p398, %p399
    %p401 = scmp.ne.s32.totalorder %s393, %s395
    %p402 = scmp.eq.s32.totalorder %s70, 1
    %p403 = por %p401, %p402
    %p404 = scmp.ne.s32.totalorder %s395, %s396
    %p405 = scmp.eq.s32.totalorder %s70, 0
    %p406 = por %p404, %p405
    %p407 = scmp.ne.s32.totalorder %s395, %s396
    %p408 = scmp.eq.s32.totalorder %s71, 1
    %p409 = por %p407, %p408
    %p411 = scmp.ne.s32.totalorder %s396, %s410
    %p412 = scmp.eq.s32.totalorder %s71, 0
    %p413 = por %p411, %p412
    %s415 = sadd.s32 %s414, 1
    %p418 = scmp.eq.s32.totalorder %s65, 1
    %p419 = scmp.ne.s32.totalorder %s414, %s416
    %p420 = scmp.eq.s32.totalorder %s65, 0
    %p421 = por %p419, %p420
    %p422 = scmp.ne.s32.totalorder %s414, %s416
    %p423 = scmp.eq.s32.totalorder %s70, 1
    %p424 = por %p422, %p423
    %p425 = scmp.ne.s32.totalorder %s416, %s417
    %p426 = scmp.eq.s32.totalorder %s70, 0
    %p427 = por %p425, %p426
    %p428 = scmp.ne.s32.totalorder %s416, %s417
    %p429 = scmp.eq.s32.totalorder %s71, 1
    %p430 = por %p428, %p429
    %p432 = scmp.ne.s32.totalorder %s417, %s431
    %p433 = scmp.eq.s32.totalorder %s71, 0
    %p434 = por %p432, %p433
    %s436 = sadd.s32 %s435, 1
    %p439 = scmp.eq.s32.totalorder %s65, 1
    %p440 = scmp.ne.s32.totalorder %s435, %s437
    %p441 = scmp.eq.s32.totalorder %s65, 0
    %p442 = por %p440, %p441
    %p443 = scmp.ne.s32.totalorder %s435, %s437
    %p444 = scmp.eq.s32.totalorder %s70, 1
    %p445 = por %p443, %p444
    %p446 = scmp.ne.s32.totalorder %s437, %s438
    %p447 = scmp.eq.s32.totalorder %s70, 0
    %p448 = por %p446, %p447
    %p449 = scmp.ne.s32.totalorder %s437, %s438
    %p450 = scmp.eq.s32.totalorder %s71, 1
    %p451 = por %p449, %p450
    %p453 = scmp.ne.s32.totalorder %s438, %s452
    %p454 = scmp.eq.s32.totalorder %s71, 0
    %p455 = por %p453, %p454
    %s457 = sadd.s32 %s456, 1
    %p460 = scmp.eq.s32.totalorder %s65, 1
    %p461 = scmp.ne.s32.totalorder %s456, %s458
    %p462 = scmp.eq.s32.totalorder %s65, 0
    %p463 = por %p461, %p462
    %p464 = scmp.ne.s32.totalorder %s456, %s458
    %p465 = scmp.eq.s32.totalorder %s70, 1
    %p466 = por %p464, %p465
    %p467 = scmp.ne.s32.totalorder %s458, %s459
    %p468 = scmp.eq.s32.totalorder %s70, 0
    %p469 = por %p467, %p468
    %p470 = scmp.ne.s32.totalorder %s458, %s459
    %p471 = scmp.eq.s32.totalorder %s71, 1
    %p472 = por %p470, %p471
    %p474 = scmp.ne.s32.totalorder %s459, %s473
    %p475 = scmp.eq.s32.totalorder %s71, 0
    %p476 = por %p474, %p475
    %s478 = sadd.s32 %s477, 1
    %p481 = scmp.eq.s32.totalorder %s65, 1
    %p482 = scmp.ne.s32.totalorder %s477, %s479
    %p483 = scmp.eq.s32.totalorder %s65, 0
    %p484 = por %p482, %p483
    %p485 = scmp.ne.s32.totalorder %s477, %s479
    %p486 = scmp.eq.s32.totalorder %s70, 1
    %p487 = por %p485, %p486
    %p488 = scmp.ne.s32.totalorder %s479, %s480
    %p489 = scmp.eq.s32.totalorder %s70, 0
    %p490 = por %p488, %p489
    %p491 = scmp.ne.s32.totalorder %s479, %s480
    %p492 = scmp.eq.s32.totalorder %s71, 1
    %p493 = por %p491, %p492
    %p495 = scmp.ne.s32.totalorder %s480, %s494
    %p496 = scmp.eq.s32.totalorder %s71, 0
    %p497 = por %p495, %p496
    %s499 = sadd.s32 %s498, 1
    %p502 = scmp.eq.s32.totalorder %s65, 1
    %p503 = scmp.ne.s32.totalorder %s498, %s500
    %p504 = scmp.eq.s32.totalorder %s65, 0
    %p505 = por %p503, %p504
    %p506 = scmp.ne.s32.totalorder %s498, %s500
    %p507 = scmp.eq.s32.totalorder %s70, 1
    %p508 = por %p506, %p507
    %p509 = scmp.ne.s32.totalorder %s500, %s501
    %p510 = scmp.eq.s32.totalorder %s70, 0
    %p511 = por %p509, %p510
    %p512 = scmp.ne.s32.totalorder %s500, %s501
    %p513 = scmp.eq.s32.totalorder %s71, 1
    %p514 = por %p512, %p513
    %p516 = scmp.ne.s32.totalorder %s501, %s515
    %p517 = scmp.eq.s32.totalorder %s71, 0
    %p518 = por %p516, %p517
    %s520 = sadd.s32 %s519, 1
    %p523 = scmp.eq.s32.totalorder %s65, 1
    %p524 = scmp.ne.s32.totalorder %s519, %s521
    %p525 = scmp.eq.s32.totalorder %s65, 0
    %p526 = por %p524, %p525
    %p527 = scmp.ne.s32.totalorder %s519, %s521
    %p528 = scmp.eq.s32.totalorder %s70, 1
    %p529 = por %p527, %p528
    %p530 = scmp.ne.s32.totalorder %s521, %s522
    %p531 = scmp.eq.s32.totalorder %s70, 0
    %p532 = por %p530, %p531
    %p533 = scmp.ne.s32.totalorder %s521, %s522
    %p534 = scmp.eq.s32.totalorder %s71, 1
    %p535 = por %p533, %p534
    %p537 = scmp.ne.s32.totalorder %s522, %s536
    %p538 = scmp.eq.s32.totalorder %s71, 0
    %p539 = por %p537, %p538
    %s541 = sadd.s32 %s540, 1
    %p544 = scmp.eq.s32.totalorder %s65, 1
    %p545 = scmp.ne.s32.totalorder %s540, %s542
    %p546 = scmp.eq.s32.totalorder %s65, 0
    %p547 = por %p545, %p546
    %p548 = scmp.ne.s32.totalorder %s540, %s542
    %p549 = scmp.eq.s32.totalorder %s70, 1
    %p550 = por %p548, %p549
    %p551 = scmp.ne.s32.totalorder %s542, %s543
    %p552 = scmp.eq.s32.totalorder %s70, 0
    %p553 = por %p551, %p552
    %p554 = scmp.ne.s32.totalorder %s542, %s543
    %p555 = scmp.eq.s32.totalorder %s71, 1
    %p556 = por %p554, %p555
    %p558 = scmp.ne.s32.totalorder %s543, %s557
    %p559 = scmp.eq.s32.totalorder %s71, 0
    %p560 = por %p558, %p559
    %s562 = sadd.s32 %s561, 1
    %p565 = scmp.eq.s32.totalorder %s65, 1
    %p566 = scmp.ne.s32.totalorder %s561, %s563
    %p567 = scmp.eq.s32.totalorder %s65, 0
    %p568 = por %p566, %p567
    %p569 = scmp.ne.s32.totalorder %s561, %s563
    %p570 = scmp.eq.s32.totalorder %s70, 1
    %p571 = por %p569, %p570
    %p572 = scmp.ne.s32.totalorder %s563, %s564
    %p573 = scmp.eq.s32.totalorder %s70, 0
    %p574 = por %p572, %p573
    %p575 = scmp.ne.s32.totalorder %s563, %s564
    %p576 = scmp.eq.s32.totalorder %s71, 1
    %p577 = por %p575, %p576
    %p579 = scmp.ne.s32.totalorder %s564, %s578
    %p580 = scmp.eq.s32.totalorder %s71, 0
    %p581 = por %p579, %p580
    %s583 = sadd.s32 %s582, 1
    %p586 = scmp.eq.s32.totalorder %s65, 1
    %p587 = scmp.ne.s32.totalorder %s582, %s584
    %p588 = scmp.eq.s32.totalorder %s65, 0
    %p589 = por %p587, %p588
    %p590 = scmp.ne.s32.totalorder %s582, %s584
    %p591 = scmp.eq.s32.totalorder %s70, 1
    %p592 = por %p590, %p591
    %p593 = scmp.ne.s32.totalorder %s584, %s585
    %p594 = scmp.eq.s32.totalorder %s70, 0
    %p595 = por %p593, %p594
    %p596 = scmp.ne.s32.totalorder %s584, %s585
    %p597 = scmp.eq.s32.totalorder %s71, 1
    %p598 = por %p596, %p597
    %p600 = scmp.ne.s32.totalorder %s585, %s599
    %p601 = scmp.eq.s32.totalorder %s71, 0
    %p602 = por %p600, %p601
    %s604 = sadd.s32 %s603, 1
    %p607 = scmp.eq.s32.totalorder %s65, 1
    %p608 = scmp.ne.s32.totalorder %s603, %s605
    %p609 = scmp.eq.s32.totalorder %s65, 0
    %p610 = por %p608, %p609
    %p611 = scmp.ne.s32.totalorder %s603, %s605
    %p612 = scmp.eq.s32.totalorder %s70, 1
    %p613 = por %p611, %p612
    %p614 = scmp.ne.s32.totalorder %s605, %s606
    %p615 = scmp.eq.s32.totalorder %s70, 0
    %p616 = por %p614, %p615
    %p617 = scmp.ne.s32.totalorder %s605, %s606
    %p618 = scmp.eq.s32.totalorder %s71, 1
    %p619 = por %p617, %p618
    %p621 = scmp.ne.s32.totalorder %s606, %s620
    %p622 = scmp.eq.s32.totalorder %s71, 0
    %p623 = por %p621, %p622
    %s625 = sadd.s32 %s624, 1
    %p628 = scmp.eq.s32.totalorder %s65, 1
    %p629 = scmp.ne.s32.totalorder %s624, %s626
    %p630 = scmp.eq.s32.totalorder %s65, 0
    %p631 = por %p629, %p630
    %p632 = scmp.ne.s32.totalorder %s624, %s626
    %p633 = scmp.eq.s32.totalorder %s70, 1
    %p634 = por %p632, %p633
    %p635 = scmp.ne.s32.totalorder %s626, %s627
    %p636 = scmp.eq.s32.totalorder %s70, 0
    %p637 = por %p635, %p636
    %p638 = scmp.ne.s32.totalorder %s626, %s627
    %p639 = scmp.eq.s32.totalorder %s71, 1
    %p640 = por %p638, %p639
    %p642 = scmp.ne.s32.totalorder %s627, %s641
    %p643 = scmp.eq.s32.totalorder %s71, 0
    %p644 = por %p642, %p643
    %s646 = sadd.s32 %s645, 1
    %p649 = scmp.eq.s32.totalorder %s65, 1
    %p650 = scmp.ne.s32.totalorder %s645, %s647
    %p651 = scmp.eq.s32.totalorder %s65, 0
    %p652 = por %p650, %p651
    %p653 = scmp.ne.s32.totalorder %s645, %s647
    %p654 = scmp.eq.s32.totalorder %s70, 1
    %p655 = por %p653, %p654
    %p656 = scmp.ne.s32.totalorder %s647, %s648
    %p657 = scmp.eq.s32.totalorder %s70, 0
    %p658 = por %p656, %p657
    %p659 = scmp.ne.s32.totalorder %s647, %s648
    %p660 = scmp.eq.s32.totalorder %s71, 1
    %p661 = por %p659, %p660
    %p663 = scmp.ne.s32.totalorder %s648, %s662
    %p664 = scmp.eq.s32.totalorder %s71, 0
    %p665 = por %p663, %p664
    %s667 = sadd.s32 %s666, 1
    %p670 = scmp.eq.s32.totalorder %s65, 1
    %p671 = scmp.ne.s32.totalorder %s666, %s668
    %p672 = scmp.eq.s32.totalorder %s65, 0
    %p673 = por %p671, %p672
    %p674 = scmp.ne.s32.totalorder %s666, %s668
    %p675 = scmp.eq.s32.totalorder %s70, 1
    %p676 = por %p674, %p675
    %p677 = scmp.ne.s32.totalorder %s668, %s669
    %p678 = scmp.eq.s32.totalorder %s70, 0
    %p679 = por %p677, %p678
    %p680 = scmp.ne.s32.totalorder %s668, %s669
    %p681 = scmp.eq.s32.totalorder %s71, 1
    %p682 = por %p680, %p681
    %p684 = scmp.ne.s32.totalorder %s669, %s683
    %p685 = scmp.eq.s32.totalorder %s71, 0
    %p686 = por %p684, %p685
    %s687 = ssub.s32 %s65, %s72
    %p688 = scmp.eq.s32.totalorder %s687, 0
    %s690 = sadd.s32 %s689, 1
    %s691 = scalar_select %p688, %s689, %s690
    %p694 = pneg %p688
    %p695 = scmp.eq.s32.totalorder %s65, 1
    %p696 = por %p694, %p695
    %p697 = scmp.ne.s32.totalorder %s689, %s692
    %p698 = scmp.eq.s32.totalorder %s65, 0
    %p699 = por %p697, %p698
    %p700 = scmp.ne.s32.totalorder %s689, %s692
    %p701 = scmp.eq.s32.totalorder %s70, 1
    %p702 = por %p700, %p701
    %p703 = scmp.ne.s32.totalorder %s692, %s693
    %p704 = scmp.eq.s32.totalorder %s70, 0
    %p705 = por %p703, %p704
    %p706 = scmp.ne.s32.totalorder %s692, %s693
    %p707 = scmp.eq.s32.totalorder %s71, 1
    %p708 = por %p706, %p707
    %p710 = scmp.ne.s32.totalorder %s693, %s709
    %p711 = scmp.eq.s32.totalorder %s71, 0
    %p712 = por %p710, %p711
    %p713 = scmp.le.s32.totalorder 1, %s65
    %p714 = scmp.lt.s32.totalorder %s65, 3
    %p715 = pnand %p713, %p714
    %p716 = pneg %p715
    // Predicated region
    $region9: #{swin_t_forward.1} parent=5 // pred_check
      _
    $region10: #{swin_t_forward.1} parent=5 // pred_check_branch
      %718 = sbr.rel (%p715) target = $region12
    $region11: #{swin_t_forward.1} parent=5 // pred_region
      %s719 = ssub.s32 %s65, 1
      // Predicated region
      $region13: #{swin_t_forward.1} parent=11 // pred_check
        %p720 = pneg %p112
      $region14: #{swin_t_forward.1} parent=11 // pred_check_branch
        %722 = sbr.rel (%p720) target = $region16
      $region15: #{swin_t_forward.1} parent=11 // pred_region
        _
      $region16: #{swin_t_forward.1} parent=11 // pred_fallthru
        _
      // Predicated region
      $region17: #{swin_t_forward.1} parent=11 // pred_check
        %p723 = pneg %p133
      $region18: #{swin_t_forward.1} parent=11 // pred_check_branch
        %725 = sbr.rel (%p723) target = $region20
      $region19: #{swin_t_forward.1} parent=11 // pred_region
        _
      $region20: #{swin_t_forward.1} parent=11 // pred_fallthru
        _
      // Predicated region
      $region21: #{swin_t_forward.1} parent=11 // pred_check
        %p726 = pneg %p154
      $region22: #{swin_t_forward.1} parent=11 // pred_check_branch
        %728 = sbr.rel (%p726) target = $region24
      $region23: #{swin_t_forward.1} parent=11 // pred_region
        _
      $region24: #{swin_t_forward.1} parent=11 // pred_fallthru
        _
      // Predicated region
      $region25: #{swin_t_forward.1} parent=11 // pred_check
        %p729 = pneg %p175
      $region26: #{swin_t_forward.1} parent=11 // pred_check_branch
        %731 = sbr.rel (%p729) target = $region28
      $region27: #{swin_t_forward.1} parent=11 // pred_region
        _
      $region28: #{swin_t_forward.1} parent=11 // pred_fallthru
        _
      // Predicated region
      $region29: #{swin_t_forward.1} parent=11 // pred_check
        %p732 = pneg %p196
      $region30: #{swin_t_forward.1} parent=11 // pred_check_branch
        %734 = sbr.rel (%p732) target = $region32
      $region31: #{swin_t_forward.1} parent=11 // pred_region
        _
      $region32: #{swin_t_forward.1} parent=11 // pred_fallthru
        _
      // Predicated region
      $region33: #{swin_t_forward.1} parent=11 // pred_check
        %p735 = pneg %p217
      $region34: #{swin_t_forward.1} parent=11 // pred_check_branch
        %737 = sbr.rel (%p735) target = $region36
      $region35: #{swin_t_forward.1} parent=11 // pred_region
        _
      $region36: #{swin_t_forward.1} parent=11 // pred_fallthru
        _
      // Predicated region
      $region37: #{swin_t_forward.1} parent=11 // pred_check
        %p738 = pneg %p238
      $region38: #{swin_t_forward.1} parent=11 // pred_check_branch
        %740 = sbr.rel (%p738) target = $region40
      $region39: #{swin_t_forward.1} parent=11 // pred_region
        _
      $region40: #{swin_t_forward.1} parent=11 // pred_fallthru
        _
      // Predicated region
      $region41: #{swin_t_forward.1} parent=11 // pred_check
        %p741 = pneg %p259
      $region42: #{swin_t_forward.1} parent=11 // pred_check_branch
        %743 = sbr.rel (%p741) target = $region44
      $region43: #{swin_t_forward.1} parent=11 // pred_region
        _
      $region44: #{swin_t_forward.1} parent=11 // pred_fallthru
        _
      // Predicated region
      $region45: #{swin_t_forward.1} parent=11 // pred_check
        %p744 = pneg %p280
      $region46: #{swin_t_forward.1} parent=11 // pred_check_branch
        %746 = sbr.rel (%p744) target = $region48
      $region47: #{swin_t_forward.1} parent=11 // pred_region
        _
      $region48: #{swin_t_forward.1} parent=11 // pred_fallthru
        _
      // Predicated region
      $region49: #{swin_t_forward.1} parent=11 // pred_check
        %p747 = pneg %p301
      $region50: #{swin_t_forward.1} parent=11 // pred_check_branch
        %749 = sbr.rel (%p747) target = $region52
      $region51: #{swin_t_forward.1} parent=11 // pred_region
        _
      $region52: #{swin_t_forward.1} parent=11 // pred_fallthru
        _
      // Predicated region
      $region53: #{swin_t_forward.1} parent=11 // pred_check
        %p750 = pneg %p322
      $region54: #{swin_t_forward.1} parent=11 // pred_check_branch
        %752 = sbr.rel (%p750) target = $region56
      $region55: #{swin_t_forward.1} parent=11 // pred_region
        _
      $region56: #{swin_t_forward.1} parent=11 // pred_fallthru
        _
      // Predicated region
      $region57: #{swin_t_forward.1} parent=11 // pred_check
        %p753 = pneg %p343
      $region58: #{swin_t_forward.1} parent=11 // pred_check_branch
        %755 = sbr.rel (%p753) target = $region60
      $region59: #{swin_t_forward.1} parent=11 // pred_region
        _
      $region60: #{swin_t_forward.1} parent=11 // pred_fallthru
        _
      // Predicated region
      $region61: #{swin_t_forward.1} parent=11 // pred_check
        %p756 = pneg %p364
      $region62: #{swin_t_forward.1} parent=11 // pred_check_branch
        %758 = sbr.rel (%p756) target = $region64
      $region63: #{swin_t_forward.1} parent=11 // pred_region
        _
      $region64: #{swin_t_forward.1} parent=11 // pred_fallthru
        _
      // Predicated region
      $region65: #{swin_t_forward.1} parent=11 // pred_check
        %p759 = pneg %p385
      $region66: #{swin_t_forward.1} parent=11 // pred_check_branch
        %761 = sbr.rel (%p759) target = $region68
      $region67: #{swin_t_forward.1} parent=11 // pred_region
        _
      $region68: #{swin_t_forward.1} parent=11 // pred_fallthru
        _
      // Predicated region
      $region69: #{swin_t_forward.1} parent=11 // pred_check
        %p762 = pneg %p406
      $region70: #{swin_t_forward.1} parent=11 // pred_check_branch
        %764 = sbr.rel (%p762) target = $region72
      $region71: #{swin_t_forward.1} parent=11 // pred_region
        _
      $region72: #{swin_t_forward.1} parent=11 // pred_fallthru
        _
      // Predicated region
      $region73: #{swin_t_forward.1} parent=11 // pred_check
        %p765 = pneg %p427
      $region74: #{swin_t_forward.1} parent=11 // pred_check_branch
        %767 = sbr.rel (%p765) target = $region76
      $region75: #{swin_t_forward.1} parent=11 // pred_region
        _
      $region76: #{swin_t_forward.1} parent=11 // pred_fallthru
        _
      // Predicated region
      $region77: #{swin_t_forward.1} parent=11 // pred_check
        %p768 = pneg %p448
      $region78: #{swin_t_forward.1} parent=11 // pred_check_branch
        %770 = sbr.rel (%p768) target = $region80
      $region79: #{swin_t_forward.1} parent=11 // pred_region
        _
      $region80: #{swin_t_forward.1} parent=11 // pred_fallthru
        _
      // Predicated region
      $region81: #{swin_t_forward.1} parent=11 // pred_check
        %p771 = pneg %p469
      $region82: #{swin_t_forward.1} parent=11 // pred_check_branch
        %773 = sbr.rel (%p771) target = $region84
      $region83: #{swin_t_forward.1} parent=11 // pred_region
        _
      $region84: #{swin_t_forward.1} parent=11 // pred_fallthru
        _
      // Predicated region
      $region85: #{swin_t_forward.1} parent=11 // pred_check
        %p774 = pneg %p490
      $region86: #{swin_t_forward.1} parent=11 // pred_check_branch
        %776 = sbr.rel (%p774) target = $region88
      $region87: #{swin_t_forward.1} parent=11 // pred_region
        _
      $region88: #{swin_t_forward.1} parent=11 // pred_fallthru
        _
      // Predicated region
      $region89: #{swin_t_forward.1} parent=11 // pred_check
        %p777 = pneg %p511
      $region90: #{swin_t_forward.1} parent=11 // pred_check_branch
        %779 = sbr.rel (%p777) target = $region92
      $region91: #{swin_t_forward.1} parent=11 // pred_region
        _
      $region92: #{swin_t_forward.1} parent=11 // pred_fallthru
        _
      // Predicated region
      $region93: #{swin_t_forward.1} parent=11 // pred_check
        %p780 = pneg %p532
      $region94: #{swin_t_forward.1} parent=11 // pred_check_branch
        %782 = sbr.rel (%p780) target = $region96
      $region95: #{swin_t_forward.1} parent=11 // pred_region
        _
      $region96: #{swin_t_forward.1} parent=11 // pred_fallthru
        _
      // Predicated region
      $region97: #{swin_t_forward.1} parent=11 // pred_check
        %p783 = pneg %p553
      $region98: #{swin_t_forward.1} parent=11 // pred_check_branch
        %785 = sbr.rel (%p783) target = $region100
      $region99: #{swin_t_forward.1} parent=11 // pred_region
        _
      $region100: #{swin_t_forward.1} parent=11 // pred_fallthru
        _
      // Predicated region
      $region101: #{swin_t_forward.1} parent=11 // pred_check
        %p786 = pneg %p574
      $region102: #{swin_t_forward.1} parent=11 // pred_check_branch
        %788 = sbr.rel (%p786) target = $region104
      $region103: #{swin_t_forward.1} parent=11 // pred_region
        _
      $region104: #{swin_t_forward.1} parent=11 // pred_fallthru
        _
      // Predicated region
      $region105: #{swin_t_forward.1} parent=11 // pred_check
        %p789 = pneg %p595
      $region106: #{swin_t_forward.1} parent=11 // pred_check_branch
        %791 = sbr.rel (%p789) target = $region108
      $region107: #{swin_t_forward.1} parent=11 // pred_region
        _
      $region108: #{swin_t_forward.1} parent=11 // pred_fallthru
        _
      // Predicated region
      $region109: #{swin_t_forward.1} parent=11 // pred_check
        %p792 = pneg %p616
      $region110: #{swin_t_forward.1} parent=11 // pred_check_branch
        %794 = sbr.rel (%p792) target = $region112
      $region111: #{swin_t_forward.1} parent=11 // pred_region
        _
      $region112: #{swin_t_forward.1} parent=11 // pred_fallthru
        _
      // Predicated region
      $region113: #{swin_t_forward.1} parent=11 // pred_check
        %p795 = pneg %p637
      $region114: #{swin_t_forward.1} parent=11 // pred_check_branch
        %797 = sbr.rel (%p795) target = $region116
      $region115: #{swin_t_forward.1} parent=11 // pred_region
        _
      $region116: #{swin_t_forward.1} parent=11 // pred_fallthru
        _
      // Predicated region
      $region117: #{swin_t_forward.1} parent=11 // pred_check
        %p798 = pneg %p658
      $region118: #{swin_t_forward.1} parent=11 // pred_check_branch
        %800 = sbr.rel (%p798) target = $region120
      $region119: #{swin_t_forward.1} parent=11 // pred_region
        _
      $region120: #{swin_t_forward.1} parent=11 // pred_fallthru
        _
      // Predicated region
      $region121: #{swin_t_forward.1} parent=11 // pred_check
        %p801 = pneg %p679
      $region122: #{swin_t_forward.1} parent=11 // pred_check_branch
        %803 = sbr.rel (%p801) target = $region124
      $region123: #{swin_t_forward.1} parent=11 // pred_region
        _
      $region124: #{swin_t_forward.1} parent=11 // pred_fallthru
        _
    $region12: #{swin_t_forward.1} parent=5 // pred_fallthru
      _
    %p804 = scmp.lt.s32.totalorder %s65, 2
    // Predicated region
    $region125: #{swin_t_forward.1} parent=5 // pred_check
      %p805 = pneg %p804
    $region126: #{swin_t_forward.1} parent=5 // pred_check_branch
      %807 = sbr.rel (%p805) target = $region128
    $region127: #{swin_t_forward.1} parent=5 // pred_region
      // Predicated region
      $region129: #{swin_t_forward.1} parent=127 // pred_check
        %p808 = pneg %p85
      $region130: #{swin_t_forward.1} parent=127 // pred_check_branch
        %810 = sbr.rel (%p808) target = $region132
      $region131: #{swin_t_forward.1} parent=127 // pred_region
        %p811 = scmp.lt.s32.totalorder %s65, 1
        %s812 = scalar_select %p811, %s65, 1
        %s813 = smul.addr %s812, 4
        %s814 = smul.addr %s813, 8
        %s815 = scalar_lea.vmem %s1, %s814
      $region132: #{swin_t_forward.1} parent=127 // pred_fallthru
        _
    $region128: #{swin_t_forward.1} parent=5 // pred_fallthru
      _
    %p816 = scmp.le.s32.totalorder 1, %s65
    %p817 = scmp.lt.s32.totalorder %s65, 3
    %p818 = pnand %p816, %p817
    %p819 = pneg %p818
    // Predicated region
    $region133: #{swin_t_forward.1} parent=5 // pred_check
      _
    $region134: #{swin_t_forward.1} parent=5 // pred_check_branch
      %821 = sbr.rel (%p818) target = $region136
    $region135: #{swin_t_forward.1} parent=5 // pred_region
      %s822 = ssub.s32 %s65, 1
      %p823 = scmp.lt.s32.totalorder %s70, 1
      %s824 = scalar_select %p823, %s70, 1
      %s825 = smul.addr %s824, 4
      %s826 = smul.addr %s825, 8
      %s827 = scalar_lea.vmem %s1, %s826
      %p828 = pneg %p91
      %p829 = pneg %p88
      %p830 = pneg %p112
      %p831 = pneg %p109
      %p832 = pneg %p133
      %p833 = pneg %p130
      %p834 = pneg %p154
      %p835 = pneg %p151
      %p836 = pneg %p175
      %p837 = pneg %p172
      %p838 = pneg %p196
      %p839 = pneg %p193
      %p840 = pneg %p217
      %p841 = pneg %p214
      %p842 = pneg %p238
      %p843 = pneg %p235
      %p844 = pneg %p259
      %p845 = pneg %p256
      %p846 = pneg %p280
      %p847 = pneg %p277
      %p848 = pneg %p301
      %p849 = pneg %p298
      %p850 = pneg %p322
      %p851 = pneg %p319
      %p852 = pneg %p343
      %p853 = pneg %p340
      %p854 = pneg %p364
      %p855 = pneg %p361
      %p856 = pneg %p385
      %p857 = pneg %p382
      %p858 = pneg %p406
      %p859 = pneg %p403
      %p860 = pneg %p427
      %p861 = pneg %p424
      %p862 = pneg %p448
      %p863 = pneg %p445
      %p864 = pneg %p469
      %p865 = pneg %p466
      %p866 = pneg %p490
      %p867 = pneg %p487
      %p868 = pneg %p511
      %p869 = pneg %p508
      %p870 = pneg %p532
      %p871 = pneg %p529
      %p872 = pneg %p553
      %p873 = pneg %p550
      %p874 = pneg %p574
      %p875 = pneg %p571
      %p876 = pneg %p595
      %p877 = pneg %p592
      %p878 = pneg %p616
      %p879 = pneg %p613
      %p880 = pneg %p637
      %p881 = pneg %p634
      %p882 = pneg %p658
      %p883 = pneg %p655
      %p884 = pneg %p679
      %p885 = pneg %p676
      %p886 = pneg %p705
      %p887 = pneg %p702
      %p888 = scmp.lt.s32.totalorder %s70, 1
      %s889 = scalar_select %p888, %s70, 1
      %s890 = smul.addr %s889, 8
      %s891 = smul.addr %s890, 8
      %s892 = scalar_lea.vmem %s59, %s891
      %p893 = scmp.lt.s32.totalorder %s70, 1
      %s894 = scalar_select %p893, %s70, 1
      %s895 = smul.addr %s894, 4
      %s896 = smul.addr %s895, 8
      %s897 = scalar_lea.vmem %s1, %s896
      %p898 = scmp.lt.s32.totalorder %s70, 1
      %s899 = scalar_select %p898, %s70, 1
      %s900 = smul.addr %s899, 8
      %s901 = smul.addr %s900, 8
      %s902 = scalar_lea.vmem %s59, %s901
      %v905 = vld [vmem:[%s897] sm:$0xff]
      %v906 = vld [vmem:[%s897 + $0x8] sm:$0xff]
      %v907 = vld [vmem:[%s897 + $0x10] sm:$0xff]
      %v908 = vld [vmem:[%s897 + $0x18] sm:$0xff]
      %v909 = vpack.c.bf16 %v907, %v905
      %v910 = vpack.c.bf16 %v908, %v906
      %v911 = vld [vmem:[%s5] sm:$0xf]
      %v912 = vld [vmem:[%s5 + $0x4] sm:$0xf]
      %v913 = vld [vmem:[%s5 + $0x8] sm:$0xf]
      %v914 = vld [vmem:[%s5 + $0xc] sm:$0xf]
      %v915 = vld [vmem:[%s5 + $0x10] sm:$0xf]
      %v916 = vld [vmem:[%s5 + $0x14] sm:$0xf]
      %v917 = vld [vmem:[%s7] sm:$0xff]
      %v918 = vld [vmem:[%s7 + $0x8] sm:$0xff]
      %v919 = vld [vmem:[%s7 + $0x10] sm:$0xff]
      %v920 = vld [vmem:[%s7 + $0x18] sm:$0xff]
      %v921 = vld [vmem:[%s7 + $0x20] sm:$0xff]
      %v922 = vld [vmem:[%s7 + $0x28] sm:$0xff]
      %924 = vset.pattern.permute.xlu0 0
      %925 = vperm.xlu0 %924, %v917
      %v926 = vpop.permute.xlu0 %925
      %929 = vset.pattern.permute.xlu0 0
      %930 = vperm.xlu0 %929, %v918
      %v931 = vpop.permute.xlu0 %930
      %934 = vset.pattern.permute.xlu0 0
      %935 = vperm.xlu0 %934, %v919
      %v936 = vpop.permute.xlu0 %935
      %939 = vset.pattern.permute.xlu0 0
      %940 = vperm.xlu0 %939, %v920
      %v941 = vpop.permute.xlu0 %940
      %944 = vset.pattern.permute.xlu0 0
      %945 = vperm.xlu0 %944, %v921
      %v946 = vpop.permute.xlu0 %945
      %949 = vset.pattern.permute.xlu0 0
      %950 = vperm.xlu0 %949, %v922
      %v951 = vpop.permute.xlu0 %950
      %v959 = vunpack.c.l.b16 %v911
      %v960 = vunpack.c.l.b16 %v912
      %v961 = vunpack.c.l.b16 %v913
      %v962 = vunpack.c.l.b16 %v914
      %v963 = vunpack.c.l.b16 %v915
      %v964 = vunpack.c.l.b16 %v916
      %v965 = vpack.c.b16 %v960, %v959
      %v966 = vpack.c.b16 %v962, %v961
      %v967 = vpack.c.b16 %v964, %v963
      %vm968 = vcmask 130048
      %v970 = vsel %vm968, %v965, 0
      %v973 = vsel %vm968, %v966, 0
      %v976 = vsel %vm968, %v967, 0
      %978 = vmatprep.subr.bf16.mxu0 %v910
      %979 = vmatpush1.bf16.msra.mxu0 %v909
      %980 = vmatprep.subr.bf16.mxu0 0
      %981 = vmatpush1.bf16.msra.mxu0 0
      %982 = vmatprep.subr.bf16.mxu0 0
      %983 = vmatpush1.bf16.msra.mxu0 0
      %984 = vmatprep.subr.bf16.mxu0 0
      %985 = vmatpush1.bf16.msra.mxu0 0
      %986 = vmatprep.subr.bf16.mxu0 0
      %987 = vmatpush1.bf16.msra.mxu0 0
      %988 = vmatprep.subr.bf16.mxu0 0
      %989 = vmatpush1.bf16.msra.mxu0 0
      %990 = vmatprep.subr.bf16.mxu0 0
      %991 = vmatpush1.bf16.msra.mxu0 0
      %992 = vmatprep.subr.bf16.mxu0 0
      %993 = vmatpush1.bf16.msra.mxu0 0
      %994 = vmatprep.subr.bf16.mxu0 0
      %995 = vmatpush1.bf16.msra.mxu0 0
      %996 = vmatprep.subr.bf16.mxu0 0
      %997 = vmatpush1.bf16.msra.mxu0 0
      %998 = vmatprep.subr.bf16.mxu0 0
      %999 = vmatpush1.bf16.msra.mxu0 0
      %1000 = vmatprep.subr.bf16.mxu0 0
      %1001 = vmatpush1.bf16.msra.mxu0 0
      %1002 = vmatprep.subr.bf16.mxu0 0
      %1003 = vmatpush1.bf16.msra.mxu0 0
      %1004 = vmatprep.subr.bf16.mxu0 0
      %1005 = vmatpush1.bf16.msra.mxu0 0
      %1006 = vmatprep.subr.bf16.mxu0 0
      %1007 = vmatpush1.bf16.msra.mxu0 0
      %1008 = vmatprep.subr.bf16.mxu0 0
      %1009 = vmatpush1.bf16.msra.mxu0 0
      %1010 = vmatprep.mubr.bf16.mxu0 0
      %1011 = vmatmul.mubr.bf16.gmra.mrb[0].mxu0 %v970
      %v1012 = vpop.f32.mrb[0].mxu0
      %v1013 = vadd.f32 %v926, %v1012
      %v1014 = vpop.f32.mrb[0].mxu0
      %v1015 = vadd.f32 %v926, %v1014
      %v1016 = vpop.f32.mrb[0].mxu0
      %v1017 = vadd.f32 %v931, %v1016
      %v1018 = vpop.f32.mrb[0].mxu0
      %v1019 = vadd.f32 %v931, %v1018
      %1020 = vmatprep.mubr.bf16.mxu0 0
      %1021 = vmatmul.mubr.bf16.gmra.mrb[0].mxu0 %v973
      %v1022 = vpop.f32.mrb[0].mxu0
      %v1023 = vadd.f32 %v936, %v1022
      %v1024 = vpop.f32.mrb[0].mxu0
      %v1025 = vadd.f32 %v936, %v1024
      %v1026 = vpop.f32.mrb[0].mxu0
      %v1027 = vadd.f32 %v941, %v1026
      %v1028 = vpop.f32.mrb[0].mxu0
      %v1029 = vadd.f32 %v941, %v1028
      %1030 = vmatprep.mubr.bf16.mxu0 0
      %1031 = vmatmul.mubr.bf16.gmra.mrb[0].mxu0 %v976
      %v1032 = vpop.f32.mrb[0].mxu0
      %v1033 = vadd.f32 %v946, %v1032
      %v1034 = vpop.f32.mrb[0].mxu0
      %v1035 = vadd.f32 %v946, %v1034
      %v1036 = vpop.f32.mrb[0].mxu0
      %v1037 = vadd.f32 %v951, %v1036
      %v1038 = vpop.f32.mrb[0].mxu0
      %v1039 = vadd.f32 %v951, %v1038
      %1040 = vdwg.mxu0
      %1041 = vxpose.xlu0.b32.start [1/16] %v1013, 128
      %1042 = vxpose.xlu0.b32.cont [2/16] %v1017, 128
      %1043 = vxpose.xlu0.b32.cont [3/16] 0.0, 128
      %1044 = vxpose.xlu0.b32.cont [4/16] 0.0, 128
      %1045 = vxpose.xlu0.b32.cont [5/16] 0.0, 128
      %1046 = vxpose.xlu0.b32.cont [6/16] 0.0, 128
      %1047 = vxpose.xlu0.b32.cont [7/16] 0.0, 128
      %1048 = vxpose.xlu0.b32.cont [8/16] 0.0, 128
      %1049 = vxpose.xlu0.b32.cont [9/16] 0.0, 128
      %1050 = vxpose.xlu0.b32.cont [10/16] 0.0, 128
      %1051 = vxpose.xlu0.b32.cont [11/16] 0.0, 128
      %1052 = vxpose.xlu0.b32.cont [12/16] 0.0, 128
      %1053 = vxpose.xlu0.b32.cont [13/16] 0.0, 128
      %1054 = vxpose.xlu0.b32.cont [14/16] 0.0, 128
      %1055 = vxpose.xlu0.b32.cont [15/16] 0.0, 128
      %1056 = vxpose.xlu0.b32.end [16/16] 0.0, 128
      %v1057 = vpop.trf.xlu0
      %v1058 = vpop.trf.xlu0
      %v1059 = vpop.trf.xlu0
      %v1060 = vpop.trf.xlu0
      %v1061 = vpop.trf.xlu0
      %v1062 = vpop.trf.xlu0
      %v1063 = vpop.trf.xlu0
      %v1064 = vpop.trf.xlu0
      %v1065 = vpop.trf.xlu0
      %v1066 = vpop.trf.xlu0
      %v1067 = vpop.trf.xlu0
      %v1068 = vpop.trf.xlu0
      %v1069 = vpop.trf.xlu0
      %v1070 = vpop.trf.xlu0
      %v1071 = vpop.trf.xlu0
      %v1072 = vpop.trf.xlu0
      %1073 = vxpose.xlu0.b32.start [1/16] %v1015, 128
      %1074 = vxpose.xlu0.b32.cont [2/16] %v1019, 128
      %1075 = vxpose.xlu0.b32.cont [3/16] 0.0, 128
      %1076 = vxpose.xlu0.b32.cont [4/16] 0.0, 128
      %1077 = vxpose.xlu0.b32.cont [5/16] 0.0, 128
      %1078 = vxpose.xlu0.b32.cont [6/16] 0.0, 128
      %1079 = vxpose.xlu0.b32.cont [7/16] 0.0, 128
      %1080 = vxpose.xlu0.b32.cont [8/16] 0.0, 128
      %1081 = vxpose.xlu0.b32.cont [9/16] 0.0, 128
      %1082 = vxpose.xlu0.b32.cont [10/16] 0.0, 128
      %1083 = vxpose.xlu0.b32.cont [11/16] 0.0, 128
      %1084 = vxpose.xlu0.b32.cont [12/16] 0.0, 128
      %1085 = vxpose.xlu0.b32.cont [13/16] 0.0, 128
      %1086 = vxpose.xlu0.b32.cont [14/16] 0.0, 128
      %1087 = vxpose.xlu0.b32.cont [15/16] 0.0, 128
      %1088 = vxpose.xlu0.b32.end [16/16] 0.0, 128
      %v1089 = vpop.trf.xlu0
      %v1090 = vpop.trf.xlu0
      %v1091 = vpop.trf.xlu0
      %v1092 = vpop.trf.xlu0
      %v1093 = vpop.trf.xlu0
      %v1094 = vpop.trf.xlu0
      %v1095 = vpop.trf.xlu0
      %v1096 = vpop.trf.xlu0
      %v1097 = vpop.trf.xlu0
      %v1098 = vpop.trf.xlu0
      %v1099 = vpop.trf.xlu0
      %v1100 = vpop.trf.xlu0
      %v1101 = vpop.trf.xlu0
      %v1102 = vpop.trf.xlu0
      %v1103 = vpop.trf.xlu0
      %v1104 = vpop.trf.xlu0
      %v1105 = vpack.c.bf16 %v1058, %v1057
      %v1106 = vpack.c.bf16 %v1060, %v1059
      %v1107 = vpack.c.bf16 %v1062, %v1061
      %v1108 = vpack.c.bf16 %v1064, %v1063
      %v1109 = vpack.c.bf16 %v1066, %v1065
      %v1110 = vpack.c.bf16 %v1068, %v1067
      %v1111 = vpack.c.bf16 %v1070, %v1069
      %v1112 = vpack.c.bf16 %v1072, %v1071
      %v1113 = vpack.c.bf16 %v1090, %v1089
      %v1114 = vpack.c.bf16 %v1092, %v1091
      %v1115 = vpack.c.bf16 %v1094, %v1093
      %v1116 = vpack.c.bf16 %v1096, %v1095
      %v1117 = vpack.c.bf16 %v1098, %v1097
      %v1118 = vpack.c.bf16 %v1100, %v1099
      %v1119 = vpack.c.bf16 %v1102, %v1101
      %v1120 = vpack.c.bf16 %v1104, %v1103
      %v1121 = vpack.c.bf16 %v1023, %v1023
      %v1122 = vpack.c.bf16 %v1025, %v1025
      %v1123 = vpack.c.bf16 %v1033, %v1033
      %v1124 = vpack.c.bf16 %v1035, %v1035
      %v1125 = vld [vmem:[%s3] sm:$0xff]
      %v1126 = vld [vmem:[%s3 + $0x8] sm:$0xff]
      %v1127 = vld [vmem:[%s3 + $0x10] sm:$0xff]
      %v1128 = vld [vmem:[%s3 + $0x18] sm:$0xff]
      %v1129 = vld [vmem:[%s3 + $0x20] sm:$0xff]
      %v1130 = vld [vmem:[%s3 + $0x28] sm:$0xff]
      %v1131 = vld [vmem:[%s3 + $0x30] sm:$0xff]
      %v1132 = vld [vmem:[%s3 + $0x38] sm:$0xff]
      %v1133 = vld [vmem:[%s3 + $0x40] sm:$0xff]
      %v1134 = vld [vmem:[%s3 + $0x48] sm:$0xff]
      %v1135 = vld [vmem:[%s3 + $0x50] sm:$0xff]
      %v1136 = vld [vmem:[%s3 + $0x58] sm:$0xff]
      %v1137 = vld [vmem:[%s3 + $0x60] sm:$0xff]
      %v1138 = vld [vmem:[%s3 + $0x68] sm:$0xff]
      %v1139 = vld [vmem:[%s3 + $0x70] sm:$0xff]
      %v1140 = vld [vmem:[%s3 + $0x78] sm:$0xff]
      %v1141 = vld [vmem:[%s3 + $0x80] sm:$0xff]
      %v1142 = vld [vmem:[%s3 + $0x88] sm:$0xff]
      %v1143 = vld [vmem:[%s3 + $0x90] sm:$0xff]
      %v1144 = vld [vmem:[%s3 + $0x98] sm:$0xff]
      %v1145 = vld [vmem:[%s3 + $0xa0] sm:$0xff]
      %v1146 = vld [vmem:[%s3 + $0xa8] sm:$0xff]
      %v1147 = vld [vmem:[%s3 + $0xb0] sm:$0xff]
      %v1148 = vld [vmem:[%s3 + $0xb8] sm:$0xff]
      %v1149 = vld [vmem:[%s3 + $0xc0] sm:$0xff]
      %v1150 = vld [vmem:[%s3 + $0xc8] sm:$0xff]
      %v1151 = vld [vmem:[%s3 + $0xd0] sm:$0xff]
      %v1152 = vld [vmem:[%s3 + $0xd8] sm:$0xff]
      %v1153 = vld [vmem:[%s3 + $0xe0] sm:$0xff]
      %v1154 = vld [vmem:[%s3 + $0xe8] sm:$0xff]
      %v1155 = vld [vmem:[%s3 + $0xf0] sm:$0xff]
      %v1156 = vld [vmem:[%s3 + $0xf8] sm:$0xff]
      %v1157 = vunpack.c.l.bf16 %v1125
      %v1158 = vunpack.c.h.bf16 %v1125
      %v1159 = vunpack.c.l.bf16 %v1126
      %v1160 = vunpack.c.h.bf16 %v1126
      %v1161 = vunpack.c.l.bf16 %v1127
      %v1162 = vunpack.c.h.bf16 %v1127
      %v1163 = vunpack.c.l.bf16 %v1128
      %v1164 = vunpack.c.h.bf16 %v1128
      %v1165 = vunpack.c.l.bf16 %v1129
      %v1166 = vunpack.c.h.bf16 %v1129
      %v1167 = vunpack.c.l.bf16 %v1130
      %v1168 = vunpack.c.h.bf16 %v1130
      %v1169 = vunpack.c.l.bf16 %v1131
      %v1170 = vunpack.c.h.bf16 %v1131
      %v1171 = vunpack.c.l.bf16 %v1132
      %v1172 = vunpack.c.h.bf16 %v1132
      %v1173 = vunpack.c.l.bf16 %v1133
      %v1174 = vunpack.c.h.bf16 %v1133
      %v1175 = vunpack.c.l.bf16 %v1134
      %v1176 = vunpack.c.h.bf16 %v1134
      %v1177 = vunpack.c.l.bf16 %v1135
      %v1178 = vunpack.c.h.bf16 %v1135
      %v1179 = vunpack.c.l.bf16 %v1136
      %v1180 = vunpack.c.h.bf16 %v1136
      %v1181 = vunpack.c.l.bf16 %v1137
      %v1182 = vunpack.c.h.bf16 %v1137
      %v1183 = vunpack.c.l.bf16 %v1138
      %v1184 = vunpack.c.h.bf16 %v1138
      %v1185 = vunpack.c.l.bf16 %v1139
      %v1186 = vunpack.c.h.bf16 %v1139
      %v1187 = vunpack.c.l.bf16 %v1140
      %v1188 = vunpack.c.h.bf16 %v1140
      %v1189 = vunpack.c.l.bf16 %v1141
      %v1190 = vunpack.c.h.bf16 %v1141
      %v1191 = vunpack.c.l.bf16 %v1142
      %v1192 = vunpack.c.h.bf16 %v1142
      %v1193 = vunpack.c.l.bf16 %v1143
      %v1194 = vunpack.c.h.bf16 %v1143
      %v1195 = vunpack.c.l.bf16 %v1144
      %v1196 = vunpack.c.h.bf16 %v1144
      %v1197 = vunpack.c.l.bf16 %v1145
      %v1198 = vunpack.c.h.bf16 %v1145
      %v1199 = vunpack.c.l.bf16 %v1146
      %v1200 = vunpack.c.h.bf16 %v1146
      %v1201 = vunpack.c.l.bf16 %v1147
      %v1202 = vunpack.c.h.bf16 %v1147
      %v1203 = vunpack.c.l.bf16 %v1148
      %v1204 = vunpack.c.h.bf16 %v1148
      %v1205 = vunpack.c.l.bf16 %v1149
      %v1206 = vunpack.c.h.bf16 %v1149
      %v1207 = vunpack.c.l.bf16 %v1150
      %v1208 = vunpack.c.h.bf16 %v1150
      %v1209 = vunpack.c.l.bf16 %v1151
      %v1210 = vunpack.c.h.bf16 %v1151
      %v1211 = vunpack.c.l.bf16 %v1152
      %v1212 = vunpack.c.h.bf16 %v1152
      %v1213 = vunpack.c.l.bf16 %v1153
      %v1214 = vunpack.c.h.bf16 %v1153
      %v1215 = vunpack.c.l.bf16 %v1154
      %v1216 = vunpack.c.h.bf16 %v1154
      %v1217 = vunpack.c.l.bf16 %v1155
      %v1218 = vunpack.c.h.bf16 %v1155
      %v1219 = vunpack.c.l.bf16 %v1156
      %v1220 = vunpack.c.h.bf16 %v1156
      %vm1221 = vcmask 31744
      %v1223 = vsel %vm1221, %v1105, 0
      %v1226 = vsel %vm1221, %v1106, 0
      %v1229 = vsel %vm1221, %v1107, 0
      %v1232 = vsel %vm1221, %v1108, 0
      %v1235 = vsel %vm1221, %v1109, 0
      %v1238 = vsel %vm1221, %v1110, 0
      %v1241 = vsel %vm1221, %v1111, 0
      %v1244 = vsel %vm1221, %v1112, 0
      %v1247 = vsel %vm1221, %v1113, 0
      %v1250 = vsel %vm1221, %v1114, 0
      %v1253 = vsel %vm1221, %v1115, 0
      %v1256 = vsel %vm1221, %v1116, 0
      %v1259 = vsel %vm1221, %v1117, 0
      %v1262 = vsel %vm1221, %v1118, 0
      %v1265 = vsel %vm1221, %v1119, 0
      %v1268 = vsel %vm1221, %v1120, 0
      %vm1270 = vcmask 1041408
      %v1272 = vsel %vm1270, %v1121, 0
      %v1275 = vsel %vm1270, %v1122, 0
      %1277 = vmatprep.subr.bf16.mxu0 %v1275
      %1278 = vmatpush1.bf16.msra.mxu0 %v1272
      %1279 = vmatprep.subr.bf16.mxu0 0
      %1280 = vmatpush1.bf16.msra.mxu0 0
      %1281 = vmatprep.subr.bf16.mxu0 0
      %1282 = vmatpush1.bf16.msra.mxu0 0
      %1283 = vmatprep.subr.bf16.mxu0 0
      %1284 = vmatpush1.bf16.msra.mxu0 0
      %1285 = vmatprep.subr.bf16.mxu0 0
      %1286 = vmatpush1.bf16.msra.mxu0 0
      %1287 = vmatprep.subr.bf16.mxu0 0
      %1288 = vmatpush1.bf16.msra.mxu0 0
      %1289 = vmatprep.subr.bf16.mxu0 0
      %1290 = vmatpush1.bf16.msra.mxu0 0
      %1291 = vmatprep.subr.bf16.mxu0 0
      %1292 = vmatpush1.bf16.msra.mxu0 0
      %1293 = vmatprep.subr.bf16.mxu0 0
      %1294 = vmatpush1.bf16.msra.mxu0 0
      %1295 = vmatprep.subr.bf16.mxu0 0
      %1296 = vmatpush1.bf16.msra.mxu0 0
      %1297 = vmatprep.subr.bf16.mxu0 0
      %1298 = vmatpush1.bf16.msra.mxu0 0
      %1299 = vmatprep.subr.bf16.mxu0 0
      %1300 = vmatpush1.bf16.msra.mxu0 0
      %1301 = vmatprep.subr.bf16.mxu0 0
      %1302 = vmatpush1.bf16.msra.mxu0 0
      %1303 = vmatprep.subr.bf16.mxu0 0
      %1304 = vmatpush1.bf16.msra.mxu0 0
      %1305 = vmatprep.subr.bf16.mxu0 0
      %1306 = vmatpush1.bf16.msra.mxu0 0
      %1307 = vmatprep.subr.bf16.mxu0 0
      %1308 = vmatpush1.bf16.msra.mxu0 0
      %1309 = vmatprep.mubr.bf16.mxu0 0
      %1310 = vmatmul.mubr.bf16.gmra.mrb[0].mxu0 %v1223
      %v1311 = vpop.f32.mrb[0].mxu0
      %v1312 = vadd.f32 %v1157, %v1311
      %v1313 = vpop.f32.mrb[0].mxu0
      %v1314 = vadd.f32 %v1158, %v1313
      %v1315 = vpop.f32.mrb[0].mxu0
      %v1316 = vadd.f32 %v1159, %v1315
      %v1317 = vpop.f32.mrb[0].mxu0
      %v1318 = vadd.f32 %v1160, %v1317
      %1319 = vmatprep.mubr.bf16.mxu0 0
      %1320 = vmatmul.mubr.bf16.gmra.mrb[0].mxu0 %v1226
      %v1321 = vpop.f32.mrb[0].mxu0
      %v1322 = vadd.f32 %v1161, %v1321
      %v1323 = vpop.f32.mrb[0].mxu0
      %v1324 = vadd.f32 %v1162, %v1323
      %v1325 = vpop.f32.mrb[0].mxu0
      %v1326 = vadd.f32 %v1163, %v1325
      %v1327 = vpop.f32.mrb[0].mxu0
      %v1328 = vadd.f32 %v1164, %v1327
      %1329 = vmatprep.mubr.bf16.mxu0 0
      %1330 = vmatmul.mubr.bf16.gmra.mrb[0].mxu0 %v1229
      %v1331 = vpop.f32.mrb[0].mxu0
      %v1332 = vadd.f32 %v1165, %v1331
      %v1333 = vpop.f32.mrb[0].mxu0
      %v1334 = vadd.f32 %v1166, %v1333
      %v1335 = vpop.f32.mrb[0].mxu0
      %v1336 = vadd.f32 %v1167, %v1335
      %v1337 = vpop.f32.mrb[0].mxu0
      %v1338 = vadd.f32 %v1168, %v1337
      %1339 = vmatprep.mubr.bf16.mxu0 0
      %1340 = vmatmul.mubr.bf16.gmra.mrb[0].mxu0 %v1232
      %v1341 = vpop.f32.mrb[0].mxu0
      %v1342 = vadd.f32 %v1169, %v1341
      %v1343 = vpop.f32.mrb[0].mxu0
      %v1344 = vadd.f32 %v1170, %v1343
      %v1345 = vpop.f32.mrb[0].mxu0
      %v1346 = vadd.f32 %v1171, %v1345
      %v1347 = vpop.f32.mrb[0].mxu0
      %v1348 = vadd.f32 %v1172, %v1347
      %1349 = vmatprep.mubr.bf16.mxu0 0
      %1350 = vmatmul.mubr.bf16.gmra.mrb[0].mxu0 %v1235
      %v1351 = vpop.f32.mrb[0].mxu0
      %v1352 = vadd.f32 %v1173, %v1351
      %v1353 = vpop.f32.mrb[0].mxu0
      %v1354 = vadd.f32 %v1174, %v1353
      %v1355 = vpop.f32.mrb[0].mxu0
      %v1356 = vadd.f32 %v1175, %v1355
      %v1357 = vpop.f32.mrb[0].mxu0
      %v1358 = vadd.f32 %v1176, %v1357
      %1359 = vmatprep.mubr.bf16.mxu0 0
      %1360 = vmatmul.mubr.bf16.gmra.mrb[0].mxu0 %v1238
      %v1361 = vpop.f32.mrb[0].mxu0
      %v1362 = vadd.f32 %v1177, %v1361
      %v1363 = vpop.f32.mrb[0].mxu0
      %v1364 = vadd.f32 %v1178, %v1363
      %v1365 = vpop.f32.mrb[0].mxu0
      %v1366 = vadd.f32 %v1179, %v1365
      %v1367 = vpop.f32.mrb[0].mxu0
      %v1368 = vadd.f32 %v1180, %v1367
      %1369 = vmatprep.mubr.bf16.mxu0 0
      %1370 = vmatmul.mubr.bf16.gmra.mrb[0].mxu0 %v1241
      %v1371 = vpop.f32.mrb[0].mxu0
      %v1372 = vadd.f32 %v1181, %v1371
      %v1373 = vpop.f32.mrb[0].mxu0
      %v1374 = vadd.f32 %v1182, %v1373
      %v1375 = vpop.f32.mrb[0].mxu0
      %v1376 = vadd.f32 %v1183, %v1375
      %v1377 = vpop.f32.mrb[0].mxu0
      %v1378 = vadd.f32 %v1184, %v1377
      %1379 = vmatprep.mubr.bf16.mxu0 0
      %1380 = vmatmul.mubr.bf16.gmra.mrb[0].mxu0 %v1244
      %v1381 = vpop.f32.mrb[0].mxu0
      %v1382 = vadd.f32 %v1185, %v1381
      %v1383 = vpop.f32.mrb[0].mxu0
      %v1384 = vadd.f32 %v1186, %v1383
      %v1385 = vpop.f32.mrb[0].mxu0
      %v1386 = vadd.f32 %v1187, %v1385
      %v1387 = vpop.f32.mrb[0].mxu0
      %v1388 = vadd.f32 %v1188, %v1387
      %1389 = vmatprep.mubr.bf16.mxu0 0
      %1390 = vmatmul.mubr.bf16.gmra.mrb[0].mxu0 %v1247
      %v1391 = vpop.f32.mrb[0].mxu0
      %v1392 = vadd.f32 %v1189, %v1391
      %v1393 = vpop.f32.mrb[0].mxu0
      %v1394 = vadd.f32 %v1190, %v1393
      %v1395 = vpop.f32.mrb[0].mxu0
      %v1396 = vadd.f32 %v1191, %v1395
      %v1397 = vpop.f32.mrb[0].mxu0
      %v1398 = vadd.f32 %v1192, %v1397
      %1399 = vmatprep.mubr.bf16.mxu0 0
      %1400 = vmatmul.mubr.bf16.gmra.mrb[0].mxu0 %v1250
      %v1401 = vpop.f32.mrb[0].mxu0
      %v1402 = vadd.f32 %v1193, %v1401
      %v1403 = vpop.f32.mrb[0].mxu0
      %v1404 = vadd.f32 %v1194, %v1403
      %v1405 = vpop.f32.mrb[0].mxu0
      %v1406 = vadd.f32 %v1195, %v1405
      %v1407 = vpop.f32.mrb[0].mxu0
      %v1408 = vadd.f32 %v1196, %v1407
      %1409 = vmatprep.mubr.bf16.mxu0 0
      %1410 = vmatmul.mubr.bf16.gmra.mrb[0].mxu0 %v1253
      %v1411 = vpop.f32.mrb[0].mxu0
      %v1412 = vadd.f32 %v1197, %v1411
      %v1413 = vpop.f32.mrb[0].mxu0
      %v1414 = vadd.f32 %v1198, %v1413
      %v1415 = vpop.f32.mrb[0].mxu0
      %v1416 = vadd.f32 %v1199, %v1415
      %v1417 = vpop.f32.mrb[0].mxu0
      %v1418 = vadd.f32 %v1200, %v1417
      %1419 = vmatprep.mubr.bf16.mxu0 0
      %1420 = vmatmul.mubr.bf16.gmra.mrb[0].mxu0 %v1256
      %v1421 = vpop.f32.mrb[0].mxu0
      %v1422 = vadd.f32 %v1201, %v1421
      %v1423 = vpop.f32.mrb[0].mxu0
      %v1424 = vadd.f32 %v1202, %v1423
      %v1425 = vpop.f32.mrb[0].mxu0
      %v1426 = vadd.f32 %v1203, %v1425
      %v1427 = vpop.f32.mrb[0].mxu0
      %v1428 = vadd.f32 %v1204, %v1427
      %1429 = vmatprep.mubr.bf16.mxu0 0
      %1430 = vmatmul.mubr.bf16.gmra.mrb[0].mxu0 %v1259
      %v1431 = vpop.f32.mrb[0].mxu0
      %v1432 = vadd.f32 %v1205, %v1431
      %v1433 = vpop.f32.mrb[0].mxu0
      %v1434 = vadd.f32 %v1206, %v1433
      %v1435 = vpop.f32.mrb[0].mxu0
      %v1436 = vadd.f32 %v1207, %v1435
      %v1437 = vpop.f32.mrb[0].mxu0
      %v1438 = vadd.f32 %v1208, %v1437
      %1439 = vmatprep.mubr.bf16.mxu0 0
      %1440 = vmatmul.mubr.bf16.gmra.mrb[0].mxu0 %v1262
      %v1441 = vpop.f32.mrb[0].mxu0
      %v1442 = vadd.f32 %v1209, %v1441
      %v1443 = vpop.f32.mrb[0].mxu0
      %v1444 = vadd.f32 %v1210, %v1443
      %v1445 = vpop.f32.mrb[0].mxu0
      %v1446 = vadd.f32 %v1211, %v1445
      %v1447 = vpop.f32.mrb[0].mxu0
      %v1448 = vadd.f32 %v1212, %v1447
      %1449 = vmatprep.mubr.bf16.mxu0 0
      %1450 = vmatmul.mubr.bf16.gmra.mrb[0].mxu0 %v1265
      %v1451 = vpop.f32.mrb[0].mxu0
      %v1452 = vadd.f32 %v1213, %v1451
      %v1453 = vpop.f32.mrb[0].mxu0
      %v1454 = vadd.f32 %v1214, %v1453
      %v1455 = vpop.f32.mrb[0].mxu0
      %v1456 = vadd.f32 %v1215, %v1455
      %v1457 = vpop.f32.mrb[0].mxu0
      %v1458 = vadd.f32 %v1216, %v1457
      %1459 = vmatprep.mubr.bf16.mxu0 0
      %1460 = vmatmul.mubr.bf16.gmra.mrb[0].mxu0 %v1268
      %v1461 = vpop.f32.mrb[0].mxu0
      %v1462 = vadd.f32 %v1217, %v1461
      %v1463 = vpop.f32.mrb[0].mxu0
      %v1464 = vadd.f32 %v1218, %v1463
      %v1465 = vpop.f32.mrb[0].mxu0
      %v1466 = vadd.f32 %v1219, %v1465
      %v1467 = vpop.f32.mrb[0].mxu0
      %v1468 = vadd.f32 %v1220, %v1467
      %1469 = vdwg.mxu0
      %v1470 = vmax.f32 %v1312, %v1314
      %1471 = vmax.xlane.f32.xlu0 %v1470
      %v1472 = vpop.xlane.xlu0 %1471
      %v1473 = vmax.f32 %v1316, %v1318
      %1474 = vmax.xlane.f32.xlu0 %v1473
      %v1475 = vpop.xlane.xlu0 %1474
      %v1476 = vmax.f32 %v1322, %v1324
      %1477 = vmax.xlane.f32.xlu0 %v1476
      %v1478 = vpop.xlane.xlu0 %1477
      %v1479 = vmax.f32 %v1326, %v1328
      %1480 = vmax.xlane.f32.xlu0 %v1479
      %v1481 = vpop.xlane.xlu0 %1480
      %v1482 = vmax.f32 %v1332, %v1334
      %1483 = vmax.xlane.f32.xlu0 %v1482
      %v1484 = vpop.xlane.xlu0 %1483
      %v1485 = vmax.f32 %v1336, %v1338
      %1486 = vmax.xlane.f32.xlu0 %v1485
      %v1487 = vpop.xlane.xlu0 %1486
      %v1488 = vmax.f32 %v1342, %v1344
      %1489 = vmax.xlane.f32.xlu0 %v1488
      %v1490 = vpop.xlane.xlu0 %1489
      %v1491 = vmax.f32 %v1346, %v1348
      %1492 = vmax.xlane.f32.xlu0 %v1491
      %v1493 = vpop.xlane.xlu0 %1492
      %v1494 = vmax.f32 %v1352, %v1354
      %1495 = vmax.xlane.f32.xlu0 %v1494
      %v1496 = vpop.xlane.xlu0 %1495
      %v1497 = vmax.f32 %v1356, %v1358
      %1498 = vmax.xlane.f32.xlu0 %v1497
      %v1499 = vpop.xlane.xlu0 %1498
      %v1500 = vmax.f32 %v1362, %v1364
      %1501 = vmax.xlane.f32.xlu0 %v1500
      %v1502 = vpop.xlane.xlu0 %1501
      %v1503 = vmax.f32 %v1366, %v1368
      %1504 = vmax.xlane.f32.xlu0 %v1503
      %v1505 = vpop.xlane.xlu0 %1504
      %v1506 = vmax.f32 %v1372, %v1374
      %1507 = vmax.xlane.f32.xlu0 %v1506
      %v1508 = vpop.xlane.xlu0 %1507
      %v1509 = vmax.f32 %v1376, %v1378
      %1510 = vmax.xlane.f32.xlu0 %v1509
      %v1511 = vpop.xlane.xlu0 %1510
      %v1512 = vmax.f32 %v1382, %v1384
      %1513 = vmax.xlane.f32.xlu0 %v1512
      %v1514 = vpop.xlane.xlu0 %1513
      %v1515 = vmax.f32 %v1386, %v1388
      %1516 = vmax.xlane.f32.xlu0 %v1515
      %v1517 = vpop.xlane.xlu0 %1516
      %v1518 = vmax.f32 %v1392, %v1394
      %1519 = vmax.xlane.f32.xlu0 %v1518
      %v1520 = vpop.xlane.xlu0 %1519
      %v1521 = vmax.f32 %v1396, %v1398
      %1522 = vmax.xlane.f32.xlu0 %v1521
      %v1523 = vpop.xlane.xlu0 %1522
      %v1524 = vmax.f32 %v1402, %v1404
      %1525 = vmax.xlane.f32.xlu0 %v1524
      %v1526 = vpop.xlane.xlu0 %1525
      %v1527 = vmax.f32 %v1406, %v1408
      %1528 = vmax.xlane.f32.xlu0 %v1527
      %v1529 = vpop.xlane.xlu0 %1528
      %v1530 = vmax.f32 %v1412, %v1414
      %1531 = vmax.xlane.f32.xlu0 %v1530
      %v1532 = vpop.xlane.xlu0 %1531
      %v1533 = vmax.f32 %v1416, %v1418
      %1534 = vmax.xlane.f32.xlu0 %v1533
      %v1535 = vpop.xlane.xlu0 %1534
      %v1536 = vmax.f32 %v1422, %v1424
      %1537 = vmax.xlane.f32.xlu0 %v1536
      %v1538 = vpop.xlane.xlu0 %1537
      %v1539 = vmax.f32 %v1426, %v1428
      %1540 = vmax.xlane.f32.xlu0 %v1539
      %v1541 = vpop.xlane.xlu0 %1540
      %v1542 = vmax.f32 %v1432, %v1434
      %1543 = vmax.xlane.f32.xlu0 %v1542
      %v1544 = vpop.xlane.xlu0 %1543
      %v1545 = vmax.f32 %v1436, %v1438
      %1546 = vmax.xlane.f32.xlu0 %v1545
      %v1547 = vpop.xlane.xlu0 %1546
      %v1548 = vmax.f32 %v1442, %v1444
      %1549 = vmax.xlane.f32.xlu0 %v1548
      %v1550 = vpop.xlane.xlu0 %1549
      %v1551 = vmax.f32 %v1446, %v1448
      %1552 = vmax.xlane.f32.xlu0 %v1551
      %v1553 = vpop.xlane.xlu0 %1552
      %v1554 = vmax.f32 %v1452, %v1454
      %1555 = vmax.xlane.f32.xlu0 %v1554
      %v1556 = vpop.xlane.xlu0 %1555
      %v1557 = vmax.f32 %v1456, %v1458
      %1558 = vmax.xlane.f32.xlu0 %v1557
      %v1559 = vpop.xlane.xlu0 %1558
      %v1560 = vmax.f32 %v1462, %v1464
      %1561 = vmax.xlane.f32.xlu0 %v1560
      %v1562 = vpop.xlane.xlu0 %1561
      %v1563 = vmax.f32 %v1466, %v1468
      %1564 = vmax.xlane.f32.xlu0 %v1563
      %v1565 = vpop.xlane.xlu0 %1564
      %v1566 = vsub.f32 %v1312, %v1472
      %v1567 = vsub.f32 %v1314, %v1472
      %v1568 = vsub.f32 %v1316, %v1475
      %v1569 = vsub.f32 %v1318, %v1475
      %v1570 = vsub.f32 %v1322, %v1478
      %v1571 = vsub.f32 %v1324, %v1478
      %v1572 = vsub.f32 %v1326, %v1481
      %v1573 = vsub.f32 %v1328, %v1481
      %v1574 = vsub.f32 %v1332, %v1484
      %v1575 = vsub.f32 %v1334, %v1484
      %v1576 = vsub.f32 %v1336, %v1487
      %v1577 = vsub.f32 %v1338, %v1487
      %v1578 = vsub.f32 %v1342, %v1490
      %v1579 = vsub.f32 %v1344, %v1490
      %v1580 = vsub.f32 %v1346, %v1493
      %v1581 = vsub.f32 %v1348, %v1493
      %v1582 = vsub.f32 %v1352, %v1496
      %v1583 = vsub.f32 %v1354, %v1496
      %v1584 = vsub.f32 %v1356, %v1499
      %v1585 = vsub.f32 %v1358, %v1499
      %v1586 = vsub.f32 %v1362, %v1502
      %v1587 = vsub.f32 %v1364, %v1502
      %v1588 = vsub.f32 %v1366, %v1505
      %v1589 = vsub.f32 %v1368, %v1505
      %v1590 = vsub.f32 %v1372, %v1508
      %v1591 = vsub.f32 %v1374, %v1508
      %v1592 = vsub.f32 %v1376, %v1511
      %v1593 = vsub.f32 %v1378, %v1511
      %v1594 = vsub.f32 %v1382, %v1514
      %v1595 = vsub.f32 %v1384, %v1514
      %v1596 = vsub.f32 %v1386, %v1517
      %v1597 = vsub.f32 %v1388, %v1517
      %v1598 = vsub.f32 %v1392, %v1520
      %v1599 = vsub.f32 %v1394, %v1520
      %v1600 = vsub.f32 %v1396, %v1523
      %v1601 = vsub.f32 %v1398, %v1523
      %v1602 = vsub.f32 %v1402, %v1526
      %v1603 = vsub.f32 %v1404, %v1526
      %v1604 = vsub.f32 %v1406, %v1529
      %v1605 = vsub.f32 %v1408, %v1529
      %v1606 = vsub.f32 %v1412, %v1532
      %v1607 = vsub.f32 %v1414, %v1532
      %v1608 = vsub.f32 %v1416, %v1535
      %v1609 = vsub.f32 %v1418, %v1535
      %v1610 = vsub.f32 %v1422, %v1538
      %v1611 = vsub.f32 %v1424, %v1538
      %v1612 = vsub.f32 %v1426, %v1541
      %v1613 = vsub.f32 %v1428, %v1541
      %v1614 = vsub.f32 %v1432, %v1544
      %v1615 = vsub.f32 %v1434, %v1544
      %v1616 = vsub.f32 %v1436, %v1547
      %v1617 = vsub.f32 %v1438, %v1547
      %v1618 = vsub.f32 %v1442, %v1550
      %v1619 = vsub.f32 %v1444, %v1550
      %v1620 = vsub.f32 %v1446, %v1553
      %v1621 = vsub.f32 %v1448, %v1553
      %v1622 = vsub.f32 %v1452, %v1556
      %v1623 = vsub.f32 %v1454, %v1556
      %v1624 = vsub.f32 %v1456, %v1559
      %v1625 = vsub.f32 %v1458, %v1559
      %v1626 = vsub.f32 %v1462, %v1562
      %v1627 = vsub.f32 %v1464, %v1562
      %v1628 = vsub.f32 %v1466, %v1565
      %v1629 = vsub.f32 %v1468, %v1565
      %v1630 = vmul.f32 %v1566, 1.442695
      %v1631 = vpow.pop %v1630
      %v1632 = vmul.f32 %v1567, 1.442695
      %v1633 = vpow.pop %v1632
      %v1634 = vmul.f32 %v1568, 1.442695
      %v1635 = vpow.pop %v1634
      %v1636 = vmul.f32 %v1569, 1.442695
      %v1637 = vpow.pop %v1636
      %v1638 = vmul.f32 %v1570, 1.442695
      %v1639 = vpow.pop %v1638
      %v1640 = vmul.f32 %v1571, 1.442695
      %v1641 = vpow.pop %v1640
      %v1642 = vmul.f32 %v1572, 1.442695
      %v1643 = vpow.pop %v1642
      %v1644 = vmul.f32 %v1573, 1.442695
      %v1645 = vpow.pop %v1644
      %v1646 = vmul.f32 %v1574, 1.442695
      %v1647 = vpow.pop %v1646
      %v1648 = vmul.f32 %v1575, 1.442695
      %v1649 = vpow.pop %v1648
      %v1650 = vmul.f32 %v1576, 1.442695
      %v1651 = vpow.pop %v1650
      %v1652 = vmul.f32 %v1577, 1.442695
      %v1653 = vpow.pop %v1652
      %v1654 = vmul.f32 %v1578, 1.442695
      %v1655 = vpow.pop %v1654
      %v1656 = vmul.f32 %v1579, 1.442695
      %v1657 = vpow.pop %v1656
      %v1658 = vmul.f32 %v1580, 1.442695
      %v1659 = vpow.pop %v1658
      %v1660 = vmul.f32 %v1581, 1.442695
      %v1661 = vpow.pop %v1660
      %v1662 = vmul.f32 %v1582, 1.442695
      %v1663 = vpow.pop %v1662
      %v1664 = vmul.f32 %v1583, 1.442695
      %v1665 = vpow.pop %v1664
      %v1666 = vmul.f32 %v1584, 1.442695
      %v1667 = vpow.pop %v1666
      %v1668 = vmul.f32 %v1585, 1.442695
      %v1669 = vpow.pop %v1668
      %v1670 = vmul.f32 %v1586, 1.442695
      %v1671 = vpow.pop %v1670
      %v1672 = vmul.f32 %v1587, 1.442695
      %v1673 = vpow.pop %v1672
      %v1674 = vmul.f32 %v1588, 1.442695
      %v1675 = vpow.pop %v1674
      %v1676 = vmul.f32 %v1589, 1.442695
      %v1677 = vpow.pop %v1676
      %v1678 = vmul.f32 %v1590, 1.442695
      %v1679 = vpow.pop %v1678
      %v1680 = vmul.f32 %v1591, 1.442695
      %v1681 = vpow.pop %v1680
      %v1682 = vmul.f32 %v1592, 1.442695
      %v1683 = vpow.pop %v1682
      %v1684 = vmul.f32 %v1593, 1.442695
      %v1685 = vpow.pop %v1684
      %v1686 = vmul.f32 %v1594, 1.442695
      %v1687 = vpow.pop %v1686
      %v1688 = vmul.f32 %v1595, 1.442695
      %v1689 = vpow.pop %v1688
      %v1690 = vmul.f32 %v1596, 1.442695
      %v1691 = vpow.pop %v1690
      %v1692 = vmul.f32 %v1597, 1.442695
      %v1693 = vpow.pop %v1692
      %v1694 = vmul.f32 %v1598, 1.442695
      %v1695 = vpow.pop %v1694
      %v1696 = vmul.f32 %v1599, 1.442695
      %v1697 = vpow.pop %v1696
      %v1698 = vmul.f32 %v1600, 1.442695
      %v1699 = vpow.pop %v1698
      %v1700 = vmul.f32 %v1601, 1.442695
      %v1701 = vpow.pop %v1700
      %v1702 = vmul.f32 %v1602, 1.442695
      %v1703 = vpow.pop %v1702
      %v1704 = vmul.f32 %v1603, 1.442695
      %v1705 = vpow.pop %v1704
      %v1706 = vmul.f32 %v1604, 1.442695
      %v1707 = vpow.pop %v1706
      %v1708 = vmul.f32 %v1605, 1.442695
      %v1709 = vpow.pop %v1708
      %v1710 = vmul.f32 %v1606, 1.442695
      %v1711 = vpow.pop %v1710
      %v1712 = vmul.f32 %v1607, 1.442695
      %v1713 = vpow.pop %v1712
      %v1714 = vmul.f32 %v1608, 1.442695
      %v1715 = vpow.pop %v1714
      %v1716 = vmul.f32 %v1609, 1.442695
      %v1717 = vpow.pop %v1716
      %v1718 = vmul.f32 %v1610, 1.442695
      %v1719 = vpow.pop %v1718
      %v1720 = vmul.f32 %v1611, 1.442695
      %v1721 = vpow.pop %v1720
      %v1722 = vmul.f32 %v1612, 1.442695
      %v1723 = vpow.pop %v1722
      %v1724 = vmul.f32 %v1613, 1.442695
      %v1725 = vpow.pop %v1724
      %v1726 = vmul.f32 %v1614, 1.442695
      %v1727 = vpow.pop %v1726
      %v1728 = vmul.f32 %v1615, 1.442695
      %v1729 = vpow.pop %v1728
      %v1730 = vmul.f32 %v1616, 1.442695
      %v1731 = vpow.pop %v1730
      %v1732 = vmul.f32 %v1617, 1.442695
      %v1733 = vpow.pop %v1732
      %v1734 = vmul.f32 %v1618, 1.442695
      %v1735 = vpow.pop %v1734
      %v1736 = vmul.f32 %v1619, 1.442695
      %v1737 = vpow.pop %v1736
      %v1738 = vmul.f32 %v1620, 1.442695
      %v1739 = vpow.pop %v1738
      %v1740 = vmul.f32 %v1621, 1.442695
      %v1741 = vpow.pop %v1740
      %v1742 = vmul.f32 %v1622, 1.442695
      %v1743 = vpow.pop %v1742
      %v1744 = vmul.f32 %v1623, 1.442695
      %v1745 = vpow.pop %v1744
      %v1746 = vmul.f32 %v1624, 1.442695
      %v1747 = vpow.pop %v1746
      %v1748 = vmul.f32 %v1625, 1.442695
      %v1749 = vpow.pop %v1748
      %v1750 = vmul.f32 %v1626, 1.442695
      %v1751 = vpow.pop %v1750
      %v1752 = vmul.f32 %v1627, 1.442695
      %v1753 = vpow.pop %v1752
      %v1754 = vmul.f32 %v1628, 1.442695
      %v1755 = vpow.pop %v1754
      %v1756 = vmul.f32 %v1629, 1.442695
      %v1757 = vpow.pop %v1756
      %v1758 = vpack.c.bf16 %v1635, %v1631
      %v1759 = vpack.c.bf16 %v1637, %v1633
      %v1760 = vpack.c.bf16 %v1643, %v1639
      %v1761 = vpack.c.bf16 %v1645, %v1641
      %v1762 = vpack.c.bf16 %v1651, %v1647
      %v1763 = vpack.c.bf16 %v1653, %v1649
      %v1764 = vpack.c.bf16 %v1659, %v1655
      %v1765 = vpack.c.bf16 %v1661, %v1657
      %v1766 = vpack.c.bf16 %v1667, %v1663
      %v1767 = vpack.c.bf16 %v1669, %v1665
      %v1768 = vpack.c.bf16 %v1675, %v1671
      %v1769 = vpack.c.bf16 %v1677, %v1673
      %v1770 = vpack.c.bf16 %v1683, %v1679
      %v1771 = vpack.c.bf16 %v1685, %v1681
      %v1772 = vpack.c.bf16 %v1691, %v1687
      %v1773 = vpack.c.bf16 %v1693, %v1689
      %v1774 = vpack.c.bf16 %v1699, %v1695
      %v1775 = vpack.c.bf16 %v1701, %v1697
      %v1776 = vpack.c.bf16 %v1707, %v1703
      %v1777 = vpack.c.bf16 %v1709, %v1705
      %v1778 = vpack.c.bf16 %v1715, %v1711
      %v1779 = vpack.c.bf16 %v1717, %v1713
      %v1780 = vpack.c.bf16 %v1723, %v1719
      %v1781 = vpack.c.bf16 %v1725, %v1721
      %v1782 = vpack.c.bf16 %v1731, %v1727
      %v1783 = vpack.c.bf16 %v1733, %v1729
      %v1784 = vpack.c.bf16 %v1739, %v1735
      %v1785 = vpack.c.bf16 %v1741, %v1737
      %v1786 = vpack.c.bf16 %v1747, %v1743
      %v1787 = vpack.c.bf16 %v1749, %v1745
      %v1788 = vpack.c.bf16 %v1755, %v1751
      %v1789 = vpack.c.bf16 %v1757, %v1753
      %1790 = vmatprep.subr.bf16.mxu0 %v1759
      %1791 = vmatpush1.bf16.xpose.msra.mxu0 %v1758
      %1792 = vmatprep.subr.bf16.mxu0 %v1761
      %1793 = vmatpush1.bf16.xpose.msra.mxu0 %v1760
      %1794 = vmatprep.subr.bf16.mxu0 %v1763
      %1795 = vmatpush1.bf16.xpose.msra.mxu0 %v1762
      %1796 = vmatprep.subr.bf16.mxu0 %v1765
      %1797 = vmatpush1.bf16.xpose.msra.mxu0 %v1764
      %1798 = vmatprep.subr.bf16.mxu0 %v1767
      %1799 = vmatpush1.bf16.xpose.msra.mxu0 %v1766
      %1800 = vmatprep.subr.bf16.mxu0 %v1769
      %1801 = vmatpush1.bf16.xpose.msra.mxu0 %v1768
      %1802 = vmatprep.subr.bf16.mxu0 %v1771
      %1803 = vmatpush1.bf16.xpose.msra.mxu0 %v1770
      %1804 = vmatprep.subr.bf16.mxu0 %v1773
      %1805 = vmatpush1.bf16.xpose.msra.mxu0 %v1772
      %1806 = vmatprep.subr.bf16.mxu0 %v1775
      %1807 = vmatpush1.bf16.xpose.msra.mxu0 %v1774
      %1808 = vmatprep.subr.bf16.mxu0 %v1777
      %1809 = vmatpush1.bf16.xpose.msra.mxu0 %v1776
      %1810 = vmatprep.subr.bf16.mxu0 %v1779
      %1811 = vmatpush1.bf16.xpose.msra.mxu0 %v1778
      %1812 = vmatprep.subr.bf16.mxu0 %v1781
      %1813 = vmatpush1.bf16.xpose.msra.mxu0 %v1780
      %1814 = vmatprep.subr.bf16.mxu0 %v1783
      %1815 = vmatpush1.bf16.xpose.msra.mxu0 %v1782
      %1816 = vmatprep.subr.bf16.mxu0 %v1785
      %1817 = vmatpush1.bf16.xpose.msra.mxu0 %v1784
      %1818 = vmatprep.subr.bf16.mxu0 %v1787
      %1819 = vmatpush1.bf16.xpose.msra.mxu0 %v1786
      %1820 = vmatprep.subr.bf16.mxu0 %v1789
      %1821 = vmatpush1.bf16.xpose.msra.mxu0 %v1788
      %1822 = vmatprep.mubr.bf16.mxu0 %v1124
      %1823 = vmatmul.mubr.bf16.gmra.mrb[0].mxu0 %v1123
      %v1824 = vpop.f32.mrb[0].mxu0
      %v1825 = vadd.f32 0.0, %v1824
      %v1826 = vpop.f32.mrb[0].mxu0
      %v1827 = vadd.f32 0.0, %v1826
      %v1828 = vpop.f32.mrb[0].mxu0
      %v1829 = vpop.f32.mrb[0].mxu0
      %1830 = vdwg.mxu0
      %1831 = vmatprep.subr.bf16.mxu0 %v1759
      %1832 = vmatpush1.bf16.xpose.msra.mxu0 %v1758
      %1833 = vmatprep.subr.bf16.mxu0 %v1761
      %1834 = vmatpush1.bf16.xpose.msra.mxu0 %v1760
      %1835 = vmatprep.subr.bf16.mxu0 %v1763
      %1836 = vmatpush1.bf16.xpose.msra.mxu0 %v1762
      %1837 = vmatprep.subr.bf16.mxu0 %v1765
      %1838 = vmatpush1.bf16.xpose.msra.mxu0 %v1764
      %1839 = vmatprep.subr.bf16.mxu0 %v1767
      %1840 = vmatpush1.bf16.xpose.msra.mxu0 %v1766
      %1841 = vmatprep.subr.bf16.mxu0 %v1769
      %1842 = vmatpush1.bf16.xpose.msra.mxu0 %v1768
      %1843 = vmatprep.subr.bf16.mxu0 %v1771
      %1844 = vmatpush1.bf16.xpose.msra.mxu0 %v1770
      %1845 = vmatprep.subr.bf16.mxu0 %v1773
      %1846 = vmatpush1.bf16.xpose.msra.mxu0 %v1772
      %1847 = vmatprep.subr.bf16.mxu0 %v1775
      %1848 = vmatpush1.bf16.xpose.msra.mxu0 %v1774
      %1849 = vmatprep.subr.bf16.mxu0 %v1777
      %1850 = vmatpush1.bf16.xpose.msra.mxu0 %v1776
      %1851 = vmatprep.subr.bf16.mxu0 %v1779
      %1852 = vmatpush1.bf16.xpose.msra.mxu0 %v1778
      %1853 = vmatprep.subr.bf16.mxu0 %v1781
      %1854 = vmatpush1.bf16.xpose.msra.mxu0 %v1780
      %1855 = vmatprep.subr.bf16.mxu0 %v1783
      %1856 = vmatpush1.bf16.xpose.msra.mxu0 %v1782
      %1857 = vmatprep.subr.bf16.mxu0 %v1785
      %1858 = vmatpush1.bf16.xpose.msra.mxu0 %v1784
      %1859 = vmatprep.subr.bf16.mxu0 %v1787
      %1860 = vmatpush1.bf16.xpose.msra.mxu0 %v1786
      %1861 = vmatprep.subr.bf16.mxu0 %v1789
      %1862 = vmatpush1.bf16.xpose.msra.mxu0 %v1788
      %1863 = vmatprep.mubr.bf16.mxu0 1065369472
      %1864 = vmatmul.mubr.bf16.gmra.mrb[0].mxu0 1065369472
      %v1865 = vpop.f32.mrb[0].mxu0
      %v1866 = vadd.f32 0.0, %v1865
      %v1867 = vpop.f32.mrb[0].mxu0
      %v1868 = vadd.f32 0.0, %v1867
      %v1869 = vpop.f32.mrb[0].mxu0
      %v1870 = vpop.f32.mrb[0].mxu0
      %1871 = vdwg.mxu0
      %v1872 = vrcp.pop %v1866
      %v1873 = vrcp.pop %v1868
      %v1874 = vlaneseq
      %v1875 = vshrl.u32 %v1874, 7
      %v1876 = vsub.s32 0, %v1875
      %v1877 = vrot.slane %v1872, %v1876
      %v1878 = vlaneseq
      %v1879 = vshrl.u32 %v1878, 7
      %v1880 = vsub.s32 0, %v1879
      %v1881 = vrot.slane %v1873, %v1880
      %v1882 = vmul.f32 %v1825, %v1877
      %v1883 = vmul.f32 %v1827, %v1881
      %s1884 = scalar_lea.vmem %s3, 256
      %v1885 = vld [vmem:[%s1884] sm:$0xff]
      %v1886 = vld [vmem:[%s1884 + $0x8] sm:$0xff]
      %v1887 = vld [vmem:[%s1884 + $0x10] sm:$0xff]
      %v1888 = vld [vmem:[%s1884 + $0x18] sm:$0xff]
      %v1889 = vld [vmem:[%s1884 + $0x20] sm:$0xff]
      %v1890 = vld [vmem:[%s1884 + $0x28] sm:$0xff]
      %v1891 = vld [vmem:[%s1884 + $0x30] sm:$0xff]
      %v1892 = vld [vmem:[%s1884 + $0x38] sm:$0xff]
      %v1893 = vld [vmem:[%s1884 + $0x40] sm:$0xff]
      %v1894 = vld [vmem:[%s1884 + $0x48] sm:$0xff]
      %v1895 = vld [vmem:[%s1884 + $0x50] sm:$0xff]
      %v1896 = vld [vmem:[%s1884 + $0x58] sm:$0xff]
      %v1897 = vld [vmem:[%s1884 + $0x60] sm:$0xff]
      %v1898 = vld [vmem:[%s1884 + $0x68] sm:$0xff]
      %v1899 = vld [vmem:[%s1884 + $0x70] sm:$0xff]
      %v1900 = vld [vmem:[%s1884 + $0x78] sm:$0xff]
      %v1901 = vld [vmem:[%s1884 + $0x80] sm:$0xff]
      %v1902 = vld [vmem:[%s1884 + $0x88] sm:$0xff]
      %v1903 = vld [vmem:[%s1884 + $0x90] sm:$0xff]
      %v1904 = vld [vmem:[%s1884 + $0x98] sm:$0xff]
      %v1905 = vld [vmem:[%s1884 + $0xa0] sm:$0xff]
      %v1906 = vld [vmem:[%s1884 + $0xa8] sm:$0xff]
      %v1907 = vld [vmem:[%s1884 + $0xb0] sm:$0xff]
      %v1908 = vld [vmem:[%s1884 + $0xb8] sm:$0xff]
      %v1909 = vld [vmem:[%s1884 + $0xc0] sm:$0xff]
      %v1910 = vld [vmem:[%s1884 + $0xc8] sm:$0xff]
      %v1911 = vld [vmem:[%s1884 + $0xd0] sm:$0xff]
      %v1912 = vld [vmem:[%s1884 + $0xd8] sm:$0xff]
      %v1913 = vld [vmem:[%s1884 + $0xe0] sm:$0xff]
      %v1914 = vld [vmem:[%s1884 + $0xe8] sm:$0xff]
      %v1915 = vld [vmem:[%s1884 + $0xf0] sm:$0xff]
      %v1916 = vld [vmem:[%s1884 + $0xf8] sm:$0xff]
      %v1917 = vunpack.c.l.bf16 %v1885
      %v1918 = vunpack.c.h.bf16 %v1885
      %v1919 = vunpack.c.l.bf16 %v1886
      %v1920 = vunpack.c.h.bf16 %v1886
      %v1921 = vunpack.c.l.bf16 %v1887
      %v1922 = vunpack.c.h.bf16 %v1887
      %v1923 = vunpack.c.l.bf16 %v1888
      %v1924 = vunpack.c.h.bf16 %v1888
      %v1925 = vunpack.c.l.bf16 %v1889
      %v1926 = vunpack.c.h.bf16 %v1889
      %v1927 = vunpack.c.l.bf16 %v1890
      %v1928 = vunpack.c.h.bf16 %v1890
      %v1929 = vunpack.c.l.bf16 %v1891
      %v1930 = vunpack.c.h.bf16 %v1891
      %v1931 = vunpack.c.l.bf16 %v1892
      %v1932 = vunpack.c.h.bf16 %v1892
      %v1933 = vunpack.c.l.bf16 %v1893
      %v1934 = vunpack.c.h.bf16 %v1893
      %v1935 = vunpack.c.l.bf16 %v1894
      %v1936 = vunpack.c.h.bf16 %v1894
      %v1937 = vunpack.c.l.bf16 %v1895
      %v1938 = vunpack.c.h.bf16 %v1895
      %v1939 = vunpack.c.l.bf16 %v1896
      %v1940 = vunpack.c.h.bf16 %v1896
      %v1941 = vunpack.c.l.bf16 %v1897
      %v1942 = vunpack.c.h.bf16 %v1897
      %v1943 = vunpack.c.l.bf16 %v1898
      %v1944 = vunpack.c.h.bf16 %v1898
      %v1945 = vunpack.c.l.bf16 %v1899
      %v1946 = vunpack.c.h.bf16 %v1899
      %v1947 = vunpack.c.l.bf16 %v1900
      %v1948 = vunpack.c.h.bf16 %v1900
      %v1949 = vunpack.c.l.bf16 %v1901
      %v1950 = vunpack.c.h.bf16 %v1901
      %v1951 = vunpack.c.l.bf16 %v1902
      %v1952 = vunpack.c.h.bf16 %v1902
      %v1953 = vunpack.c.l.bf16 %v1903
      %v1954 = vunpack.c.h.bf16 %v1903
      %v1955 = vunpack.c.l.bf16 %v1904
      %v1956 = vunpack.c.h.bf16 %v1904
      %v1957 = vunpack.c.l.bf16 %v1905
      %v1958 = vunpack.c.h.bf16 %v1905
      %v1959 = vunpack.c.l.bf16 %v1906
      %v1960 = vunpack.c.h.bf16 %v1906
      %v1961 = vunpack.c.l.bf16 %v1907
      %v1962 = vunpack.c.h.bf16 %v1907
      %v1963 = vunpack.c.l.bf16 %v1908
      %v1964 = vunpack.c.h.bf16 %v1908
      %v1965 = vunpack.c.l.bf16 %v1909
      %v1966 = vunpack.c.h.bf16 %v1909
      %v1967 = vunpack.c.l.bf16 %v1910
      %v1968 = vunpack.c.h.bf16 %v1910
      %v1969 = vunpack.c.l.bf16 %v1911
      %v1970 = vunpack.c.h.bf16 %v1911
      %v1971 = vunpack.c.l.bf16 %v1912
      %v1972 = vunpack.c.h.bf16 %v1912
      %v1973 = vunpack.c.l.bf16 %v1913
      %v1974 = vunpack.c.h.bf16 %v1913
      %v1975 = vunpack.c.l.bf16 %v1914
      %v1976 = vunpack.c.h.bf16 %v1914
      %v1977 = vunpack.c.l.bf16 %v1915
      %v1978 = vunpack.c.h.bf16 %v1915
      %v1979 = vunpack.c.l.bf16 %v1916
      %v1980 = vunpack.c.h.bf16 %v1916
      %1997 = vrot.lane.b32.xlu0 %v1105, 124
      %v1998 = vpop.permute.xlu0 %1997
      %1999 = vrot.lane.b32.xlu0 %v1106, 124
      %v2000 = vpop.permute.xlu0 %1999
      %2001 = vrot.lane.b32.xlu0 %v1107, 124
      %v2002 = vpop.permute.xlu0 %2001
      %2003 = vrot.lane.b32.xlu0 %v1108, 124
      %v2004 = vpop.permute.xlu0 %2003
      %2005 = vrot.lane.b32.xlu0 %v1109, 124
      %v2006 = vpop.permute.xlu0 %2005
      %2007 = vrot.lane.b32.xlu0 %v1110, 124
      %v2008 = vpop.permute.xlu0 %2007
      %2009 = vrot.lane.b32.xlu0 %v1111, 124
      %v2010 = vpop.permute.xlu0 %2009
      %2011 = vrot.lane.b32.xlu0 %v1112, 124
      %v2012 = vpop.permute.xlu0 %2011
      %2013 = vrot.lane.b32.xlu0 %v1113, 124
      %v2014 = vpop.permute.xlu0 %2013
      %2015 = vrot.lane.b32.xlu0 %v1114, 124
      %v2016 = vpop.permute.xlu0 %2015
      %2017 = vrot.lane.b32.xlu0 %v1115, 124
      %v2018 = vpop.permute.xlu0 %2017
      %2019 = vrot.lane.b32.xlu0 %v1116, 124
      %v2020 = vpop.permute.xlu0 %2019
      %2021 = vrot.lane.b32.xlu0 %v1117, 124
      %v2022 = vpop.permute.xlu0 %2021
      %2023 = vrot.lane.b32.xlu0 %v1118, 124
      %v2024 = vpop.permute.xlu0 %2023
      %2025 = vrot.lane.b32.xlu0 %v1119, 124
      %v2026 = vpop.permute.xlu0 %2025
      %2027 = vrot.lane.b32.xlu0 %v1120, 124
      %v2028 = vpop.permute.xlu0 %2027
      %v2031 = vrot.slane %v1121, 2
      %v2032 = vrot.slane %v1122, 2
      %v2034 = vsel %vm1221, %v1998, 0
      %v2037 = vsel %vm1221, %v2000, 0
      %v2040 = vsel %vm1221, %v2002, 0
      %v2043 = vsel %vm1221, %v2004, 0
      %v2046 = vsel %vm1221, %v2006, 0
      %v2049 = vsel %vm1221, %v2008, 0
      %v2052 = vsel %vm1221, %v2010, 0
      %v2055 = vsel %vm1221, %v2012, 0
      %v2058 = vsel %vm1221, %v2014, 0
      %v2061 = vsel %vm1221, %v2016, 0
      %v2064 = vsel %vm1221, %v2018, 0
      %v2067 = vsel %vm1221, %v2020, 0
      %v2070 = vsel %vm1221, %v2022, 0
      %v2073 = vsel %vm1221, %v2024, 0
      %v2076 = vsel %vm1221, %v2026, 0
      %v2079 = vsel %vm1221, %v2028, 0
      %v2082 = vsel %vm1270, %v2031, 0
      %v2085 = vsel %vm1270, %v2032, 0
      %2087 = vmatprep.subr.bf16.mxu0 %v2085
      %2088 = vmatpush1.bf16.msra.mxu0 %v2082
      %2089 = vmatprep.subr.bf16.mxu0 0
      %2090 = vmatpush1.bf16.msra.mxu0 0
      %2091 = vmatprep.subr.bf16.mxu0 0
      %2092 = vmatpush1.bf16.msra.mxu0 0
      %2093 = vmatprep.subr.bf16.mxu0 0
      %2094 = vmatpush1.bf16.msra.mxu0 0
      %2095 = vmatprep.subr.bf16.mxu0 0
      %2096 = vmatpush1.bf16.msra.mxu0 0
      %2097 = vmatprep.subr.bf16.mxu0 0
      %2098 = vmatpush1.bf16.msra.mxu0 0
      %2099 = vmatprep.subr.bf16.mxu0 0
      %2100 = vmatpush1.bf16.msra.mxu0 0
      %2101 = vmatprep.subr.bf16.mxu0 0
      %2102 = vmatpush1.bf16.msra.mxu0 0
      %2103 = vmatprep.subr.bf16.mxu0 0
      %2104 = vmatpush1.bf16.msra.mxu0 0
      %2105 = vmatprep.subr.bf16.mxu0 0
      %2106 = vmatpush1.bf16.msra.mxu0 0
      %2107 = vmatprep.subr.bf16.mxu0 0
      %2108 = vmatpush1.bf16.msra.mxu0 0
      %2109 = vmatprep.subr.bf16.mxu0 0
      %2110 = vmatpush1.bf16.msra.mxu0 0
      %2111 = vmatprep.subr.bf16.mxu0 0
      %2112 = vmatpush1.bf16.msra.mxu0 0
      %2113 = vmatprep.subr.bf16.mxu0 0
      %2114 = vmatpush1.bf16.msra.mxu0 0
      %2115 = vmatprep.subr.bf16.mxu0 0
      %2116 = vmatpush1.bf16.msra.mxu0 0
      %2117 = vmatprep.subr.bf16.mxu0 0
      %2118 = vmatpush1.bf16.msra.mxu0 0
      %2119 = vmatprep.mubr.bf16.mxu0 0
      %2120 = vmatmul.mubr.bf16.gmra.mrb[0].mxu0 %v2034
      %v2121 = vpop.f32.mrb[0].mxu0
      %v2122 = vadd.f32 %v1917, %v2121
      %v2123 = vpop.f32.mrb[0].mxu0
      %v2124 = vadd.f32 %v1918, %v2123
      %v2125 = vpop.f32.mrb[0].mxu0
      %v2126 = vadd.f32 %v1919, %v2125
      %v2127 = vpop.f32.mrb[0].mxu0
      %v2128 = vadd.f32 %v1920, %v2127
      %2129 = vmatprep.mubr.bf16.mxu0 0
      %2130 = vmatmul.mubr.bf16.gmra.mrb[0].mxu0 %v2037
      %v2131 = vpop.f32.mrb[0].mxu0
      %v2132 = vadd.f32 %v1921, %v2131
      %v2133 = vpop.f32.mrb[0].mxu0
      %v2134 = vadd.f32 %v1922, %v2133
      %v2135 = vpop.f32.mrb[0].mxu0
      %v2136 = vadd.f32 %v1923, %v2135
      %v2137 = vpop.f32.mrb[0].mxu0
      %v2138 = vadd.f32 %v1924, %v2137
      %2139 = vmatprep.mubr.bf16.mxu0 0
      %2140 = vmatmul.mubr.bf16.gmra.mrb[0].mxu0 %v2040
      %v2141 = vpop.f32.mrb[0].mxu0
      %v2142 = vadd.f32 %v1925, %v2141
      %v2143 = vpop.f32.mrb[0].mxu0
      %v2144 = vadd.f32 %v1926, %v2143
      %v2145 = vpop.f32.mrb[0].mxu0
      %v2146 = vadd.f32 %v1927, %v2145
      %v2147 = vpop.f32.mrb[0].mxu0
      %v2148 = vadd.f32 %v1928, %v2147
      %2149 = vmatprep.mubr.bf16.mxu0 0
      %2150 = vmatmul.mubr.bf16.gmra.mrb[0].mxu0 %v2043
      %v2151 = vpop.f32.mrb[0].mxu0
      %v2152 = vadd.f32 %v1929, %v2151
      %v2153 = vpop.f32.mrb[0].mxu0
      %v2154 = vadd.f32 %v1930, %v2153
      %v2155 = vpop.f32.mrb[0].mxu0
      %v2156 = vadd.f32 %v1931, %v2155
      %v2157 = vpop.f32.mrb[0].mxu0
      %v2158 = vadd.f32 %v1932, %v2157
      %2159 = vmatprep.mubr.bf16.mxu0 0
      %2160 = vmatmul.mubr.bf16.gmra.mrb[0].mxu0 %v2046
      %v2161 = vpop.f32.mrb[0].mxu0
      %v2162 = vadd.f32 %v1933, %v2161
      %v2163 = vpop.f32.mrb[0].mxu0
      %v2164 = vadd.f32 %v1934, %v2163
      %v2165 = vpop.f32.mrb[0].mxu0
      %v2166 = vadd.f32 %v1935, %v2165
      %v2167 = vpop.f32.mrb[0].mxu0
      %v2168 = vadd.f32 %v1936, %v2167
      %2169 = vmatprep.mubr.bf16.mxu0 0
      %2170 = vmatmul.mubr.bf16.gmra.mrb[0].mxu0 %v2049
      %v2171 = vpop.f32.mrb[0].mxu0
      %v2172 = vadd.f32 %v1937, %v2171
      %v2173 = vpop.f32.mrb[0].mxu0
      %v2174 = vadd.f32 %v1938, %v2173
      %v2175 = vpop.f32.mrb[0].mxu0
      %v2176 = vadd.f32 %v1939, %v2175
      %v2177 = vpop.f32.mrb[0].mxu0
      %v2178 = vadd.f32 %v1940, %v2177
      %2179 = vmatprep.mubr.bf16.mxu0 0
      %2180 = vmatmul.mubr.bf16.gmra.mrb[0].mxu0 %v2052
      %v2181 = vpop.f32.mrb[0].mxu0
      %v2182 = vadd.f32 %v1941, %v2181
      %v2183 = vpop.f32.mrb[0].mxu0
      %v2184 = vadd.f32 %v1942, %v2183
      %v2185 = vpop.f32.mrb[0].mxu0
      %v2186 = vadd.f32 %v1943, %v2185
      %v2187 = vpop.f32.mrb[0].mxu0
      %v2188 = vadd.f32 %v1944, %v2187
      %2189 = vmatprep.mubr.bf16.mxu0 0
      %2190 = vmatmul.mubr.bf16.gmra.mrb[0].mxu0 %v2055
      %v2191 = vpop.f32.mrb[0].mxu0
      %v2192 = vadd.f32 %v1945, %v2191
      %v2193 = vpop.f32.mrb[0].mxu0
      %v2194 = vadd.f32 %v1946, %v2193
      %v2195 = vpop.f32.mrb[0].mxu0
      %v2196 = vadd.f32 %v1947, %v2195
      %v2197 = vpop.f32.mrb[0].mxu0
      %v2198 = vadd.f32 %v1948, %v2197
      %2199 = vmatprep.mubr.bf16.mxu0 0
      %2200 = vmatmul.mubr.bf16.gmra.mrb[0].mxu0 %v2058
      %v2201 = vpop.f32.mrb[0].mxu0
      %v2202 = vadd.f32 %v1949, %v2201
      %v2203 = vpop.f32.mrb[0].mxu0
      %v2204 = vadd.f32 %v1950, %v2203
      %v2205 = vpop.f32.mrb[0].mxu0
      %v2206 = vadd.f32 %v1951, %v2205
      %v2207 = vpop.f32.mrb[0].mxu0
      %v2208 = vadd.f32 %v1952, %v2207
      %2209 = vmatprep.mubr.bf16.mxu0 0
      %2210 = vmatmul.mubr.bf16.gmra.mrb[0].mxu0 %v2061
      %v2211 = vpop.f32.mrb[0].mxu0
      %v2212 = vadd.f32 %v1953, %v2211
      %v2213 = vpop.f32.mrb[0].mxu0
      %v2214 = vadd.f32 %v1954, %v2213
      %v2215 = vpop.f32.mrb[0].mxu0
      %v2216 = vadd.f32 %v1955, %v2215
      %v2217 = vpop.f32.mrb[0].mxu0
      %v2218 = vadd.f32 %v1956, %v2217
      %2219 = vmatprep.mubr.bf16.mxu0 0
      %2220 = vmatmul.mubr.bf16.gmra.mrb[0].mxu0 %v2064
      %v2221 = vpop.f32.mrb[0].mxu0
      %v2222 = vadd.f32 %v1957, %v2221
      %v2223 = vpop.f32.mrb[0].mxu0
      %v2224 = vadd.f32 %v1958, %v2223
      %v2225 = vpop.f32.mrb[0].mxu0
      %v2226 = vadd.f32 %v1959, %v2225
      %v2227 = vpop.f32.mrb[0].mxu0
      %v2228 = vadd.f32 %v1960, %v2227
      %2229 = vmatprep.mubr.bf16.mxu0 0
      %2230 = vmatmul.mubr.bf16.gmra.mrb[0].mxu0 %v2067
      %v2231 = vpop.f32.mrb[0].mxu0
      %v2232 = vadd.f32 %v1961, %v2231
      %v2233 = vpop.f32.mrb[0].mxu0
      %v2234 = vadd.f32 %v1962, %v2233
      %v2235 = vpop.f32.mrb[0].mxu0
      %v2236 = vadd.f32 %v1963, %v2235
      %v2237 = vpop.f32.mrb[0].mxu0
      %v2238 = vadd.f32 %v1964, %v2237
      %2239 = vmatprep.mubr.bf16.mxu0 0
      %2240 = vmatmul.mubr.bf16.gmra.mrb[0].mxu0 %v2070
      %v2241 = vpop.f32.mrb[0].mxu0
      %v2242 = vadd.f32 %v1965, %v2241
      %v2243 = vpop.f32.mrb[0].mxu0
      %v2244 = vadd.f32 %v1966, %v2243
      %v2245 = vpop.f32.mrb[0].mxu0
      %v2246 = vadd.f32 %v1967, %v2245
      %v2247 = vpop.f32.mrb[0].mxu0
      %v2248 = vadd.f32 %v1968, %v2247
      %2249 = vmatprep.mubr.bf16.mxu0 0
      %2250 = vmatmul.mubr.bf16.gmra.mrb[0].mxu0 %v2073
      %v2251 = vpop.f32.mrb[0].mxu0
      %v2252 = vadd.f32 %v1969, %v2251
      %v2253 = vpop.f32.mrb[0].mxu0
      %v2254 = vadd.f32 %v1970, %v2253
      %v2255 = vpop.f32.mrb[0].mxu0
      %v2256 = vadd.f32 %v1971, %v2255
      %v2257 = vpop.f32.mrb[0].mxu0
      %v2258 = vadd.f32 %v1972, %v2257
      %2259 = vmatprep.mubr.bf16.mxu0 0
      %2260 = vmatmul.mubr.bf16.gmra.mrb[0].mxu0 %v2076
      %v2261 = vpop.f32.mrb[0].mxu0
      %v2262 = vadd.f32 %v1973, %v2261
      %v2263 = vpop.f32.mrb[0].mxu0
      %v2264 = vadd.f32 %v1974, %v2263
      %v2265 = vpop.f32.mrb[0].mxu0
      %v2266 = vadd.f32 %v1975, %v2265
      %v2267 = vpop.f32.mrb[0].mxu0
      %v2268 = vadd.f32 %v1976, %v2267
      %2269 = vmatprep.mubr.bf16.mxu0 0
      %2270 = vmatmul.mubr.bf16.gmra.mrb[0].mxu0 %v2079
      %v2271 = vpop.f32.mrb[0].mxu0
      %v2272 = vadd.f32 %v1977, %v2271
      %v2273 = vpop.f32.mrb[0].mxu0
      %v2274 = vadd.f32 %v1978, %v2273
      %v2275 = vpop.f32.mrb[0].mxu0
      %v2276 = vadd.f32 %v1979, %v2275
      %v2277 = vpop.f32.mrb[0].mxu0
      %v2278 = vadd.f32 %v1980, %v2277
      %2279 = vdwg.mxu0
      %v2280 = vmax.f32 %v2122, %v2124
      %2281 = vmax.xlane.f32.xlu0 %v2280
      %v2282 = vpop.xlane.xlu0 %2281
      %v2283 = vmax.f32 %v2126, %v2128
      %2284 = vmax.xlane.f32.xlu0 %v2283
      %v2285 = vpop.xlane.xlu0 %2284
      %v2286 = vmax.f32 %v2132, %v2134
      %2287 = vmax.xlane.f32.xlu0 %v2286
      %v2288 = vpop.xlane.xlu0 %2287
      %v2289 = vmax.f32 %v2136, %v2138
      %2290 = vmax.xlane.f32.xlu0 %v2289
      %v2291 = vpop.xlane.xlu0 %2290
      %v2292 = vmax.f32 %v2142, %v2144
      %2293 = vmax.xlane.f32.xlu0 %v2292
      %v2294 = vpop.xlane.xlu0 %2293
      %v2295 = vmax.f32 %v2146, %v2148
      %2296 = vmax.xlane.f32.xlu0 %v2295
      %v2297 = vpop.xlane.xlu0 %2296
      %v2298 = vmax.f32 %v2152, %v2154
      %2299 = vmax.xlane.f32.xlu0 %v2298
      %v2300 = vpop.xlane.xlu0 %2299
      %v2301 = vmax.f32 %v2156, %v2158
      %2302 = vmax.xlane.f32.xlu0 %v2301
      %v2303 = vpop.xlane.xlu0 %2302
      %v2304 = vmax.f32 %v2162, %v2164
      %2305 = vmax.xlane.f32.xlu0 %v2304
      %v2306 = vpop.xlane.xlu0 %2305
      %v2307 = vmax.f32 %v2166, %v2168
      %2308 = vmax.xlane.f32.xlu0 %v2307
      %v2309 = vpop.xlane.xlu0 %2308
      %v2310 = vmax.f32 %v2172, %v2174
      %2311 = vmax.xlane.f32.xlu0 %v2310
      %v2312 = vpop.xlane.xlu0 %2311
      %v2313 = vmax.f32 %v2176, %v2178
      %2314 = vmax.xlane.f32.xlu0 %v2313
      %v2315 = vpop.xlane.xlu0 %2314
      %v2316 = vmax.f32 %v2182, %v2184
      %2317 = vmax.xlane.f32.xlu0 %v2316
      %v2318 = vpop.xlane.xlu0 %2317
      %v2319 = vmax.f32 %v2186, %v2188
      %2320 = vmax.xlane.f32.xlu0 %v2319
      %v2321 = vpop.xlane.xlu0 %2320
      %v2322 = vmax.f32 %v2192, %v2194
      %2323 = vmax.xlane.f32.xlu0 %v2322
      %v2324 = vpop.xlane.xlu0 %2323
      %v2325 = vmax.f32 %v2196, %v2198
      %2326 = vmax.xlane.f32.xlu0 %v2325
      %v2327 = vpop.xlane.xlu0 %2326
      %v2328 = vmax.f32 %v2202, %v2204
      %2329 = vmax.xlane.f32.xlu0 %v2328
      %v2330 = vpop.xlane.xlu0 %2329
      %v2331 = vmax.f32 %v2206, %v2208
      %2332 = vmax.xlane.f32.xlu0 %v2331
      %v2333 = vpop.xlane.xlu0 %2332
      %v2334 = vmax.f32 %v2212, %v2214
      %2335 = vmax.xlane.f32.xlu0 %v2334
      %v2336 = vpop.xlane.xlu0 %2335
      %v2337 = vmax.f32 %v2216, %v2218
      %2338 = vmax.xlane.f32.xlu0 %v2337
      %v2339 = vpop.xlane.xlu0 %2338
      %v2340 = vmax.f32 %v2222, %v2224
      %2341 = vmax.xlane.f32.xlu0 %v2340
      %v2342 = vpop.xlane.xlu0 %2341
      %v2343 = vmax.f32 %v2226, %v2228
      %2344 = vmax.xlane.f32.xlu0 %v2343
      %v2345 = vpop.xlane.xlu0 %2344
      %v2346 = vmax.f32 %v2232, %v2234
      %2347 = vmax.xlane.f32.xlu0 %v2346
      %v2348 = vpop.xlane.xlu0 %2347
      %v2349 = vmax.f32 %v2236, %v2238
      %2350 = vmax.xlane.f32.xlu0 %v2349
      %v2351 = vpop.xlane.xlu0 %2350
      %v2352 = vmax.f32 %v2242, %v2244
      %2353 = vmax.xlane.f32.xlu0 %v2352
      %v2354 = vpop.xlane.xlu0 %2353
      %v2355 = vmax.f32 %v2246, %v2248
      %2356 = vmax.xlane.f32.xlu0 %v2355
      %v2357 = vpop.xlane.xlu0 %2356
      %v2358 = vmax.f32 %v2252, %v2254
      %2359 = vmax.xlane.f32.xlu0 %v2358
      %v2360 = vpop.xlane.xlu0 %2359
      %v2361 = vmax.f32 %v2256, %v2258
      %2362 = vmax.xlane.f32.xlu0 %v2361
      %v2363 = vpop.xlane.xlu0 %2362
      %v2364 = vmax.f32 %v2262, %v2264
      %2365 = vmax.xlane.f32.xlu0 %v2364
      %v2366 = vpop.xlane.xlu0 %2365
      %v2367 = vmax.f32 %v2266, %v2268
      %2368 = vmax.xlane.f32.xlu0 %v2367
      %v2369 = vpop.xlane.xlu0 %2368
      %v2370 = vmax.f32 %v2272, %v2274
      %2371 = vmax.xlane.f32.xlu0 %v2370
      %v2372 = vpop.xlane.xlu0 %2371
      %v2373 = vmax.f32 %v2276, %v2278
      %2374 = vmax.xlane.f32.xlu0 %v2373
      %v2375 = vpop.xlane.xlu0 %2374
      %v2376 = vsub.f32 %v2122, %v2282
      %v2377 = vsub.f32 %v2124, %v2282
      %v2378 = vsub.f32 %v2126, %v2285
      %v2379 = vsub.f32 %v2128, %v2285
      %v2380 = vsub.f32 %v2132, %v2288
      %v2381 = vsub.f32 %v2134, %v2288
      %v2382 = vsub.f32 %v2136, %v2291
      %v2383 = vsub.f32 %v2138, %v2291
      %v2384 = vsub.f32 %v2142, %v2294
      %v2385 = vsub.f32 %v2144, %v2294
      %v2386 = vsub.f32 %v2146, %v2297
      %v2387 = vsub.f32 %v2148, %v2297
      %v2388 = vsub.f32 %v2152, %v2300
      %v2389 = vsub.f32 %v2154, %v2300
      %v2390 = vsub.f32 %v2156, %v2303
      %v2391 = vsub.f32 %v2158, %v2303
      %v2392 = vsub.f32 %v2162, %v2306
      %v2393 = vsub.f32 %v2164, %v2306
      %v2394 = vsub.f32 %v2166, %v2309
      %v2395 = vsub.f32 %v2168, %v2309
      %v2396 = vsub.f32 %v2172, %v2312
      %v2397 = vsub.f32 %v2174, %v2312
      %v2398 = vsub.f32 %v2176, %v2315
      %v2399 = vsub.f32 %v2178, %v2315
      %v2400 = vsub.f32 %v2182, %v2318
      %v2401 = vsub.f32 %v2184, %v2318
      %v2402 = vsub.f32 %v2186, %v2321
      %v2403 = vsub.f32 %v2188, %v2321
      %v2404 = vsub.f32 %v2192, %v2324
      %v2405 = vsub.f32 %v2194, %v2324
      %v2406 = vsub.f32 %v2196, %v2327
      %v2407 = vsub.f32 %v2198, %v2327
      %v2408 = vsub.f32 %v2202, %v2330
      %v2409 = vsub.f32 %v2204, %v2330
      %v2410 = vsub.f32 %v2206, %v2333
      %v2411 = vsub.f32 %v2208, %v2333
      %v2412 = vsub.f32 %v2212, %v2336
      %v2413 = vsub.f32 %v2214, %v2336
      %v2414 = vsub.f32 %v2216, %v2339
      %v2415 = vsub.f32 %v2218, %v2339
      %v2416 = vsub.f32 %v2222, %v2342
      %v2417 = vsub.f32 %v2224, %v2342
      %v2418 = vsub.f32 %v2226, %v2345
      %v2419 = vsub.f32 %v2228, %v2345
      %v2420 = vsub.f32 %v2232, %v2348
      %v2421 = vsub.f32 %v2234, %v2348
      %v2422 = vsub.f32 %v2236, %v2351
      %v2423 = vsub.f32 %v2238, %v2351
      %v2424 = vsub.f32 %v2242, %v2354
      %v2425 = vsub.f32 %v2244, %v2354
      %v2426 = vsub.f32 %v2246, %v2357
      %v2427 = vsub.f32 %v2248, %v2357
      %v2428 = vsub.f32 %v2252, %v2360
      %v2429 = vsub.f32 %v2254, %v2360
      %v2430 = vsub.f32 %v2256, %v2363
      %v2431 = vsub.f32 %v2258, %v2363
      %v2432 = vsub.f32 %v2262, %v2366
      %v2433 = vsub.f32 %v2264, %v2366
      %v2434 = vsub.f32 %v2266, %v2369
      %v2435 = vsub.f32 %v2268, %v2369
      %v2436 = vsub.f32 %v2272, %v2372
      %v2437 = vsub.f32 %v2274, %v2372
      %v2438 = vsub.f32 %v2276, %v2375
      %v2439 = vsub.f32 %v2278, %v2375
      %v2440 = vmul.f32 %v2376, 1.442695
      %v2441 = vpow.pop %v2440
      %v2442 = vmul.f32 %v2377, 1.442695
      %v2443 = vpow.pop %v2442
      %v2444 = vmul.f32 %v2378, 1.442695
      %v2445 = vpow.pop %v2444
      %v2446 = vmul.f32 %v2379, 1.442695
      %v2447 = vpow.pop %v2446
      %v2448 = vmul.f32 %v2380, 1.442695
      %v2449 = vpow.pop %v2448
      %v2450 = vmul.f32 %v2381, 1.442695
      %v2451 = vpow.pop %v2450
      %v2452 = vmul.f32 %v2382, 1.442695
      %v2453 = vpow.pop %v2452
      %v2454 = vmul.f32 %v2383, 1.442695
      %v2455 = vpow.pop %v2454
      %v2456 = vmul.f32 %v2384, 1.442695
      %v2457 = vpow.pop %v2456
      %v2458 = vmul.f32 %v2385, 1.442695
      %v2459 = vpow.pop %v2458
      %v2460 = vmul.f32 %v2386, 1.442695
      %v2461 = vpow.pop %v2460
      %v2462 = vmul.f32 %v2387, 1.442695
      %v2463 = vpow.pop %v2462
      %v2464 = vmul.f32 %v2388, 1.442695
      %v2465 = vpow.pop %v2464
      %v2466 = vmul.f32 %v2389, 1.442695
      %v2467 = vpow.pop %v2466
      %v2468 = vmul.f32 %v2390, 1.442695
      %v2469 = vpow.pop %v2468
      %v2470 = vmul.f32 %v2391, 1.442695
      %v2471 = vpow.pop %v2470
      %v2472 = vmul.f32 %v2392, 1.442695
      %v2473 = vpow.pop %v2472
      %v2474 = vmul.f32 %v2393, 1.442695
      %v2475 = vpow.pop %v2474
      %v2476 = vmul.f32 %v2394, 1.442695
      %v2477 = vpow.pop %v2476
      %v2478 = vmul.f32 %v2395, 1.442695
      %v2479 = vpow.pop %v2478
      %v2480 = vmul.f32 %v2396, 1.442695
      %v2481 = vpow.pop %v2480
      %v2482 = vmul.f32 %v2397, 1.442695
      %v2483 = vpow.pop %v2482
      %v2484 = vmul.f32 %v2398, 1.442695
      %v2485 = vpow.pop %v2484
      %v2486 = vmul.f32 %v2399, 1.442695
      %v2487 = vpow.pop %v2486
      %v2488 = vmul.f32 %v2400, 1.442695
      %v2489 = vpow.pop %v2488
      %v2490 = vmul.f32 %v2401, 1.442695
      %v2491 = vpow.pop %v2490
      %v2492 = vmul.f32 %v2402, 1.442695
      %v2493 = vpow.pop %v2492
      %v2494 = vmul.f32 %v2403, 1.442695
      %v2495 = vpow.pop %v2494
      %v2496 = vmul.f32 %v2404, 1.442695
      %v2497 = vpow.pop %v2496
      %v2498 = vmul.f32 %v2405, 1.442695
      %v2499 = vpow.pop %v2498
      %v2500 = vmul.f32 %v2406, 1.442695
      %v2501 = vpow.pop %v2500
      %v2502 = vmul.f32 %v2407, 1.442695
      %v2503 = vpow.pop %v2502
      %v2504 = vmul.f32 %v2408, 1.442695
      %v2505 = vpow.pop %v2504
      %v2506 = vmul.f32 %v2409, 1.442695
      %v2507 = vpow.pop %v2506
      %v2508 = vmul.f32 %v2410, 1.442695
      %v2509 = vpow.pop %v2508
      %v2510 = vmul.f32 %v2411, 1.442695
      %v2511 = vpow.pop %v2510
      %v2512 = vmul.f32 %v2412, 1.442695
      %v2513 = vpow.pop %v2512
      %v2514 = vmul.f32 %v2413, 1.442695
      %v2515 = vpow.pop %v2514
      %v2516 = vmul.f32 %v2414, 1.442695
      %v2517 = vpow.pop %v2516
      %v2518 = vmul.f32 %v2415, 1.442695
      %v2519 = vpow.pop %v2518
      %v2520 = vmul.f32 %v2416, 1.442695
      %v2521 = vpow.pop %v2520
      %v2522 = vmul.f32 %v2417, 1.442695
      %v2523 = vpow.pop %v2522
      %v2524 = vmul.f32 %v2418, 1.442695
      %v2525 = vpow.pop %v2524
      %v2526 = vmul.f32 %v2419, 1.442695
      %v2527 = vpow.pop %v2526
      %v2528 = vmul.f32 %v2420, 1.442695
      %v2529 = vpow.pop %v2528
      %v2530 = vmul.f32 %v2421, 1.442695
      %v2531 = vpow.pop %v2530
      %v2532 = vmul.f32 %v2422, 1.442695
      %v2533 = vpow.pop %v2532
      %v2534 = vmul.f32 %v2423, 1.442695
      %v2535 = vpow.pop %v2534
      %v2536 = vmul.f32 %v2424, 1.442695
      %v2537 = vpow.pop %v2536
      %v2538 = vmul.f32 %v2425, 1.442695
      %v2539 = vpow.pop %v2538
      %v2540 = vmul.f32 %v2426, 1.442695
      %v2541 = vpow.pop %v2540
      %v2542 = vmul.f32 %v2427, 1.442695
      %v2543 = vpow.pop %v2542
      %v2544 = vmul.f32 %v2428, 1.442695
      %v2545 = vpow.pop %v2544
      %v2546 = vmul.f32 %v2429, 1.442695
      %v2547 = vpow.pop %v2546
      %v2548 = vmul.f32 %v2430, 1.442695
      %v2549 = vpow.pop %v2548
      %v2550 = vmul.f32 %v2431, 1.442695
      %v2551 = vpow.pop %v2550
      %v2552 = vmul.f32 %v2432, 1.442695
      %v2553 = vpow.pop %v2552
      %v2554 = vmul.f32 %v2433, 1.442695
      %v2555 = vpow.pop %v2554
      %v2556 = vmul.f32 %v2434, 1.442695
      %v2557 = vpow.pop %v2556
      %v2558 = vmul.f32 %v2435, 1.442695
      %v2559 = vpow.pop %v2558
      %v2560 = vmul.f32 %v2436, 1.442695
      %v2561 = vpow.pop %v2560
      %v2562 = vmul.f32 %v2437, 1.442695
      %v2563 = vpow.pop %v2562
      %v2564 = vmul.f32 %v2438, 1.442695
      %v2565 = vpow.pop %v2564
      %v2566 = vmul.f32 %v2439, 1.442695
      %v2567 = vpow.pop %v2566
      %v2568 = vpack.c.bf16 %v2445, %v2441
      %v2569 = vpack.c.bf16 %v2447, %v2443
      %v2570 = vpack.c.bf16 %v2453, %v2449
      %v2571 = vpack.c.bf16 %v2455, %v2451
      %v2572 = vpack.c.bf16 %v2461, %v2457
      %v2573 = vpack.c.bf16 %v2463, %v2459
      %v2574 = vpack.c.bf16 %v2469, %v2465
      %v2575 = vpack.c.bf16 %v2471, %v2467
      %v2576 = vpack.c.bf16 %v2477, %v2473
      %v2577 = vpack.c.bf16 %v2479, %v2475
      %v2578 = vpack.c.bf16 %v2485, %v2481
      %v2579 = vpack.c.bf16 %v2487, %v2483
      %v2580 = vpack.c.bf16 %v2493, %v2489
      %v2581 = vpack.c.bf16 %v2495, %v2491
      %v2582 = vpack.c.bf16 %v2501, %v2497
      %v2583 = vpack.c.bf16 %v2503, %v2499
      %v2584 = vpack.c.bf16 %v2509, %v2505
      %v2585 = vpack.c.bf16 %v2511, %v2507
      %v2586 = vpack.c.bf16 %v2517, %v2513
      %v2587 = vpack.c.bf16 %v2519, %v2515
      %v2588 = vpack.c.bf16 %v2525, %v2521
      %v2589 = vpack.c.bf16 %v2527, %v2523
      %v2590 = vpack.c.bf16 %v2533, %v2529
      %v2591 = vpack.c.bf16 %v2535, %v2531
      %v2592 = vpack.c.bf16 %v2541, %v2537
      %v2593 = vpack.c.bf16 %v2543, %v2539
      %v2594 = vpack.c.bf16 %v2549, %v2545
      %v2595 = vpack.c.bf16 %v2551, %v2547
      %v2596 = vpack.c.bf16 %v2557, %v2553
      %v2597 = vpack.c.bf16 %v2559, %v2555
      %v2598 = vpack.c.bf16 %v2565, %v2561
      %v2599 = vpack.c.bf16 %v2567, %v2563
      %v2602 = vrot.slane %v1123, 2
      %v2603 = vrot.slane %v1124, 2
      %2606 = vmatprep.subr.bf16.mxu0 %v2569
      %2607 = vmatpush1.bf16.xpose.msra.mxu0 %v2568
      %2608 = vmatprep.subr.bf16.mxu0 %v2571
      %2609 = vmatpush1.bf16.xpose.msra.mxu0 %v2570
      %2610 = vmatprep.subr.bf16.mxu0 %v2573
      %2611 = vmatpush1.bf16.xpose.msra.mxu0 %v2572
      %2612 = vmatprep.subr.bf16.mxu0 %v2575
      %2613 = vmatpush1.bf16.xpose.msra.mxu0 %v2574
      %2614 = vmatprep.subr.bf16.mxu0 %v2577
      %2615 = vmatpush1.bf16.xpose.msra.mxu0 %v2576
      %2616 = vmatprep.subr.bf16.mxu0 %v2579
      %2617 = vmatpush1.bf16.xpose.msra.mxu0 %v2578
      %2618 = vmatprep.subr.bf16.mxu0 %v2581
      %2619 = vmatpush1.bf16.xpose.msra.mxu0 %v2580
      %2620 = vmatprep.subr.bf16.mxu0 %v2583
      %2621 = vmatpush1.bf16.xpose.msra.mxu0 %v2582
      %2622 = vmatprep.subr.bf16.mxu0 %v2585
      %2623 = vmatpush1.bf16.xpose.msra.mxu0 %v2584
      %2624 = vmatprep.subr.bf16.mxu0 %v2587
      %2625 = vmatpush1.bf16.xpose.msra.mxu0 %v2586
      %2626 = vmatprep.subr.bf16.mxu0 %v2589
      %2627 = vmatpush1.bf16.xpose.msra.mxu0 %v2588
      %2628 = vmatprep.subr.bf16.mxu0 %v2591
      %2629 = vmatpush1.bf16.xpose.msra.mxu0 %v2590
      %2630 = vmatprep.subr.bf16.mxu0 %v2593
      %2631 = vmatpush1.bf16.xpose.msra.mxu0 %v2592
      %2632 = vmatprep.subr.bf16.mxu0 %v2595
      %2633 = vmatpush1.bf16.xpose.msra.mxu0 %v2594
      %2634 = vmatprep.subr.bf16.mxu0 %v2597
      %2635 = vmatpush1.bf16.xpose.msra.mxu0 %v2596
      %2636 = vmatprep.subr.bf16.mxu0 %v2599
      %2637 = vmatpush1.bf16.xpose.msra.mxu0 %v2598
      %2638 = vmatprep.mubr.bf16.mxu0 %v2603
      %2639 = vmatmul.mubr.bf16.gmra.mrb[0].mxu0 %v2602
      %v2640 = vpop.f32.mrb[0].mxu0
      %v2641 = vadd.f32 0.0, %v2640
      %v2642 = vpop.f32.mrb[0].mxu0
      %v2643 = vadd.f32 0.0, %v2642
      %v2644 = vpop.f32.mrb[0].mxu0
      %v2645 = vpop.f32.mrb[0].mxu0
      %2646 = vdwg.mxu0
      %2647 = vmatprep.subr.bf16.mxu0 %v2569
      %2648 = vmatpush1.bf16.xpose.msra.mxu0 %v2568
      %2649 = vmatprep.subr.bf16.mxu0 %v2571
      %2650 = vmatpush1.bf16.xpose.msra.mxu0 %v2570
      %2651 = vmatprep.subr.bf16.mxu0 %v2573
      %2652 = vmatpush1.bf16.xpose.msra.mxu0 %v2572
      %2653 = vmatprep.subr.bf16.mxu0 %v2575
      %2654 = vmatpush1.bf16.xpose.msra.mxu0 %v2574
      %2655 = vmatprep.subr.bf16.mxu0 %v2577
      %2656 = vmatpush1.bf16.xpose.msra.mxu0 %v2576
      %2657 = vmatprep.subr.bf16.mxu0 %v2579
      %2658 = vmatpush1.bf16.xpose.msra.mxu0 %v2578
      %2659 = vmatprep.subr.bf16.mxu0 %v2581
      %2660 = vmatpush1.bf16.xpose.msra.mxu0 %v2580
      %2661 = vmatprep.subr.bf16.mxu0 %v2583
      %2662 = vmatpush1.bf16.xpose.msra.mxu0 %v2582
      %2663 = vmatprep.subr.bf16.mxu0 %v2585
      %2664 = vmatpush1.bf16.xpose.msra.mxu0 %v2584
      %2665 = vmatprep.subr.bf16.mxu0 %v2587
      %2666 = vmatpush1.bf16.xpose.msra.mxu0 %v2586
      %2667 = vmatprep.subr.bf16.mxu0 %v2589
      %2668 = vmatpush1.bf16.xpose.msra.mxu0 %v2588
      %2669 = vmatprep.subr.bf16.mxu0 %v2591
      %2670 = vmatpush1.bf16.xpose.msra.mxu0 %v2590
      %2671 = vmatprep.subr.bf16.mxu0 %v2593
      %2672 = vmatpush1.bf16.xpose.msra.mxu0 %v2592
      %2673 = vmatprep.subr.bf16.mxu0 %v2595
      %2674 = vmatpush1.bf16.xpose.msra.mxu0 %v2594
      %2675 = vmatprep.subr.bf16.mxu0 %v2597
      %2676 = vmatpush1.bf16.xpose.msra.mxu0 %v2596
      %2677 = vmatprep.subr.bf16.mxu0 %v2599
      %2678 = vmatpush1.bf16.xpose.msra.mxu0 %v2598
      %2679 = vmatprep.mubr.bf16.mxu0 1065369472
      %2680 = vmatmul.mubr.bf16.gmra.mrb[0].mxu0 1065369472
      %v2681 = vpop.f32.mrb[0].mxu0
      %v2682 = vadd.f32 0.0, %v2681
      %v2683 = vpop.f32.mrb[0].mxu0
      %v2684 = vadd.f32 0.0, %v2683
      %v2685 = vpop.f32.mrb[0].mxu0
      %v2686 = vpop.f32.mrb[0].mxu0
      %2687 = vdwg.mxu0
      %v2688 = vrcp.pop %v2682
      %v2689 = vrcp.pop %v2684
      %v2690 = vlaneseq
      %v2691 = vshrl.u32 %v2690, 7
      %v2692 = vsub.s32 0, %v2691
      %v2693 = vrot.slane %v2688, %v2692
      %v2694 = vlaneseq
      %v2695 = vshrl.u32 %v2694, 7
      %v2696 = vsub.s32 0, %v2695
      %v2697 = vrot.slane %v2689, %v2696
      %v2698 = vmul.f32 %v2641, %v2693
      %v2699 = vmul.f32 %v2643, %v2697
      %v2700 = vpack.c.bf16 %v1027, %v1027
      %v2701 = vpack.c.bf16 %v1029, %v1029
      %v2702 = vpack.c.bf16 %v1037, %v1037
      %v2703 = vpack.c.bf16 %v1039, %v1039
      %s2704 = scalar_lea.vmem %s3, 512
      %v2705 = vld [vmem:[%s2704] sm:$0xff]
      %v2706 = vld [vmem:[%s2704 + $0x8] sm:$0xff]
      %v2707 = vld [vmem:[%s2704 + $0x10] sm:$0xff]
      %v2708 = vld [vmem:[%s2704 + $0x18] sm:$0xff]
      %v2709 = vld [vmem:[%s2704 + $0x20] sm:$0xff]
      %v2710 = vld [vmem:[%s2704 + $0x28] sm:$0xff]
      %v2711 = vld [vmem:[%s2704 + $0x30] sm:$0xff]
      %v2712 = vld [vmem:[%s2704 + $0x38] sm:$0xff]
      %v2713 = vld [vmem:[%s2704 + $0x40] sm:$0xff]
      %v2714 = vld [vmem:[%s2704 + $0x48] sm:$0xff]
      %v2715 = vld [vmem:[%s2704 + $0x50] sm:$0xff]
      %v2716 = vld [vmem:[%s2704 + $0x58] sm:$0xff]
      %v2717 = vld [vmem:[%s2704 + $0x60] sm:$0xff]
      %v2718 = vld [vmem:[%s2704 + $0x68] sm:$0xff]
      %v2719 = vld [vmem:[%s2704 + $0x70] sm:$0xff]
      %v2720 = vld [vmem:[%s2704 + $0x78] sm:$0xff]
      %v2721 = vld [vmem:[%s2704 + $0x80] sm:$0xff]
      %v2722 = vld [vmem:[%s2704 + $0x88] sm:$0xff]
      %v2723 = vld [vmem:[%s2704 + $0x90] sm:$0xff]
      %v2724 = vld [vmem:[%s2704 + $0x98] sm:$0xff]
      %v2725 = vld [vmem:[%s2704 + $0xa0] sm:$0xff]
      %v2726 = vld [vmem:[%s2704 + $0xa8] sm:$0xff]
      %v2727 = vld [vmem:[%s2704 + $0xb0] sm:$0xff]
      %v2728 = vld [vmem:[%s2704 + $0xb8] sm:$0xff]
      %v2729 = vld [vmem:[%s2704 + $0xc0] sm:$0xff]
      %v2730 = vld [vmem:[%s2704 + $0xc8] sm:$0xff]
      %v2731 = vld [vmem:[%s2704 + $0xd0] sm:$0xff]
      %v2732 = vld [vmem:[%s2704 + $0xd8] sm:$0xff]
      %v2733 = vld [vmem:[%s2704 + $0xe0] sm:$0xff]
      %v2734 = vld [vmem:[%s2704 + $0xe8] sm:$0xff]
      %v2735 = vld [vmem:[%s2704 + $0xf0] sm:$0xff]
      %v2736 = vld [vmem:[%s2704 + $0xf8] sm:$0xff]
      %v2737 = vunpack.c.l.bf16 %v2705
      %v2738 = vunpack.c.h.bf16 %v2705
      %v2739 = vunpack.c.l.bf16 %v2706
      %v2740 = vunpack.c.h.bf16 %v2706
      %v2741 = vunpack.c.l.bf16 %v2707
      %v2742 = vunpack.c.h.bf16 %v2707
      %v2743 = vunpack.c.l.bf16 %v2708
      %v2744 = vunpack.c.h.bf16 %v2708
      %v2745 = vunpack.c.l.bf16 %v2709
      %v2746 = vunpack.c.h.bf16 %v2709
      %v2747 = vunpack.c.l.bf16 %v2710
      %v2748 = vunpack.c.h.bf16 %v2710
      %v2749 = vunpack.c.l.bf16 %v2711
      %v2750 = vunpack.c.h.bf16 %v2711
      %v2751 = vunpack.c.l.bf16 %v2712
      %v2752 = vunpack.c.h.bf16 %v2712
      %v2753 = vunpack.c.l.bf16 %v2713
      %v2754 = vunpack.c.h.bf16 %v2713
      %v2755 = vunpack.c.l.bf16 %v2714
      %v2756 = vunpack.c.h.bf16 %v2714
      %v2757 = vunpack.c.l.bf16 %v2715
      %v2758 = vunpack.c.h.bf16 %v2715
      %v2759 = vunpack.c.l.bf16 %v2716
      %v2760 = vunpack.c.h.bf16 %v2716
      %v2761 = vunpack.c.l.bf16 %v2717
      %v2762 = vunpack.c.h.bf16 %v2717
      %v2763 = vunpack.c.l.bf16 %v2718
      %v2764 = vunpack.c.h.bf16 %v2718
      %v2765 = vunpack.c.l.bf16 %v2719
      %v2766 = vunpack.c.h.bf16 %v2719
      %v2767 = vunpack.c.l.bf16 %v2720
      %v2768 = vunpack.c.h.bf16 %v2720
      %v2769 = vunpack.c.l.bf16 %v2721
      %v2770 = vunpack.c.h.bf16 %v2721
      %v2771 = vunpack.c.l.bf16 %v2722
      %v2772 = vunpack.c.h.bf16 %v2722
      %v2773 = vunpack.c.l.bf16 %v2723
      %v2774 = vunpack.c.h.bf16 %v2723
      %v2775 = vunpack.c.l.bf16 %v2724
      %v2776 = vunpack.c.h.bf16 %v2724
      %v2777 = vunpack.c.l.bf16 %v2725
      %v2778 = vunpack.c.h.bf16 %v2725
      %v2779 = vunpack.c.l.bf16 %v2726
      %v2780 = vunpack.c.h.bf16 %v2726
      %v2781 = vunpack.c.l.bf16 %v2727
      %v2782 = vunpack.c.h.bf16 %v2727
      %v2783 = vunpack.c.l.bf16 %v2728
      %v2784 = vunpack.c.h.bf16 %v2728
      %v2785 = vunpack.c.l.bf16 %v2729
      %v2786 = vunpack.c.h.bf16 %v2729
      %v2787 = vunpack.c.l.bf16 %v2730
      %v2788 = vunpack.c.h.bf16 %v2730
      %v2789 = vunpack.c.l.bf16 %v2731
      %v2790 = vunpack.c.h.bf16 %v2731
      %v2791 = vunpack.c.l.bf16 %v2732
      %v2792 = vunpack.c.h.bf16 %v2732
      %v2793 = vunpack.c.l.bf16 %v2733
      %v2794 = vunpack.c.h.bf16 %v2733
      %v2795 = vunpack.c.l.bf16 %v2734
      %v2796 = vunpack.c.h.bf16 %v2734
      %v2797 = vunpack.c.l.bf16 %v2735
      %v2798 = vunpack.c.h.bf16 %v2735
      %v2799 = vunpack.c.l.bf16 %v2736
      %v2800 = vunpack.c.h.bf16 %v2736
      %2801 = vrot.lane.b32.xlu0 %v1105, 120
      %v2802 = vpop.permute.xlu0 %2801
      %2803 = vrot.lane.b32.xlu0 %v1106, 120
      %v2804 = vpop.permute.xlu0 %2803
      %2805 = vrot.lane.b32.xlu0 %v1107, 120
      %v2806 = vpop.permute.xlu0 %2805
      %2807 = vrot.lane.b32.xlu0 %v1108, 120
      %v2808 = vpop.permute.xlu0 %2807
      %2809 = vrot.lane.b32.xlu0 %v1109, 120
      %v2810 = vpop.permute.xlu0 %2809
      %2811 = vrot.lane.b32.xlu0 %v1110, 120
      %v2812 = vpop.permute.xlu0 %2811
      %2813 = vrot.lane.b32.xlu0 %v1111, 120
      %v2814 = vpop.permute.xlu0 %2813
      %2815 = vrot.lane.b32.xlu0 %v1112, 120
      %v2816 = vpop.permute.xlu0 %2815
      %2817 = vrot.lane.b32.xlu0 %v1113, 120
      %v2818 = vpop.permute.xlu0 %2817
      %2819 = vrot.lane.b32.xlu0 %v1114, 120
      %v2820 = vpop.permute.xlu0 %2819
      %2821 = vrot.lane.b32.xlu0 %v1115, 120
      %v2822 = vpop.permute.xlu0 %2821
      %2823 = vrot.lane.b32.xlu0 %v1116, 120
      %v2824 = vpop.permute.xlu0 %2823
      %2825 = vrot.lane.b32.xlu0 %v1117, 120
      %v2826 = vpop.permute.xlu0 %2825
      %2827 = vrot.lane.b32.xlu0 %v1118, 120
      %v2828 = vpop.permute.xlu0 %2827
      %2829 = vrot.lane.b32.xlu0 %v1119, 120
      %v2830 = vpop.permute.xlu0 %2829
      %2831 = vrot.lane.b32.xlu0 %v1120, 120
      %v2832 = vpop.permute.xlu0 %2831
      %v2834 = vsel %vm1221, %v2802, 0
      %v2837 = vsel %vm1221, %v2804, 0
      %v2840 = vsel %vm1221, %v2806, 0
      %v2843 = vsel %vm1221, %v2808, 0
      %v2846 = vsel %vm1221, %v2810, 0
      %v2849 = vsel %vm1221, %v2812, 0
      %v2852 = vsel %vm1221, %v2814, 0
      %v2855 = vsel %vm1221, %v2816, 0
      %v2858 = vsel %vm1221, %v2818, 0
      %v2861 = vsel %vm1221, %v2820, 0
      %v2864 = vsel %vm1221, %v2822, 0
      %v2867 = vsel %vm1221, %v2824, 0
      %v2870 = vsel %vm1221, %v2826, 0
      %v2873 = vsel %vm1221, %v2828, 0
      %v2876 = vsel %vm1221, %v2830, 0
      %v2879 = vsel %vm1221, %v2832, 0
      %v2882 = vsel %vm1270, %v2700, 0
      %v2885 = vsel %vm1270, %v2701, 0
      %2887 = vmatprep.subr.bf16.mxu0 %v2885
      %2888 = vmatpush1.bf16.msra.mxu0 %v2882
      %2889 = vmatprep.subr.bf16.mxu0 0
      %2890 = vmatpush1.bf16.msra.mxu0 0
      %2891 = vmatprep.subr.bf16.mxu0 0
      %2892 = vmatpush1.bf16.msra.mxu0 0
      %2893 = vmatprep.subr.bf16.mxu0 0
      %2894 = vmatpush1.bf16.msra.mxu0 0
      %2895 = vmatprep.subr.bf16.mxu0 0
      %2896 = vmatpush1.bf16.msra.mxu0 0
      %2897 = vmatprep.subr.bf16.mxu0 0
      %2898 = vmatpush1.bf16.msra.mxu0 0
      %2899 = vmatprep.subr.bf16.mxu0 0
      %2900 = vmatpush1.bf16.msra.mxu0 0
      %2901 = vmatprep.subr.bf16.mxu0 0
      %2902 = vmatpush1.bf16.msra.mxu0 0
      %2903 = vmatprep.subr.bf16.mxu0 0
      %2904 = vmatpush1.bf16.msra.mxu0 0
      %2905 = vmatprep.subr.bf16.mxu0 0
      %2906 = vmatpush1.bf16.msra.mxu0 0
      %2907 = vmatprep.subr.bf16.mxu0 0
      %2908 = vmatpush1.bf16.msra.mxu0 0
      %2909 = vmatprep.subr.bf16.mxu0 0
      %2910 = vmatpush1.bf16.msra.mxu0 0
      %2911 = vmatprep.subr.bf16.mxu0 0
      %2912 = vmatpush1.bf16.msra.mxu0 0
      %2913 = vmatprep.subr.bf16.mxu0 0
      %2914 = vmatpush1.bf16.msra.mxu0 0
      %2915 = vmatprep.subr.bf16.mxu0 0
      %2916 = vmatpush1.bf16.msra.mxu0 0
      %2917 = vmatprep.subr.bf16.mxu0 0
      %2918 = vmatpush1.bf16.msra.mxu0 0
      %2919 = vmatprep.mubr.bf16.mxu0 0
      %2920 = vmatmul.mubr.bf16.gmra.mrb[0].mxu0 %v2834
      %v2921 = vpop.f32.mrb[0].mxu0
      %v2922 = vadd.f32 %v2737, %v2921
      %v2923 = vpop.f32.mrb[0].mxu0
      %v2924 = vadd.f32 %v2738, %v2923
      %v2925 = vpop.f32.mrb[0].mxu0
      %v2926 = vadd.f32 %v2739, %v2925
      %v2927 = vpop.f32.mrb[0].mxu0
      %v2928 = vadd.f32 %v2740, %v2927
      %2929 = vmatprep.mubr.bf16.mxu0 0
      %2930 = vmatmul.mubr.bf16.gmra.mrb[0].mxu0 %v2837
      %v2931 = vpop.f32.mrb[0].mxu0
      %v2932 = vadd.f32 %v2741, %v2931
      %v2933 = vpop.f32.mrb[0].mxu0
      %v2934 = vadd.f32 %v2742, %v2933
      %v2935 = vpop.f32.mrb[0].mxu0
      %v2936 = vadd.f32 %v2743, %v2935
      %v2937 = vpop.f32.mrb[0].mxu0
      %v2938 = vadd.f32 %v2744, %v2937
      %2939 = vmatprep.mubr.bf16.mxu0 0
      %2940 = vmatmul.mubr.bf16.gmra.mrb[0].mxu0 %v2840
      %v2941 = vpop.f32.mrb[0].mxu0
      %v2942 = vadd.f32 %v2745, %v2941
      %v2943 = vpop.f32.mrb[0].mxu0
      %v2944 = vadd.f32 %v2746, %v2943
      %v2945 = vpop.f32.mrb[0].mxu0
      %v2946 = vadd.f32 %v2747, %v2945
      %v2947 = vpop.f32.mrb[0].mxu0
      %v2948 = vadd.f32 %v2748, %v2947
      %2949 = vmatprep.mubr.bf16.mxu0 0
      %2950 = vmatmul.mubr.bf16.gmra.mrb[0].mxu0 %v2843
      %v2951 = vpop.f32.mrb[0].mxu0
      %v2952 = vadd.f32 %v2749, %v2951
      %v2953 = vpop.f32.mrb[0].mxu0
      %v2954 = vadd.f32 %v2750, %v2953
      %v2955 = vpop.f32.mrb[0].mxu0
      %v2956 = vadd.f32 %v2751, %v2955
      %v2957 = vpop.f32.mrb[0].mxu0
      %v2958 = vadd.f32 %v2752, %v2957
      %2959 = vmatprep.mubr.bf16.mxu0 0
      %2960 = vmatmul.mubr.bf16.gmra.mrb[0].mxu0 %v2846
      %v2961 = vpop.f32.mrb[0].mxu0
      %v2962 = vadd.f32 %v2753, %v2961
      %v2963 = vpop.f32.mrb[0].mxu0
      %v2964 = vadd.f32 %v2754, %v2963
      %v2965 = vpop.f32.mrb[0].mxu0
      %v2966 = vadd.f32 %v2755, %v2965
      %v2967 = vpop.f32.mrb[0].mxu0
      %v2968 = vadd.f32 %v2756, %v2967
      %2969 = vmatprep.mubr.bf16.mxu0 0
      %2970 = vmatmul.mubr.bf16.gmra.mrb[0].mxu0 %v2849
      %v2971 = vpop.f32.mrb[0].mxu0
      %v2972 = vadd.f32 %v2757, %v2971
      %v2973 = vpop.f32.mrb[0].mxu0
      %v2974 = vadd.f32 %v2758, %v2973
      %v2975 = vpop.f32.mrb[0].mxu0
      %v2976 = vadd.f32 %v2759, %v2975
      %v2977 = vpop.f32.mrb[0].mxu0
      %v2978 = vadd.f32 %v2760, %v2977
      %2979 = vmatprep.mubr.bf16.mxu0 0
      %2980 = vmatmul.mubr.bf16.gmra.mrb[0].mxu0 %v2852
      %v2981 = vpop.f32.mrb[0].mxu0
      %v2982 = vadd.f32 %v2761, %v2981
      %v2983 = vpop.f32.mrb[0].mxu0
      %v2984 = vadd.f32 %v2762, %v2983
      %v2985 = vpop.f32.mrb[0].mxu0
      %v2986 = vadd.f32 %v2763, %v2985
      %v2987 = vpop.f32.mrb[0].mxu0
      %v2988 = vadd.f32 %v2764, %v2987
      %2989 = vmatprep.mubr.bf16.mxu0 0
      %2990 = vmatmul.mubr.bf16.gmra.mrb[0].mxu0 %v2855
      %v2991 = vpop.f32.mrb[0].mxu0
      %v2992 = vadd.f32 %v2765, %v2991
      %v2993 = vpop.f32.mrb[0].mxu0
      %v2994 = vadd.f32 %v2766, %v2993
      %v2995 = vpop.f32.mrb[0].mxu0
      %v2996 = vadd.f32 %v2767, %v2995
      %v2997 = vpop.f32.mrb[0].mxu0
      %v2998 = vadd.f32 %v2768, %v2997
      %2999 = vmatprep.mubr.bf16.mxu0 0
      %3000 = vmatmul.mubr.bf16.gmra.mrb[0].mxu0 %v2858
      %v3001 = vpop.f32.mrb[0].mxu0
      %v3002 = vadd.f32 %v2769, %v3001
      %v3003 = vpop.f32.mrb[0].mxu0
      %v3004 = vadd.f32 %v2770, %v3003
      %v3005 = vpop.f32.mrb[0].mxu0
      %v3006 = vadd.f32 %v2771, %v3005
      %v3007 = vpop.f32.mrb[0].mxu0
      %v3008 = vadd.f32 %v2772, %v3007
      %3009 = vmatprep.mubr.bf16.mxu0 0
      %3010 = vmatmul.mubr.bf16.gmra.mrb[0].mxu0 %v2861
      %v3011 = vpop.f32.mrb[0].mxu0
      %v3012 = vadd.f32 %v2773, %v3011
      %v3013 = vpop.f32.mrb[0].mxu0
      %v3014 = vadd.f32 %v2774, %v3013
      %v3015 = vpop.f32.mrb[0].mxu0
      %v3016 = vadd.f32 %v2775, %v3015
      %v3017 = vpop.f32.mrb[0].mxu0
      %v3018 = vadd.f32 %v2776, %v3017
      %3019 = vmatprep.mubr.bf16.mxu0 0
      %3020 = vmatmul.mubr.bf16.gmra.mrb[0].mxu0 %v2864
      %v3021 = vpop.f32.mrb[0].mxu0
      %v3022 = vadd.f32 %v2777, %v3021
      %v3023 = vpop.f32.mrb[0].mxu0
      %v3024 = vadd.f32 %v2778, %v3023
      %v3025 = vpop.f32.mrb[0].mxu0
      %v3026 = vadd.f32 %v2779, %v3025
      %v3027 = vpop.f32.mrb[0].mxu0
      %v3028 = vadd.f32 %v2780, %v3027
      %3029 = vmatprep.mubr.bf16.mxu0 0
      %3030 = vmatmul.mubr.bf16.gmra.mrb[0].mxu0 %v2867
      %v3031 = vpop.f32.mrb[0].mxu0
      %v3032 = vadd.f32 %v2781, %v3031
      %v3033 = vpop.f32.mrb[0].mxu0
      %v3034 = vadd.f32 %v2782, %v3033
      %v3035 = vpop.f32.mrb[0].mxu0
      %v3036 = vadd.f32 %v2783, %v3035
      %v3037 = vpop.f32.mrb[0].mxu0
      %v3038 = vadd.f32 %v2784, %v3037
      %3039 = vmatprep.mubr.bf16.mxu0 0
      %3040 = vmatmul.mubr.bf16.gmra.mrb[0].mxu0 %v2870
      %v3041 = vpop.f32.mrb[0].mxu0
      %v3042 = vadd.f32 %v2785, %v3041
      %v3043 = vpop.f32.mrb[0].mxu0
      %v3044 = vadd.f32 %v2786, %v3043
      %v3045 = vpop.f32.mrb[0].mxu0
      %v3046 = vadd.f32 %v2787, %v3045
      %v3047 = vpop.f32.mrb[0].mxu0
      %v3048 = vadd.f32 %v2788, %v3047
      %3049 = vmatprep.mubr.bf16.mxu0 0
      %3050 = vmatmul.mubr.bf16.gmra.mrb[0].mxu0 %v2873
      %v3051 = vpop.f32.mrb[0].mxu0
      %v3052 = vadd.f32 %v2789, %v3051
      %v3053 = vpop.f32.mrb[0].mxu0
      %v3054 = vadd.f32 %v2790, %v3053
      %v3055 = vpop.f32.mrb[0].mxu0
      %v3056 = vadd.f32 %v2791, %v3055
      %v3057 = vpop.f32.mrb[0].mxu0
      %v3058 = vadd.f32 %v2792, %v3057
      %3059 = vmatprep.mubr.bf16.mxu0 0
      %3060 = vmatmul.mubr.bf16.gmra.mrb[0].mxu0 %v2876
      %v3061 = vpop.f32.mrb[0].mxu0
      %v3062 = vadd.f32 %v2793, %v3061
      %v3063 = vpop.f32.mrb[0].mxu0
      %v3064 = vadd.f32 %v2794, %v3063
      %v3065 = vpop.f32.mrb[0].mxu0
      %v3066 = vadd.f32 %v2795, %v3065
      %v3067 = vpop.f32.mrb[0].mxu0
      %v3068 = vadd.f32 %v2796, %v3067
      %3069 = vmatprep.mubr.bf16.mxu0 0
      %3070 = vmatmul.mubr.bf16.gmra.mrb[0].mxu0 %v2879
      %v3071 = vpop.f32.mrb[0].mxu0
      %v3072 = vadd.f32 %v2797, %v3071
      %v3073 = vpop.f32.mrb[0].mxu0
      %v3074 = vadd.f32 %v2798, %v3073
      %v3075 = vpop.f32.mrb[0].mxu0
      %v3076 = vadd.f32 %v2799, %v3075
      %v3077 = vpop.f32.mrb[0].mxu0
      %v3078 = vadd.f32 %v2800, %v3077
      %3079 = vdwg.mxu0
      %v3080 = vmax.f32 %v2922, %v2924
      %3081 = vmax.xlane.f32.xlu0 %v3080
      %v3082 = vpop.xlane.xlu0 %3081
      %v3083 = vmax.f32 %v2926, %v2928
      %3084 = vmax.xlane.f32.xlu0 %v3083
      %v3085 = vpop.xlane.xlu0 %3084
      %v3086 = vmax.f32 %v2932, %v2934
      %3087 = vmax.xlane.f32.xlu0 %v3086
      %v3088 = vpop.xlane.xlu0 %3087
      %v3089 = vmax.f32 %v2936, %v2938
      %3090 = vmax.xlane.f32.xlu0 %v3089
      %v3091 = vpop.xlane.xlu0 %3090
      %v3092 = vmax.f32 %v2942, %v2944
      %3093 = vmax.xlane.f32.xlu0 %v3092
      %v3094 = vpop.xlane.xlu0 %3093
      %v3095 = vmax.f32 %v2946, %v2948
      %3096 = vmax.xlane.f32.xlu0 %v3095
      %v3097 = vpop.xlane.xlu0 %3096
      %v3098 = vmax.f32 %v2952, %v2954
      %3099 = vmax.xlane.f32.xlu0 %v3098
      %v3100 = vpop.xlane.xlu0 %3099
      %v3101 = vmax.f32 %v2956, %v2958
      %3102 = vmax.xlane.f32.xlu0 %v3101
      %v3103 = vpop.xlane.xlu0 %3102
      %v3104 = vmax.f32 %v2962, %v2964
      %3105 = vmax.xlane.f32.xlu0 %v3104
      %v3106 = vpop.xlane.xlu0 %3105
      %v3107 = vmax.f32 %v2966, %v2968
      %3108 = vmax.xlane.f32.xlu0 %v3107
      %v3109 = vpop.xlane.xlu0 %3108
      %v3110 = vmax.f32 %v2972, %v2974
      %3111 = vmax.xlane.f32.xlu0 %v3110
      %v3112 = vpop.xlane.xlu0 %3111
      %v3113 = vmax.f32 %v2976, %v2978
      %3114 = vmax.xlane.f32.xlu0 %v3113
      %v3115 = vpop.xlane.xlu0 %3114
      %v3116 = vmax.f32 %v2982, %v2984
      %3117 = vmax.xlane.f32.xlu0 %v3116
      %v3118 = vpop.xlane.xlu0 %3117
      %v3119 = vmax.f32 %v2986, %v2988
      %3120 = vmax.xlane.f32.xlu0 %v3119
      %v3121 = vpop.xlane.xlu0 %3120
      %v3122 = vmax.f32 %v2992, %v2994
      %3123 = vmax.xlane.f32.xlu0 %v3122
      %v3124 = vpop.xlane.xlu0 %3123
      %v3125 = vmax.f32 %v2996, %v2998
      %3126 = vmax.xlane.f32.xlu0 %v3125
      %v3127 = vpop.xlane.xlu0 %3126
      %v3128 = vmax.f32 %v3002, %v3004
      %3129 = vmax.xlane.f32.xlu0 %v3128
      %v3130 = vpop.xlane.xlu0 %3129
      %v3131 = vmax.f32 %v3006, %v3008
      %3132 = vmax.xlane.f32.xlu0 %v3131
      %v3133 = vpop.xlane.xlu0 %3132
      %v3134 = vmax.f32 %v3012, %v3014
      %3135 = vmax.xlane.f32.xlu0 %v3134
      %v3136 = vpop.xlane.xlu0 %3135
      %v3137 = vmax.f32 %v3016, %v3018
      %3138 = vmax.xlane.f32.xlu0 %v3137
      %v3139 = vpop.xlane.xlu0 %3138
      %v3140 = vmax.f32 %v3022, %v3024
      %3141 = vmax.xlane.f32.xlu0 %v3140
      %v3142 = vpop.xlane.xlu0 %3141
      %v3143 = vmax.f32 %v3026, %v3028
      %3144 = vmax.xlane.f32.xlu0 %v3143
      %v3145 = vpop.xlane.xlu0 %3144
      %v3146 = vmax.f32 %v3032, %v3034
      %3147 = vmax.xlane.f32.xlu0 %v3146
      %v3148 = vpop.xlane.xlu0 %3147
      %v3149 = vmax.f32 %v3036, %v3038
      %3150 = vmax.xlane.f32.xlu0 %v3149
      %v3151 = vpop.xlane.xlu0 %3150
      %v3152 = vmax.f32 %v3042, %v3044
      %3153 = vmax.xlane.f32.xlu0 %v3152
      %v3154 = vpop.xlane.xlu0 %3153
      %v3155 = vmax.f32 %v3046, %v3048
      %3156 = vmax.xlane.f32.xlu0 %v3155
      %v3157 = vpop.xlane.xlu0 %3156
      %v3158 = vmax.f32 %v3052, %v3054
      %3159 = vmax.xlane.f32.xlu0 %v3158
      %v3160 = vpop.xlane.xlu0 %3159
      %v3161 = vmax.f32 %v3056, %v3058
      %3162 = vmax.xlane.f32.xlu0 %v3161
      %v3163 = vpop.xlane.xlu0 %3162
      %v3164 = vmax.f32 %v3062, %v3064
      %3165 = vmax.xlane.f32.xlu0 %v3164
      %v3166 = vpop.xlane.xlu0 %3165
      %v3167 = vmax.f32 %v3066, %v3068
      %3168 = vmax.xlane.f32.xlu0 %v3167
      %v3169 = vpop.xlane.xlu0 %3168
      %v3170 = vmax.f32 %v3072, %v3074
      %3171 = vmax.xlane.f32.xlu0 %v3170
      %v3172 = vpop.xlane.xlu0 %3171
      %v3173 = vmax.f32 %v3076, %v3078
      %3174 = vmax.xlane.f32.xlu0 %v3173
      %v3175 = vpop.xlane.xlu0 %3174
      %v3176 = vsub.f32 %v2922, %v3082
      %v3177 = vsub.f32 %v2924, %v3082
      %v3178 = vsub.f32 %v2926, %v3085
      %v3179 = vsub.f32 %v2928, %v3085
      %v3180 = vsub.f32 %v2932, %v3088
      %v3181 = vsub.f32 %v2934, %v3088
      %v3182 = vsub.f32 %v2936, %v3091
      %v3183 = vsub.f32 %v2938, %v3091
      %v3184 = vsub.f32 %v2942, %v3094
      %v3185 = vsub.f32 %v2944, %v3094
      %v3186 = vsub.f32 %v2946, %v3097
      %v3187 = vsub.f32 %v2948, %v3097
      %v3188 = vsub.f32 %v2952, %v3100
      %v3189 = vsub.f32 %v2954, %v3100
      %v3190 = vsub.f32 %v2956, %v3103
      %v3191 = vsub.f32 %v2958, %v3103
      %v3192 = vsub.f32 %v2962, %v3106
      %v3193 = vsub.f32 %v2964, %v3106
      %v3194 = vsub.f32 %v2966, %v3109
      %v3195 = vsub.f32 %v2968, %v3109
      %v3196 = vsub.f32 %v2972, %v3112
      %v3197 = vsub.f32 %v2974, %v3112
      %v3198 = vsub.f32 %v2976, %v3115
      %v3199 = vsub.f32 %v2978, %v3115
      %v3200 = vsub.f32 %v2982, %v3118
      %v3201 = vsub.f32 %v2984, %v3118
      %v3202 = vsub.f32 %v2986, %v3121
      %v3203 = vsub.f32 %v2988, %v3121
      %v3204 = vsub.f32 %v2992, %v3124
      %v3205 = vsub.f32 %v2994, %v3124
      %v3206 = vsub.f32 %v2996, %v3127
      %v3207 = vsub.f32 %v2998, %v3127
      %v3208 = vsub.f32 %v3002, %v3130
      %v3209 = vsub.f32 %v3004, %v3130
      %v3210 = vsub.f32 %v3006, %v3133
      %v3211 = vsub.f32 %v3008, %v3133
      %v3212 = vsub.f32 %v3012, %v3136
      %v3213 = vsub.f32 %v3014, %v3136
      %v3214 = vsub.f32 %v3016, %v3139
      %v3215 = vsub.f32 %v3018, %v3139
      %v3216 = vsub.f32 %v3022, %v3142
      %v3217 = vsub.f32 %v3024, %v3142
      %v3218 = vsub.f32 %v3026, %v3145
      %v3219 = vsub.f32 %v3028, %v3145
      %v3220 = vsub.f32 %v3032, %v3148
      %v3221 = vsub.f32 %v3034, %v3148
      %v3222 = vsub.f32 %v3036, %v3151
      %v3223 = vsub.f32 %v3038, %v3151
      %v3224 = vsub.f32 %v3042, %v3154
      %v3225 = vsub.f32 %v3044, %v3154
      %v3226 = vsub.f32 %v3046, %v3157
      %v3227 = vsub.f32 %v3048, %v3157
      %v3228 = vsub.f32 %v3052, %v3160
      %v3229 = vsub.f32 %v3054, %v3160
      %v3230 = vsub.f32 %v3056, %v3163
      %v3231 = vsub.f32 %v3058, %v3163
      %v3232 = vsub.f32 %v3062, %v3166
      %v3233 = vsub.f32 %v3064, %v3166
      %v3234 = vsub.f32 %v3066, %v3169
      %v3235 = vsub.f32 %v3068, %v3169
      %v3236 = vsub.f32 %v3072, %v3172
      %v3237 = vsub.f32 %v3074, %v3172
      %v3238 = vsub.f32 %v3076, %v3175
      %v3239 = vsub.f32 %v3078, %v3175
      %v3240 = vmul.f32 %v3176, 1.442695
      %v3241 = vpow.pop %v3240
      %v3242 = vmul.f32 %v3177, 1.442695
      %v3243 = vpow.pop %v3242
      %v3244 = vmul.f32 %v3178, 1.442695
      %v3245 = vpow.pop %v3244
      %v3246 = vmul.f32 %v3179, 1.442695
      %v3247 = vpow.pop %v3246
      %v3248 = vmul.f32 %v3180, 1.442695
      %v3249 = vpow.pop %v3248
      %v3250 = vmul.f32 %v3181, 1.442695
      %v3251 = vpow.pop %v3250
      %v3252 = vmul.f32 %v3182, 1.442695
      %v3253 = vpow.pop %v3252
      %v3254 = vmul.f32 %v3183, 1.442695
      %v3255 = vpow.pop %v3254
      %v3256 = vmul.f32 %v3184, 1.442695
      %v3257 = vpow.pop %v3256
      %v3258 = vmul.f32 %v3185, 1.442695
      %v3259 = vpow.pop %v3258
      %v3260 = vmul.f32 %v3186, 1.442695
      %v3261 = vpow.pop %v3260
      %v3262 = vmul.f32 %v3187, 1.442695
      %v3263 = vpow.pop %v3262
      %v3264 = vmul.f32 %v3188, 1.442695
      %v3265 = vpow.pop %v3264
      %v3266 = vmul.f32 %v3189, 1.442695
      %v3267 = vpow.pop %v3266
      %v3268 = vmul.f32 %v3190, 1.442695
      %v3269 = vpow.pop %v3268
      %v3270 = vmul.f32 %v3191, 1.442695
      %v3271 = vpow.pop %v3270
      %v3272 = vmul.f32 %v3192, 1.442695
      %v3273 = vpow.pop %v3272
      %v3274 = vmul.f32 %v3193, 1.442695
      %v3275 = vpow.pop %v3274
      %v3276 = vmul.f32 %v3194, 1.442695
      %v3277 = vpow.pop %v3276
      %v3278 = vmul.f32 %v3195, 1.442695
      %v3279 = vpow.pop %v3278
      %v3280 = vmul.f32 %v3196, 1.442695
      %v3281 = vpow.pop %v3280
      %v3282 = vmul.f32 %v3197, 1.442695
      %v3283 = vpow.pop %v3282
      %v3284 = vmul.f32 %v3198, 1.442695
      %v3285 = vpow.pop %v3284
      %v3286 = vmul.f32 %v3199, 1.442695
      %v3287 = vpow.pop %v3286
      %v3288 = vmul.f32 %v3200, 1.442695
      %v3289 = vpow.pop %v3288
      %v3290 = vmul.f32 %v3201, 1.442695
      %v3291 = vpow.pop %v3290
      %v3292 = vmul.f32 %v3202, 1.442695
      %v3293 = vpow.pop %v3292
      %v3294 = vmul.f32 %v3203, 1.442695
      %v3295 = vpow.pop %v3294
      %v3296 = vmul.f32 %v3204, 1.442695
      %v3297 = vpow.pop %v3296
      %v3298 = vmul.f32 %v3205, 1.442695
      %v3299 = vpow.pop %v3298
      %v3300 = vmul.f32 %v3206, 1.442695
      %v3301 = vpow.pop %v3300
      %v3302 = vmul.f32 %v3207, 1.442695
      %v3303 = vpow.pop %v3302
      %v3304 = vmul.f32 %v3208, 1.442695
      %v3305 = vpow.pop %v3304
      %v3306 = vmul.f32 %v3209, 1.442695
      %v3307 = vpow.pop %v3306
      %v3308 = vmul.f32 %v3210, 1.442695
      %v3309 = vpow.pop %v3308
      %v3310 = vmul.f32 %v3211, 1.442695
      %v3311 = vpow.pop %v3310
      %v3312 = vmul.f32 %v3212, 1.442695
      %v3313 = vpow.pop %v3312
      %v3314 = vmul.f32 %v3213, 1.442695
      %v3315 = vpow.pop %v3314
      %v3316 = vmul.f32 %v3214, 1.442695
      %v3317 = vpow.pop %v3316
      %v3318 = vmul.f32 %v3215, 1.442695
      %v3319 = vpow.pop %v3318
      %v3320 = vmul.f32 %v3216, 1.442695
      %v3321 = vpow.pop %v3320
      %v3322 = vmul.f32 %v3217, 1.442695
      %v3323 = vpow.pop %v3322
      %v3324 = vmul.f32 %v3218, 1.442695
      %v3325 = vpow.pop %v3324
      %v3326 = vmul.f32 %v3219, 1.442695
      %v3327 = vpow.pop %v3326
      %v3328 = vmul.f32 %v3220, 1.442695
      %v3329 = vpow.pop %v3328
      %v3330 = vmul.f32 %v3221, 1.442695
      %v3331 = vpow.pop %v3330
      %v3332 = vmul.f32 %v3222, 1.442695
      %v3333 = vpow.pop %v3332
      %v3334 = vmul.f32 %v3223, 1.442695
      %v3335 = vpow.pop %v3334
      %v3336 = vmul.f32 %v3224, 1.442695
      %v3337 = vpow.pop %v3336
      %v3338 = vmul.f32 %v3225, 1.442695
      %v3339 = vpow.pop %v3338
      %v3340 = vmul.f32 %v3226, 1.442695
      %v3341 = vpow.pop %v3340
      %v3342 = vmul.f32 %v3227, 1.442695
      %v3343 = vpow.pop %v3342
      %v3344 = vmul.f32 %v3228, 1.442695
      %v3345 = vpow.pop %v3344
      %v3346 = vmul.f32 %v3229, 1.442695
      %v3347 = vpow.pop %v3346
      %v3348 = vmul.f32 %v3230, 1.442695
      %v3349 = vpow.pop %v3348
      %v3350 = vmul.f32 %v3231, 1.442695
      %v3351 = vpow.pop %v3350
      %v3352 = vmul.f32 %v3232, 1.442695
      %v3353 = vpow.pop %v3352
      %v3354 = vmul.f32 %v3233, 1.442695
      %v3355 = vpow.pop %v3354
      %v3356 = vmul.f32 %v3234, 1.442695
      %v3357 = vpow.pop %v3356
      %v3358 = vmul.f32 %v3235, 1.442695
      %v3359 = vpow.pop %v3358
      %v3360 = vmul.f32 %v3236, 1.442695
      %v3361 = vpow.pop %v3360
      %v3362 = vmul.f32 %v3237, 1.442695
      %v3363 = vpow.pop %v3362
      %v3364 = vmul.f32 %v3238, 1.442695
      %v3365 = vpow.pop %v3364
      %v3366 = vmul.f32 %v3239, 1.442695
      %v3367 = vpow.pop %v3366
      %v3368 = vpack.c.bf16 %v3245, %v3241
      %v3369 = vpack.c.bf16 %v3247, %v3243
      %v3370 = vpack.c.bf16 %v3253, %v3249
      %v3371 = vpack.c.bf16 %v3255, %v3251
      %v3372 = vpack.c.bf16 %v3261, %v3257
      %v3373 = vpack.c.bf16 %v3263, %v3259
      %v3374 = vpack.c.bf16 %v3269, %v3265
      %v3375 = vpack.c.bf16 %v3271, %v3267
      %v3376 = vpack.c.bf16 %v3277, %v3273
      %v3377 = vpack.c.bf16 %v3279, %v3275
      %v3378 = vpack.c.bf16 %v3285, %v3281
      %v3379 = vpack.c.bf16 %v3287, %v3283
      %v3380 = vpack.c.bf16 %v3293, %v3289
      %v3381 = vpack.c.bf16 %v3295, %v3291
      %v3382 = vpack.c.bf16 %v3301, %v3297
      %v3383 = vpack.c.bf16 %v3303, %v3299
      %v3384 = vpack.c.bf16 %v3309, %v3305
      %v3385 = vpack.c.bf16 %v3311, %v3307
      %v3386 = vpack.c.bf16 %v3317, %v3313
      %v3387 = vpack.c.bf16 %v3319, %v3315
      %v3388 = vpack.c.bf16 %v3325, %v3321
      %v3389 = vpack.c.bf16 %v3327, %v3323
      %v3390 = vpack.c.bf16 %v3333, %v3329
      %v3391 = vpack.c.bf16 %v3335, %v3331
      %v3392 = vpack.c.bf16 %v3341, %v3337
      %v3393 = vpack.c.bf16 %v3343, %v3339
      %v3394 = vpack.c.bf16 %v3349, %v3345
      %v3395 = vpack.c.bf16 %v3351, %v3347
      %v3396 = vpack.c.bf16 %v3357, %v3353
      %v3397 = vpack.c.bf16 %v3359, %v3355
      %v3398 = vpack.c.bf16 %v3365, %v3361
      %v3399 = vpack.c.bf16 %v3367, %v3363
      %3400 = vmatprep.subr.bf16.mxu0 %v3369
      %3401 = vmatpush1.bf16.xpose.msra.mxu0 %v3368
      %3402 = vmatprep.subr.bf16.mxu0 %v3371
      %3403 = vmatpush1.bf16.xpose.msra.mxu0 %v3370
      %3404 = vmatprep.subr.bf16.mxu0 %v3373
      %3405 = vmatpush1.bf16.xpose.msra.mxu0 %v3372
      %3406 = vmatprep.subr.bf16.mxu0 %v3375
      %3407 = vmatpush1.bf16.xpose.msra.mxu0 %v3374
      %3408 = vmatprep.subr.bf16.mxu0 %v3377
      %3409 = vmatpush1.bf16.xpose.msra.mxu0 %v3376
      %3410 = vmatprep.subr.bf16.mxu0 %v3379
      %3411 = vmatpush1.bf16.xpose.msra.mxu0 %v3378
      %3412 = vmatprep.subr.bf16.mxu0 %v3381
      %3413 = vmatpush1.bf16.xpose.msra.mxu0 %v3380
      %3414 = vmatprep.subr.bf16.mxu0 %v3383
      %3415 = vmatpush1.bf16.xpose.msra.mxu0 %v3382
      %3416 = vmatprep.subr.bf16.mxu0 %v3385
      %3417 = vmatpush1.bf16.xpose.msra.mxu0 %v3384
      %3418 = vmatprep.subr.bf16.mxu0 %v3387
      %3419 = vmatpush1.bf16.xpose.msra.mxu0 %v3386
      %3420 = vmatprep.subr.bf16.mxu0 %v3389
      %3421 = vmatpush1.bf16.xpose.msra.mxu0 %v3388
      %3422 = vmatprep.subr.bf16.mxu0 %v3391
      %3423 = vmatpush1.bf16.xpose.msra.mxu0 %v3390
      %3424 = vmatprep.subr.bf16.mxu0 %v3393
      %3425 = vmatpush1.bf16.xpose.msra.mxu0 %v3392
      %3426 = vmatprep.subr.bf16.mxu0 %v3395
      %3427 = vmatpush1.bf16.xpose.msra.mxu0 %v3394
      %3428 = vmatprep.subr.bf16.mxu0 %v3397
      %3429 = vmatpush1.bf16.xpose.msra.mxu0 %v3396
      %3430 = vmatprep.subr.bf16.mxu0 %v3399
      %3431 = vmatpush1.bf16.xpose.msra.mxu0 %v3398
      %3432 = vmatprep.mubr.bf16.mxu0 %v2703
      %3433 = vmatmul.mubr.bf16.gmra.mrb[0].mxu0 %v2702
      %v3434 = vpop.f32.mrb[0].mxu0
      %v3435 = vadd.f32 0.0, %v3434
      %v3436 = vpop.f32.mrb[0].mxu0
      %v3437 = vadd.f32 0.0, %v3436
      %v3438 = vpop.f32.mrb[0].mxu0
      %v3439 = vpop.f32.mrb[0].mxu0
      %3440 = vdwg.mxu0
      %3441 = vmatprep.subr.bf16.mxu0 %v3369
      %3442 = vmatpush1.bf16.xpose.msra.mxu0 %v3368
      %3443 = vmatprep.subr.bf16.mxu0 %v3371
      %3444 = vmatpush1.bf16.xpose.msra.mxu0 %v3370
      %3445 = vmatprep.subr.bf16.mxu0 %v3373
      %3446 = vmatpush1.bf16.xpose.msra.mxu0 %v3372
      %3447 = vmatprep.subr.bf16.mxu0 %v3375
      %3448 = vmatpush1.bf16.xpose.msra.mxu0 %v3374
      %3449 = vmatprep.subr.bf16.mxu0 %v3377
      %3450 = vmatpush1.bf16.xpose.msra.mxu0 %v3376
      %3451 = vmatprep.subr.bf16.mxu0 %v3379
      %3452 = vmatpush1.bf16.xpose.msra.mxu0 %v3378
      %3453 = vmatprep.subr.bf16.mxu0 %v3381
      %3454 = vmatpush1.bf16.xpose.msra.mxu0 %v3380
      %3455 = vmatprep.subr.bf16.mxu0 %v3383
      %3456 = vmatpush1.bf16.xpose.msra.mxu0 %v3382
      %3457 = vmatprep.subr.bf16.mxu0 %v3385
      %3458 = vmatpush1.bf16.xpose.msra.mxu0 %v3384
      %3459 = vmatprep.subr.bf16.mxu0 %v3387
      %3460 = vmatpush1.bf16.xpose.msra.mxu0 %v3386
      %3461 = vmatprep.subr.bf16.mxu0 %v3389
      %3462 = vmatpush1.bf16.xpose.msra.mxu0 %v3388
      %3463 = vmatprep.subr.bf16.mxu0 %v3391
      %3464 = vmatpush1.bf16.xpose.msra.mxu0 %v3390
      %3465 = vmatprep.subr.bf16.mxu0 %v3393
      %3466 = vmatpush1.bf16.xpose.msra.mxu0 %v3392
      %3467 = vmatprep.subr.bf16.mxu0 %v3395
      %3468 = vmatpush1.bf16.xpose.msra.mxu0 %v3394
      %3469 = vmatprep.subr.bf16.mxu0 %v3397
      %3470 = vmatpush1.bf16.xpose.msra.mxu0 %v3396
      %3471 = vmatprep.subr.bf16.mxu0 %v3399
      %3472 = vmatpush1.bf16.xpose.msra.mxu0 %v3398
      %3473 = vmatprep.mubr.bf16.mxu0 1065369472
      %3474 = vmatmul.mubr.bf16.gmra.mrb[0].mxu0 1065369472
      %v3475 = vpop.f32.mrb[0].mxu0
      %v3476 = vadd.f32 0.0, %v3475
      %v3477 = vpop.f32.mrb[0].mxu0
      %v3478 = vadd.f32 0.0, %v3477
      %v3479 = vpop.f32.mrb[0].mxu0
      %v3480 = vpop.f32.mrb[0].mxu0
      %3481 = vdwg.mxu0
      %v3482 = vrcp.pop %v3476
      %v3483 = vrcp.pop %v3478
      %v3484 = vlaneseq
      %v3485 = vshrl.u32 %v3484, 7
      %v3486 = vsub.s32 0, %v3485
      %v3487 = vrot.slane %v3482, %v3486
      %v3488 = vlaneseq
      %v3489 = vshrl.u32 %v3488, 7
      %v3490 = vsub.s32 0, %v3489
      %v3491 = vrot.slane %v3483, %v3490
      %v3492 = vmul.f32 %v3435, %v3487
      %v3493 = vmul.f32 %v3437, %v3491
      %s3494 = scalar_lea.vmem %s3, 768
      %v3495 = vld [vmem:[%s3494] sm:$0xff]
      %v3496 = vld [vmem:[%s3494 + $0x8] sm:$0xff]
      %v3497 = vld [vmem:[%s3494 + $0x10] sm:$0xff]
      %v3498 = vld [vmem:[%s3494 + $0x18] sm:$0xff]
      %v3499 = vld [vmem:[%s3494 + $0x20] sm:$0xff]
      %v3500 = vld [vmem:[%s3494 + $0x28] sm:$0xff]
      %v3501 = vld [vmem:[%s3494 + $0x30] sm:$0xff]
      %v3502 = vld [vmem:[%s3494 + $0x38] sm:$0xff]
      %v3503 = vld [vmem:[%s3494 + $0x40] sm:$0xff]
      %v3504 = vld [vmem:[%s3494 + $0x48] sm:$0xff]
      %v3505 = vld [vmem:[%s3494 + $0x50] sm:$0xff]
      %v3506 = vld [vmem:[%s3494 + $0x58] sm:$0xff]
      %v3507 = vld [vmem:[%s3494 + $0x60] sm:$0xff]
      %v3508 = vld [vmem:[%s3494 + $0x68] sm:$0xff]
      %v3509 = vld [vmem:[%s3494 + $0x70] sm:$0xff]
      %v3510 = vld [vmem:[%s3494 + $0x78] sm:$0xff]
      %v3511 = vld [vmem:[%s3494 + $0x80] sm:$0xff]
      %v3512 = vld [vmem:[%s3494 + $0x88] sm:$0xff]
      %v3513 = vld [vmem:[%s3494 + $0x90] sm:$0xff]
      %v3514 = vld [vmem:[%s3494 + $0x98] sm:$0xff]
      %v3515 = vld [vmem:[%s3494 + $0xa0] sm:$0xff]
      %v3516 = vld [vmem:[%s3494 + $0xa8] sm:$0xff]
      %v3517 = vld [vmem:[%s3494 + $0xb0] sm:$0xff]
      %v3518 = vld [vmem:[%s3494 + $0xb8] sm:$0xff]
      %v3519 = vld [vmem:[%s3494 + $0xc0] sm:$0xff]
      %v3520 = vld [vmem:[%s3494 + $0xc8] sm:$0xff]
      %v3521 = vld [vmem:[%s3494 + $0xd0] sm:$0xff]
      %v3522 = vld [vmem:[%s3494 + $0xd8] sm:$0xff]
      %v3523 = vld [vmem:[%s3494 + $0xe0] sm:$0xff]
      %v3524 = vld [vmem:[%s3494 + $0xe8] sm:$0xff]
      %v3525 = vld [vmem:[%s3494 + $0xf0] sm:$0xff]
      %v3526 = vld [vmem:[%s3494 + $0xf8] sm:$0xff]
      %v3527 = vunpack.c.l.bf16 %v3495
      %v3528 = vunpack.c.h.bf16 %v3495
      %v3529 = vunpack.c.l.bf16 %v3496
      %v3530 = vunpack.c.h.bf16 %v3496
      %v3531 = vunpack.c.l.bf16 %v3497
      %v3532 = vunpack.c.h.bf16 %v3497
      %v3533 = vunpack.c.l.bf16 %v3498
      %v3534 = vunpack.c.h.bf16 %v3498
      %v3535 = vunpack.c.l.bf16 %v3499
      %v3536 = vunpack.c.h.bf16 %v3499
      %v3537 = vunpack.c.l.bf16 %v3500
      %v3538 = vunpack.c.h.bf16 %v3500
      %v3539 = vunpack.c.l.bf16 %v3501
      %v3540 = vunpack.c.h.bf16 %v3501
      %v3541 = vunpack.c.l.bf16 %v3502
      %v3542 = vunpack.c.h.bf16 %v3502
      %v3543 = vunpack.c.l.bf16 %v3503
      %v3544 = vunpack.c.h.bf16 %v3503
      %v3545 = vunpack.c.l.bf16 %v3504
      %v3546 = vunpack.c.h.bf16 %v3504
      %v3547 = vunpack.c.l.bf16 %v3505
      %v3548 = vunpack.c.h.bf16 %v3505
      %v3549 = vunpack.c.l.bf16 %v3506
      %v3550 = vunpack.c.h.bf16 %v3506
      %v3551 = vunpack.c.l.bf16 %v3507
      %v3552 = vunpack.c.h.bf16 %v3507
      %v3553 = vunpack.c.l.bf16 %v3508
      %v3554 = vunpack.c.h.bf16 %v3508
      %v3555 = vunpack.c.l.bf16 %v3509
      %v3556 = vunpack.c.h.bf16 %v3509
      %v3557 = vunpack.c.l.bf16 %v3510
      %v3558 = vunpack.c.h.bf16 %v3510
      %v3559 = vunpack.c.l.bf16 %v3511
      %v3560 = vunpack.c.h.bf16 %v3511
      %v3561 = vunpack.c.l.bf16 %v3512
      %v3562 = vunpack.c.h.bf16 %v3512
      %v3563 = vunpack.c.l.bf16 %v3513
      %v3564 = vunpack.c.h.bf16 %v3513
      %v3565 = vunpack.c.l.bf16 %v3514
      %v3566 = vunpack.c.h.bf16 %v3514
      %v3567 = vunpack.c.l.bf16 %v3515
      %v3568 = vunpack.c.h.bf16 %v3515
      %v3569 = vunpack.c.l.bf16 %v3516
      %v3570 = vunpack.c.h.bf16 %v3516
      %v3571 = vunpack.c.l.bf16 %v3517
      %v3572 = vunpack.c.h.bf16 %v3517
      %v3573 = vunpack.c.l.bf16 %v3518
      %v3574 = vunpack.c.h.bf16 %v3518
      %v3575 = vunpack.c.l.bf16 %v3519
      %v3576 = vunpack.c.h.bf16 %v3519
      %v3577 = vunpack.c.l.bf16 %v3520
      %v3578 = vunpack.c.h.bf16 %v3520
      %v3579 = vunpack.c.l.bf16 %v3521
      %v3580 = vunpack.c.h.bf16 %v3521
      %v3581 = vunpack.c.l.bf16 %v3522
      %v3582 = vunpack.c.h.bf16 %v3522
      %v3583 = vunpack.c.l.bf16 %v3523
      %v3584 = vunpack.c.h.bf16 %v3523
      %v3585 = vunpack.c.l.bf16 %v3524
      %v3586 = vunpack.c.h.bf16 %v3524
      %v3587 = vunpack.c.l.bf16 %v3525
      %v3588 = vunpack.c.h.bf16 %v3525
      %v3589 = vunpack.c.l.bf16 %v3526
      %v3590 = vunpack.c.h.bf16 %v3526
      %3591 = vrot.lane.b32.xlu0 %v1105, 116
      %v3592 = vpop.permute.xlu0 %3591
      %3593 = vrot.lane.b32.xlu0 %v1106, 116
      %v3594 = vpop.permute.xlu0 %3593
      %3595 = vrot.lane.b32.xlu0 %v1107, 116
      %v3596 = vpop.permute.xlu0 %3595
      %3597 = vrot.lane.b32.xlu0 %v1108, 116
      %v3598 = vpop.permute.xlu0 %3597
      %3599 = vrot.lane.b32.xlu0 %v1109, 116
      %v3600 = vpop.permute.xlu0 %3599
      %3601 = vrot.lane.b32.xlu0 %v1110, 116
      %v3602 = vpop.permute.xlu0 %3601
      %3603 = vrot.lane.b32.xlu0 %v1111, 116
      %v3604 = vpop.permute.xlu0 %3603
      %3605 = vrot.lane.b32.xlu0 %v1112, 116
      %v3606 = vpop.permute.xlu0 %3605
      %3607 = vrot.lane.b32.xlu0 %v1113, 116
      %v3608 = vpop.permute.xlu0 %3607
      %3609 = vrot.lane.b32.xlu0 %v1114, 116
      %v3610 = vpop.permute.xlu0 %3609
      %3611 = vrot.lane.b32.xlu0 %v1115, 116
      %v3612 = vpop.permute.xlu0 %3611
      %3613 = vrot.lane.b32.xlu0 %v1116, 116
      %v3614 = vpop.permute.xlu0 %3613
      %3615 = vrot.lane.b32.xlu0 %v1117, 116
      %v3616 = vpop.permute.xlu0 %3615
      %3617 = vrot.lane.b32.xlu0 %v1118, 116
      %v3618 = vpop.permute.xlu0 %3617
      %3619 = vrot.lane.b32.xlu0 %v1119, 116
      %v3620 = vpop.permute.xlu0 %3619
      %3621 = vrot.lane.b32.xlu0 %v1120, 116
      %v3622 = vpop.permute.xlu0 %3621
      %v3625 = vrot.slane %v2700, 2
      %v3626 = vrot.slane %v2701, 2
      %v3628 = vsel %vm1221, %v3592, 0
      %v3631 = vsel %vm1221, %v3594, 0
      %v3634 = vsel %vm1221, %v3596, 0
      %v3637 = vsel %vm1221, %v3598, 0
      %v3640 = vsel %vm1221, %v3600, 0
      %v3643 = vsel %vm1221, %v3602, 0
      %v3646 = vsel %vm1221, %v3604, 0
      %v3649 = vsel %vm1221, %v3606, 0
      %v3652 = vsel %vm1221, %v3608, 0
      %v3655 = vsel %vm1221, %v3610, 0
      %v3658 = vsel %vm1221, %v3612, 0
      %v3661 = vsel %vm1221, %v3614, 0
      %v3664 = vsel %vm1221, %v3616, 0
      %v3667 = vsel %vm1221, %v3618, 0
      %v3670 = vsel %vm1221, %v3620, 0
      %v3673 = vsel %vm1221, %v3622, 0
      %v3676 = vsel %vm1270, %v3625, 0
      %v3679 = vsel %vm1270, %v3626, 0
      %3681 = vmatprep.subr.bf16.mxu0 %v3679
      %3682 = vmatpush1.bf16.msra.mxu0 %v3676
      %3683 = vmatprep.subr.bf16.mxu0 0
      %3684 = vmatpush1.bf16.msra.mxu0 0
      %3685 = vmatprep.subr.bf16.mxu0 0
      %3686 = vmatpush1.bf16.msra.mxu0 0
      %3687 = vmatprep.subr.bf16.mxu0 0
      %3688 = vmatpush1.bf16.msra.mxu0 0
      %3689 = vmatprep.subr.bf16.mxu0 0
      %3690 = vmatpush1.bf16.msra.mxu0 0
      %3691 = vmatprep.subr.bf16.mxu0 0
      %3692 = vmatpush1.bf16.msra.mxu0 0
      %3693 = vmatprep.subr.bf16.mxu0 0
      %3694 = vmatpush1.bf16.msra.mxu0 0
      %3695 = vmatprep.subr.bf16.mxu0 0
      %3696 = vmatpush1.bf16.msra.mxu0 0
      %3697 = vmatprep.subr.bf16.mxu0 0
      %3698 = vmatpush1.bf16.msra.mxu0 0
      %3699 = vmatprep.subr.bf16.mxu0 0
      %3700 = vmatpush1.bf16.msra.mxu0 0
      %3701 = vmatprep.subr.bf16.mxu0 0
      %3702 = vmatpush1.bf16.msra.mxu0 0
      %3703 = vmatprep.subr.bf16.mxu0 0
      %3704 = vmatpush1.bf16.msra.mxu0 0
      %3705 = vmatprep.subr.bf16.mxu0 0
      %3706 = vmatpush1.bf16.msra.mxu0 0
      %3707 = vmatprep.subr.bf16.mxu0 0
      %3708 = vmatpush1.bf16.msra.mxu0 0
      %3709 = vmatprep.subr.bf16.mxu0 0
      %3710 = vmatpush1.bf16.msra.mxu0 0
      %3711 = vmatprep.subr.bf16.mxu0 0
      %3712 = vmatpush1.bf16.msra.mxu0 0
      %3713 = vmatprep.mubr.bf16.mxu0 0
      %3714 = vmatmul.mubr.bf16.gmra.mrb[0].mxu0 %v3628
      %v3715 = vpop.f32.mrb[0].mxu0
      %v3716 = vadd.f32 %v3527, %v3715
      %v3717 = vpop.f32.mrb[0].mxu0
      %v3718 = vadd.f32 %v3528, %v3717
      %v3719 = vpop.f32.mrb[0].mxu0
      %v3720 = vadd.f32 %v3529, %v3719
      %v3721 = vpop.f32.mrb[0].mxu0
      %v3722 = vadd.f32 %v3530, %v3721
      %3723 = vmatprep.mubr.bf16.mxu0 0
      %3724 = vmatmul.mubr.bf16.gmra.mrb[0].mxu0 %v3631
      %v3725 = vpop.f32.mrb[0].mxu0
      %v3726 = vadd.f32 %v3531, %v3725
      %v3727 = vpop.f32.mrb[0].mxu0
      %v3728 = vadd.f32 %v3532, %v3727
      %v3729 = vpop.f32.mrb[0].mxu0
      %v3730 = vadd.f32 %v3533, %v3729
      %v3731 = vpop.f32.mrb[0].mxu0
      %v3732 = vadd.f32 %v3534, %v3731
      %3733 = vmatprep.mubr.bf16.mxu0 0
      %3734 = vmatmul.mubr.bf16.gmra.mrb[0].mxu0 %v3634
      %v3735 = vpop.f32.mrb[0].mxu0
      %v3736 = vadd.f32 %v3535, %v3735
      %v3737 = vpop.f32.mrb[0].mxu0
      %v3738 = vadd.f32 %v3536, %v3737
      %v3739 = vpop.f32.mrb[0].mxu0
      %v3740 = vadd.f32 %v3537, %v3739
      %v3741 = vpop.f32.mrb[0].mxu0
      %v3742 = vadd.f32 %v3538, %v3741
      %3743 = vmatprep.mubr.bf16.mxu0 0
      %3744 = vmatmul.mubr.bf16.gmra.mrb[0].mxu0 %v3637
      %v3745 = vpop.f32.mrb[0].mxu0
      %v3746 = vadd.f32 %v3539, %v3745
      %v3747 = vpop.f32.mrb[0].mxu0
      %v3748 = vadd.f32 %v3540, %v3747
      %v3749 = vpop.f32.mrb[0].mxu0
      %v3750 = vadd.f32 %v3541, %v3749
      %v3751 = vpop.f32.mrb[0].mxu0
      %v3752 = vadd.f32 %v3542, %v3751
      %3753 = vmatprep.mubr.bf16.mxu0 0
      %3754 = vmatmul.mubr.bf16.gmra.mrb[0].mxu0 %v3640
      %v3755 = vpop.f32.mrb[0].mxu0
      %v3756 = vadd.f32 %v3543, %v3755
      %v3757 = vpop.f32.mrb[0].mxu0
      %v3758 = vadd.f32 %v3544, %v3757
      %v3759 = vpop.f32.mrb[0].mxu0
      %v3760 = vadd.f32 %v3545, %v3759
      %v3761 = vpop.f32.mrb[0].mxu0
      %v3762 = vadd.f32 %v3546, %v3761
      %3763 = vmatprep.mubr.bf16.mxu0 0
      %3764 = vmatmul.mubr.bf16.gmra.mrb[0].mxu0 %v3643
      %v3765 = vpop.f32.mrb[0].mxu0
      %v3766 = vadd.f32 %v3547, %v3765
      %v3767 = vpop.f32.mrb[0].mxu0
      %v3768 = vadd.f32 %v3548, %v3767
      %v3769 = vpop.f32.mrb[0].mxu0
      %v3770 = vadd.f32 %v3549, %v3769
      %v3771 = vpop.f32.mrb[0].mxu0
      %v3772 = vadd.f32 %v3550, %v3771
      %3773 = vmatprep.mubr.bf16.mxu0 0
      %3774 = vmatmul.mubr.bf16.gmra.mrb[0].mxu0 %v3646
      %v3775 = vpop.f32.mrb[0].mxu0
      %v3776 = vadd.f32 %v3551, %v3775
      %v3777 = vpop.f32.mrb[0].mxu0
      %v3778 = vadd.f32 %v3552, %v3777
      %v3779 = vpop.f32.mrb[0].mxu0
      %v3780 = vadd.f32 %v3553, %v3779
      %v3781 = vpop.f32.mrb[0].mxu0
      %v3782 = vadd.f32 %v3554, %v3781
      %3783 = vmatprep.mubr.bf16.mxu0 0
      %3784 = vmatmul.mubr.bf16.gmra.mrb[0].mxu0 %v3649
      %v3785 = vpop.f32.mrb[0].mxu0
      %v3786 = vadd.f32 %v3555, %v3785
      %v3787 = vpop.f32.mrb[0].mxu0
      %v3788 = vadd.f32 %v3556, %v3787
      %v3789 = vpop.f32.mrb[0].mxu0
      %v3790 = vadd.f32 %v3557, %v3789
      %v3791 = vpop.f32.mrb[0].mxu0
      %v3792 = vadd.f32 %v3558, %v3791
      %3793 = vmatprep.mubr.bf16.mxu0 0
      %3794 = vmatmul.mubr.bf16.gmra.mrb[0].mxu0 %v3652
      %v3795 = vpop.f32.mrb[0].mxu0
      %v3796 = vadd.f32 %v3559, %v3795
      %v3797 = vpop.f32.mrb[0].mxu0
      %v3798 = vadd.f32 %v3560, %v3797
      %v3799 = vpop.f32.mrb[0].mxu0
      %v3800 = vadd.f32 %v3561, %v3799
      %v3801 = vpop.f32.mrb[0].mxu0
      %v3802 = vadd.f32 %v3562, %v3801
      %3803 = vmatprep.mubr.bf16.mxu0 0
      %3804 = vmatmul.mubr.bf16.gmra.mrb[0].mxu0 %v3655
      %v3805 = vpop.f32.mrb[0].mxu0
      %v3806 = vadd.f32 %v3563, %v3805
      %v3807 = vpop.f32.mrb[0].mxu0
      %v3808 = vadd.f32 %v3564, %v3807
      %v3809 = vpop.f32.mrb[0].mxu0
      %v3810 = vadd.f32 %v3565, %v3809
      %v3811 = vpop.f32.mrb[0].mxu0
      %v3812 = vadd.f32 %v3566, %v3811
      %3813 = vmatprep.mubr.bf16.mxu0 0
      %3814 = vmatmul.mubr.bf16.gmra.mrb[0].mxu0 %v3658
      %v3815 = vpop.f32.mrb[0].mxu0
      %v3816 = vadd.f32 %v3567, %v3815
      %v3817 = vpop.f32.mrb[0].mxu0
      %v3818 = vadd.f32 %v3568, %v3817
      %v3819 = vpop.f32.mrb[0].mxu0
      %v3820 = vadd.f32 %v3569, %v3819
      %v3821 = vpop.f32.mrb[0].mxu0
      %v3822 = vadd.f32 %v3570, %v3821
      %3823 = vmatprep.mubr.bf16.mxu0 0
      %3824 = vmatmul.mubr.bf16.gmra.mrb[0].mxu0 %v3661
      %v3825 = vpop.f32.mrb[0].mxu0
      %v3826 = vadd.f32 %v3571, %v3825
      %v3827 = vpop.f32.mrb[0].mxu0
      %v3828 = vadd.f32 %v3572, %v3827
      %v3829 = vpop.f32.mrb[0].mxu0
      %v3830 = vadd.f32 %v3573, %v3829
      %v3831 = vpop.f32.mrb[0].mxu0
      %v3832 = vadd.f32 %v3574, %v3831
      %3833 = vmatprep.mubr.bf16.mxu0 0
      %3834 = vmatmul.mubr.bf16.gmra.mrb[0].mxu0 %v3664
      %v3835 = vpop.f32.mrb[0].mxu0
      %v3836 = vadd.f32 %v3575, %v3835
      %v3837 = vpop.f32.mrb[0].mxu0
      %v3838 = vadd.f32 %v3576, %v3837
      %v3839 = vpop.f32.mrb[0].mxu0
      %v3840 = vadd.f32 %v3577, %v3839
      %v3841 = vpop.f32.mrb[0].mxu0
      %v3842 = vadd.f32 %v3578, %v3841
      %3843 = vmatprep.mubr.bf16.mxu0 0
      %3844 = vmatmul.mubr.bf16.gmra.mrb[0].mxu0 %v3667
      %v3845 = vpop.f32.mrb[0].mxu0
      %v3846 = vadd.f32 %v3579, %v3845
      %v3847 = vpop.f32.mrb[0].mxu0
      %v3848 = vadd.f32 %v3580, %v3847
      %v3849 = vpop.f32.mrb[0].mxu0
      %v3850 = vadd.f32 %v3581, %v3849
      %v3851 = vpop.f32.mrb[0].mxu0
      %v3852 = vadd.f32 %v3582, %v3851
      %3853 = vmatprep.mubr.bf16.mxu0 0
      %3854 = vmatmul.mubr.bf16.gmra.mrb[0].mxu0 %v3670
      %v3855 = vpop.f32.mrb[0].mxu0
      %v3856 = vadd.f32 %v3583, %v3855
      %v3857 = vpop.f32.mrb[0].mxu0
      %v3858 = vadd.f32 %v3584, %v3857
      %v3859 = vpop.f32.mrb[0].mxu0
      %v3860 = vadd.f32 %v3585, %v3859
      %v3861 = vpop.f32.mrb[0].mxu0
      %v3862 = vadd.f32 %v3586, %v3861
      %3863 = vmatprep.mubr.bf16.mxu0 0
      %3864 = vmatmul.mubr.bf16.gmra.mrb[0].mxu0 %v3673
      %v3865 = vpop.f32.mrb[0].mxu0
      %v3866 = vadd.f32 %v3587, %v3865
      %v3867 = vpop.f32.mrb[0].mxu0
      %v3868 = vadd.f32 %v3588, %v3867
      %v3869 = vpop.f32.mrb[0].mxu0
      %v3870 = vadd.f32 %v3589, %v3869
      %v3871 = vpop.f32.mrb[0].mxu0
      %v3872 = vadd.f32 %v3590, %v3871
      %3873 = vdwg.mxu0
      %v3874 = vmax.f32 %v3716, %v3718
      %3875 = vmax.xlane.f32.xlu0 %v3874
      %v3876 = vpop.xlane.xlu0 %3875
      %v3877 = vmax.f32 %v3720, %v3722
      %3878 = vmax.xlane.f32.xlu0 %v3877
      %v3879 = vpop.xlane.xlu0 %3878
      %v3880 = vmax.f32 %v3726, %v3728
      %3881 = vmax.xlane.f32.xlu0 %v3880
      %v3882 = vpop.xlane.xlu0 %3881
      %v3883 = vmax.f32 %v3730, %v3732
      %3884 = vmax.xlane.f32.xlu0 %v3883
      %v3885 = vpop.xlane.xlu0 %3884
      %v3886 = vmax.f32 %v3736, %v3738
      %3887 = vmax.xlane.f32.xlu0 %v3886
      %v3888 = vpop.xlane.xlu0 %3887
      %v3889 = vmax.f32 %v3740, %v3742
      %3890 = vmax.xlane.f32.xlu0 %v3889
      %v3891 = vpop.xlane.xlu0 %3890
      %v3892 = vmax.f32 %v3746, %v3748
      %3893 = vmax.xlane.f32.xlu0 %v3892
      %v3894 = vpop.xlane.xlu0 %3893
      %v3895 = vmax.f32 %v3750, %v3752
      %3896 = vmax.xlane.f32.xlu0 %v3895
      %v3897 = vpop.xlane.xlu0 %3896
      %v3898 = vmax.f32 %v3756, %v3758
      %3899 = vmax.xlane.f32.xlu0 %v3898
      %v3900 = vpop.xlane.xlu0 %3899
      %v3901 = vmax.f32 %v3760, %v3762
      %3902 = vmax.xlane.f32.xlu0 %v3901
      %v3903 = vpop.xlane.xlu0 %3902
      %v3904 = vmax.f32 %v3766, %v3768
      %3905 = vmax.xlane.f32.xlu0 %v3904
      %v3906 = vpop.xlane.xlu0 %3905
      %v3907 = vmax.f32 %v3770, %v3772
      %3908 = vmax.xlane.f32.xlu0 %v3907
      %v3909 = vpop.xlane.xlu0 %3908
      %v3910 = vmax.f32 %v3776, %v3778
      %3911 = vmax.xlane.f32.xlu0 %v3910
      %v3912 = vpop.xlane.xlu0 %3911
      %v3913 = vmax.f32 %v3780, %v3782
      %3914 = vmax.xlane.f32.xlu0 %v3913
      %v3915 = vpop.xlane.xlu0 %3914
      %v3916 = vmax.f32 %v3786, %v3788
      %3917 = vmax.xlane.f32.xlu0 %v3916
      %v3918 = vpop.xlane.xlu0 %3917
      %v3919 = vmax.f32 %v3790, %v3792
      %3920 = vmax.xlane.f32.xlu0 %v3919
      %v3921 = vpop.xlane.xlu0 %3920
      %v3922 = vmax.f32 %v3796, %v3798
      %3923 = vmax.xlane.f32.xlu0 %v3922
      %v3924 = vpop.xlane.xlu0 %3923
      %v3925 = vmax.f32 %v3800, %v3802
      %3926 = vmax.xlane.f32.xlu0 %v3925
      %v3927 = vpop.xlane.xlu0 %3926
      %v3928 = vmax.f32 %v3806, %v3808
      %3929 = vmax.xlane.f32.xlu0 %v3928
      %v3930 = vpop.xlane.xlu0 %3929
      %v3931 = vmax.f32 %v3810, %v3812
      %3932 = vmax.xlane.f32.xlu0 %v3931
      %v3933 = vpop.xlane.xlu0 %3932
      %v3934 = vmax.f32 %v3816, %v3818
      %3935 = vmax.xlane.f32.xlu0 %v3934
      %v3936 = vpop.xlane.xlu0 %3935
      %v3937 = vmax.f32 %v3820, %v3822
      %3938 = vmax.xlane.f32.xlu0 %v3937
      %v3939 = vpop.xlane.xlu0 %3938
      %v3940 = vmax.f32 %v3826, %v3828
      %3941 = vmax.xlane.f32.xlu0 %v3940
      %v3942 = vpop.xlane.xlu0 %3941
      %v3943 = vmax.f32 %v3830, %v3832
      %3944 = vmax.xlane.f32.xlu0 %v3943
      %v3945 = vpop.xlane.xlu0 %3944
      %v3946 = vmax.f32 %v3836, %v3838
      %3947 = vmax.xlane.f32.xlu0 %v3946
      %v3948 = vpop.xlane.xlu0 %3947
      %v3949 = vmax.f32 %v3840, %v3842
      %3950 = vmax.xlane.f32.xlu0 %v3949
      %v3951 = vpop.xlane.xlu0 %3950
      %v3952 = vmax.f32 %v3846, %v3848
      %3953 = vmax.xlane.f32.xlu0 %v3952
      %v3954 = vpop.xlane.xlu0 %3953
      %v3955 = vmax.f32 %v3850, %v3852
      %3956 = vmax.xlane.f32.xlu0 %v3955
      %v3957 = vpop.xlane.xlu0 %3956
      %v3958 = vmax.f32 %v3856, %v3858
      %3959 = vmax.xlane.f32.xlu0 %v3958
      %v3960 = vpop.xlane.xlu0 %3959
      %v3961 = vmax.f32 %v3860, %v3862
      %3962 = vmax.xlane.f32.xlu0 %v3961
      %v3963 = vpop.xlane.xlu0 %3962
      %v3964 = vmax.f32 %v3866, %v3868
      %3965 = vmax.xlane.f32.xlu0 %v3964
      %v3966 = vpop.xlane.xlu0 %3965
      %v3967 = vmax.f32 %v3870, %v3872
      %3968 = vmax.xlane.f32.xlu0 %v3967
      %v3969 = vpop.xlane.xlu0 %3968
      %v3970 = vsub.f32 %v3716, %v3876
      %v3971 = vsub.f32 %v3718, %v3876
      %v3972 = vsub.f32 %v3720, %v3879
      %v3973 = vsub.f32 %v3722, %v3879
      %v3974 = vsub.f32 %v3726, %v3882
      %v3975 = vsub.f32 %v3728, %v3882
      %v3976 = vsub.f32 %v3730, %v3885
      %v3977 = vsub.f32 %v3732, %v3885
      %v3978 = vsub.f32 %v3736, %v3888
      %v3979 = vsub.f32 %v3738, %v3888
      %v3980 = vsub.f32 %v3740, %v3891
      %v3981 = vsub.f32 %v3742, %v3891
      %v3982 = vsub.f32 %v3746, %v3894
      %v3983 = vsub.f32 %v3748, %v3894
      %v3984 = vsub.f32 %v3750, %v3897
      %v3985 = vsub.f32 %v3752, %v3897
      %v3986 = vsub.f32 %v3756, %v3900
      %v3987 = vsub.f32 %v3758, %v3900
      %v3988 = vsub.f32 %v3760, %v3903
      %v3989 = vsub.f32 %v3762, %v3903
      %v3990 = vsub.f32 %v3766, %v3906
      %v3991 = vsub.f32 %v3768, %v3906
      %v3992 = vsub.f32 %v3770, %v3909
      %v3993 = vsub.f32 %v3772, %v3909
      %v3994 = vsub.f32 %v3776, %v3912
      %v3995 = vsub.f32 %v3778, %v3912
      %v3996 = vsub.f32 %v3780, %v3915
      %v3997 = vsub.f32 %v3782, %v3915
      %v3998 = vsub.f32 %v3786, %v3918
      %v3999 = vsub.f32 %v3788, %v3918
      %v4000 = vsub.f32 %v3790, %v3921
      %v4001 = vsub.f32 %v3792, %v3921
      %v4002 = vsub.f32 %v3796, %v3924
      %v4003 = vsub.f32 %v3798, %v3924
      %v4004 = vsub.f32 %v3800, %v3927
      %v4005 = vsub.f32 %v3802, %v3927
      %v4006 = vsub.f32 %v3806, %v3930
      %v4007 = vsub.f32 %v3808, %v3930
      %v4008 = vsub.f32 %v3810, %v3933
      %v4009 = vsub.f32 %v3812, %v3933
      %v4010 = vsub.f32 %v3816, %v3936
      %v4011 = vsub.f32 %v3818, %v3936
      %v4012 = vsub.f32 %v3820, %v3939
      %v4013 = vsub.f32 %v3822, %v3939
      %v4014 = vsub.f32 %v3826, %v3942
      %v4015 = vsub.f32 %v3828, %v3942
      %v4016 = vsub.f32 %v3830, %v3945
      %v4017 = vsub.f32 %v3832, %v3945
      %v4018 = vsub.f32 %v3836, %v3948
      %v4019 = vsub.f32 %v3838, %v3948
      %v4020 = vsub.f32 %v3840, %v3951
      %v4021 = vsub.f32 %v3842, %v3951
      %v4022 = vsub.f32 %v3846, %v3954
      %v4023 = vsub.f32 %v3848, %v3954
      %v4024 = vsub.f32 %v3850, %v3957
      %v4025 = vsub.f32 %v3852, %v3957
      %v4026 = vsub.f32 %v3856, %v3960
      %v4027 = vsub.f32 %v3858, %v3960
      %v4028 = vsub.f32 %v3860, %v3963
      %v4029 = vsub.f32 %v3862, %v3963
      %v4030 = vsub.f32 %v3866, %v3966
      %v4031 = vsub.f32 %v3868, %v3966
      %v4032 = vsub.f32 %v3870, %v3969
      %v4033 = vsub.f32 %v3872, %v3969
      %v4034 = vmul.f32 %v3970, 1.442695
      %v4035 = vpow.pop %v4034
      %v4036 = vmul.f32 %v3971, 1.442695
      %v4037 = vpow.pop %v4036
      %v4038 = vmul.f32 %v3972, 1.442695
      %v4039 = vpow.pop %v4038
      %v4040 = vmul.f32 %v3973, 1.442695
      %v4041 = vpow.pop %v4040
      %v4042 = vmul.f32 %v3974, 1.442695
      %v4043 = vpow.pop %v4042
      %v4044 = vmul.f32 %v3975, 1.442695
      %v4045 = vpow.pop %v4044
      %v4046 = vmul.f32 %v3976, 1.442695
      %v4047 = vpow.pop %v4046
      %v4048 = vmul.f32 %v3977, 1.442695
      %v4049 = vpow.pop %v4048
      %v4050 = vmul.f32 %v3978, 1.442695
      %v4051 = vpow.pop %v4050
      %v4052 = vmul.f32 %v3979, 1.442695
      %v4053 = vpow.pop %v4052
      %v4054 = vmul.f32 %v3980, 1.442695
      %v4055 = vpow.pop %v4054
      %v4056 = vmul.f32 %v3981, 1.442695
      %v4057 = vpow.pop %v4056
      %v4058 = vmul.f32 %v3982, 1.442695
      %v4059 = vpow.pop %v4058
      %v4060 = vmul.f32 %v3983, 1.442695
      %v4061 = vpow.pop %v4060
      %v4062 = vmul.f32 %v3984, 1.442695
      %v4063 = vpow.pop %v4062
      %v4064 = vmul.f32 %v3985, 1.442695
      %v4065 = vpow.pop %v4064
      %v4066 = vmul.f32 %v3986, 1.442695
      %v4067 = vpow.pop %v4066
      %v4068 = vmul.f32 %v3987, 1.442695
      %v4069 = vpow.pop %v4068
      %v4070 = vmul.f32 %v3988, 1.442695
      %v4071 = vpow.pop %v4070
      %v4072 = vmul.f32 %v3989, 1.442695
      %v4073 = vpow.pop %v4072
      %v4074 = vmul.f32 %v3990, 1.442695
      %v4075 = vpow.pop %v4074
      %v4076 = vmul.f32 %v3991, 1.442695
      %v4077 = vpow.pop %v4076
      %v4078 = vmul.f32 %v3992, 1.442695
      %v4079 = vpow.pop %v4078
      %v4080 = vmul.f32 %v3993, 1.442695
      %v4081 = vpow.pop %v4080
      %v4082 = vmul.f32 %v3994, 1.442695
      %v4083 = vpow.pop %v4082
      %v4084 = vmul.f32 %v3995, 1.442695
      %v4085 = vpow.pop %v4084
      %v4086 = vmul.f32 %v3996, 1.442695
      %v4087 = vpow.pop %v4086
      %v4088 = vmul.f32 %v3997, 1.442695
      %v4089 = vpow.pop %v4088
      %v4090 = vmul.f32 %v3998, 1.442695
      %v4091 = vpow.pop %v4090
      %v4092 = vmul.f32 %v3999, 1.442695
      %v4093 = vpow.pop %v4092
      %v4094 = vmul.f32 %v4000, 1.442695
      %v4095 = vpow.pop %v4094
      %v4096 = vmul.f32 %v4001, 1.442695
      %v4097 = vpow.pop %v4096
      %v4098 = vmul.f32 %v4002, 1.442695
      %v4099 = vpow.pop %v4098
      %v4100 = vmul.f32 %v4003, 1.442695
      %v4101 = vpow.pop %v4100
      %v4102 = vmul.f32 %v4004, 1.442695
      %v4103 = vpow.pop %v4102
      %v4104 = vmul.f32 %v4005, 1.442695
      %v4105 = vpow.pop %v4104
      %v4106 = vmul.f32 %v4006, 1.442695
      %v4107 = vpow.pop %v4106
      %v4108 = vmul.f32 %v4007, 1.442695
      %v4109 = vpow.pop %v4108
      %v4110 = vmul.f32 %v4008, 1.442695
      %v4111 = vpow.pop %v4110
      %v4112 = vmul.f32 %v4009, 1.442695
      %v4113 = vpow.pop %v4112
      %v4114 = vmul.f32 %v4010, 1.442695
      %v4115 = vpow.pop %v4114
      %v4116 = vmul.f32 %v4011, 1.442695
      %v4117 = vpow.pop %v4116
      %v4118 = vmul.f32 %v4012, 1.442695
      %v4119 = vpow.pop %v4118
      %v4120 = vmul.f32 %v4013, 1.442695
      %v4121 = vpow.pop %v4120
      %v4122 = vmul.f32 %v4014, 1.442695
      %v4123 = vpow.pop %v4122
      %v4124 = vmul.f32 %v4015, 1.442695
      %v4125 = vpow.pop %v4124
      %v4126 = vmul.f32 %v4016, 1.442695
      %v4127 = vpow.pop %v4126
      %v4128 = vmul.f32 %v4017, 1.442695
      %v4129 = vpow.pop %v4128
      %v4130 = vmul.f32 %v4018, 1.442695
      %v4131 = vpow.pop %v4130
      %v4132 = vmul.f32 %v4019, 1.442695
      %v4133 = vpow.pop %v4132
      %v4134 = vmul.f32 %v4020, 1.442695
      %v4135 = vpow.pop %v4134
      %v4136 = vmul.f32 %v4021, 1.442695
      %v4137 = vpow.pop %v4136
      %v4138 = vmul.f32 %v4022, 1.442695
      %v4139 = vpow.pop %v4138
      %v4140 = vmul.f32 %v4023, 1.442695
      %v4141 = vpow.pop %v4140
      %v4142 = vmul.f32 %v4024, 1.442695
      %v4143 = vpow.pop %v4142
      %v4144 = vmul.f32 %v4025, 1.442695
      %v4145 = vpow.pop %v4144
      %v4146 = vmul.f32 %v4026, 1.442695
      %v4147 = vpow.pop %v4146
      %v4148 = vmul.f32 %v4027, 1.442695
      %v4149 = vpow.pop %v4148
      %v4150 = vmul.f32 %v4028, 1.442695
      %v4151 = vpow.pop %v4150
      %v4152 = vmul.f32 %v4029, 1.442695
      %v4153 = vpow.pop %v4152
      %v4154 = vmul.f32 %v4030, 1.442695
      %v4155 = vpow.pop %v4154
      %v4156 = vmul.f32 %v4031, 1.442695
      %v4157 = vpow.pop %v4156
      %v4158 = vmul.f32 %v4032, 1.442695
      %v4159 = vpow.pop %v4158
      %v4160 = vmul.f32 %v4033, 1.442695
      %v4161 = vpow.pop %v4160
      %v4162 = vpack.c.bf16 %v4039, %v4035
      %v4163 = vpack.c.bf16 %v4041, %v4037
      %v4164 = vpack.c.bf16 %v4047, %v4043
      %v4165 = vpack.c.bf16 %v4049, %v4045
      %v4166 = vpack.c.bf16 %v4055, %v4051
      %v4167 = vpack.c.bf16 %v4057, %v4053
      %v4168 = vpack.c.bf16 %v4063, %v4059
      %v4169 = vpack.c.bf16 %v4065, %v4061
      %v4170 = vpack.c.bf16 %v4071, %v4067
      %v4171 = vpack.c.bf16 %v4073, %v4069
      %v4172 = vpack.c.bf16 %v4079, %v4075
      %v4173 = vpack.c.bf16 %v4081, %v4077
      %v4174 = vpack.c.bf16 %v4087, %v4083
      %v4175 = vpack.c.bf16 %v4089, %v4085
      %v4176 = vpack.c.bf16 %v4095, %v4091
      %v4177 = vpack.c.bf16 %v4097, %v4093
      %v4178 = vpack.c.bf16 %v4103, %v4099
      %v4179 = vpack.c.bf16 %v4105, %v4101
      %v4180 = vpack.c.bf16 %v4111, %v4107
      %v4181 = vpack.c.bf16 %v4113, %v4109
      %v4182 = vpack.c.bf16 %v4119, %v4115
      %v4183 = vpack.c.bf16 %v4121, %v4117
      %v4184 = vpack.c.bf16 %v4127, %v4123
      %v4185 = vpack.c.bf16 %v4129, %v4125
      %v4186 = vpack.c.bf16 %v4135, %v4131
      %v4187 = vpack.c.bf16 %v4137, %v4133
      %v4188 = vpack.c.bf16 %v4143, %v4139
      %v4189 = vpack.c.bf16 %v4145, %v4141
      %v4190 = vpack.c.bf16 %v4151, %v4147
      %v4191 = vpack.c.bf16 %v4153, %v4149
      %v4192 = vpack.c.bf16 %v4159, %v4155
      %v4193 = vpack.c.bf16 %v4161, %v4157
      %v4196 = vrot.slane %v2702, 2
      %v4197 = vrot.slane %v2703, 2
      %4200 = vmatprep.subr.bf16.mxu0 %v4163
      %4201 = vmatpush1.bf16.xpose.msra.mxu0 %v4162
      %4202 = vmatprep.subr.bf16.mxu0 %v4165
      %4203 = vmatpush1.bf16.xpose.msra.mxu0 %v4164
      %4204 = vmatprep.subr.bf16.mxu0 %v4167
      %4205 = vmatpush1.bf16.xpose.msra.mxu0 %v4166
      %4206 = vmatprep.subr.bf16.mxu0 %v4169
      %4207 = vmatpush1.bf16.xpose.msra.mxu0 %v4168
      %4208 = vmatprep.subr.bf16.mxu0 %v4171
      %4209 = vmatpush1.bf16.xpose.msra.mxu0 %v4170
      %4210 = vmatprep.subr.bf16.mxu0 %v4173
      %4211 = vmatpush1.bf16.xpose.msra.mxu0 %v4172
      %4212 = vmatprep.subr.bf16.mxu0 %v4175
      %4213 = vmatpush1.bf16.xpose.msra.mxu0 %v4174
      %4214 = vmatprep.subr.bf16.mxu0 %v4177
      %4215 = vmatpush1.bf16.xpose.msra.mxu0 %v4176
      %4216 = vmatprep.subr.bf16.mxu0 %v4179
      %4217 = vmatpush1.bf16.xpose.msra.mxu0 %v4178
      %4218 = vmatprep.subr.bf16.mxu0 %v4181
      %4219 = vmatpush1.bf16.xpose.msra.mxu0 %v4180
      %4220 = vmatprep.subr.bf16.mxu0 %v4183
      %4221 = vmatpush1.bf16.xpose.msra.mxu0 %v4182
      %4222 = vmatprep.subr.bf16.mxu0 %v4185
      %4223 = vmatpush1.bf16.xpose.msra.mxu0 %v4184
      %4224 = vmatprep.subr.bf16.mxu0 %v4187
      %4225 = vmatpush1.bf16.xpose.msra.mxu0 %v4186
      %4226 = vmatprep.subr.bf16.mxu0 %v4189
      %4227 = vmatpush1.bf16.xpose.msra.mxu0 %v4188
      %4228 = vmatprep.subr.bf16.mxu0 %v4191
      %4229 = vmatpush1.bf16.xpose.msra.mxu0 %v4190
      %4230 = vmatprep.subr.bf16.mxu0 %v4193
      %4231 = vmatpush1.bf16.xpose.msra.mxu0 %v4192
      %4232 = vmatprep.mubr.bf16.mxu0 %v4197
      %4233 = vmatmul.mubr.bf16.gmra.mrb[0].mxu0 %v4196
      %v4234 = vpop.f32.mrb[0].mxu0
      %v4235 = vadd.f32 0.0, %v4234
      %v4236 = vpop.f32.mrb[0].mxu0
      %v4237 = vadd.f32 0.0, %v4236
      %v4238 = vpop.f32.mrb[0].mxu0
      %v4239 = vpop.f32.mrb[0].mxu0
      %4240 = vdwg.mxu0
      %4241 = vmatprep.subr.bf16.mxu0 %v4163
      %4242 = vmatpush1.bf16.xpose.msra.mxu0 %v4162
      %4243 = vmatprep.subr.bf16.mxu0 %v4165
      %4244 = vmatpush1.bf16.xpose.msra.mxu0 %v4164
      %4245 = vmatprep.subr.bf16.mxu0 %v4167
      %4246 = vmatpush1.bf16.xpose.msra.mxu0 %v4166
      %4247 = vmatprep.subr.bf16.mxu0 %v4169
      %4248 = vmatpush1.bf16.xpose.msra.mxu0 %v4168
      %4249 = vmatprep.subr.bf16.mxu0 %v4171
      %4250 = vmatpush1.bf16.xpose.msra.mxu0 %v4170
      %4251 = vmatprep.subr.bf16.mxu0 %v4173
      %4252 = vmatpush1.bf16.xpose.msra.mxu0 %v4172
      %4253 = vmatprep.subr.bf16.mxu0 %v4175
      %4254 = vmatpush1.bf16.xpose.msra.mxu0 %v4174
      %4255 = vmatprep.subr.bf16.mxu0 %v4177
      %4256 = vmatpush1.bf16.xpose.msra.mxu0 %v4176
      %4257 = vmatprep.subr.bf16.mxu0 %v4179
      %4258 = vmatpush1.bf16.xpose.msra.mxu0 %v4178
      %4259 = vmatprep.subr.bf16.mxu0 %v4181
      %4260 = vmatpush1.bf16.xpose.msra.mxu0 %v4180
      %4261 = vmatprep.subr.bf16.mxu0 %v4183
      %4262 = vmatpush1.bf16.xpose.msra.mxu0 %v4182
      %4263 = vmatprep.subr.bf16.mxu0 %v4185
      %4264 = vmatpush1.bf16.xpose.msra.mxu0 %v4184
      %4265 = vmatprep.subr.bf16.mxu0 %v4187
      %4266 = vmatpush1.bf16.xpose.msra.mxu0 %v4186
      %4267 = vmatprep.subr.bf16.mxu0 %v4189
      %4268 = vmatpush1.bf16.xpose.msra.mxu0 %v4188
      %4269 = vmatprep.subr.bf16.mxu0 %v4191
      %4270 = vmatpush1.bf16.xpose.msra.mxu0 %v4190
      %4271 = vmatprep.subr.bf16.mxu0 %v4193
      %4272 = vmatpush1.bf16.xpose.msra.mxu0 %v4192
      %4273 = vmatprep.mubr.bf16.mxu0 1065369472
      %4274 = vmatmul.mubr.bf16.gmra.mrb[0].mxu0 1065369472
      %v4275 = vpop.f32.mrb[0].mxu0
      %v4276 = vadd.f32 0.0, %v4275
      %v4277 = vpop.f32.mrb[0].mxu0
      %v4278 = vadd.f32 0.0, %v4277
      %v4279 = vpop.f32.mrb[0].mxu0
      %v4280 = vpop.f32.mrb[0].mxu0
      %4281 = vdwg.mxu0
      %v4282 = vrcp.pop %v4276
      %v4283 = vrcp.pop %v4278
      %v4284 = vlaneseq
      %v4285 = vshrl.u32 %v4284, 7
      %v4286 = vsub.s32 0, %v4285
      %v4287 = vrot.slane %v4282, %v4286
      %v4288 = vlaneseq
      %v4289 = vshrl.u32 %v4288, 7
      %v4290 = vsub.s32 0, %v4289
      %v4291 = vrot.slane %v4283, %v4290
      %v4292 = vmul.f32 %v4235, %v4287
      %v4293 = vmul.f32 %v4237, %v4291
      %v4296 = vrot.slane %v2698, 4
      %v4297 = vrot.slane %v2699, 4
      %v4302 = vrot.slane %v4292, 4
      %v4303 = vrot.slane %v4293, 4
      %vm4306 = vcmask 1043456
      %v4307 = vsel %vm4306, %v1882, %v4296
      %v4308 = vsel %vm4306, %v1883, %v4297
      %v4309 = vsel %vm4306, %v3492, %v4302
      %v4310 = vsel %vm4306, %v3493, %v4303
      %v4311 = vld [vmem:[%s9] sm:$0xf]
      %v4312 = vld [vmem:[%s9 + $0x4] sm:$0xf]
      %v4313 = vpack.c.bf16 %v4309, %v4307
      %v4314 = vpack.c.bf16 %v4310, %v4308
      %v4315 = vld [vmem:[%s11] sm:$0xff]
      %v4316 = vld [vmem:[%s11 + $0x8] sm:$0xff]
      %4318 = vset.pattern.permute.xlu0 0
      %4319 = vperm.xlu0 %4318, %v4315
      %v4320 = vpop.permute.xlu0 %4319
      %4323 = vset.pattern.permute.xlu0 0
      %4324 = vperm.xlu0 %4323, %v4316
      %v4325 = vpop.permute.xlu0 %4324
      %v4329 = vunpack.c.l.b16 %v4311
      %v4330 = vunpack.c.l.b16 %v4312
      %v4331 = vpack.c.b16 %v4330, %v4329
      %v4333 = vsel %vm968, %v4331, 0
      %4335 = vmatprep.subr.bf16.mxu0 %v4314
      %4336 = vmatpush1.bf16.msra.mxu0 %v4313
      %4337 = vmatprep.subr.bf16.mxu0 0
      %4338 = vmatpush1.bf16.msra.mxu0 0
      %4339 = vmatprep.subr.bf16.mxu0 0
      %4340 = vmatpush1.bf16.msra.mxu0 0
      %4341 = vmatprep.subr.bf16.mxu0 0
      %4342 = vmatpush1.bf16.msra.mxu0 0
      %4343 = vmatprep.subr.bf16.mxu0 0
      %4344 = vmatpush1.bf16.msra.mxu0 0
      %4345 = vmatprep.subr.bf16.mxu0 0
      %4346 = vmatpush1.bf16.msra.mxu0 0
      %4347 = vmatprep.subr.bf16.mxu0 0
      %4348 = vmatpush1.bf16.msra.mxu0 0
      %4349 = vmatprep.subr.bf16.mxu0 0
      %4350 = vmatpush1.bf16.msra.mxu0 0
      %4351 = vmatprep.subr.bf16.mxu0 0
      %4352 = vmatpush1.bf16.msra.mxu0 0
      %4353 = vmatprep.subr.bf16.mxu0 0
      %4354 = vmatpush1.bf16.msra.mxu0 0
      %4355 = vmatprep.subr.bf16.mxu0 0
      %4356 = vmatpush1.bf16.msra.mxu0 0
      %4357 = vmatprep.subr.bf16.mxu0 0
      %4358 = vmatpush1.bf16.msra.mxu0 0
      %4359 = vmatprep.subr.bf16.mxu0 0
      %4360 = vmatpush1.bf16.msra.mxu0 0
      %4361 = vmatprep.subr.bf16.mxu0 0
      %4362 = vmatpush1.bf16.msra.mxu0 0
      %4363 = vmatprep.subr.bf16.mxu0 0
      %4364 = vmatpush1.bf16.msra.mxu0 0
      %4365 = vmatprep.subr.bf16.mxu0 0
      %4366 = vmatpush1.bf16.msra.mxu0 0
      %4367 = vmatprep.mubr.bf16.mxu0 0
      %4368 = vmatmul.mubr.bf16.gmra.mrb[0].mxu0 %v4333
      %v4369 = vpop.f32.mrb[0].mxu0
      %v4370 = vadd.f32 %v4320, %v4369
      %v4371 = vpop.f32.mrb[0].mxu0
      %v4372 = vadd.f32 %v4320, %v4371
      %v4373 = vpop.f32.mrb[0].mxu0
      %v4374 = vadd.f32 %v4325, %v4373
      %v4375 = vpop.f32.mrb[0].mxu0
      %v4376 = vadd.f32 %v4325, %v4375
      %4377 = vdwg.mxu0
      %v4378 = vadd.f32 %v4370, %v4374
      %v4379 = vrot.slane %v4378, 4
      %v4380 = vadd.f32 %v4378, %v4379
      %v4381 = vrot.slane %v4380, 2
      %v4382 = vadd.f32 %v4380, %v4381
      %v4383 = vrot.slane %v4382, 1
      %v4384 = vadd.f32 %v4382, %v4383
      %v4385 = vadd.f32 %v4372, %v4376
      %v4386 = vrot.slane %v4385, 4
      %v4387 = vadd.f32 %v4385, %v4386
      %v4388 = vrot.slane %v4387, 2
      %v4389 = vadd.f32 %v4387, %v4388
      %v4390 = vrot.slane %v4389, 1
      %v4391 = vadd.f32 %v4389, %v4390
      %v4392 = vrcp.pop 16.0
      %v4393 = vmul.f32 %v4384, %v4392
      %v4394 = vmul.f32 %v4391, %v4392
      %v4395 = vsub.f32 %v4370, %v4393
      %v4396 = vsub.f32 %v4372, %v4394
      %v4397 = vsub.f32 %v4374, %v4393
      %v4398 = vsub.f32 %v4376, %v4394
      %v4399 = vmul.f32 %v4395, %v4395
      %v4400 = vmul.f32 %v4396, %v4396
      %v4401 = vmul.f32 %v4397, %v4397
      %v4402 = vmul.f32 %v4398, %v4398
      %v4403 = vadd.f32 %v4399, %v4401
      %v4404 = vrot.slane %v4403, 4
      %v4405 = vadd.f32 %v4403, %v4404
      %v4406 = vrot.slane %v4405, 2
      %v4407 = vadd.f32 %v4405, %v4406
      %v4408 = vrot.slane %v4407, 1
      %v4409 = vadd.f32 %v4407, %v4408
      %v4410 = vadd.f32 %v4400, %v4402
      %v4411 = vrot.slane %v4410, 4
      %v4412 = vadd.f32 %v4410, %v4411
      %v4413 = vrot.slane %v4412, 2
      %v4414 = vadd.f32 %v4412, %v4413
      %v4415 = vrot.slane %v4414, 1
      %v4416 = vadd.f32 %v4414, %v4415
      %v4417 = vmul.f32 %v4409, %v4392
      %v4418 = vmul.f32 %v4416, %v4392
      %v4419 = vadd.f32 %v4417, 1e-05
      %v4420 = vadd.f32 %v4418, 1e-05
      %v4421 = vrsqrt.pop %v4419
      %v4422 = vrsqrt.pop %v4420
      %v4423 = vmul.f32 %v4395, %v4421
      %v4424 = vmul.f32 %v4396, %v4422
      %v4425 = vmul.f32 %v4397, %v4421
      %v4426 = vmul.f32 %v4398, %v4422
      %v4427 = vld [vmem:[%s13] sm:$0xff]
      %v4428 = vld [vmem:[%s13 + $0x8] sm:$0xff]
      %4430 = vset.pattern.permute.xlu0 0
      %4431 = vperm.xlu0 %4430, %v4427
      %v4432 = vpop.permute.xlu0 %4431
      %4435 = vset.pattern.permute.xlu0 0
      %4436 = vperm.xlu0 %4435, %v4428
      %v4437 = vpop.permute.xlu0 %4436
      %v4439 = vmul.f32 %v4423, %v4432
      %v4440 = vmul.f32 %v4424, %v4432
      %v4441 = vmul.f32 %v4425, %v4437
      %v4442 = vmul.f32 %v4426, %v4437
      %v4443 = vld [vmem:[%s15] sm:$0xff]
      %v4444 = vld [vmem:[%s15 + $0x8] sm:$0xff]
      %4446 = vset.pattern.permute.xlu0 0
      %4447 = vperm.xlu0 %4446, %v4443
      %v4448 = vpop.permute.xlu0 %4447
      %4451 = vset.pattern.permute.xlu0 0
      %4452 = vperm.xlu0 %4451, %v4444
      %v4453 = vpop.permute.xlu0 %4452
      %v4455 = vadd.f32 %v4439, %v4448
      %v4456 = vadd.f32 %v4440, %v4448
      %v4457 = vadd.f32 %v4441, %v4453
      %v4458 = vadd.f32 %v4442, %v4453
      %v4459 = vadd.f32 %v905, %v4455
      %v4460 = vadd.f32 %v906, %v4456
      %v4461 = vadd.f32 %v907, %v4457
      %v4462 = vadd.f32 %v908, %v4458
      %v4463 = vld [vmem:[%s17] sm:$0xf]
      %v4464 = vld [vmem:[%s17 + $0x4] sm:$0xf]
      %v4465 = vld [vmem:[%s17 + $0x8] sm:$0xf]
      %v4466 = vld [vmem:[%s17 + $0xc] sm:$0xf]
      %v4467 = vld [vmem:[%s17 + $0x10] sm:$0xf]
      %v4468 = vld [vmem:[%s17 + $0x14] sm:$0xf]
      %v4469 = vld [vmem:[%s17 + $0x18] sm:$0xf]
      %v4470 = vld [vmem:[%s17 + $0x1c] sm:$0xf]
      %v4471 = vpack.c.bf16 %v4461, %v4459
      %v4472 = vpack.c.bf16 %v4462, %v4460
      %v4473 = vld [vmem:[%s19] sm:$0xff]
      %v4474 = vld [vmem:[%s19 + $0x8] sm:$0xff]
      %v4475 = vld [vmem:[%s19 + $0x10] sm:$0xff]
      %v4476 = vld [vmem:[%s19 + $0x18] sm:$0xff]
      %v4477 = vld [vmem:[%s19 + $0x20] sm:$0xff]
      %v4478 = vld [vmem:[%s19 + $0x28] sm:$0xff]
      %v4479 = vld [vmem:[%s19 + $0x30] sm:$0xff]
      %v4480 = vld [vmem:[%s19 + $0x38] sm:$0xff]
      %4482 = vset.pattern.permute.xlu0 0
      %4483 = vperm.xlu0 %4482, %v4473
      %v4484 = vpop.permute.xlu0 %4483
      %4487 = vset.pattern.permute.xlu0 0
      %4488 = vperm.xlu0 %4487, %v4474
      %v4489 = vpop.permute.xlu0 %4488
      %4492 = vset.pattern.permute.xlu0 0
      %4493 = vperm.xlu0 %4492, %v4475
      %v4494 = vpop.permute.xlu0 %4493
      %4497 = vset.pattern.permute.xlu0 0
      %4498 = vperm.xlu0 %4497, %v4476
      %v4499 = vpop.permute.xlu0 %4498
      %4502 = vset.pattern.permute.xlu0 0
      %4503 = vperm.xlu0 %4502, %v4477
      %v4504 = vpop.permute.xlu0 %4503
      %4507 = vset.pattern.permute.xlu0 0
      %4508 = vperm.xlu0 %4507, %v4478
      %v4509 = vpop.permute.xlu0 %4508
      %4512 = vset.pattern.permute.xlu0 0
      %4513 = vperm.xlu0 %4512, %v4479
      %v4514 = vpop.permute.xlu0 %4513
      %4517 = vset.pattern.permute.xlu0 0
      %4518 = vperm.xlu0 %4517, %v4480
      %v4519 = vpop.permute.xlu0 %4518
      %v4529 = vunpack.c.l.b16 %v4463
      %v4530 = vunpack.c.l.b16 %v4464
      %v4531 = vunpack.c.l.b16 %v4465
      %v4532 = vunpack.c.l.b16 %v4466
      %v4533 = vunpack.c.l.b16 %v4467
      %v4534 = vunpack.c.l.b16 %v4468
      %v4535 = vunpack.c.l.b16 %v4469
      %v4536 = vunpack.c.l.b16 %v4470
      %v4537 = vpack.c.b16 %v4530, %v4529
      %v4538 = vpack.c.b16 %v4532, %v4531
      %v4539 = vpack.c.b16 %v4534, %v4533
      %v4540 = vpack.c.b16 %v4536, %v4535
      %v4542 = vsel %vm968, %v4537, 0
      %v4545 = vsel %vm968, %v4538, 0
      %v4548 = vsel %vm968, %v4539, 0
      %v4551 = vsel %vm968, %v4540, 0
      %4553 = vmatprep.subr.bf16.mxu0 %v4472
      %4554 = vmatpush1.bf16.msra.mxu0 %v4471
      %4555 = vmatprep.subr.bf16.mxu0 0
      %4556 = vmatpush1.bf16.msra.mxu0 0
      %4557 = vmatprep.subr.bf16.mxu0 0
      %4558 = vmatpush1.bf16.msra.mxu0 0
      %4559 = vmatprep.subr.bf16.mxu0 0
      %4560 = vmatpush1.bf16.msra.mxu0 0
      %4561 = vmatprep.subr.bf16.mxu0 0
      %4562 = vmatpush1.bf16.msra.mxu0 0
      %4563 = vmatprep.subr.bf16.mxu0 0
      %4564 = vmatpush1.bf16.msra.mxu0 0
      %4565 = vmatprep.subr.bf16.mxu0 0
      %4566 = vmatpush1.bf16.msra.mxu0 0
      %4567 = vmatprep.subr.bf16.mxu0 0
      %4568 = vmatpush1.bf16.msra.mxu0 0
      %4569 = vmatprep.subr.bf16.mxu0 0
      %4570 = vmatpush1.bf16.msra.mxu0 0
      %4571 = vmatprep.subr.bf16.mxu0 0
      %4572 = vmatpush1.bf16.msra.mxu0 0
      %4573 = vmatprep.subr.bf16.mxu0 0
      %4574 = vmatpush1.bf16.msra.mxu0 0
      %4575 = vmatprep.subr.bf16.mxu0 0
      %4576 = vmatpush1.bf16.msra.mxu0 0
      %4577 = vmatprep.subr.bf16.mxu0 0
      %4578 = vmatpush1.bf16.msra.mxu0 0
      %4579 = vmatprep.subr.bf16.mxu0 0
      %4580 = vmatpush1.bf16.msra.mxu0 0
      %4581 = vmatprep.subr.bf16.mxu0 0
      %4582 = vmatpush1.bf16.msra.mxu0 0
      %4583 = vmatprep.subr.bf16.mxu0 0
      %4584 = vmatpush1.bf16.msra.mxu0 0
      %4585 = vmatprep.mubr.bf16.mxu0 0
      %4586 = vmatmul.mubr.bf16.gmra.mrb[0].mxu0 %v4542
      %v4587 = vpop.f32.mrb[0].mxu0
      %v4588 = vadd.f32 %v4484, %v4587
      %v4589 = vpop.f32.mrb[0].mxu0
      %v4590 = vadd.f32 %v4484, %v4589
      %v4591 = vpop.f32.mrb[0].mxu0
      %v4592 = vadd.f32 %v4489, %v4591
      %v4593 = vpop.f32.mrb[0].mxu0
      %v4594 = vadd.f32 %v4489, %v4593
      %4595 = vmatprep.mubr.bf16.mxu0 0
      %4596 = vmatmul.mubr.bf16.gmra.mrb[0].mxu0 %v4545
      %v4597 = vpop.f32.mrb[0].mxu0
      %v4598 = vadd.f32 %v4494, %v4597
      %v4599 = vpop.f32.mrb[0].mxu0
      %v4600 = vadd.f32 %v4494, %v4599
      %v4601 = vpop.f32.mrb[0].mxu0
      %v4602 = vadd.f32 %v4499, %v4601
      %v4603 = vpop.f32.mrb[0].mxu0
      %v4604 = vadd.f32 %v4499, %v4603
      %4605 = vmatprep.mubr.bf16.mxu0 0
      %4606 = vmatmul.mubr.bf16.gmra.mrb[0].mxu0 %v4548
      %v4607 = vpop.f32.mrb[0].mxu0
      %v4608 = vadd.f32 %v4504, %v4607
      %v4609 = vpop.f32.mrb[0].mxu0
      %v4610 = vadd.f32 %v4504, %v4609
      %v4611 = vpop.f32.mrb[0].mxu0
      %v4612 = vadd.f32 %v4509, %v4611
      %v4613 = vpop.f32.mrb[0].mxu0
      %v4614 = vadd.f32 %v4509, %v4613
      %4615 = vmatprep.mubr.bf16.mxu0 0
      %4616 = vmatmul.mubr.bf16.gmra.mrb[0].mxu0 %v4551
      %v4617 = vpop.f32.mrb[0].mxu0
      %v4618 = vadd.f32 %v4514, %v4617
      %v4619 = vpop.f32.mrb[0].mxu0
      %v4620 = vadd.f32 %v4514, %v4619
      %v4621 = vpop.f32.mrb[0].mxu0
      %v4622 = vadd.f32 %v4519, %v4621
      %v4623 = vpop.f32.mrb[0].mxu0
      %v4624 = vadd.f32 %v4519, %v4623
      %4625 = vdwg.mxu0
      %v4626 = vmul.f32 %v4588, 0.5
      %v4627 = vmul.f32 %v4590, 0.5
      %v4628 = vmul.f32 %v4592, 0.5
      %v4629 = vmul.f32 %v4594, 0.5
      %v4630 = vmul.f32 %v4598, 0.5
      %v4631 = vmul.f32 %v4600, 0.5
      %v4632 = vmul.f32 %v4602, 0.5
      %v4633 = vmul.f32 %v4604, 0.5
      %v4634 = vmul.f32 %v4608, 0.5
      %v4635 = vmul.f32 %v4610, 0.5
      %v4636 = vmul.f32 %v4612, 0.5
      %v4637 = vmul.f32 %v4614, 0.5
      %v4638 = vmul.f32 %v4618, 0.5
      %v4639 = vmul.f32 %v4620, 0.5
      %v4640 = vmul.f32 %v4622, 0.5
      %v4641 = vmul.f32 %v4624, 0.5
      %v4642 = vmul.f32 %v4588, %v4588
      %v4643 = vmul.f32 %v4590, %v4590
      %v4644 = vmul.f32 %v4592, %v4592
      %v4645 = vmul.f32 %v4594, %v4594
      %v4646 = vmul.f32 %v4598, %v4598
      %v4647 = vmul.f32 %v4600, %v4600
      %v4648 = vmul.f32 %v4602, %v4602
      %v4649 = vmul.f32 %v4604, %v4604
      %v4650 = vmul.f32 %v4608, %v4608
      %v4651 = vmul.f32 %v4610, %v4610
      %v4652 = vmul.f32 %v4612, %v4612
      %v4653 = vmul.f32 %v4614, %v4614
      %v4654 = vmul.f32 %v4618, %v4618
      %v4655 = vmul.f32 %v4620, %v4620
      %v4656 = vmul.f32 %v4622, %v4622
      %v4657 = vmul.f32 %v4624, %v4624
      %v4658 = vmul.f32 %v4642, %v4588
      %v4659 = vmul.f32 %v4643, %v4590
      %v4660 = vmul.f32 %v4644, %v4592
      %v4661 = vmul.f32 %v4645, %v4594
      %v4662 = vmul.f32 %v4646, %v4598
      %v4663 = vmul.f32 %v4647, %v4600
      %v4664 = vmul.f32 %v4648, %v4602
      %v4665 = vmul.f32 %v4649, %v4604
      %v4666 = vmul.f32 %v4650, %v4608
      %v4667 = vmul.f32 %v4651, %v4610
      %v4668 = vmul.f32 %v4652, %v4612
      %v4669 = vmul.f32 %v4653, %v4614
      %v4670 = vmul.f32 %v4654, %v4618
      %v4671 = vmul.f32 %v4655, %v4620
      %v4672 = vmul.f32 %v4656, %v4622
      %v4673 = vmul.f32 %v4657, %v4624
      %v4674 = vmul.f32 %v4658, 0.044715
      %v4675 = vmul.f32 %v4659, 0.044715
      %v4676 = vmul.f32 %v4660, 0.044715
      %v4677 = vmul.f32 %v4661, 0.044715
      %v4678 = vmul.f32 %v4662, 0.044715
      %v4679 = vmul.f32 %v4663, 0.044715
      %v4680 = vmul.f32 %v4664, 0.044715
      %v4681 = vmul.f32 %v4665, 0.044715
      %v4682 = vmul.f32 %v4666, 0.044715
      %v4683 = vmul.f32 %v4667, 0.044715
      %v4684 = vmul.f32 %v4668, 0.044715
      %v4685 = vmul.f32 %v4669, 0.044715
      %v4686 = vmul.f32 %v4670, 0.044715
      %v4687 = vmul.f32 %v4671, 0.044715
      %v4688 = vmul.f32 %v4672, 0.044715
      %v4689 = vmul.f32 %v4673, 0.044715
      %v4690 = vadd.f32 %v4588, %v4674
      %v4691 = vadd.f32 %v4590, %v4675
      %v4692 = vadd.f32 %v4592, %v4676
      %v4693 = vadd.f32 %v4594, %v4677
      %v4694 = vadd.f32 %v4598, %v4678
      %v4695 = vadd.f32 %v4600, %v4679
      %v4696 = vadd.f32 %v4602, %v4680
      %v4697 = vadd.f32 %v4604, %v4681
      %v4698 = vadd.f32 %v4608, %v4682
      %v4699 = vadd.f32 %v4610, %v4683
      %v4700 = vadd.f32 %v4612, %v4684
      %v4701 = vadd.f32 %v4614, %v4685
      %v4702 = vadd.f32 %v4618, %v4686
      %v4703 = vadd.f32 %v4620, %v4687
      %v4704 = vadd.f32 %v4622, %v4688
      %v4705 = vadd.f32 %v4624, %v4689
      %v4706 = vmul.f32 %v4690, 0.7978846
      %v4707 = vmul.f32 %v4691, 0.7978846
      %v4708 = vmul.f32 %v4692, 0.7978846
      %v4709 = vmul.f32 %v4693, 0.7978846
      %v4710 = vmul.f32 %v4694, 0.7978846
      %v4711 = vmul.f32 %v4695, 0.7978846
      %v4712 = vmul.f32 %v4696, 0.7978846
      %v4713 = vmul.f32 %v4697, 0.7978846
      %v4714 = vmul.f32 %v4698, 0.7978846
      %v4715 = vmul.f32 %v4699, 0.7978846
      %v4716 = vmul.f32 %v4700, 0.7978846
      %v4717 = vmul.f32 %v4701, 0.7978846
      %v4718 = vmul.f32 %v4702, 0.7978846
      %v4719 = vmul.f32 %v4703, 0.7978846
      %v4720 = vmul.f32 %v4704, 0.7978846
      %v4721 = vmul.f32 %v4705, 0.7978846
      %v4722 = vtanh.pop %v4706
      %v4723 = vtanh.pop %v4707
      %v4724 = vtanh.pop %v4708
      %v4725 = vtanh.pop %v4709
      %v4726 = vtanh.pop %v4710
      %v4727 = vtanh.pop %v4711
      %v4728 = vtanh.pop %v4712
      %v4729 = vtanh.pop %v4713
      %v4730 = vtanh.pop %v4714
      %v4731 = vtanh.pop %v4715
      %v4732 = vtanh.pop %v4716
      %v4733 = vtanh.pop %v4717
      %v4734 = vtanh.pop %v4718
      %v4735 = vtanh.pop %v4719
      %v4736 = vtanh.pop %v4720
      %v4737 = vtanh.pop %v4721
      %v4738 = vadd.f32 %v4722, 1.0
      %v4739 = vadd.f32 %v4723, 1.0
      %v4740 = vadd.f32 %v4724, 1.0
      %v4741 = vadd.f32 %v4725, 1.0
      %v4742 = vadd.f32 %v4726, 1.0
      %v4743 = vadd.f32 %v4727, 1.0
      %v4744 = vadd.f32 %v4728, 1.0
      %v4745 = vadd.f32 %v4729, 1.0
      %v4746 = vadd.f32 %v4730, 1.0
      %v4747 = vadd.f32 %v4731, 1.0
      %v4748 = vadd.f32 %v4732, 1.0
      %v4749 = vadd.f32 %v4733, 1.0
      %v4750 = vadd.f32 %v4734, 1.0
      %v4751 = vadd.f32 %v4735, 1.0
      %v4752 = vadd.f32 %v4736, 1.0
      %v4753 = vadd.f32 %v4737, 1.0
      %v4754 = vmul.f32 %v4626, %v4738
      %v4755 = vmul.f32 %v4627, %v4739
      %v4756 = vmul.f32 %v4628, %v4740
      %v4757 = vmul.f32 %v4629, %v4741
      %v4758 = vmul.f32 %v4630, %v4742
      %v4759 = vmul.f32 %v4631, %v4743
      %v4760 = vmul.f32 %v4632, %v4744
      %v4761 = vmul.f32 %v4633, %v4745
      %v4762 = vmul.f32 %v4634, %v4746
      %v4763 = vmul.f32 %v4635, %v4747
      %v4764 = vmul.f32 %v4636, %v4748
      %v4765 = vmul.f32 %v4637, %v4749
      %v4766 = vmul.f32 %v4638, %v4750
      %v4767 = vmul.f32 %v4639, %v4751
      %v4768 = vmul.f32 %v4640, %v4752
      %v4769 = vmul.f32 %v4641, %v4753
      %v4770 = vld [vmem:[%s21] sm:$0xf]
      %v4771 = vld [vmem:[%s21 + $0x4] sm:$0xf]
      %v4772 = vpack.c.bf16 %v4756, %v4754
      %v4773 = vpack.c.bf16 %v4757, %v4755
      %v4774 = vpack.c.bf16 %v4760, %v4758
      %v4775 = vpack.c.bf16 %v4761, %v4759
      %v4776 = vpack.c.bf16 %v4764, %v4762
      %v4777 = vpack.c.bf16 %v4765, %v4763
      %v4778 = vpack.c.bf16 %v4768, %v4766
      %v4779 = vpack.c.bf16 %v4769, %v4767
      %v4780 = vld [vmem:[%s23] sm:$0xff]
      %v4781 = vld [vmem:[%s23 + $0x8] sm:$0xff]
      %4783 = vset.pattern.permute.xlu0 0
      %4784 = vperm.xlu0 %4783, %v4780
      %v4785 = vpop.permute.xlu0 %4784
      %4788 = vset.pattern.permute.xlu0 0
      %4789 = vperm.xlu0 %4788, %v4781
      %v4790 = vpop.permute.xlu0 %4789
      %v4794 = vunpack.c.l.b16 %v4770
      %v4795 = vunpack.c.l.b16 %v4771
      %v4796 = vpack.c.b16 %v4795, %v4794
      %vm4797 = vcmask 523264
      %v4799 = vsel %vm4797, %v4796, 0
      %4801 = vmatprep.subr.bf16.mxu0 %v4773
      %4802 = vmatpush1.bf16.msra.mxu0 %v4772
      %4803 = vmatprep.subr.bf16.mxu0 %v4775
      %4804 = vmatpush1.bf16.msra.mxu0 %v4774
      %4805 = vmatprep.subr.bf16.mxu0 %v4777
      %4806 = vmatpush1.bf16.msra.mxu0 %v4776
      %4807 = vmatprep.subr.bf16.mxu0 %v4779
      %4808 = vmatpush1.bf16.msra.mxu0 %v4778
      %4809 = vmatprep.subr.bf16.mxu0 0
      %4810 = vmatpush1.bf16.msra.mxu0 0
      %4811 = vmatprep.subr.bf16.mxu0 0
      %4812 = vmatpush1.bf16.msra.mxu0 0
      %4813 = vmatprep.subr.bf16.mxu0 0
      %4814 = vmatpush1.bf16.msra.mxu0 0
      %4815 = vmatprep.subr.bf16.mxu0 0
      %4816 = vmatpush1.bf16.msra.mxu0 0
      %4817 = vmatprep.subr.bf16.mxu0 0
      %4818 = vmatpush1.bf16.msra.mxu0 0
      %4819 = vmatprep.subr.bf16.mxu0 0
      %4820 = vmatpush1.bf16.msra.mxu0 0
      %4821 = vmatprep.subr.bf16.mxu0 0
      %4822 = vmatpush1.bf16.msra.mxu0 0
      %4823 = vmatprep.subr.bf16.mxu0 0
      %4824 = vmatpush1.bf16.msra.mxu0 0
      %4825 = vmatprep.subr.bf16.mxu0 0
      %4826 = vmatpush1.bf16.msra.mxu0 0
      %4827 = vmatprep.subr.bf16.mxu0 0
      %4828 = vmatpush1.bf16.msra.mxu0 0
      %4829 = vmatprep.subr.bf16.mxu0 0
      %4830 = vmatpush1.bf16.msra.mxu0 0
      %4831 = vmatprep.subr.bf16.mxu0 0
      %4832 = vmatpush1.bf16.msra.mxu0 0
      %4833 = vmatprep.mubr.bf16.mxu0 0
      %4834 = vmatmul.mubr.bf16.gmra.mrb[0].mxu0 %v4799
      %v4835 = vpop.f32.mrb[0].mxu0
      %v4836 = vadd.f32 %v4785, %v4835
      %v4837 = vpop.f32.mrb[0].mxu0
      %v4838 = vadd.f32 %v4785, %v4837
      %v4839 = vpop.f32.mrb[0].mxu0
      %v4840 = vadd.f32 %v4790, %v4839
      %v4841 = vpop.f32.mrb[0].mxu0
      %v4842 = vadd.f32 %v4790, %v4841
      %4843 = vdwg.mxu0
      %v4844 = vadd.f32 %v4836, %v4840
      %v4845 = vrot.slane %v4844, 4
      %v4846 = vadd.f32 %v4844, %v4845
      %v4847 = vrot.slane %v4846, 2
      %v4848 = vadd.f32 %v4846, %v4847
      %v4849 = vrot.slane %v4848, 1
      %v4850 = vadd.f32 %v4848, %v4849
      %v4851 = vadd.f32 %v4838, %v4842
      %v4852 = vrot.slane %v4851, 4
      %v4853 = vadd.f32 %v4851, %v4852
      %v4854 = vrot.slane %v4853, 2
      %v4855 = vadd.f32 %v4853, %v4854
      %v4856 = vrot.slane %v4855, 1
      %v4857 = vadd.f32 %v4855, %v4856
      %v4858 = vmul.f32 %v4850, %v4392
      %v4859 = vmul.f32 %v4857, %v4392
      %v4860 = vsub.f32 %v4836, %v4858
      %v4861 = vsub.f32 %v4838, %v4859
      %v4862 = vsub.f32 %v4840, %v4858
      %v4863 = vsub.f32 %v4842, %v4859
      %v4864 = vmul.f32 %v4860, %v4860
      %v4865 = vmul.f32 %v4861, %v4861
      %v4866 = vmul.f32 %v4862, %v4862
      %v4867 = vmul.f32 %v4863, %v4863
      %v4868 = vadd.f32 %v4864, %v4866
      %v4869 = vrot.slane %v4868, 4
      %v4870 = vadd.f32 %v4868, %v4869
      %v4871 = vrot.slane %v4870, 2
      %v4872 = vadd.f32 %v4870, %v4871
      %v4873 = vrot.slane %v4872, 1
      %v4874 = vadd.f32 %v4872, %v4873
      %v4875 = vadd.f32 %v4865, %v4867
      %v4876 = vrot.slane %v4875, 4
      %v4877 = vadd.f32 %v4875, %v4876
      %v4878 = vrot.slane %v4877, 2
      %v4879 = vadd.f32 %v4877, %v4878
      %v4880 = vrot.slane %v4879, 1
      %v4881 = vadd.f32 %v4879, %v4880
      %v4882 = vmul.f32 %v4874, %v4392
      %v4883 = vmul.f32 %v4881, %v4392
      %v4884 = vadd.f32 %v4882, 1e-05
      %v4885 = vadd.f32 %v4883, 1e-05
      %v4886 = vrsqrt.pop %v4884
      %v4887 = vrsqrt.pop %v4885
      %v4888 = vmul.f32 %v4860, %v4886
      %v4889 = vmul.f32 %v4861, %v4887
      %v4890 = vmul.f32 %v4862, %v4886
      %v4891 = vmul.f32 %v4863, %v4887
      %v4892 = vld [vmem:[%s25] sm:$0xff]
      %v4893 = vld [vmem:[%s25 + $0x8] sm:$0xff]
      %4895 = vset.pattern.permute.xlu0 0
      %4896 = vperm.xlu0 %4895, %v4892
      %v4897 = vpop.permute.xlu0 %4896
      %4900 = vset.pattern.permute.xlu0 0
      %4901 = vperm.xlu0 %4900, %v4893
      %v4902 = vpop.permute.xlu0 %4901
      %v4904 = vmul.f32 %v4888, %v4897
      %v4905 = vmul.f32 %v4889, %v4897
      %v4906 = vmul.f32 %v4890, %v4902
      %v4907 = vmul.f32 %v4891, %v4902
      %v4908 = vld [vmem:[%s27] sm:$0xff]
      %v4909 = vld [vmem:[%s27 + $0x8] sm:$0xff]
      %4911 = vset.pattern.permute.xlu0 0
      %4912 = vperm.xlu0 %4911, %v4908
      %v4913 = vpop.permute.xlu0 %4912
      %4916 = vset.pattern.permute.xlu0 0
      %4917 = vperm.xlu0 %4916, %v4909
      %v4918 = vpop.permute.xlu0 %4917
      %v4920 = vadd.f32 %v4904, %v4913
      %v4921 = vadd.f32 %v4905, %v4913
      %v4922 = vadd.f32 %v4906, %v4918
      %v4923 = vadd.f32 %v4907, %v4918
      %v4924 = vadd.f32 %v4459, %v4920
      %v4925 = vadd.f32 %v4460, %v4921
      %v4926 = vadd.f32 %v4461, %v4922
      %v4927 = vadd.f32 %v4462, %v4923
      %v4928 = vpack.c.bf16 %v4926, %v4924
      %v4929 = vpack.c.bf16 %v4927, %v4925
      %v4930 = vld [vmem:[%s31] sm:$0xf]
      %v4931 = vld [vmem:[%s31 + $0x4] sm:$0xf]
      %v4932 = vld [vmem:[%s31 + $0x8] sm:$0xf]
      %v4933 = vld [vmem:[%s31 + $0xc] sm:$0xf]
      %v4934 = vld [vmem:[%s31 + $0x10] sm:$0xf]
      %v4935 = vld [vmem:[%s31 + $0x14] sm:$0xf]
      %v4936 = vld [vmem:[%s33] sm:$0xff]
      %v4937 = vld [vmem:[%s33 + $0x8] sm:$0xff]
      %v4938 = vld [vmem:[%s33 + $0x10] sm:$0xff]
      %v4939 = vld [vmem:[%s33 + $0x18] sm:$0xff]
      %v4940 = vld [vmem:[%s33 + $0x20] sm:$0xff]
      %v4941 = vld [vmem:[%s33 + $0x28] sm:$0xff]
      %4943 = vset.pattern.permute.xlu0 0
      %4944 = vperm.xlu0 %4943, %v4936
      %v4945 = vpop.permute.xlu0 %4944
      %4948 = vset.pattern.permute.xlu0 0
      %4949 = vperm.xlu0 %4948, %v4937
      %v4950 = vpop.permute.xlu0 %4949
      %4953 = vset.pattern.permute.xlu0 0
      %4954 = vperm.xlu0 %4953, %v4938
      %v4955 = vpop.permute.xlu0 %4954
      %4958 = vset.pattern.permute.xlu0 0
      %4959 = vperm.xlu0 %4958, %v4939
      %v4960 = vpop.permute.xlu0 %4959
      %4963 = vset.pattern.permute.xlu0 0
      %4964 = vperm.xlu0 %4963, %v4940
      %v4965 = vpop.permute.xlu0 %4964
      %4968 = vset.pattern.permute.xlu0 0
      %4969 = vperm.xlu0 %4968, %v4941
      %v4970 = vpop.permute.xlu0 %4969
      %v4978 = vunpack.c.l.b16 %v4930
      %v4979 = vunpack.c.l.b16 %v4931
      %v4980 = vunpack.c.l.b16 %v4932
      %v4981 = vunpack.c.l.b16 %v4933
      %v4982 = vunpack.c.l.b16 %v4934
      %v4983 = vunpack.c.l.b16 %v4935
      %v4984 = vpack.c.b16 %v4979, %v4978
      %v4985 = vpack.c.b16 %v4981, %v4980
      %v4986 = vpack.c.b16 %v4983, %v4982
      %v4988 = vsel %vm968, %v4984, 0
      %v4991 = vsel %vm968, %v4985, 0
      %v4994 = vsel %vm968, %v4986, 0
      %4996 = vmatprep.subr.bf16.mxu0 %v4929
      %4997 = vmatpush1.bf16.msra.mxu0 %v4928
      %4998 = vmatprep.subr.bf16.mxu0 0
      %4999 = vmatpush1.bf16.msra.mxu0 0
      %5000 = vmatprep.subr.bf16.mxu0 0
      %5001 = vmatpush1.bf16.msra.mxu0 0
      %5002 = vmatprep.subr.bf16.mxu0 0
      %5003 = vmatpush1.bf16.msra.mxu0 0
      %5004 = vmatprep.subr.bf16.mxu0 0
      %5005 = vmatpush1.bf16.msra.mxu0 0
      %5006 = vmatprep.subr.bf16.mxu0 0
      %5007 = vmatpush1.bf16.msra.mxu0 0
      %5008 = vmatprep.subr.bf16.mxu0 0
      %5009 = vmatpush1.bf16.msra.mxu0 0
      %5010 = vmatprep.subr.bf16.mxu0 0
      %5011 = vmatpush1.bf16.msra.mxu0 0
      %5012 = vmatprep.subr.bf16.mxu0 0
      %5013 = vmatpush1.bf16.msra.mxu0 0
      %5014 = vmatprep.subr.bf16.mxu0 0
      %5015 = vmatpush1.bf16.msra.mxu0 0
      %5016 = vmatprep.subr.bf16.mxu0 0
      %5017 = vmatpush1.bf16.msra.mxu0 0
      %5018 = vmatprep.subr.bf16.mxu0 0
      %5019 = vmatpush1.bf16.msra.mxu0 0
      %5020 = vmatprep.subr.bf16.mxu0 0
      %5021 = vmatpush1.bf16.msra.mxu0 0
      %5022 = vmatprep.subr.bf16.mxu0 0
      %5023 = vmatpush1.bf16.msra.mxu0 0
      %5024 = vmatprep.subr.bf16.mxu0 0
      %5025 = vmatpush1.bf16.msra.mxu0 0
      %5026 = vmatprep.subr.bf16.mxu0 0
      %5027 = vmatpush1.bf16.msra.mxu0 0
      %5028 = vmatprep.mubr.bf16.mxu0 0
      %5029 = vmatmul.mubr.bf16.gmra.mrb[0].mxu0 %v4988
      %v5030 = vpop.f32.mrb[0].mxu0
      %v5031 = vadd.f32 %v4945, %v5030
      %v5032 = vpop.f32.mrb[0].mxu0
      %v5033 = vadd.f32 %v4945, %v5032
      %v5034 = vpop.f32.mrb[0].mxu0
      %v5035 = vadd.f32 %v4950, %v5034
      %v5036 = vpop.f32.mrb[0].mxu0
      %v5037 = vadd.f32 %v4950, %v5036
      %5038 = vmatprep.mubr.bf16.mxu0 0
      %5039 = vmatmul.mubr.bf16.gmra.mrb[0].mxu0 %v4991
      %v5040 = vpop.f32.mrb[0].mxu0
      %v5041 = vadd.f32 %v4955, %v5040
      %v5042 = vpop.f32.mrb[0].mxu0
      %v5043 = vadd.f32 %v4955, %v5042
      %v5044 = vpop.f32.mrb[0].mxu0
      %v5045 = vadd.f32 %v4960, %v5044
      %v5046 = vpop.f32.mrb[0].mxu0
      %v5047 = vadd.f32 %v4960, %v5046
      %5048 = vmatprep.mubr.bf16.mxu0 0
      %5049 = vmatmul.mubr.bf16.gmra.mrb[0].mxu0 %v4994
      %v5050 = vpop.f32.mrb[0].mxu0
      %v5051 = vadd.f32 %v4965, %v5050
      %v5052 = vpop.f32.mrb[0].mxu0
      %v5053 = vadd.f32 %v4965, %v5052
      %v5054 = vpop.f32.mrb[0].mxu0
      %v5055 = vadd.f32 %v4970, %v5054
      %v5056 = vpop.f32.mrb[0].mxu0
      %v5057 = vadd.f32 %v4970, %v5056
      %5058 = vdwg.mxu0
      %5059 = vxpose.xlu0.b32.start [1/16] %v5031, 128
      %5060 = vxpose.xlu0.b32.cont [2/16] %v5035, 128
      %5061 = vxpose.xlu0.b32.cont [3/16] 0.0, 128
      %5062 = vxpose.xlu0.b32.cont [4/16] 0.0, 128
      %5063 = vxpose.xlu0.b32.cont [5/16] 0.0, 128
      %5064 = vxpose.xlu0.b32.cont [6/16] 0.0, 128
      %5065 = vxpose.xlu0.b32.cont [7/16] 0.0, 128
      %5066 = vxpose.xlu0.b32.cont [8/16] 0.0, 128
      %5067 = vxpose.xlu0.b32.cont [9/16] 0.0, 128
      %5068 = vxpose.xlu0.b32.cont [10/16] 0.0, 128
      %5069 = vxpose.xlu0.b32.cont [11/16] 0.0, 128
      %5070 = vxpose.xlu0.b32.cont [12/16] 0.0, 128
      %5071 = vxpose.xlu0.b32.cont [13/16] 0.0, 128
      %5072 = vxpose.xlu0.b32.cont [14/16] 0.0, 128
      %5073 = vxpose.xlu0.b32.cont [15/16] 0.0, 128
      %5074 = vxpose.xlu0.b32.end [16/16] 0.0, 128
      %v5075 = vpop.trf.xlu0
      %v5076 = vpop.trf.xlu0
      %v5077 = vpop.trf.xlu0
      %v5078 = vpop.trf.xlu0
      %v5079 = vpop.trf.xlu0
      %v5080 = vpop.trf.xlu0
      %v5081 = vpop.trf.xlu0
      %v5082 = vpop.trf.xlu0
      %v5083 = vpop.trf.xlu0
      %v5084 = vpop.trf.xlu0
      %v5085 = vpop.trf.xlu0
      %v5086 = vpop.trf.xlu0
      %v5087 = vpop.trf.xlu0
      %v5088 = vpop.trf.xlu0
      %v5089 = vpop.trf.xlu0
      %v5090 = vpop.trf.xlu0
      %5091 = vxpose.xlu0.b32.start [1/16] %v5033, 128
      %5092 = vxpose.xlu0.b32.cont [2/16] %v5037, 128
      %5093 = vxpose.xlu0.b32.cont [3/16] 0.0, 128
      %5094 = vxpose.xlu0.b32.cont [4/16] 0.0, 128
      %5095 = vxpose.xlu0.b32.cont [5/16] 0.0, 128
      %5096 = vxpose.xlu0.b32.cont [6/16] 0.0, 128
      %5097 = vxpose.xlu0.b32.cont [7/16] 0.0, 128
      %5098 = vxpose.xlu0.b32.cont [8/16] 0.0, 128
      %5099 = vxpose.xlu0.b32.cont [9/16] 0.0, 128
      %5100 = vxpose.xlu0.b32.cont [10/16] 0.0, 128
      %5101 = vxpose.xlu0.b32.cont [11/16] 0.0, 128
      %5102 = vxpose.xlu0.b32.cont [12/16] 0.0, 128
      %5103 = vxpose.xlu0.b32.cont [13/16] 0.0, 128
      %5104 = vxpose.xlu0.b32.cont [14/16] 0.0, 128
      %5105 = vxpose.xlu0.b32.cont [15/16] 0.0, 128
      %5106 = vxpose.xlu0.b32.end [16/16] 0.0, 128
      %v5107 = vpop.trf.xlu0
      %v5108 = vpop.trf.xlu0
      %v5109 = vpop.trf.xlu0
      %v5110 = vpop.trf.xlu0
      %v5111 = vpop.trf.xlu0
      %v5112 = vpop.trf.xlu0
      %v5113 = vpop.trf.xlu0
      %v5114 = vpop.trf.xlu0
      %v5115 = vpop.trf.xlu0
      %v5116 = vpop.trf.xlu0
      %v5117 = vpop.trf.xlu0
      %v5118 = vpop.trf.xlu0
      %v5119 = vpop.trf.xlu0
      %v5120 = vpop.trf.xlu0
      %v5121 = vpop.trf.xlu0
      %v5122 = vpop.trf.xlu0
      %v5123 = vpack.c.bf16 %v5076, %v5075
      %v5124 = vpack.c.bf16 %v5078, %v5077
      %v5125 = vpack.c.bf16 %v5080, %v5079
      %v5126 = vpack.c.bf16 %v5082, %v5081
      %v5127 = vpack.c.bf16 %v5084, %v5083
      %v5128 = vpack.c.bf16 %v5086, %v5085
      %v5129 = vpack.c.bf16 %v5088, %v5087
      %v5130 = vpack.c.bf16 %v5090, %v5089
      %v5131 = vpack.c.bf16 %v5108, %v5107
      %v5132 = vpack.c.bf16 %v5110, %v5109
      %v5133 = vpack.c.bf16 %v5112, %v5111
      %v5134 = vpack.c.bf16 %v5114, %v5113
      %v5135 = vpack.c.bf16 %v5116, %v5115
      %v5136 = vpack.c.bf16 %v5118, %v5117
      %v5137 = vpack.c.bf16 %v5120, %v5119
      %v5138 = vpack.c.bf16 %v5122, %v5121
      %v5139 = vpack.c.bf16 %v5041, %v5041
      %v5140 = vpack.c.bf16 %v5043, %v5043
      %v5141 = vpack.c.bf16 %v5051, %v5051
      %v5142 = vpack.c.bf16 %v5053, %v5053
      %v5143 = vld [vmem:[%s29] sm:$0xff]
      %v5144 = vld [vmem:[%s29 + $0x8] sm:$0xff]
      %v5145 = vld [vmem:[%s29 + $0x10] sm:$0xff]
      %v5146 = vld [vmem:[%s29 + $0x18] sm:$0xff]
      %v5147 = vld [vmem:[%s29 + $0x20] sm:$0xff]
      %v5148 = vld [vmem:[%s29 + $0x28] sm:$0xff]
      %v5149 = vld [vmem:[%s29 + $0x30] sm:$0xff]
      %v5150 = vld [vmem:[%s29 + $0x38] sm:$0xff]
      %v5151 = vld [vmem:[%s29 + $0x40] sm:$0xff]
      %v5152 = vld [vmem:[%s29 + $0x48] sm:$0xff]
      %v5153 = vld [vmem:[%s29 + $0x50] sm:$0xff]
      %v5154 = vld [vmem:[%s29 + $0x58] sm:$0xff]
      %v5155 = vld [vmem:[%s29 + $0x60] sm:$0xff]
      %v5156 = vld [vmem:[%s29 + $0x68] sm:$0xff]
      %v5157 = vld [vmem:[%s29 + $0x70] sm:$0xff]
      %v5158 = vld [vmem:[%s29 + $0x78] sm:$0xff]
      %v5159 = vld [vmem:[%s29 + $0x80] sm:$0xff]
      %v5160 = vld [vmem:[%s29 + $0x88] sm:$0xff]
      %v5161 = vld [vmem:[%s29 + $0x90] sm:$0xff]
      %v5162 = vld [vmem:[%s29 + $0x98] sm:$0xff]
      %v5163 = vld [vmem:[%s29 + $0xa0] sm:$0xff]
      %v5164 = vld [vmem:[%s29 + $0xa8] sm:$0xff]
      %v5165 = vld [vmem:[%s29 + $0xb0] sm:$0xff]
      %v5166 = vld [vmem:[%s29 + $0xb8] sm:$0xff]
      %v5167 = vld [vmem:[%s29 + $0xc0] sm:$0xff]
      %v5168 = vld [vmem:[%s29 + $0xc8] sm:$0xff]
      %v5169 = vld [vmem:[%s29 + $0xd0] sm:$0xff]
      %v5170 = vld [vmem:[%s29 + $0xd8] sm:$0xff]
      %v5171 = vld [vmem:[%s29 + $0xe0] sm:$0xff]
      %v5172 = vld [vmem:[%s29 + $0xe8] sm:$0xff]
      %v5173 = vld [vmem:[%s29 + $0xf0] sm:$0xff]
      %v5174 = vld [vmem:[%s29 + $0xf8] sm:$0xff]
      %v5175 = vunpack.c.l.bf16 %v5143
      %v5176 = vunpack.c.h.bf16 %v5143
      %v5177 = vunpack.c.l.bf16 %v5144
      %v5178 = vunpack.c.h.bf16 %v5144
      %v5179 = vunpack.c.l.bf16 %v5145
      %v5180 = vunpack.c.h.bf16 %v5145
      %v5181 = vunpack.c.l.bf16 %v5146
      %v5182 = vunpack.c.h.bf16 %v5146
      %v5183 = vunpack.c.l.bf16 %v5147
      %v5184 = vunpack.c.h.bf16 %v5147
      %v5185 = vunpack.c.l.bf16 %v5148
      %v5186 = vunpack.c.h.bf16 %v5148
      %v5187 = vunpack.c.l.bf16 %v5149
      %v5188 = vunpack.c.h.bf16 %v5149
      %v5189 = vunpack.c.l.bf16 %v5150
      %v5190 = vunpack.c.h.bf16 %v5150
      %v5191 = vunpack.c.l.bf16 %v5151
      %v5192 = vunpack.c.h.bf16 %v5151
      %v5193 = vunpack.c.l.bf16 %v5152
      %v5194 = vunpack.c.h.bf16 %v5152
      %v5195 = vunpack.c.l.bf16 %v5153
      %v5196 = vunpack.c.h.bf16 %v5153
      %v5197 = vunpack.c.l.bf16 %v5154
      %v5198 = vunpack.c.h.bf16 %v5154
      %v5199 = vunpack.c.l.bf16 %v5155
      %v5200 = vunpack.c.h.bf16 %v5155
      %v5201 = vunpack.c.l.bf16 %v5156
      %v5202 = vunpack.c.h.bf16 %v5156
      %v5203 = vunpack.c.l.bf16 %v5157
      %v5204 = vunpack.c.h.bf16 %v5157
      %v5205 = vunpack.c.l.bf16 %v5158
      %v5206 = vunpack.c.h.bf16 %v5158
      %v5207 = vunpack.c.l.bf16 %v5159
      %v5208 = vunpack.c.h.bf16 %v5159
      %v5209 = vunpack.c.l.bf16 %v5160
      %v5210 = vunpack.c.h.bf16 %v5160
      %v5211 = vunpack.c.l.bf16 %v5161
      %v5212 = vunpack.c.h.bf16 %v5161
      %v5213 = vunpack.c.l.bf16 %v5162
      %v5214 = vunpack.c.h.bf16 %v5162
      %v5215 = vunpack.c.l.bf16 %v5163
      %v5216 = vunpack.c.h.bf16 %v5163
      %v5217 = vunpack.c.l.bf16 %v5164
      %v5218 = vunpack.c.h.bf16 %v5164
      %v5219 = vunpack.c.l.bf16 %v5165
      %v5220 = vunpack.c.h.bf16 %v5165
      %v5221 = vunpack.c.l.bf16 %v5166
      %v5222 = vunpack.c.h.bf16 %v5166
      %v5223 = vunpack.c.l.bf16 %v5167
      %v5224 = vunpack.c.h.bf16 %v5167
      %v5225 = vunpack.c.l.bf16 %v5168
      %v5226 = vunpack.c.h.bf16 %v5168
      %v5227 = vunpack.c.l.bf16 %v5169
      %v5228 = vunpack.c.h.bf16 %v5169
      %v5229 = vunpack.c.l.bf16 %v5170
      %v5230 = vunpack.c.h.bf16 %v5170
      %v5231 = vunpack.c.l.bf16 %v5171
      %v5232 = vunpack.c.h.bf16 %v5171
      %v5233 = vunpack.c.l.bf16 %v5172
      %v5234 = vunpack.c.h.bf16 %v5172
      %v5235 = vunpack.c.l.bf16 %v5173
      %v5236 = vunpack.c.h.bf16 %v5173
      %v5237 = vunpack.c.l.bf16 %v5174
      %v5238 = vunpack.c.h.bf16 %v5174
      %v5240 = vsel %vm1221, %v5123, 0
      %v5243 = vsel %vm1221, %v5124, 0
      %v5246 = vsel %vm1221, %v5125, 0
      %v5249 = vsel %vm1221, %v5126, 0
      %v5252 = vsel %vm1221, %v5127, 0
      %v5255 = vsel %vm1221, %v5128, 0
      %v5258 = vsel %vm1221, %v5129, 0
      %v5261 = vsel %vm1221, %v5130, 0
      %v5264 = vsel %vm1221, %v5131, 0
      %v5267 = vsel %vm1221, %v5132, 0
      %v5270 = vsel %vm1221, %v5133, 0
      %v5273 = vsel %vm1221, %v5134, 0
      %v5276 = vsel %vm1221, %v5135, 0
      %v5279 = vsel %vm1221, %v5136, 0
      %v5282 = vsel %vm1221, %v5137, 0
      %v5285 = vsel %vm1221, %v5138, 0
      %v5288 = vsel %vm1270, %v5139, 0
      %v5291 = vsel %vm1270, %v5140, 0
      %5293 = vmatprep.subr.bf16.mxu0 %v5291
      %5294 = vmatpush1.bf16.msra.mxu0 %v5288
      %5295 = vmatprep.subr.bf16.mxu0 0
      %5296 = vmatpush1.bf16.msra.mxu0 0
      %5297 = vmatprep.subr.bf16.mxu0 0
      %5298 = vmatpush1.bf16.msra.mxu0 0
      %5299 = vmatprep.subr.bf16.mxu0 0
      %5300 = vmatpush1.bf16.msra.mxu0 0
      %5301 = vmatprep.subr.bf16.mxu0 0
      %5302 = vmatpush1.bf16.msra.mxu0 0
      %5303 = vmatprep.subr.bf16.mxu0 0
      %5304 = vmatpush1.bf16.msra.mxu0 0
      %5305 = vmatprep.subr.bf16.mxu0 0
      %5306 = vmatpush1.bf16.msra.mxu0 0
      %5307 = vmatprep.subr.bf16.mxu0 0
      %5308 = vmatpush1.bf16.msra.mxu0 0
      %5309 = vmatprep.subr.bf16.mxu0 0
      %5310 = vmatpush1.bf16.msra.mxu0 0
      %5311 = vmatprep.subr.bf16.mxu0 0
      %5312 = vmatpush1.bf16.msra.mxu0 0
      %5313 = vmatprep.subr.bf16.mxu0 0
      %5314 = vmatpush1.bf16.msra.mxu0 0
      %5315 = vmatprep.subr.bf16.mxu0 0
      %5316 = vmatpush1.bf16.msra.mxu0 0
      %5317 = vmatprep.subr.bf16.mxu0 0
      %5318 = vmatpush1.bf16.msra.mxu0 0
      %5319 = vmatprep.subr.bf16.mxu0 0
      %5320 = vmatpush1.bf16.msra.mxu0 0
      %5321 = vmatprep.subr.bf16.mxu0 0
      %5322 = vmatpush1.bf16.msra.mxu0 0
      %5323 = vmatprep.subr.bf16.mxu0 0
      %5324 = vmatpush1.bf16.msra.mxu0 0
      %5325 = vmatprep.mubr.bf16.mxu0 0
      %5326 = vmatmul.mubr.bf16.gmra.mrb[0].mxu0 %v5240
      %v5327 = vpop.f32.mrb[0].mxu0
      %v5328 = vadd.f32 %v5175, %v5327
      %v5329 = vpop.f32.mrb[0].mxu0
      %v5330 = vadd.f32 %v5176, %v5329
      %v5331 = vpop.f32.mrb[0].mxu0
      %v5332 = vadd.f32 %v5177, %v5331
      %v5333 = vpop.f32.mrb[0].mxu0
      %v5334 = vadd.f32 %v5178, %v5333
      %5335 = vmatprep.mubr.bf16.mxu0 0
      %5336 = vmatmul.mubr.bf16.gmra.mrb[0].mxu0 %v5243
      %v5337 = vpop.f32.mrb[0].mxu0
      %v5338 = vadd.f32 %v5179, %v5337
      %v5339 = vpop.f32.mrb[0].mxu0
      %v5340 = vadd.f32 %v5180, %v5339
      %v5341 = vpop.f32.mrb[0].mxu0
      %v5342 = vadd.f32 %v5181, %v5341
      %v5343 = vpop.f32.mrb[0].mxu0
      %v5344 = vadd.f32 %v5182, %v5343
      %5345 = vmatprep.mubr.bf16.mxu0 0
      %5346 = vmatmul.mubr.bf16.gmra.mrb[0].mxu0 %v5246
      %v5347 = vpop.f32.mrb[0].mxu0
      %v5348 = vadd.f32 %v5183, %v5347
      %v5349 = vpop.f32.mrb[0].mxu0
      %v5350 = vadd.f32 %v5184, %v5349
      %v5351 = vpop.f32.mrb[0].mxu0
      %v5352 = vadd.f32 %v5185, %v5351
      %v5353 = vpop.f32.mrb[0].mxu0
      %v5354 = vadd.f32 %v5186, %v5353
      %5355 = vmatprep.mubr.bf16.mxu0 0
      %5356 = vmatmul.mubr.bf16.gmra.mrb[0].mxu0 %v5249
      %v5357 = vpop.f32.mrb[0].mxu0
      %v5358 = vadd.f32 %v5187, %v5357
      %v5359 = vpop.f32.mrb[0].mxu0
      %v5360 = vadd.f32 %v5188, %v5359
      %v5361 = vpop.f32.mrb[0].mxu0
      %v5362 = vadd.f32 %v5189, %v5361
      %v5363 = vpop.f32.mrb[0].mxu0
      %v5364 = vadd.f32 %v5190, %v5363
      %5365 = vmatprep.mubr.bf16.mxu0 0
      %5366 = vmatmul.mubr.bf16.gmra.mrb[0].mxu0 %v5252
      %v5367 = vpop.f32.mrb[0].mxu0
      %v5368 = vadd.f32 %v5191, %v5367
      %v5369 = vpop.f32.mrb[0].mxu0
      %v5370 = vadd.f32 %v5192, %v5369
      %v5371 = vpop.f32.mrb[0].mxu0
      %v5372 = vadd.f32 %v5193, %v5371
      %v5373 = vpop.f32.mrb[0].mxu0
      %v5374 = vadd.f32 %v5194, %v5373
      %5375 = vmatprep.mubr.bf16.mxu0 0
      %5376 = vmatmul.mubr.bf16.gmra.mrb[0].mxu0 %v5255
      %v5377 = vpop.f32.mrb[0].mxu0
      %v5378 = vadd.f32 %v5195, %v5377
      %v5379 = vpop.f32.mrb[0].mxu0
      %v5380 = vadd.f32 %v5196, %v5379
      %v5381 = vpop.f32.mrb[0].mxu0
      %v5382 = vadd.f32 %v5197, %v5381
      %v5383 = vpop.f32.mrb[0].mxu0
      %v5384 = vadd.f32 %v5198, %v5383
      %5385 = vmatprep.mubr.bf16.mxu0 0
      %5386 = vmatmul.mubr.bf16.gmra.mrb[0].mxu0 %v5258
      %v5387 = vpop.f32.mrb[0].mxu0
      %v5388 = vadd.f32 %v5199, %v5387
      %v5389 = vpop.f32.mrb[0].mxu0
      %v5390 = vadd.f32 %v5200, %v5389
      %v5391 = vpop.f32.mrb[0].mxu0
      %v5392 = vadd.f32 %v5201, %v5391
      %v5393 = vpop.f32.mrb[0].mxu0
      %v5394 = vadd.f32 %v5202, %v5393
      %5395 = vmatprep.mubr.bf16.mxu0 0
      %5396 = vmatmul.mubr.bf16.gmra.mrb[0].mxu0 %v5261
      %v5397 = vpop.f32.mrb[0].mxu0
      %v5398 = vadd.f32 %v5203, %v5397
      %v5399 = vpop.f32.mrb[0].mxu0
      %v5400 = vadd.f32 %v5204, %v5399
      %v5401 = vpop.f32.mrb[0].mxu0
      %v5402 = vadd.f32 %v5205, %v5401
      %v5403 = vpop.f32.mrb[0].mxu0
      %v5404 = vadd.f32 %v5206, %v5403
      %5405 = vmatprep.mubr.bf16.mxu0 0
      %5406 = vmatmul.mubr.bf16.gmra.mrb[0].mxu0 %v5264
      %v5407 = vpop.f32.mrb[0].mxu0
      %v5408 = vadd.f32 %v5207, %v5407
      %v5409 = vpop.f32.mrb[0].mxu0
      %v5410 = vadd.f32 %v5208, %v5409
      %v5411 = vpop.f32.mrb[0].mxu0
      %v5412 = vadd.f32 %v5209, %v5411
      %v5413 = vpop.f32.mrb[0].mxu0
      %v5414 = vadd.f32 %v5210, %v5413
      %5415 = vmatprep.mubr.bf16.mxu0 0
      %5416 = vmatmul.mubr.bf16.gmra.mrb[0].mxu0 %v5267
      %v5417 = vpop.f32.mrb[0].mxu0
      %v5418 = vadd.f32 %v5211, %v5417
      %v5419 = vpop.f32.mrb[0].mxu0
      %v5420 = vadd.f32 %v5212, %v5419
      %v5421 = vpop.f32.mrb[0].mxu0
      %v5422 = vadd.f32 %v5213, %v5421
      %v5423 = vpop.f32.mrb[0].mxu0
      %v5424 = vadd.f32 %v5214, %v5423
      %5425 = vmatprep.mubr.bf16.mxu0 0
      %5426 = vmatmul.mubr.bf16.gmra.mrb[0].mxu0 %v5270
      %v5427 = vpop.f32.mrb[0].mxu0
      %v5428 = vadd.f32 %v5215, %v5427
      %v5429 = vpop.f32.mrb[0].mxu0
      %v5430 = vadd.f32 %v5216, %v5429
      %v5431 = vpop.f32.mrb[0].mxu0
      %v5432 = vadd.f32 %v5217, %v5431
      %v5433 = vpop.f32.mrb[0].mxu0
      %v5434 = vadd.f32 %v5218, %v5433
      %5435 = vmatprep.mubr.bf16.mxu0 0
      %5436 = vmatmul.mubr.bf16.gmra.mrb[0].mxu0 %v5273
      %v5437 = vpop.f32.mrb[0].mxu0
      %v5438 = vadd.f32 %v5219, %v5437
      %v5439 = vpop.f32.mrb[0].mxu0
      %v5440 = vadd.f32 %v5220, %v5439
      %v5441 = vpop.f32.mrb[0].mxu0
      %v5442 = vadd.f32 %v5221, %v5441
      %v5443 = vpop.f32.mrb[0].mxu0
      %v5444 = vadd.f32 %v5222, %v5443
      %5445 = vmatprep.mubr.bf16.mxu0 0
      %5446 = vmatmul.mubr.bf16.gmra.mrb[0].mxu0 %v5276
      %v5447 = vpop.f32.mrb[0].mxu0
      %v5448 = vadd.f32 %v5223, %v5447
      %v5449 = vpop.f32.mrb[0].mxu0
      %v5450 = vadd.f32 %v5224, %v5449
      %v5451 = vpop.f32.mrb[0].mxu0
      %v5452 = vadd.f32 %v5225, %v5451
      %v5453 = vpop.f32.mrb[0].mxu0
      %v5454 = vadd.f32 %v5226, %v5453
      %5455 = vmatprep.mubr.bf16.mxu0 0
      %5456 = vmatmul.mubr.bf16.gmra.mrb[0].mxu0 %v5279
      %v5457 = vpop.f32.mrb[0].mxu0
      %v5458 = vadd.f32 %v5227, %v5457
      %v5459 = vpop.f32.mrb[0].mxu0
      %v5460 = vadd.f32 %v5228, %v5459
      %v5461 = vpop.f32.mrb[0].mxu0
      %v5462 = vadd.f32 %v5229, %v5461
      %v5463 = vpop.f32.mrb[0].mxu0
      %v5464 = vadd.f32 %v5230, %v5463
      %5465 = vmatprep.mubr.bf16.mxu0 0
      %5466 = vmatmul.mubr.bf16.gmra.mrb[0].mxu0 %v5282
      %v5467 = vpop.f32.mrb[0].mxu0
      %v5468 = vadd.f32 %v5231, %v5467
      %v5469 = vpop.f32.mrb[0].mxu0
      %v5470 = vadd.f32 %v5232, %v5469
      %v5471 = vpop.f32.mrb[0].mxu0
      %v5472 = vadd.f32 %v5233, %v5471
      %v5473 = vpop.f32.mrb[0].mxu0
      %v5474 = vadd.f32 %v5234, %v5473
      %5475 = vmatprep.mubr.bf16.mxu0 0
      %5476 = vmatmul.mubr.bf16.gmra.mrb[0].mxu0 %v5285
      %v5477 = vpop.f32.mrb[0].mxu0
      %v5478 = vadd.f32 %v5235, %v5477
      %v5479 = vpop.f32.mrb[0].mxu0
      %v5480 = vadd.f32 %v5236, %v5479
      %v5481 = vpop.f32.mrb[0].mxu0
      %v5482 = vadd.f32 %v5237, %v5481
      %v5483 = vpop.f32.mrb[0].mxu0
      %v5484 = vadd.f32 %v5238, %v5483
      %5485 = vdwg.mxu0
      %v5486 = vmax.f32 %v5328, %v5330
      %5487 = vmax.xlane.f32.xlu0 %v5486
      %v5488 = vpop.xlane.xlu0 %5487
      %v5489 = vmax.f32 %v5332, %v5334
      %5490 = vmax.xlane.f32.xlu0 %v5489
      %v5491 = vpop.xlane.xlu0 %5490
      %v5492 = vmax.f32 %v5338, %v5340
      %5493 = vmax.xlane.f32.xlu0 %v5492
      %v5494 = vpop.xlane.xlu0 %5493
      %v5495 = vmax.f32 %v5342, %v5344
      %5496 = vmax.xlane.f32.xlu0 %v5495
      %v5497 = vpop.xlane.xlu0 %5496
      %v5498 = vmax.f32 %v5348, %v5350
      %5499 = vmax.xlane.f32.xlu0 %v5498
      %v5500 = vpop.xlane.xlu0 %5499
      %v5501 = vmax.f32 %v5352, %v5354
      %5502 = vmax.xlane.f32.xlu0 %v5501
      %v5503 = vpop.xlane.xlu0 %5502
      %v5504 = vmax.f32 %v5358, %v5360
      %5505 = vmax.xlane.f32.xlu0 %v5504
      %v5506 = vpop.xlane.xlu0 %5505
      %v5507 = vmax.f32 %v5362, %v5364
      %5508 = vmax.xlane.f32.xlu0 %v5507
      %v5509 = vpop.xlane.xlu0 %5508
      %v5510 = vmax.f32 %v5368, %v5370
      %5511 = vmax.xlane.f32.xlu0 %v5510
      %v5512 = vpop.xlane.xlu0 %5511
      %v5513 = vmax.f32 %v5372, %v5374
      %5514 = vmax.xlane.f32.xlu0 %v5513
      %v5515 = vpop.xlane.xlu0 %5514
      %v5516 = vmax.f32 %v5378, %v5380
      %5517 = vmax.xlane.f32.xlu0 %v5516
      %v5518 = vpop.xlane.xlu0 %5517
      %v5519 = vmax.f32 %v5382, %v5384
      %5520 = vmax.xlane.f32.xlu0 %v5519
      %v5521 = vpop.xlane.xlu0 %5520
      %v5522 = vmax.f32 %v5388, %v5390
      %5523 = vmax.xlane.f32.xlu0 %v5522
      %v5524 = vpop.xlane.xlu0 %5523
      %v5525 = vmax.f32 %v5392, %v5394
      %5526 = vmax.xlane.f32.xlu0 %v5525
      %v5527 = vpop.xlane.xlu0 %5526
      %v5528 = vmax.f32 %v5398, %v5400
      %5529 = vmax.xlane.f32.xlu0 %v5528
      %v5530 = vpop.xlane.xlu0 %5529
      %v5531 = vmax.f32 %v5402, %v5404
      %5532 = vmax.xlane.f32.xlu0 %v5531
      %v5533 = vpop.xlane.xlu0 %5532
      %v5534 = vmax.f32 %v5408, %v5410
      %5535 = vmax.xlane.f32.xlu0 %v5534
      %v5536 = vpop.xlane.xlu0 %5535
      %v5537 = vmax.f32 %v5412, %v5414
      %5538 = vmax.xlane.f32.xlu0 %v5537
      %v5539 = vpop.xlane.xlu0 %5538
      %v5540 = vmax.f32 %v5418, %v5420
      %5541 = vmax.xlane.f32.xlu0 %v5540
      %v5542 = vpop.xlane.xlu0 %5541
      %v5543 = vmax.f32 %v5422, %v5424
      %5544 = vmax.xlane.f32.xlu0 %v5543
      %v5545 = vpop.xlane.xlu0 %5544
      %v5546 = vmax.f32 %v5428, %v5430
      %5547 = vmax.xlane.f32.xlu0 %v5546
      %v5548 = vpop.xlane.xlu0 %5547
      %v5549 = vmax.f32 %v5432, %v5434
      %5550 = vmax.xlane.f32.xlu0 %v5549
      %v5551 = vpop.xlane.xlu0 %5550
      %v5552 = vmax.f32 %v5438, %v5440
      %5553 = vmax.xlane.f32.xlu0 %v5552
      %v5554 = vpop.xlane.xlu0 %5553
      %v5555 = vmax.f32 %v5442, %v5444
      %5556 = vmax.xlane.f32.xlu0 %v5555
      %v5557 = vpop.xlane.xlu0 %5556
      %v5558 = vmax.f32 %v5448, %v5450
      %5559 = vmax.xlane.f32.xlu0 %v5558
      %v5560 = vpop.xlane.xlu0 %5559
      %v5561 = vmax.f32 %v5452, %v5454
      %5562 = vmax.xlane.f32.xlu0 %v5561
      %v5563 = vpop.xlane.xlu0 %5562
      %v5564 = vmax.f32 %v5458, %v5460
      %5565 = vmax.xlane.f32.xlu0 %v5564
      %v5566 = vpop.xlane.xlu0 %5565
      %v5567 = vmax.f32 %v5462, %v5464
      %5568 = vmax.xlane.f32.xlu0 %v5567
      %v5569 = vpop.xlane.xlu0 %5568
      %v5570 = vmax.f32 %v5468, %v5470
      %5571 = vmax.xlane.f32.xlu0 %v5570
      %v5572 = vpop.xlane.xlu0 %5571
      %v5573 = vmax.f32 %v5472, %v5474
      %5574 = vmax.xlane.f32.xlu0 %v5573
      %v5575 = vpop.xlane.xlu0 %5574
      %v5576 = vmax.f32 %v5478, %v5480
      %5577 = vmax.xlane.f32.xlu0 %v5576
      %v5578 = vpop.xlane.xlu0 %5577
      %v5579 = vmax.f32 %v5482, %v5484
      %5580 = vmax.xlane.f32.xlu0 %v5579
      %v5581 = vpop.xlane.xlu0 %5580
      %v5582 = vsub.f32 %v5328, %v5488
      %v5583 = vsub.f32 %v5330, %v5488
      %v5584 = vsub.f32 %v5332, %v5491
      %v5585 = vsub.f32 %v5334, %v5491
      %v5586 = vsub.f32 %v5338, %v5494
      %v5587 = vsub.f32 %v5340, %v5494
      %v5588 = vsub.f32 %v5342, %v5497
      %v5589 = vsub.f32 %v5344, %v5497
      %v5590 = vsub.f32 %v5348, %v5500
      %v5591 = vsub.f32 %v5350, %v5500
      %v5592 = vsub.f32 %v5352, %v5503
      %v5593 = vsub.f32 %v5354, %v5503
      %v5594 = vsub.f32 %v5358, %v5506
      %v5595 = vsub.f32 %v5360, %v5506
      %v5596 = vsub.f32 %v5362, %v5509
      %v5597 = vsub.f32 %v5364, %v5509
      %v5598 = vsub.f32 %v5368, %v5512
      %v5599 = vsub.f32 %v5370, %v5512
      %v5600 = vsub.f32 %v5372, %v5515
      %v5601 = vsub.f32 %v5374, %v5515
      %v5602 = vsub.f32 %v5378, %v5518
      %v5603 = vsub.f32 %v5380, %v5518
      %v5604 = vsub.f32 %v5382, %v5521
      %v5605 = vsub.f32 %v5384, %v5521
      %v5606 = vsub.f32 %v5388, %v5524
      %v5607 = vsub.f32 %v5390, %v5524
      %v5608 = vsub.f32 %v5392, %v5527
      %v5609 = vsub.f32 %v5394, %v5527
      %v5610 = vsub.f32 %v5398, %v5530
      %v5611 = vsub.f32 %v5400, %v5530
      %v5612 = vsub.f32 %v5402, %v5533
      %v5613 = vsub.f32 %v5404, %v5533
      %v5614 = vsub.f32 %v5408, %v5536
      %v5615 = vsub.f32 %v5410, %v5536
      %v5616 = vsub.f32 %v5412, %v5539
      %v5617 = vsub.f32 %v5414, %v5539
      %v5618 = vsub.f32 %v5418, %v5542
      %v5619 = vsub.f32 %v5420, %v5542
      %v5620 = vsub.f32 %v5422, %v5545
      %v5621 = vsub.f32 %v5424, %v5545
      %v5622 = vsub.f32 %v5428, %v5548
      %v5623 = vsub.f32 %v5430, %v5548
      %v5624 = vsub.f32 %v5432, %v5551
      %v5625 = vsub.f32 %v5434, %v5551
      %v5626 = vsub.f32 %v5438, %v5554
      %v5627 = vsub.f32 %v5440, %v5554
      %v5628 = vsub.f32 %v5442, %v5557
      %v5629 = vsub.f32 %v5444, %v5557
      %v5630 = vsub.f32 %v5448, %v5560
      %v5631 = vsub.f32 %v5450, %v5560
      %v5632 = vsub.f32 %v5452, %v5563
      %v5633 = vsub.f32 %v5454, %v5563
      %v5634 = vsub.f32 %v5458, %v5566
      %v5635 = vsub.f32 %v5460, %v5566
      %v5636 = vsub.f32 %v5462, %v5569
      %v5637 = vsub.f32 %v5464, %v5569
      %v5638 = vsub.f32 %v5468, %v5572
      %v5639 = vsub.f32 %v5470, %v5572
      %v5640 = vsub.f32 %v5472, %v5575
      %v5641 = vsub.f32 %v5474, %v5575
      %v5642 = vsub.f32 %v5478, %v5578
      %v5643 = vsub.f32 %v5480, %v5578
      %v5644 = vsub.f32 %v5482, %v5581
      %v5645 = vsub.f32 %v5484, %v5581
      %v5646 = vmul.f32 %v5582, 1.442695
      %v5647 = vpow.pop %v5646
      %v5648 = vmul.f32 %v5583, 1.442695
      %v5649 = vpow.pop %v5648
      %v5650 = vmul.f32 %v5584, 1.442695
      %v5651 = vpow.pop %v5650
      %v5652 = vmul.f32 %v5585, 1.442695
      %v5653 = vpow.pop %v5652
      %v5654 = vmul.f32 %v5586, 1.442695
      %v5655 = vpow.pop %v5654
      %v5656 = vmul.f32 %v5587, 1.442695
      %v5657 = vpow.pop %v5656
      %v5658 = vmul.f32 %v5588, 1.442695
      %v5659 = vpow.pop %v5658
      %v5660 = vmul.f32 %v5589, 1.442695
      %v5661 = vpow.pop %v5660
      %v5662 = vmul.f32 %v5590, 1.442695
      %v5663 = vpow.pop %v5662
      %v5664 = vmul.f32 %v5591, 1.442695
      %v5665 = vpow.pop %v5664
      %v5666 = vmul.f32 %v5592, 1.442695
      %v5667 = vpow.pop %v5666
      %v5668 = vmul.f32 %v5593, 1.442695
      %v5669 = vpow.pop %v5668
      %v5670 = vmul.f32 %v5594, 1.442695
      %v5671 = vpow.pop %v5670
      %v5672 = vmul.f32 %v5595, 1.442695
      %v5673 = vpow.pop %v5672
      %v5674 = vmul.f32 %v5596, 1.442695
      %v5675 = vpow.pop %v5674
      %v5676 = vmul.f32 %v5597, 1.442695
      %v5677 = vpow.pop %v5676
      %v5678 = vmul.f32 %v5598, 1.442695
      %v5679 = vpow.pop %v5678
      %v5680 = vmul.f32 %v5599, 1.442695
      %v5681 = vpow.pop %v5680
      %v5682 = vmul.f32 %v5600, 1.442695
      %v5683 = vpow.pop %v5682
      %v5684 = vmul.f32 %v5601, 1.442695
      %v5685 = vpow.pop %v5684
      %v5686 = vmul.f32 %v5602, 1.442695
      %v5687 = vpow.pop %v5686
      %v5688 = vmul.f32 %v5603, 1.442695
      %v5689 = vpow.pop %v5688
      %v5690 = vmul.f32 %v5604, 1.442695
      %v5691 = vpow.pop %v5690
      %v5692 = vmul.f32 %v5605, 1.442695
      %v5693 = vpow.pop %v5692
      %v5694 = vmul.f32 %v5606, 1.442695
      %v5695 = vpow.pop %v5694
      %v5696 = vmul.f32 %v5607, 1.442695
      %v5697 = vpow.pop %v5696
      %v5698 = vmul.f32 %v5608, 1.442695
      %v5699 = vpow.pop %v5698
      %v5700 = vmul.f32 %v5609, 1.442695
      %v5701 = vpow.pop %v5700
      %v5702 = vmul.f32 %v5610, 1.442695
      %v5703 = vpow.pop %v5702
      %v5704 = vmul.f32 %v5611, 1.442695
      %v5705 = vpow.pop %v5704
      %v5706 = vmul.f32 %v5612, 1.442695
      %v5707 = vpow.pop %v5706
      %v5708 = vmul.f32 %v5613, 1.442695
      %v5709 = vpow.pop %v5708
      %v5710 = vmul.f32 %v5614, 1.442695
      %v5711 = vpow.pop %v5710
      %v5712 = vmul.f32 %v5615, 1.442695
      %v5713 = vpow.pop %v5712
      %v5714 = vmul.f32 %v5616, 1.442695
      %v5715 = vpow.pop %v5714
      %v5716 = vmul.f32 %v5617, 1.442695
      %v5717 = vpow.pop %v5716
      %v5718 = vmul.f32 %v5618, 1.442695
      %v5719 = vpow.pop %v5718
      %v5720 = vmul.f32 %v5619, 1.442695
      %v5721 = vpow.pop %v5720
      %v5722 = vmul.f32 %v5620, 1.442695
      %v5723 = vpow.pop %v5722
      %v5724 = vmul.f32 %v5621, 1.442695
      %v5725 = vpow.pop %v5724
      %v5726 = vmul.f32 %v5622, 1.442695
      %v5727 = vpow.pop %v5726
      %v5728 = vmul.f32 %v5623, 1.442695
      %v5729 = vpow.pop %v5728
      %v5730 = vmul.f32 %v5624, 1.442695
      %v5731 = vpow.pop %v5730
      %v5732 = vmul.f32 %v5625, 1.442695
      %v5733 = vpow.pop %v5732
      %v5734 = vmul.f32 %v5626, 1.442695
      %v5735 = vpow.pop %v5734
      %v5736 = vmul.f32 %v5627, 1.442695
      %v5737 = vpow.pop %v5736
      %v5738 = vmul.f32 %v5628, 1.442695
      %v5739 = vpow.pop %v5738
      %v5740 = vmul.f32 %v5629, 1.442695
      %v5741 = vpow.pop %v5740
      %v5742 = vmul.f32 %v5630, 1.442695
      %v5743 = vpow.pop %v5742
      %v5744 = vmul.f32 %v5631, 1.442695
      %v5745 = vpow.pop %v5744
      %v5746 = vmul.f32 %v5632, 1.442695
      %v5747 = vpow.pop %v5746
      %v5748 = vmul.f32 %v5633, 1.442695
      %v5749 = vpow.pop %v5748
      %v5750 = vmul.f32 %v5634, 1.442695
      %v5751 = vpow.pop %v5750
      %v5752 = vmul.f32 %v5635, 1.442695
      %v5753 = vpow.pop %v5752
      %v5754 = vmul.f32 %v5636, 1.442695
      %v5755 = vpow.pop %v5754
      %v5756 = vmul.f32 %v5637, 1.442695
      %v5757 = vpow.pop %v5756
      %v5758 = vmul.f32 %v5638, 1.442695
      %v5759 = vpow.pop %v5758
      %v5760 = vmul.f32 %v5639, 1.442695
      %v5761 = vpow.pop %v5760
      %v5762 = vmul.f32 %v5640, 1.442695
      %v5763 = vpow.pop %v5762
      %v5764 = vmul.f32 %v5641, 1.442695
      %v5765 = vpow.pop %v5764
      %v5766 = vmul.f32 %v5642, 1.442695
      %v5767 = vpow.pop %v5766
      %v5768 = vmul.f32 %v5643, 1.442695
      %v5769 = vpow.pop %v5768
      %v5770 = vmul.f32 %v5644, 1.442695
      %v5771 = vpow.pop %v5770
      %v5772 = vmul.f32 %v5645, 1.442695
      %v5773 = vpow.pop %v5772
      %v5774 = vpack.c.bf16 %v5651, %v5647
      %v5775 = vpack.c.bf16 %v5653, %v5649
      %v5776 = vpack.c.bf16 %v5659, %v5655
      %v5777 = vpack.c.bf16 %v5661, %v5657
      %v5778 = vpack.c.bf16 %v5667, %v5663
      %v5779 = vpack.c.bf16 %v5669, %v5665
      %v5780 = vpack.c.bf16 %v5675, %v5671
      %v5781 = vpack.c.bf16 %v5677, %v5673
      %v5782 = vpack.c.bf16 %v5683, %v5679
      %v5783 = vpack.c.bf16 %v5685, %v5681
      %v5784 = vpack.c.bf16 %v5691, %v5687
      %v5785 = vpack.c.bf16 %v5693, %v5689
      %v5786 = vpack.c.bf16 %v5699, %v5695
      %v5787 = vpack.c.bf16 %v5701, %v5697
      %v5788 = vpack.c.bf16 %v5707, %v5703
      %v5789 = vpack.c.bf16 %v5709, %v5705
      %v5790 = vpack.c.bf16 %v5715, %v5711
      %v5791 = vpack.c.bf16 %v5717, %v5713
      %v5792 = vpack.c.bf16 %v5723, %v5719
      %v5793 = vpack.c.bf16 %v5725, %v5721
      %v5794 = vpack.c.bf16 %v5731, %v5727
      %v5795 = vpack.c.bf16 %v5733, %v5729
      %v5796 = vpack.c.bf16 %v5739, %v5735
      %v5797 = vpack.c.bf16 %v5741, %v5737
      %v5798 = vpack.c.bf16 %v5747, %v5743
      %v5799 = vpack.c.bf16 %v5749, %v5745
      %v5800 = vpack.c.bf16 %v5755, %v5751
      %v5801 = vpack.c.bf16 %v5757, %v5753
      %v5802 = vpack.c.bf16 %v5763, %v5759
      %v5803 = vpack.c.bf16 %v5765, %v5761
      %v5804 = vpack.c.bf16 %v5771, %v5767
      %v5805 = vpack.c.bf16 %v5773, %v5769
      %5806 = vmatprep.subr.bf16.mxu0 %v5775
      %5807 = vmatpush1.bf16.xpose.msra.mxu0 %v5774
      %5808 = vmatprep.subr.bf16.mxu0 %v5777
      %5809 = vmatpush1.bf16.xpose.msra.mxu0 %v5776
      %5810 = vmatprep.subr.bf16.mxu0 %v5779
      %5811 = vmatpush1.bf16.xpose.msra.mxu0 %v5778
      %5812 = vmatprep.subr.bf16.mxu0 %v5781
      %5813 = vmatpush1.bf16.xpose.msra.mxu0 %v5780
      %5814 = vmatprep.subr.bf16.mxu0 %v5783
      %5815 = vmatpush1.bf16.xpose.msra.mxu0 %v5782
      %5816 = vmatprep.subr.bf16.mxu0 %v5785
      %5817 = vmatpush1.bf16.xpose.msra.mxu0 %v5784
      %5818 = vmatprep.subr.bf16.mxu0 %v5787
      %5819 = vmatpush1.bf16.xpose.msra.mxu0 %v5786
      %5820 = vmatprep.subr.bf16.mxu0 %v5789
      %5821 = vmatpush1.bf16.xpose.msra.mxu0 %v5788
      %5822 = vmatprep.subr.bf16.mxu0 %v5791
      %5823 = vmatpush1.bf16.xpose.msra.mxu0 %v5790
      %5824 = vmatprep.subr.bf16.mxu0 %v5793
      %5825 = vmatpush1.bf16.xpose.msra.mxu0 %v5792
      %5826 = vmatprep.subr.bf16.mxu0 %v5795
      %5827 = vmatpush1.bf16.xpose.msra.mxu0 %v5794
      %5828 = vmatprep.subr.bf16.mxu0 %v5797
      %5829 = vmatpush1.bf16.xpose.msra.mxu0 %v5796
      %5830 = vmatprep.subr.bf16.mxu0 %v5799
      %5831 = vmatpush1.bf16.xpose.msra.mxu0 %v5798
      %5832 = vmatprep.subr.bf16.mxu0 %v5801
      %5833 = vmatpush1.bf16.xpose.msra.mxu0 %v5800
      %5834 = vmatprep.subr.bf16.mxu0 %v5803
      %5835 = vmatpush1.bf16.xpose.msra.mxu0 %v5802
      %5836 = vmatprep.subr.bf16.mxu0 %v5805
      %5837 = vmatpush1.bf16.xpose.msra.mxu0 %v5804
      %5838 = vmatprep.mubr.bf16.mxu0 %v5142
      %5839 = vmatmul.mubr.bf16.gmra.mrb[0].mxu0 %v5141
      %v5840 = vpop.f32.mrb[0].mxu0
      %v5841 = vadd.f32 0.0, %v5840
      %v5842 = vpop.f32.mrb[0].mxu0
      %v5843 = vadd.f32 0.0, %v5842
      %v5844 = vpop.f32.mrb[0].mxu0
      %v5845 = vpop.f32.mrb[0].mxu0
      %5846 = vdwg.mxu0
      %5847 = vmatprep.subr.bf16.mxu0 %v5775
      %5848 = vmatpush1.bf16.xpose.msra.mxu0 %v5774
      %5849 = vmatprep.subr.bf16.mxu0 %v5777
      %5850 = vmatpush1.bf16.xpose.msra.mxu0 %v5776
      %5851 = vmatprep.subr.bf16.mxu0 %v5779
      %5852 = vmatpush1.bf16.xpose.msra.mxu0 %v5778
      %5853 = vmatprep.subr.bf16.mxu0 %v5781
      %5854 = vmatpush1.bf16.xpose.msra.mxu0 %v5780
      %5855 = vmatprep.subr.bf16.mxu0 %v5783
      %5856 = vmatpush1.bf16.xpose.msra.mxu0 %v5782
      %5857 = vmatprep.subr.bf16.mxu0 %v5785
      %5858 = vmatpush1.bf16.xpose.msra.mxu0 %v5784
      %5859 = vmatprep.subr.bf16.mxu0 %v5787
      %5860 = vmatpush1.bf16.xpose.msra.mxu0 %v5786
      %5861 = vmatprep.subr.bf16.mxu0 %v5789
      %5862 = vmatpush1.bf16.xpose.msra.mxu0 %v5788
      %5863 = vmatprep.subr.bf16.mxu0 %v5791
      %5864 = vmatpush1.bf16.xpose.msra.mxu0 %v5790
      %5865 = vmatprep.subr.bf16.mxu0 %v5793
      %5866 = vmatpush1.bf16.xpose.msra.mxu0 %v5792
      %5867 = vmatprep.subr.bf16.mxu0 %v5795
      %5868 = vmatpush1.bf16.xpose.msra.mxu0 %v5794
      %5869 = vmatprep.subr.bf16.mxu0 %v5797
      %5870 = vmatpush1.bf16.xpose.msra.mxu0 %v5796
      %5871 = vmatprep.subr.bf16.mxu0 %v5799
      %5872 = vmatpush1.bf16.xpose.msra.mxu0 %v5798
      %5873 = vmatprep.subr.bf16.mxu0 %v5801
      %5874 = vmatpush1.bf16.xpose.msra.mxu0 %v5800
      %5875 = vmatprep.subr.bf16.mxu0 %v5803
      %5876 = vmatpush1.bf16.xpose.msra.mxu0 %v5802
      %5877 = vmatprep.subr.bf16.mxu0 %v5805
      %5878 = vmatpush1.bf16.xpose.msra.mxu0 %v5804
      %5879 = vmatprep.mubr.bf16.mxu0 1065369472
      %5880 = vmatmul.mubr.bf16.gmra.mrb[0].mxu0 1065369472
      %v5881 = vpop.f32.mrb[0].mxu0
      %v5882 = vadd.f32 0.0, %v5881
      %v5883 = vpop.f32.mrb[0].mxu0
      %v5884 = vadd.f32 0.0, %v5883
      %v5885 = vpop.f32.mrb[0].mxu0
      %v5886 = vpop.f32.mrb[0].mxu0
      %5887 = vdwg.mxu0
      %v5888 = vrcp.pop %v5882
      %v5889 = vrcp.pop %v5884
      %v5890 = vlaneseq
      %v5891 = vshrl.u32 %v5890, 7
      %v5892 = vsub.s32 0, %v5891
      %v5893 = vrot.slane %v5888, %v5892
      %v5894 = vlaneseq
      %v5895 = vshrl.u32 %v5894, 7
      %v5896 = vsub.s32 0, %v5895
      %v5897 = vrot.slane %v5889, %v5896
      %v5898 = vmul.f32 %v5841, %v5893
      %v5899 = vmul.f32 %v5843, %v5897
      %s5900 = scalar_lea.vmem %s29, 256
      %v5901 = vld [vmem:[%s5900] sm:$0xff]
      %v5902 = vld [vmem:[%s5900 + $0x8] sm:$0xff]
      %v5903 = vld [vmem:[%s5900 + $0x10] sm:$0xff]
      %v5904 = vld [vmem:[%s5900 + $0x18] sm:$0xff]
      %v5905 = vld [vmem:[%s5900 + $0x20] sm:$0xff]
      %v5906 = vld [vmem:[%s5900 + $0x28] sm:$0xff]
      %v5907 = vld [vmem:[%s5900 + $0x30] sm:$0xff]
      %v5908 = vld [vmem:[%s5900 + $0x38] sm:$0xff]
      %v5909 = vld [vmem:[%s5900 + $0x40] sm:$0xff]
      %v5910 = vld [vmem:[%s5900 + $0x48] sm:$0xff]
      %v5911 = vld [vmem:[%s5900 + $0x50] sm:$0xff]
      %v5912 = vld [vmem:[%s5900 + $0x58] sm:$0xff]
      %v5913 = vld [vmem:[%s5900 + $0x60] sm:$0xff]
      %v5914 = vld [vmem:[%s5900 + $0x68] sm:$0xff]
      %v5915 = vld [vmem:[%s5900 + $0x70] sm:$0xff]
      %v5916 = vld [vmem:[%s5900 + $0x78] sm:$0xff]
      %v5917 = vld [vmem:[%s5900 + $0x80] sm:$0xff]
      %v5918 = vld [vmem:[%s5900 + $0x88] sm:$0xff]
      %v5919 = vld [vmem:[%s5900 + $0x90] sm:$0xff]
      %v5920 = vld [vmem:[%s5900 + $0x98] sm:$0xff]
      %v5921 = vld [vmem:[%s5900 + $0xa0] sm:$0xff]
      %v5922 = vld [vmem:[%s5900 + $0xa8] sm:$0xff]
      %v5923 = vld [vmem:[%s5900 + $0xb0] sm:$0xff]
      %v5924 = vld [vmem:[%s5900 + $0xb8] sm:$0xff]
      %v5925 = vld [vmem:[%s5900 + $0xc0] sm:$0xff]
      %v5926 = vld [vmem:[%s5900 + $0xc8] sm:$0xff]
      %v5927 = vld [vmem:[%s5900 + $0xd0] sm:$0xff]
      %v5928 = vld [vmem:[%s5900 + $0xd8] sm:$0xff]
      %v5929 = vld [vmem:[%s5900 + $0xe0] sm:$0xff]
      %v5930 = vld [vmem:[%s5900 + $0xe8] sm:$0xff]
      %v5931 = vld [vmem:[%s5900 + $0xf0] sm:$0xff]
      %v5932 = vld [vmem:[%s5900 + $0xf8] sm:$0xff]
      %v5933 = vunpack.c.l.bf16 %v5901
      %v5934 = vunpack.c.h.bf16 %v5901
      %v5935 = vunpack.c.l.bf16 %v5902
      %v5936 = vunpack.c.h.bf16 %v5902
      %v5937 = vunpack.c.l.bf16 %v5903
      %v5938 = vunpack.c.h.bf16 %v5903
      %v5939 = vunpack.c.l.bf16 %v5904
      %v5940 = vunpack.c.h.bf16 %v5904
      %v5941 = vunpack.c.l.bf16 %v5905
      %v5942 = vunpack.c.h.bf16 %v5905
      %v5943 = vunpack.c.l.bf16 %v5906
      %v5944 = vunpack.c.h.bf16 %v5906
      %v5945 = vunpack.c.l.bf16 %v5907
      %v5946 = vunpack.c.h.bf16 %v5907
      %v5947 = vunpack.c.l.bf16 %v5908
      %v5948 = vunpack.c.h.bf16 %v5908
      %v5949 = vunpack.c.l.bf16 %v5909
      %v5950 = vunpack.c.h.bf16 %v5909
      %v5951 = vunpack.c.l.bf16 %v5910
      %v5952 = vunpack.c.h.bf16 %v5910
      %v5953 = vunpack.c.l.bf16 %v5911
      %v5954 = vunpack.c.h.bf16 %v5911
      %v5955 = vunpack.c.l.bf16 %v5912
      %v5956 = vunpack.c.h.bf16 %v5912
      %v5957 = vunpack.c.l.bf16 %v5913
      %v5958 = vunpack.c.h.bf16 %v5913
      %v5959 = vunpack.c.l.bf16 %v5914
      %v5960 = vunpack.c.h.bf16 %v5914
      %v5961 = vunpack.c.l.bf16 %v5915
      %v5962 = vunpack.c.h.bf16 %v5915
      %v5963 = vunpack.c.l.bf16 %v5916
      %v5964 = vunpack.c.h.bf16 %v5916
      %v5965 = vunpack.c.l.bf16 %v5917
      %v5966 = vunpack.c.h.bf16 %v5917
      %v5967 = vunpack.c.l.bf16 %v5918
      %v5968 = vunpack.c.h.bf16 %v5918
      %v5969 = vunpack.c.l.bf16 %v5919
      %v5970 = vunpack.c.h.bf16 %v5919
      %v5971 = vunpack.c.l.bf16 %v5920
      %v5972 = vunpack.c.h.bf16 %v5920
      %v5973 = vunpack.c.l.bf16 %v5921
      %v5974 = vunpack.c.h.bf16 %v5921
      %v5975 = vunpack.c.l.bf16 %v5922
      %v5976 = vunpack.c.h.bf16 %v5922
      %v5977 = vunpack.c.l.bf16 %v5923
      %v5978 = vunpack.c.h.bf16 %v5923
      %v5979 = vunpack.c.l.bf16 %v5924
      %v5980 = vunpack.c.h.bf16 %v5924
      %v5981 = vunpack.c.l.bf16 %v5925
      %v5982 = vunpack.c.h.bf16 %v5925
      %v5983 = vunpack.c.l.bf16 %v5926
      %v5984 = vunpack.c.h.bf16 %v5926
      %v5985 = vunpack.c.l.bf16 %v5927
      %v5986 = vunpack.c.h.bf16 %v5927
      %v5987 = vunpack.c.l.bf16 %v5928
      %v5988 = vunpack.c.h.bf16 %v5928
      %v5989 = vunpack.c.l.bf16 %v5929
      %v5990 = vunpack.c.h.bf16 %v5929
      %v5991 = vunpack.c.l.bf16 %v5930
      %v5992 = vunpack.c.h.bf16 %v5930
      %v5993 = vunpack.c.l.bf16 %v5931
      %v5994 = vunpack.c.h.bf16 %v5931
      %v5995 = vunpack.c.l.bf16 %v5932
      %v5996 = vunpack.c.h.bf16 %v5932
      %6013 = vrot.lane.b32.xlu0 %v5123, 124
      %v6014 = vpop.permute.xlu0 %6013
      %6015 = vrot.lane.b32.xlu0 %v5124, 124
      %v6016 = vpop.permute.xlu0 %6015
      %6017 = vrot.lane.b32.xlu0 %v5125, 124
      %v6018 = vpop.permute.xlu0 %6017
      %6019 = vrot.lane.b32.xlu0 %v5126, 124
      %v6020 = vpop.permute.xlu0 %6019
      %6021 = vrot.lane.b32.xlu0 %v5127, 124
      %v6022 = vpop.permute.xlu0 %6021
      %6023 = vrot.lane.b32.xlu0 %v5128, 124
      %v6024 = vpop.permute.xlu0 %6023
      %6025 = vrot.lane.b32.xlu0 %v5129, 124
      %v6026 = vpop.permute.xlu0 %6025
      %6027 = vrot.lane.b32.xlu0 %v5130, 124
      %v6028 = vpop.permute.xlu0 %6027
      %6029 = vrot.lane.b32.xlu0 %v5131, 124
      %v6030 = vpop.permute.xlu0 %6029
      %6031 = vrot.lane.b32.xlu0 %v5132, 124
      %v6032 = vpop.permute.xlu0 %6031
      %6033 = vrot.lane.b32.xlu0 %v5133, 124
      %v6034 = vpop.permute.xlu0 %6033
      %6035 = vrot.lane.b32.xlu0 %v5134, 124
      %v6036 = vpop.permute.xlu0 %6035
      %6037 = vrot.lane.b32.xlu0 %v5135, 124
      %v6038 = vpop.permute.xlu0 %6037
      %6039 = vrot.lane.b32.xlu0 %v5136, 124
      %v6040 = vpop.permute.xlu0 %6039
      %6041 = vrot.lane.b32.xlu0 %v5137, 124
      %v6042 = vpop.permute.xlu0 %6041
      %6043 = vrot.lane.b32.xlu0 %v5138, 124
      %v6044 = vpop.permute.xlu0 %6043
      %v6047 = vrot.slane %v5139, 2
      %v6048 = vrot.slane %v5140, 2
      %v6050 = vsel %vm1221, %v6014, 0
      %v6053 = vsel %vm1221, %v6016, 0
      %v6056 = vsel %vm1221, %v6018, 0
      %v6059 = vsel %vm1221, %v6020, 0
      %v6062 = vsel %vm1221, %v6022, 0
      %v6065 = vsel %vm1221, %v6024, 0
      %v6068 = vsel %vm1221, %v6026, 0
      %v6071 = vsel %vm1221, %v6028, 0
      %v6074 = vsel %vm1221, %v6030, 0
      %v6077 = vsel %vm1221, %v6032, 0
      %v6080 = vsel %vm1221, %v6034, 0
      %v6083 = vsel %vm1221, %v6036, 0
      %v6086 = vsel %vm1221, %v6038, 0
      %v6089 = vsel %vm1221, %v6040, 0
      %v6092 = vsel %vm1221, %v6042, 0
      %v6095 = vsel %vm1221, %v6044, 0
      %v6098 = vsel %vm1270, %v6047, 0
      %v6101 = vsel %vm1270, %v6048, 0
      %6103 = vmatprep.subr.bf16.mxu0 %v6101
      %6104 = vmatpush1.bf16.msra.mxu0 %v6098
      %6105 = vmatprep.subr.bf16.mxu0 0
      %6106 = vmatpush1.bf16.msra.mxu0 0
      %6107 = vmatprep.subr.bf16.mxu0 0
      %6108 = vmatpush1.bf16.msra.mxu0 0
      %6109 = vmatprep.subr.bf16.mxu0 0
      %6110 = vmatpush1.bf16.msra.mxu0 0
      %6111 = vmatprep.subr.bf16.mxu0 0
      %6112 = vmatpush1.bf16.msra.mxu0 0
      %6113 = vmatprep.subr.bf16.mxu0 0
      %6114 = vmatpush1.bf16.msra.mxu0 0
      %6115 = vmatprep.subr.bf16.mxu0 0
      %6116 = vmatpush1.bf16.msra.mxu0 0
      %6117 = vmatprep.subr.bf16.mxu0 0
      %6118 = vmatpush1.bf16.msra.mxu0 0
      %6119 = vmatprep.subr.bf16.mxu0 0
      %6120 = vmatpush1.bf16.msra.mxu0 0
      %6121 = vmatprep.subr.bf16.mxu0 0
      %6122 = vmatpush1.bf16.msra.mxu0 0
      %6123 = vmatprep.subr.bf16.mxu0 0
      %6124 = vmatpush1.bf16.msra.mxu0 0
      %6125 = vmatprep.subr.bf16.mxu0 0
      %6126 = vmatpush1.bf16.msra.mxu0 0
      %6127 = vmatprep.subr.bf16.mxu0 0
      %6128 = vmatpush1.bf16.msra.mxu0 0
      %6129 = vmatprep.subr.bf16.mxu0 0
      %6130 = vmatpush1.bf16.msra.mxu0 0
      %6131 = vmatprep.subr.bf16.mxu0 0
      %6132 = vmatpush1.bf16.msra.mxu0 0
      %6133 = vmatprep.subr.bf16.mxu0 0
      %6134 = vmatpush1.bf16.msra.mxu0 0
      %6135 = vmatprep.mubr.bf16.mxu0 0
      %6136 = vmatmul.mubr.bf16.gmra.mrb[0].mxu0 %v6050
      %v6137 = vpop.f32.mrb[0].mxu0
      %v6138 = vadd.f32 %v5933, %v6137
      %v6139 = vpop.f32.mrb[0].mxu0
      %v6140 = vadd.f32 %v5934, %v6139
      %v6141 = vpop.f32.mrb[0].mxu0
      %v6142 = vadd.f32 %v5935, %v6141
      %v6143 = vpop.f32.mrb[0].mxu0
      %v6144 = vadd.f32 %v5936, %v6143
      %6145 = vmatprep.mubr.bf16.mxu0 0
      %6146 = vmatmul.mubr.bf16.gmra.mrb[0].mxu0 %v6053
      %v6147 = vpop.f32.mrb[0].mxu0
      %v6148 = vadd.f32 %v5937, %v6147
      %v6149 = vpop.f32.mrb[0].mxu0
      %v6150 = vadd.f32 %v5938, %v6149
      %v6151 = vpop.f32.mrb[0].mxu0
      %v6152 = vadd.f32 %v5939, %v6151
      %v6153 = vpop.f32.mrb[0].mxu0
      %v6154 = vadd.f32 %v5940, %v6153
      %6155 = vmatprep.mubr.bf16.mxu0 0
      %6156 = vmatmul.mubr.bf16.gmra.mrb[0].mxu0 %v6056
      %v6157 = vpop.f32.mrb[0].mxu0
      %v6158 = vadd.f32 %v5941, %v6157
      %v6159 = vpop.f32.mrb[0].mxu0
      %v6160 = vadd.f32 %v5942, %v6159
      %v6161 = vpop.f32.mrb[0].mxu0
      %v6162 = vadd.f32 %v5943, %v6161
      %v6163 = vpop.f32.mrb[0].mxu0
      %v6164 = vadd.f32 %v5944, %v6163
      %6165 = vmatprep.mubr.bf16.mxu0 0
      %6166 = vmatmul.mubr.bf16.gmra.mrb[0].mxu0 %v6059
      %v6167 = vpop.f32.mrb[0].mxu0
      %v6168 = vadd.f32 %v5945, %v6167
      %v6169 = vpop.f32.mrb[0].mxu0
      %v6170 = vadd.f32 %v5946, %v6169
      %v6171 = vpop.f32.mrb[0].mxu0
      %v6172 = vadd.f32 %v5947, %v6171
      %v6173 = vpop.f32.mrb[0].mxu0
      %v6174 = vadd.f32 %v5948, %v6173
      %6175 = vmatprep.mubr.bf16.mxu0 0
      %6176 = vmatmul.mubr.bf16.gmra.mrb[0].mxu0 %v6062
      %v6177 = vpop.f32.mrb[0].mxu0
      %v6178 = vadd.f32 %v5949, %v6177
      %v6179 = vpop.f32.mrb[0].mxu0
      %v6180 = vadd.f32 %v5950, %v6179
      %v6181 = vpop.f32.mrb[0].mxu0
      %v6182 = vadd.f32 %v5951, %v6181
      %v6183 = vpop.f32.mrb[0].mxu0
      %v6184 = vadd.f32 %v5952, %v6183
      %6185 = vmatprep.mubr.bf16.mxu0 0
      %6186 = vmatmul.mubr.bf16.gmra.mrb[0].mxu0 %v6065
      %v6187 = vpop.f32.mrb[0].mxu0
      %v6188 = vadd.f32 %v5953, %v6187
      %v6189 = vpop.f32.mrb[0].mxu0
      %v6190 = vadd.f32 %v5954, %v6189
      %v6191 = vpop.f32.mrb[0].mxu0
      %v6192 = vadd.f32 %v5955, %v6191
      %v6193 = vpop.f32.mrb[0].mxu0
      %v6194 = vadd.f32 %v5956, %v6193
      %6195 = vmatprep.mubr.bf16.mxu0 0
      %6196 = vmatmul.mubr.bf16.gmra.mrb[0].mxu0 %v6068
      %v6197 = vpop.f32.mrb[0].mxu0
      %v6198 = vadd.f32 %v5957, %v6197
      %v6199 = vpop.f32.mrb[0].mxu0
      %v6200 = vadd.f32 %v5958, %v6199
      %v6201 = vpop.f32.mrb[0].mxu0
      %v6202 = vadd.f32 %v5959, %v6201
      %v6203 = vpop.f32.mrb[0].mxu0
      %v6204 = vadd.f32 %v5960, %v6203
      %6205 = vmatprep.mubr.bf16.mxu0 0
      %6206 = vmatmul.mubr.bf16.gmra.mrb[0].mxu0 %v6071
      %v6207 = vpop.f32.mrb[0].mxu0
      %v6208 = vadd.f32 %v5961, %v6207
      %v6209 = vpop.f32.mrb[0].mxu0
      %v6210 = vadd.f32 %v5962, %v6209
      %v6211 = vpop.f32.mrb[0].mxu0
      %v6212 = vadd.f32 %v5963, %v6211
      %v6213 = vpop.f32.mrb[0].mxu0
      %v6214 = vadd.f32 %v5964, %v6213
      %6215 = vmatprep.mubr.bf16.mxu0 0
      %6216 = vmatmul.mubr.bf16.gmra.mrb[0].mxu0 %v6074
      %v6217 = vpop.f32.mrb[0].mxu0
      %v6218 = vadd.f32 %v5965, %v6217
      %v6219 = vpop.f32.mrb[0].mxu0
      %v6220 = vadd.f32 %v5966, %v6219
      %v6221 = vpop.f32.mrb[0].mxu0
      %v6222 = vadd.f32 %v5967, %v6221
      %v6223 = vpop.f32.mrb[0].mxu0
      %v6224 = vadd.f32 %v5968, %v6223
      %6225 = vmatprep.mubr.bf16.mxu0 0
      %6226 = vmatmul.mubr.bf16.gmra.mrb[0].mxu0 %v6077
      %v6227 = vpop.f32.mrb[0].mxu0
      %v6228 = vadd.f32 %v5969, %v6227
      %v6229 = vpop.f32.mrb[0].mxu0
      %v6230 = vadd.f32 %v5970, %v6229
      %v6231 = vpop.f32.mrb[0].mxu0
      %v6232 = vadd.f32 %v5971, %v6231
      %v6233 = vpop.f32.mrb[0].mxu0
      %v6234 = vadd.f32 %v5972, %v6233
      %6235 = vmatprep.mubr.bf16.mxu0 0
      %6236 = vmatmul.mubr.bf16.gmra.mrb[0].mxu0 %v6080
      %v6237 = vpop.f32.mrb[0].mxu0
      %v6238 = vadd.f32 %v5973, %v6237
      %v6239 = vpop.f32.mrb[0].mxu0
      %v6240 = vadd.f32 %v5974, %v6239
      %v6241 = vpop.f32.mrb[0].mxu0
      %v6242 = vadd.f32 %v5975, %v6241
      %v6243 = vpop.f32.mrb[0].mxu0
      %v6244 = vadd.f32 %v5976, %v6243
      %6245 = vmatprep.mubr.bf16.mxu0 0
      %6246 = vmatmul.mubr.bf16.gmra.mrb[0].mxu0 %v6083
      %v6247 = vpop.f32.mrb[0].mxu0
      %v6248 = vadd.f32 %v5977, %v6247
      %v6249 = vpop.f32.mrb[0].mxu0
      %v6250 = vadd.f32 %v5978, %v6249
      %v6251 = vpop.f32.mrb[0].mxu0
      %v6252 = vadd.f32 %v5979, %v6251
      %v6253 = vpop.f32.mrb[0].mxu0
      %v6254 = vadd.f32 %v5980, %v6253
      %6255 = vmatprep.mubr.bf16.mxu0 0
      %6256 = vmatmul.mubr.bf16.gmra.mrb[0].mxu0 %v6086
      %v6257 = vpop.f32.mrb[0].mxu0
      %v6258 = vadd.f32 %v5981, %v6257
      %v6259 = vpop.f32.mrb[0].mxu0
      %v6260 = vadd.f32 %v5982, %v6259
      %v6261 = vpop.f32.mrb[0].mxu0
      %v6262 = vadd.f32 %v5983, %v6261
      %v6263 = vpop.f32.mrb[0].mxu0
      %v6264 = vadd.f32 %v5984, %v6263
      %6265 = vmatprep.mubr.bf16.mxu0 0
      %6266 = vmatmul.mubr.bf16.gmra.mrb[0].mxu0 %v6089
      %v6267 = vpop.f32.mrb[0].mxu0
      %v6268 = vadd.f32 %v5985, %v6267
      %v6269 = vpop.f32.mrb[0].mxu0
      %v6270 = vadd.f32 %v5986, %v6269
      %v6271 = vpop.f32.mrb[0].mxu0
      %v6272 = vadd.f32 %v5987, %v6271
      %v6273 = vpop.f32.mrb[0].mxu0
      %v6274 = vadd.f32 %v5988, %v6273
      %6275 = vmatprep.mubr.bf16.mxu0 0
      %6276 = vmatmul.mubr.bf16.gmra.mrb[0].mxu0 %v6092
      %v6277 = vpop.f32.mrb[0].mxu0
      %v6278 = vadd.f32 %v5989, %v6277
      %v6279 = vpop.f32.mrb[0].mxu0
      %v6280 = vadd.f32 %v5990, %v6279
      %v6281 = vpop.f32.mrb[0].mxu0
      %v6282 = vadd.f32 %v5991, %v6281
      %v6283 = vpop.f32.mrb[0].mxu0
      %v6284 = vadd.f32 %v5992, %v6283
      %6285 = vmatprep.mubr.bf16.mxu0 0
      %6286 = vmatmul.mubr.bf16.gmra.mrb[0].mxu0 %v6095
      %v6287 = vpop.f32.mrb[0].mxu0
      %v6288 = vadd.f32 %v5993, %v6287
      %v6289 = vpop.f32.mrb[0].mxu0
      %v6290 = vadd.f32 %v5994, %v6289
      %v6291 = vpop.f32.mrb[0].mxu0
      %v6292 = vadd.f32 %v5995, %v6291
      %v6293 = vpop.f32.mrb[0].mxu0
      %v6294 = vadd.f32 %v5996, %v6293
      %6295 = vdwg.mxu0
      %v6296 = vmax.f32 %v6138, %v6140
      %6297 = vmax.xlane.f32.xlu0 %v6296
      %v6298 = vpop.xlane.xlu0 %6297
      %v6299 = vmax.f32 %v6142, %v6144
      %6300 = vmax.xlane.f32.xlu0 %v6299
      %v6301 = vpop.xlane.xlu0 %6300
      %v6302 = vmax.f32 %v6148, %v6150
      %6303 = vmax.xlane.f32.xlu0 %v6302
      %v6304 = vpop.xlane.xlu0 %6303
      %v6305 = vmax.f32 %v6152, %v6154
      %6306 = vmax.xlane.f32.xlu0 %v6305
      %v6307 = vpop.xlane.xlu0 %6306
      %v6308 = vmax.f32 %v6158, %v6160
      %6309 = vmax.xlane.f32.xlu0 %v6308
      %v6310 = vpop.xlane.xlu0 %6309
      %v6311 = vmax.f32 %v6162, %v6164
      %6312 = vmax.xlane.f32.xlu0 %v6311
      %v6313 = vpop.xlane.xlu0 %6312
      %v6314 = vmax.f32 %v6168, %v6170
      %6315 = vmax.xlane.f32.xlu0 %v6314
      %v6316 = vpop.xlane.xlu0 %6315
      %v6317 = vmax.f32 %v6172, %v6174
      %6318 = vmax.xlane.f32.xlu0 %v6317
      %v6319 = vpop.xlane.xlu0 %6318
      %v6320 = vmax.f32 %v6178, %v6180
      %6321 = vmax.xlane.f32.xlu0 %v6320
      %v6322 = vpop.xlane.xlu0 %6321
      %v6323 = vmax.f32 %v6182, %v6184
      %6324 = vmax.xlane.f32.xlu0 %v6323
      %v6325 = vpop.xlane.xlu0 %6324
      %v6326 = vmax.f32 %v6188, %v6190
      %6327 = vmax.xlane.f32.xlu0 %v6326
      %v6328 = vpop.xlane.xlu0 %6327
      %v6329 = vmax.f32 %v6192, %v6194
      %6330 = vmax.xlane.f32.xlu0 %v6329
      %v6331 = vpop.xlane.xlu0 %6330
      %v6332 = vmax.f32 %v6198, %v6200
      %6333 = vmax.xlane.f32.xlu0 %v6332
      %v6334 = vpop.xlane.xlu0 %6333
      %v6335 = vmax.f32 %v6202, %v6204
      %6336 = vmax.xlane.f32.xlu0 %v6335
      %v6337 = vpop.xlane.xlu0 %6336
      %v6338 = vmax.f32 %v6208, %v6210
      %6339 = vmax.xlane.f32.xlu0 %v6338
      %v6340 = vpop.xlane.xlu0 %6339
      %v6341 = vmax.f32 %v6212, %v6214
      %6342 = vmax.xlane.f32.xlu0 %v6341
      %v6343 = vpop.xlane.xlu0 %6342
      %v6344 = vmax.f32 %v6218, %v6220
      %6345 = vmax.xlane.f32.xlu0 %v6344
      %v6346 = vpop.xlane.xlu0 %6345
      %v6347 = vmax.f32 %v6222, %v6224
      %6348 = vmax.xlane.f32.xlu0 %v6347
      %v6349 = vpop.xlane.xlu0 %6348
      %v6350 = vmax.f32 %v6228, %v6230
      %6351 = vmax.xlane.f32.xlu0 %v6350
      %v6352 = vpop.xlane.xlu0 %6351
      %v6353 = vmax.f32 %v6232, %v6234
      %6354 = vmax.xlane.f32.xlu0 %v6353
      %v6355 = vpop.xlane.xlu0 %6354
      %v6356 = vmax.f32 %v6238, %v6240
      %6357 = vmax.xlane.f32.xlu0 %v6356
      %v6358 = vpop.xlane.xlu0 %6357
      %v6359 = vmax.f32 %v6242, %v6244
      %6360 = vmax.xlane.f32.xlu0 %v6359
      %v6361 = vpop.xlane.xlu0 %6360
      %v6362 = vmax.f32 %v6248, %v6250
      %6363 = vmax.xlane.f32.xlu0 %v6362
      %v6364 = vpop.xlane.xlu0 %6363
      %v6365 = vmax.f32 %v6252, %v6254
      %6366 = vmax.xlane.f32.xlu0 %v6365
      %v6367 = vpop.xlane.xlu0 %6366
      %v6368 = vmax.f32 %v6258, %v6260
      %6369 = vmax.xlane.f32.xlu0 %v6368
      %v6370 = vpop.xlane.xlu0 %6369
      %v6371 = vmax.f32 %v6262, %v6264
      %6372 = vmax.xlane.f32.xlu0 %v6371
      %v6373 = vpop.xlane.xlu0 %6372
      %v6374 = vmax.f32 %v6268, %v6270
      %6375 = vmax.xlane.f32.xlu0 %v6374
      %v6376 = vpop.xlane.xlu0 %6375
      %v6377 = vmax.f32 %v6272, %v6274
      %6378 = vmax.xlane.f32.xlu0 %v6377
      %v6379 = vpop.xlane.xlu0 %6378
      %v6380 = vmax.f32 %v6278, %v6280
      %6381 = vmax.xlane.f32.xlu0 %v6380
      %v6382 = vpop.xlane.xlu0 %6381
      %v6383 = vmax.f32 %v6282, %v6284
      %6384 = vmax.xlane.f32.xlu0 %v6383
      %v6385 = vpop.xlane.xlu0 %6384
      %v6386 = vmax.f32 %v6288, %v6290
      %6387 = vmax.xlane.f32.xlu0 %v6386
      %v6388 = vpop.xlane.xlu0 %6387
      %v6389 = vmax.f32 %v6292, %v6294
      %6390 = vmax.xlane.f32.xlu0 %v6389
      %v6391 = vpop.xlane.xlu0 %6390
      %v6392 = vsub.f32 %v6138, %v6298
      %v6393 = vsub.f32 %v6140, %v6298
      %v6394 = vsub.f32 %v6142, %v6301
      %v6395 = vsub.f32 %v6144, %v6301
      %v6396 = vsub.f32 %v6148, %v6304
      %v6397 = vsub.f32 %v6150, %v6304
      %v6398 = vsub.f32 %v6152, %v6307
      %v6399 = vsub.f32 %v6154, %v6307
      %v6400 = vsub.f32 %v6158, %v6310
      %v6401 = vsub.f32 %v6160, %v6310
      %v6402 = vsub.f32 %v6162, %v6313
      %v6403 = vsub.f32 %v6164, %v6313
      %v6404 = vsub.f32 %v6168, %v6316
      %v6405 = vsub.f32 %v6170, %v6316
      %v6406 = vsub.f32 %v6172, %v6319
      %v6407 = vsub.f32 %v6174, %v6319
      %v6408 = vsub.f32 %v6178, %v6322
      %v6409 = vsub.f32 %v6180, %v6322
      %v6410 = vsub.f32 %v6182, %v6325
      %v6411 = vsub.f32 %v6184, %v6325
      %v6412 = vsub.f32 %v6188, %v6328
      %v6413 = vsub.f32 %v6190, %v6328
      %v6414 = vsub.f32 %v6192, %v6331
      %v6415 = vsub.f32 %v6194, %v6331
      %v6416 = vsub.f32 %v6198, %v6334
      %v6417 = vsub.f32 %v6200, %v6334
      %v6418 = vsub.f32 %v6202, %v6337
      %v6419 = vsub.f32 %v6204, %v6337
      %v6420 = vsub.f32 %v6208, %v6340
      %v6421 = vsub.f32 %v6210, %v6340
      %v6422 = vsub.f32 %v6212, %v6343
      %v6423 = vsub.f32 %v6214, %v6343
      %v6424 = vsub.f32 %v6218, %v6346
      %v6425 = vsub.f32 %v6220, %v6346
      %v6426 = vsub.f32 %v6222, %v6349
      %v6427 = vsub.f32 %v6224, %v6349
      %v6428 = vsub.f32 %v6228, %v6352
      %v6429 = vsub.f32 %v6230, %v6352
      %v6430 = vsub.f32 %v6232, %v6355
      %v6431 = vsub.f32 %v6234, %v6355
      %v6432 = vsub.f32 %v6238, %v6358
      %v6433 = vsub.f32 %v6240, %v6358
      %v6434 = vsub.f32 %v6242, %v6361
      %v6435 = vsub.f32 %v6244, %v6361
      %v6436 = vsub.f32 %v6248, %v6364
      %v6437 = vsub.f32 %v6250, %v6364
      %v6438 = vsub.f32 %v6252, %v6367
      %v6439 = vsub.f32 %v6254, %v6367
      %v6440 = vsub.f32 %v6258, %v6370
      %v6441 = vsub.f32 %v6260, %v6370
      %v6442 = vsub.f32 %v6262, %v6373
      %v6443 = vsub.f32 %v6264, %v6373
      %v6444 = vsub.f32 %v6268, %v6376
      %v6445 = vsub.f32 %v6270, %v6376
      %v6446 = vsub.f32 %v6272, %v6379
      %v6447 = vsub.f32 %v6274, %v6379
      %v6448 = vsub.f32 %v6278, %v6382
      %v6449 = vsub.f32 %v6280, %v6382
      %v6450 = vsub.f32 %v6282, %v6385
      %v6451 = vsub.f32 %v6284, %v6385
      %v6452 = vsub.f32 %v6288, %v6388
      %v6453 = vsub.f32 %v6290, %v6388
      %v6454 = vsub.f32 %v6292, %v6391
      %v6455 = vsub.f32 %v6294, %v6391
      %v6456 = vmul.f32 %v6392, 1.442695
      %v6457 = vpow.pop %v6456
      %v6458 = vmul.f32 %v6393, 1.442695
      %v6459 = vpow.pop %v6458
      %v6460 = vmul.f32 %v6394, 1.442695
      %v6461 = vpow.pop %v6460
      %v6462 = vmul.f32 %v6395, 1.442695
      %v6463 = vpow.pop %v6462
      %v6464 = vmul.f32 %v6396, 1.442695
      %v6465 = vpow.pop %v6464
      %v6466 = vmul.f32 %v6397, 1.442695
      %v6467 = vpow.pop %v6466
      %v6468 = vmul.f32 %v6398, 1.442695
      %v6469 = vpow.pop %v6468
      %v6470 = vmul.f32 %v6399, 1.442695
      %v6471 = vpow.pop %v6470
      %v6472 = vmul.f32 %v6400, 1.442695
      %v6473 = vpow.pop %v6472
      %v6474 = vmul.f32 %v6401, 1.442695
      %v6475 = vpow.pop %v6474
      %v6476 = vmul.f32 %v6402, 1.442695
      %v6477 = vpow.pop %v6476
      %v6478 = vmul.f32 %v6403, 1.442695
      %v6479 = vpow.pop %v6478
      %v6480 = vmul.f32 %v6404, 1.442695
      %v6481 = vpow.pop %v6480
      %v6482 = vmul.f32 %v6405, 1.442695
      %v6483 = vpow.pop %v6482
      %v6484 = vmul.f32 %v6406, 1.442695
      %v6485 = vpow.pop %v6484
      %v6486 = vmul.f32 %v6407, 1.442695
      %v6487 = vpow.pop %v6486
      %v6488 = vmul.f32 %v6408, 1.442695
      %v6489 = vpow.pop %v6488
      %v6490 = vmul.f32 %v6409, 1.442695
      %v6491 = vpow.pop %v6490
      %v6492 = vmul.f32 %v6410, 1.442695
      %v6493 = vpow.pop %v6492
      %v6494 = vmul.f32 %v6411, 1.442695
      %v6495 = vpow.pop %v6494
      %v6496 = vmul.f32 %v6412, 1.442695
      %v6497 = vpow.pop %v6496
      %v6498 = vmul.f32 %v6413, 1.442695
      %v6499 = vpow.pop %v6498
      %v6500 = vmul.f32 %v6414, 1.442695
      %v6501 = vpow.pop %v6500
      %v6502 = vmul.f32 %v6415, 1.442695
      %v6503 = vpow.pop %v6502
      %v6504 = vmul.f32 %v6416, 1.442695
      %v6505 = vpow.pop %v6504
      %v6506 = vmul.f32 %v6417, 1.442695
      %v6507 = vpow.pop %v6506
      %v6508 = vmul.f32 %v6418, 1.442695
      %v6509 = vpow.pop %v6508
      %v6510 = vmul.f32 %v6419, 1.442695
      %v6511 = vpow.pop %v6510
      %v6512 = vmul.f32 %v6420, 1.442695
      %v6513 = vpow.pop %v6512
      %v6514 = vmul.f32 %v6421, 1.442695
      %v6515 = vpow.pop %v6514
      %v6516 = vmul.f32 %v6422, 1.442695
      %v6517 = vpow.pop %v6516
      %v6518 = vmul.f32 %v6423, 1.442695
      %v6519 = vpow.pop %v6518
      %v6520 = vmul.f32 %v6424, 1.442695
      %v6521 = vpow.pop %v6520
      %v6522 = vmul.f32 %v6425, 1.442695
      %v6523 = vpow.pop %v6522
      %v6524 = vmul.f32 %v6426, 1.442695
      %v6525 = vpow.pop %v6524
      %v6526 = vmul.f32 %v6427, 1.442695
      %v6527 = vpow.pop %v6526
      %v6528 = vmul.f32 %v6428, 1.442695
      %v6529 = vpow.pop %v6528
      %v6530 = vmul.f32 %v6429, 1.442695
      %v6531 = vpow.pop %v6530
      %v6532 = vmul.f32 %v6430, 1.442695
      %v6533 = vpow.pop %v6532
      %v6534 = vmul.f32 %v6431, 1.442695
      %v6535 = vpow.pop %v6534
      %v6536 = vmul.f32 %v6432, 1.442695
      %v6537 = vpow.pop %v6536
      %v6538 = vmul.f32 %v6433, 1.442695
      %v6539 = vpow.pop %v6538
      %v6540 = vmul.f32 %v6434, 1.442695
      %v6541 = vpow.pop %v6540
      %v6542 = vmul.f32 %v6435, 1.442695
      %v6543 = vpow.pop %v6542
      %v6544 = vmul.f32 %v6436, 1.442695
      %v6545 = vpow.pop %v6544
      %v6546 = vmul.f32 %v6437, 1.442695
      %v6547 = vpow.pop %v6546
      %v6548 = vmul.f32 %v6438, 1.442695
      %v6549 = vpow.pop %v6548
      %v6550 = vmul.f32 %v6439, 1.442695
      %v6551 = vpow.pop %v6550
      %v6552 = vmul.f32 %v6440, 1.442695
      %v6553 = vpow.pop %v6552
      %v6554 = vmul.f32 %v6441, 1.442695
      %v6555 = vpow.pop %v6554
      %v6556 = vmul.f32 %v6442, 1.442695
      %v6557 = vpow.pop %v6556
      %v6558 = vmul.f32 %v6443, 1.442695
      %v6559 = vpow.pop %v6558
      %v6560 = vmul.f32 %v6444, 1.442695
      %v6561 = vpow.pop %v6560
      %v6562 = vmul.f32 %v6445, 1.442695
      %v6563 = vpow.pop %v6562
      %v6564 = vmul.f32 %v6446, 1.442695
      %v6565 = vpow.pop %v6564
      %v6566 = vmul.f32 %v6447, 1.442695
      %v6567 = vpow.pop %v6566
      %v6568 = vmul.f32 %v6448, 1.442695
      %v6569 = vpow.pop %v6568
      %v6570 = vmul.f32 %v6449, 1.442695
      %v6571 = vpow.pop %v6570
      %v6572 = vmul.f32 %v6450, 1.442695
      %v6573 = vpow.pop %v6572
      %v6574 = vmul.f32 %v6451, 1.442695
      %v6575 = vpow.pop %v6574
      %v6576 = vmul.f32 %v6452, 1.442695
      %v6577 = vpow.pop %v6576
      %v6578 = vmul.f32 %v6453, 1.442695
      %v6579 = vpow.pop %v6578
      %v6580 = vmul.f32 %v6454, 1.442695
      %v6581 = vpow.pop %v6580
      %v6582 = vmul.f32 %v6455, 1.442695
      %v6583 = vpow.pop %v6582
      %v6584 = vpack.c.bf16 %v6461, %v6457
      %v6585 = vpack.c.bf16 %v6463, %v6459
      %v6586 = vpack.c.bf16 %v6469, %v6465
      %v6587 = vpack.c.bf16 %v6471, %v6467
      %v6588 = vpack.c.bf16 %v6477, %v6473
      %v6589 = vpack.c.bf16 %v6479, %v6475
      %v6590 = vpack.c.bf16 %v6485, %v6481
      %v6591 = vpack.c.bf16 %v6487, %v6483
      %v6592 = vpack.c.bf16 %v6493, %v6489
      %v6593 = vpack.c.bf16 %v6495, %v6491
      %v6594 = vpack.c.bf16 %v6501, %v6497
      %v6595 = vpack.c.bf16 %v6503, %v6499
      %v6596 = vpack.c.bf16 %v6509, %v6505
      %v6597 = vpack.c.bf16 %v6511, %v6507
      %v6598 = vpack.c.bf16 %v6517, %v6513
      %v6599 = vpack.c.bf16 %v6519, %v6515
      %v6600 = vpack.c.bf16 %v6525, %v6521
      %v6601 = vpack.c.bf16 %v6527, %v6523
      %v6602 = vpack.c.bf16 %v6533, %v6529
      %v6603 = vpack.c.bf16 %v6535, %v6531
      %v6604 = vpack.c.bf16 %v6541, %v6537
      %v6605 = vpack.c.bf16 %v6543, %v6539
      %v6606 = vpack.c.bf16 %v6549, %v6545
      %v6607 = vpack.c.bf16 %v6551, %v6547
      %v6608 = vpack.c.bf16 %v6557, %v6553
      %v6609 = vpack.c.bf16 %v6559, %v6555
      %v6610 = vpack.c.bf16 %v6565, %v6561
      %v6611 = vpack.c.bf16 %v6567, %v6563
      %v6612 = vpack.c.bf16 %v6573, %v6569
      %v6613 = vpack.c.bf16 %v6575, %v6571
      %v6614 = vpack.c.bf16 %v6581, %v6577
      %v6615 = vpack.c.bf16 %v6583, %v6579
      %v6618 = vrot.slane %v5141, 2
      %v6619 = vrot.slane %v5142, 2
      %6622 = vmatprep.subr.bf16.mxu0 %v6585
      %6623 = vmatpush1.bf16.xpose.msra.mxu0 %v6584
      %6624 = vmatprep.subr.bf16.mxu0 %v6587
      %6625 = vmatpush1.bf16.xpose.msra.mxu0 %v6586
      %6626 = vmatprep.subr.bf16.mxu0 %v6589
      %6627 = vmatpush1.bf16.xpose.msra.mxu0 %v6588
      %6628 = vmatprep.subr.bf16.mxu0 %v6591
      %6629 = vmatpush1.bf16.xpose.msra.mxu0 %v6590
      %6630 = vmatprep.subr.bf16.mxu0 %v6593
      %6631 = vmatpush1.bf16.xpose.msra.mxu0 %v6592
      %6632 = vmatprep.subr.bf16.mxu0 %v6595
      %6633 = vmatpush1.bf16.xpose.msra.mxu0 %v6594
      %6634 = vmatprep.subr.bf16.mxu0 %v6597
      %6635 = vmatpush1.bf16.xpose.msra.mxu0 %v6596
      %6636 = vmatprep.subr.bf16.mxu0 %v6599
      %6637 = vmatpush1.bf16.xpose.msra.mxu0 %v6598
      %6638 = vmatprep.subr.bf16.mxu0 %v6601
      %6639 = vmatpush1.bf16.xpose.msra.mxu0 %v6600
      %6640 = vmatprep.subr.bf16.mxu0 %v6603
      %6641 = vmatpush1.bf16.xpose.msra.mxu0 %v6602
      %6642 = vmatprep.subr.bf16.mxu0 %v6605
      %6643 = vmatpush1.bf16.xpose.msra.mxu0 %v6604
      %6644 = vmatprep.subr.bf16.mxu0 %v6607
      %6645 = vmatpush1.bf16.xpose.msra.mxu0 %v6606
      %6646 = vmatprep.subr.bf16.mxu0 %v6609
      %6647 = vmatpush1.bf16.xpose.msra.mxu0 %v6608
      %6648 = vmatprep.subr.bf16.mxu0 %v6611
      %6649 = vmatpush1.bf16.xpose.msra.mxu0 %v6610
      %6650 = vmatprep.subr.bf16.mxu0 %v6613
      %6651 = vmatpush1.bf16.xpose.msra.mxu0 %v6612
      %6652 = vmatprep.subr.bf16.mxu0 %v6615
      %6653 = vmatpush1.bf16.xpose.msra.mxu0 %v6614
      %6654 = vmatprep.mubr.bf16.mxu0 %v6619
      %6655 = vmatmul.mubr.bf16.gmra.mrb[0].mxu0 %v6618
      %v6656 = vpop.f32.mrb[0].mxu0
      %v6657 = vadd.f32 0.0, %v6656
      %v6658 = vpop.f32.mrb[0].mxu0
      %v6659 = vadd.f32 0.0, %v6658
      %v6660 = vpop.f32.mrb[0].mxu0
      %v6661 = vpop.f32.mrb[0].mxu0
      %6662 = vdwg.mxu0
      %6663 = vmatprep.subr.bf16.mxu0 %v6585
      %6664 = vmatpush1.bf16.xpose.msra.mxu0 %v6584
      %6665 = vmatprep.subr.bf16.mxu0 %v6587
      %6666 = vmatpush1.bf16.xpose.msra.mxu0 %v6586
      %6667 = vmatprep.subr.bf16.mxu0 %v6589
      %6668 = vmatpush1.bf16.xpose.msra.mxu0 %v6588
      %6669 = vmatprep.subr.bf16.mxu0 %v6591
      %6670 = vmatpush1.bf16.xpose.msra.mxu0 %v6590
      %6671 = vmatprep.subr.bf16.mxu0 %v6593
      %6672 = vmatpush1.bf16.xpose.msra.mxu0 %v6592
      %6673 = vmatprep.subr.bf16.mxu0 %v6595
      %6674 = vmatpush1.bf16.xpose.msra.mxu0 %v6594
      %6675 = vmatprep.subr.bf16.mxu0 %v6597
      %6676 = vmatpush1.bf16.xpose.msra.mxu0 %v6596
      %6677 = vmatprep.subr.bf16.mxu0 %v6599
      %6678 = vmatpush1.bf16.xpose.msra.mxu0 %v6598
      %6679 = vmatprep.subr.bf16.mxu0 %v6601
      %6680 = vmatpush1.bf16.xpose.msra.mxu0 %v6600
      %6681 = vmatprep.subr.bf16.mxu0 %v6603
      %6682 = vmatpush1.bf16.xpose.msra.mxu0 %v6602
      %6683 = vmatprep.subr.bf16.mxu0 %v6605
      %6684 = vmatpush1.bf16.xpose.msra.mxu0 %v6604
      %6685 = vmatprep.subr.bf16.mxu0 %v6607
      %6686 = vmatpush1.bf16.xpose.msra.mxu0 %v6606
      %6687 = vmatprep.subr.bf16.mxu0 %v6609
      %6688 = vmatpush1.bf16.xpose.msra.mxu0 %v6608
      %6689 = vmatprep.subr.bf16.mxu0 %v6611
      %6690 = vmatpush1.bf16.xpose.msra.mxu0 %v6610
      %6691 = vmatprep.subr.bf16.mxu0 %v6613
      %6692 = vmatpush1.bf16.xpose.msra.mxu0 %v6612
      %6693 = vmatprep.subr.bf16.mxu0 %v6615
      %6694 = vmatpush1.bf16.xpose.msra.mxu0 %v6614
      %6695 = vmatprep.mubr.bf16.mxu0 1065369472
      %6696 = vmatmul.mubr.bf16.gmra.mrb[0].mxu0 1065369472
      %v6697 = vpop.f32.mrb[0].mxu0
      %v6698 = vadd.f32 0.0, %v6697
      %v6699 = vpop.f32.mrb[0].mxu0
      %v6700 = vadd.f32 0.0, %v6699
      %v6701 = vpop.f32.mrb[0].mxu0
      %v6702 = vpop.f32.mrb[0].mxu0
      %6703 = vdwg.mxu0
      %v6704 = vrcp.pop %v6698
      %v6705 = vrcp.pop %v6700
      %v6706 = vlaneseq
      %v6707 = vshrl.u32 %v6706, 7
      %v6708 = vsub.s32 0, %v6707
      %v6709 = vrot.slane %v6704, %v6708
      %v6710 = vlaneseq
      %v6711 = vshrl.u32 %v6710, 7
      %v6712 = vsub.s32 0, %v6711
      %v6713 = vrot.slane %v6705, %v6712
      %v6714 = vmul.f32 %v6657, %v6709
      %v6715 = vmul.f32 %v6659, %v6713
      %v6716 = vpack.c.bf16 %v5045, %v5045
      %v6717 = vpack.c.bf16 %v5047, %v5047
      %v6718 = vpack.c.bf16 %v5055, %v5055
      %v6719 = vpack.c.bf16 %v5057, %v5057
      %s6720 = scalar_lea.vmem %s29, 512
      %v6721 = vld [vmem:[%s6720] sm:$0xff]
      %v6722 = vld [vmem:[%s6720 + $0x8] sm:$0xff]
      %v6723 = vld [vmem:[%s6720 + $0x10] sm:$0xff]
      %v6724 = vld [vmem:[%s6720 + $0x18] sm:$0xff]
      %v6725 = vld [vmem:[%s6720 + $0x20] sm:$0xff]
      %v6726 = vld [vmem:[%s6720 + $0x28] sm:$0xff]
      %v6727 = vld [vmem:[%s6720 + $0x30] sm:$0xff]
      %v6728 = vld [vmem:[%s6720 + $0x38] sm:$0xff]
      %v6729 = vld [vmem:[%s6720 + $0x40] sm:$0xff]
      %v6730 = vld [vmem:[%s6720 + $0x48] sm:$0xff]
      %v6731 = vld [vmem:[%s6720 + $0x50] sm:$0xff]
      %v6732 = vld [vmem:[%s6720 + $0x58] sm:$0xff]
      %v6733 = vld [vmem:[%s6720 + $0x60] sm:$0xff]
      %v6734 = vld [vmem:[%s6720 + $0x68] sm:$0xff]
      %v6735 = vld [vmem:[%s6720 + $0x70] sm:$0xff]
      %v6736 = vld [vmem:[%s6720 + $0x78] sm:$0xff]
      %v6737 = vld [vmem:[%s6720 + $0x80] sm:$0xff]
      %v6738 = vld [vmem:[%s6720 + $0x88] sm:$0xff]
      %v6739 = vld [vmem:[%s6720 + $0x90] sm:$0xff]
      %v6740 = vld [vmem:[%s6720 + $0x98] sm:$0xff]
      %v6741 = vld [vmem:[%s6720 + $0xa0] sm:$0xff]
      %v6742 = vld [vmem:[%s6720 + $0xa8] sm:$0xff]
      %v6743 = vld [vmem:[%s6720 + $0xb0] sm:$0xff]
      %v6744 = vld [vmem:[%s6720 + $0xb8] sm:$0xff]
      %v6745 = vld [vmem:[%s6720 + $0xc0] sm:$0xff]
      %v6746 = vld [vmem:[%s6720 + $0xc8] sm:$0xff]
      %v6747 = vld [vmem:[%s6720 + $0xd0] sm:$0xff]
      %v6748 = vld [vmem:[%s6720 + $0xd8] sm:$0xff]
      %v6749 = vld [vmem:[%s6720 + $0xe0] sm:$0xff]
      %v6750 = vld [vmem:[%s6720 + $0xe8] sm:$0xff]
      %v6751 = vld [vmem:[%s6720 + $0xf0] sm:$0xff]
      %v6752 = vld [vmem:[%s6720 + $0xf8] sm:$0xff]
      %v6753 = vunpack.c.l.bf16 %v6721
      %v6754 = vunpack.c.h.bf16 %v6721
      %v6755 = vunpack.c.l.bf16 %v6722
      %v6756 = vunpack.c.h.bf16 %v6722
      %v6757 = vunpack.c.l.bf16 %v6723
      %v6758 = vunpack.c.h.bf16 %v6723
      %v6759 = vunpack.c.l.bf16 %v6724
      %v6760 = vunpack.c.h.bf16 %v6724
      %v6761 = vunpack.c.l.bf16 %v6725
      %v6762 = vunpack.c.h.bf16 %v6725
      %v6763 = vunpack.c.l.bf16 %v6726
      %v6764 = vunpack.c.h.bf16 %v6726
      %v6765 = vunpack.c.l.bf16 %v6727
      %v6766 = vunpack.c.h.bf16 %v6727
      %v6767 = vunpack.c.l.bf16 %v6728
      %v6768 = vunpack.c.h.bf16 %v6728
      %v6769 = vunpack.c.l.bf16 %v6729
      %v6770 = vunpack.c.h.bf16 %v6729
      %v6771 = vunpack.c.l.bf16 %v6730
      %v6772 = vunpack.c.h.bf16 %v6730
      %v6773 = vunpack.c.l.bf16 %v6731
      %v6774 = vunpack.c.h.bf16 %v6731
      %v6775 = vunpack.c.l.bf16 %v6732
      %v6776 = vunpack.c.h.bf16 %v6732
      %v6777 = vunpack.c.l.bf16 %v6733
      %v6778 = vunpack.c.h.bf16 %v6733
      %v6779 = vunpack.c.l.bf16 %v6734
      %v6780 = vunpack.c.h.bf16 %v6734
      %v6781 = vunpack.c.l.bf16 %v6735
      %v6782 = vunpack.c.h.bf16 %v6735
      %v6783 = vunpack.c.l.bf16 %v6736
      %v6784 = vunpack.c.h.bf16 %v6736
      %v6785 = vunpack.c.l.bf16 %v6737
      %v6786 = vunpack.c.h.bf16 %v6737
      %v6787 = vunpack.c.l.bf16 %v6738
      %v6788 = vunpack.c.h.bf16 %v6738
      %v6789 = vunpack.c.l.bf16 %v6739
      %v6790 = vunpack.c.h.bf16 %v6739
      %v6791 = vunpack.c.l.bf16 %v6740
      %v6792 = vunpack.c.h.bf16 %v6740
      %v6793 = vunpack.c.l.bf16 %v6741
      %v6794 = vunpack.c.h.bf16 %v6741
      %v6795 = vunpack.c.l.bf16 %v6742
      %v6796 = vunpack.c.h.bf16 %v6742
      %v6797 = vunpack.c.l.bf16 %v6743
      %v6798 = vunpack.c.h.bf16 %v6743
      %v6799 = vunpack.c.l.bf16 %v6744
      %v6800 = vunpack.c.h.bf16 %v6744
      %v6801 = vunpack.c.l.bf16 %v6745
      %v6802 = vunpack.c.h.bf16 %v6745
      %v6803 = vunpack.c.l.bf16 %v6746
      %v6804 = vunpack.c.h.bf16 %v6746
      %v6805 = vunpack.c.l.bf16 %v6747
      %v6806 = vunpack.c.h.bf16 %v6747
      %v6807 = vunpack.c.l.bf16 %v6748
      %v6808 = vunpack.c.h.bf16 %v6748
      %v6809 = vunpack.c.l.bf16 %v6749
      %v6810 = vunpack.c.h.bf16 %v6749
      %v6811 = vunpack.c.l.bf16 %v6750
      %v6812 = vunpack.c.h.bf16 %v6750
      %v6813 = vunpack.c.l.bf16 %v6751
      %v6814 = vunpack.c.h.bf16 %v6751
      %v6815 = vunpack.c.l.bf16 %v6752
      %v6816 = vunpack.c.h.bf16 %v6752
      %6817 = vrot.lane.b32.xlu0 %v5123, 120
      %v6818 = vpop.permute.xlu0 %6817
      %6819 = vrot.lane.b32.xlu0 %v5124, 120
      %v6820 = vpop.permute.xlu0 %6819
      %6821 = vrot.lane.b32.xlu0 %v5125, 120
      %v6822 = vpop.permute.xlu0 %6821
      %6823 = vrot.lane.b32.xlu0 %v5126, 120
      %v6824 = vpop.permute.xlu0 %6823
      %6825 = vrot.lane.b32.xlu0 %v5127, 120
      %v6826 = vpop.permute.xlu0 %6825
      %6827 = vrot.lane.b32.xlu0 %v5128, 120
      %v6828 = vpop.permute.xlu0 %6827
      %6829 = vrot.lane.b32.xlu0 %v5129, 120
      %v6830 = vpop.permute.xlu0 %6829
      %6831 = vrot.lane.b32.xlu0 %v5130, 120
      %v6832 = vpop.permute.xlu0 %6831
      %6833 = vrot.lane.b32.xlu0 %v5131, 120
      %v6834 = vpop.permute.xlu0 %6833
      %6835 = vrot.lane.b32.xlu0 %v5132, 120
      %v6836 = vpop.permute.xlu0 %6835
      %6837 = vrot.lane.b32.xlu0 %v5133, 120
      %v6838 = vpop.permute.xlu0 %6837
      %6839 = vrot.lane.b32.xlu0 %v5134, 120
      %v6840 = vpop.permute.xlu0 %6839
      %6841 = vrot.lane.b32.xlu0 %v5135, 120
      %v6842 = vpop.permute.xlu0 %6841
      %6843 = vrot.lane.b32.xlu0 %v5136, 120
      %v6844 = vpop.permute.xlu0 %6843
      %6845 = vrot.lane.b32.xlu0 %v5137, 120
      %v6846 = vpop.permute.xlu0 %6845
      %6847 = vrot.lane.b32.xlu0 %v5138, 120
      %v6848 = vpop.permute.xlu0 %6847
      %v6850 = vsel %vm1221, %v6818, 0
      %v6853 = vsel %vm1221, %v6820, 0
      %v6856 = vsel %vm1221, %v6822, 0
      %v6859 = vsel %vm1221, %v6824, 0
      %v6862 = vsel %vm1221, %v6826, 0
      %v6865 = vsel %vm1221, %v6828, 0
      %v6868 = vsel %vm1221, %v6830, 0
      %v6871 = vsel %vm1221, %v6832, 0
      %v6874 = vsel %vm1221, %v6834, 0
      %v6877 = vsel %vm1221, %v6836, 0
      %v6880 = vsel %vm1221, %v6838, 0
      %v6883 = vsel %vm1221, %v6840, 0
      %v6886 = vsel %vm1221, %v6842, 0
      %v6889 = vsel %vm1221, %v6844, 0
      %v6892 = vsel %vm1221, %v6846, 0
      %v6895 = vsel %vm1221, %v6848, 0
      %v6898 = vsel %vm1270, %v6716, 0
      %v6901 = vsel %vm1270, %v6717, 0
      %6903 = vmatprep.subr.bf16.mxu0 %v6901
      %6904 = vmatpush1.bf16.msra.mxu0 %v6898
      %6905 = vmatprep.subr.bf16.mxu0 0
      %6906 = vmatpush1.bf16.msra.mxu0 0
      %6907 = vmatprep.subr.bf16.mxu0 0
      %6908 = vmatpush1.bf16.msra.mxu0 0
      %6909 = vmatprep.subr.bf16.mxu0 0
      %6910 = vmatpush1.bf16.msra.mxu0 0
      %6911 = vmatprep.subr.bf16.mxu0 0
      %6912 = vmatpush1.bf16.msra.mxu0 0
      %6913 = vmatprep.subr.bf16.mxu0 0
      %6914 = vmatpush1.bf16.msra.mxu0 0
      %6915 = vmatprep.subr.bf16.mxu0 0
      %6916 = vmatpush1.bf16.msra.mxu0 0
      %6917 = vmatprep.subr.bf16.mxu0 0
      %6918 = vmatpush1.bf16.msra.mxu0 0
      %6919 = vmatprep.subr.bf16.mxu0 0
      %6920 = vmatpush1.bf16.msra.mxu0 0
      %6921 = vmatprep.subr.bf16.mxu0 0
      %6922 = vmatpush1.bf16.msra.mxu0 0
      %6923 = vmatprep.subr.bf16.mxu0 0
      %6924 = vmatpush1.bf16.msra.mxu0 0
      %6925 = vmatprep.subr.bf16.mxu0 0
      %6926 = vmatpush1.bf16.msra.mxu0 0
      %6927 = vmatprep.subr.bf16.mxu0 0
      %6928 = vmatpush1.bf16.msra.mxu0 0
      %6929 = vmatprep.subr.bf16.mxu0 0
      %6930 = vmatpush1.bf16.msra.mxu0 0
      %6931 = vmatprep.subr.bf16.mxu0 0
      %6932 = vmatpush1.bf16.msra.mxu0 0
      %6933 = vmatprep.subr.bf16.mxu0 0
      %6934 = vmatpush1.bf16.msra.mxu0 0
      %6935 = vmatprep.mubr.bf16.mxu0 0
      %6936 = vmatmul.mubr.bf16.gmra.mrb[0].mxu0 %v6850
      %v6937 = vpop.f32.mrb[0].mxu0
      %v6938 = vadd.f32 %v6753, %v6937
      %v6939 = vpop.f32.mrb[0].mxu0
      %v6940 = vadd.f32 %v6754, %v6939
      %v6941 = vpop.f32.mrb[0].mxu0
      %v6942 = vadd.f32 %v6755, %v6941
      %v6943 = vpop.f32.mrb[0].mxu0
      %v6944 = vadd.f32 %v6756, %v6943
      %6945 = vmatprep.mubr.bf16.mxu0 0
      %6946 = vmatmul.mubr.bf16.gmra.mrb[0].mxu0 %v6853
      %v6947 = vpop.f32.mrb[0].mxu0
      %v6948 = vadd.f32 %v6757, %v6947
      %v6949 = vpop.f32.mrb[0].mxu0
      %v6950 = vadd.f32 %v6758, %v6949
      %v6951 = vpop.f32.mrb[0].mxu0
      %v6952 = vadd.f32 %v6759, %v6951
      %v6953 = vpop.f32.mrb[0].mxu0
      %v6954 = vadd.f32 %v6760, %v6953
      %6955 = vmatprep.mubr.bf16.mxu0 0
      %6956 = vmatmul.mubr.bf16.gmra.mrb[0].mxu0 %v6856
      %v6957 = vpop.f32.mrb[0].mxu0
      %v6958 = vadd.f32 %v6761, %v6957
      %v6959 = vpop.f32.mrb[0].mxu0
      %v6960 = vadd.f32 %v6762, %v6959
      %v6961 = vpop.f32.mrb[0].mxu0
      %v6962 = vadd.f32 %v6763, %v6961
      %v6963 = vpop.f32.mrb[0].mxu0
      %v6964 = vadd.f32 %v6764, %v6963
      %6965 = vmatprep.mubr.bf16.mxu0 0
      %6966 = vmatmul.mubr.bf16.gmra.mrb[0].mxu0 %v6859
      %v6967 = vpop.f32.mrb[0].mxu0
      %v6968 = vadd.f32 %v6765, %v6967
      %v6969 = vpop.f32.mrb[0].mxu0
      %v6970 = vadd.f32 %v6766, %v6969
      %v6971 = vpop.f32.mrb[0].mxu0
      %v6972 = vadd.f32 %v6767, %v6971
      %v6973 = vpop.f32.mrb[0].mxu0
      %v6974 = vadd.f32 %v6768, %v6973
      %6975 = vmatprep.mubr.bf16.mxu0 0
      %6976 = vmatmul.mubr.bf16.gmra.mrb[0].mxu0 %v6862
      %v6977 = vpop.f32.mrb[0].mxu0
      %v6978 = vadd.f32 %v6769, %v6977
      %v6979 = vpop.f32.mrb[0].mxu0
      %v6980 = vadd.f32 %v6770, %v6979
      %v6981 = vpop.f32.mrb[0].mxu0
      %v6982 = vadd.f32 %v6771, %v6981
      %v6983 = vpop.f32.mrb[0].mxu0
      %v6984 = vadd.f32 %v6772, %v6983
      %6985 = vmatprep.mubr.bf16.mxu0 0
      %6986 = vmatmul.mubr.bf16.gmra.mrb[0].mxu0 %v6865
      %v6987 = vpop.f32.mrb[0].mxu0
      %v6988 = vadd.f32 %v6773, %v6987
      %v6989 = vpop.f32.mrb[0].mxu0
      %v6990 = vadd.f32 %v6774, %v6989
      %v6991 = vpop.f32.mrb[0].mxu0
      %v6992 = vadd.f32 %v6775, %v6991
      %v6993 = vpop.f32.mrb[0].mxu0
      %v6994 = vadd.f32 %v6776, %v6993
      %6995 = vmatprep.mubr.bf16.mxu0 0
      %6996 = vmatmul.mubr.bf16.gmra.mrb[0].mxu0 %v6868
      %v6997 = vpop.f32.mrb[0].mxu0
      %v6998 = vadd.f32 %v6777, %v6997
      %v6999 = vpop.f32.mrb[0].mxu0
      %v7000 = vadd.f32 %v6778, %v6999
      %v7001 = vpop.f32.mrb[0].mxu0
      %v7002 = vadd.f32 %v6779, %v7001
      %v7003 = vpop.f32.mrb[0].mxu0
      %v7004 = vadd.f32 %v6780, %v7003
      %7005 = vmatprep.mubr.bf16.mxu0 0
      %7006 = vmatmul.mubr.bf16.gmra.mrb[0].mxu0 %v6871
      %v7007 = vpop.f32.mrb[0].mxu0
      %v7008 = vadd.f32 %v6781, %v7007
      %v7009 = vpop.f32.mrb[0].mxu0
      %v7010 = vadd.f32 %v6782, %v7009
      %v7011 = vpop.f32.mrb[0].mxu0
      %v7012 = vadd.f32 %v6783, %v7011
      %v7013 = vpop.f32.mrb[0].mxu0
      %v7014 = vadd.f32 %v6784, %v7013
      %7015 = vmatprep.mubr.bf16.mxu0 0
      %7016 = vmatmul.mubr.bf16.gmra.mrb[0].mxu0 %v6874
      %v7017 = vpop.f32.mrb[0].mxu0
      %v7018 = vadd.f32 %v6785, %v7017
      %v7019 = vpop.f32.mrb[0].mxu0
      %v7020 = vadd.f32 %v6786, %v7019
      %v7021 = vpop.f32.mrb[0].mxu0
      %v7022 = vadd.f32 %v6787, %v7021
      %v7023 = vpop.f32.mrb[0].mxu0
      %v7024 = vadd.f32 %v6788, %v7023
      %7025 = vmatprep.mubr.bf16.mxu0 0
      %7026 = vmatmul.mubr.bf16.gmra.mrb[0].mxu0 %v6877
      %v7027 = vpop.f32.mrb[0].mxu0
      %v7028 = vadd.f32 %v6789, %v7027
      %v7029 = vpop.f32.mrb[0].mxu0
      %v7030 = vadd.f32 %v6790, %v7029
      %v7031 = vpop.f32.mrb[0].mxu0
      %v7032 = vadd.f32 %v6791, %v7031
      %v7033 = vpop.f32.mrb[0].mxu0
      %v7034 = vadd.f32 %v6792, %v7033
      %7035 = vmatprep.mubr.bf16.mxu0 0
      %7036 = vmatmul.mubr.bf16.gmra.mrb[0].mxu0 %v6880
      %v7037 = vpop.f32.mrb[0].mxu0
      %v7038 = vadd.f32 %v6793, %v7037
      %v7039 = vpop.f32.mrb[0].mxu0
      %v7040 = vadd.f32 %v6794, %v7039
      %v7041 = vpop.f32.mrb[0].mxu0
      %v7042 = vadd.f32 %v6795, %v7041
      %v7043 = vpop.f32.mrb[0].mxu0
      %v7044 = vadd.f32 %v6796, %v7043
      %7045 = vmatprep.mubr.bf16.mxu0 0
      %7046 = vmatmul.mubr.bf16.gmra.mrb[0].mxu0 %v6883
      %v7047 = vpop.f32.mrb[0].mxu0
      %v7048 = vadd.f32 %v6797, %v7047
      %v7049 = vpop.f32.mrb[0].mxu0
      %v7050 = vadd.f32 %v6798, %v7049
      %v7051 = vpop.f32.mrb[0].mxu0
      %v7052 = vadd.f32 %v6799, %v7051
      %v7053 = vpop.f32.mrb[0].mxu0
      %v7054 = vadd.f32 %v6800, %v7053
      %7055 = vmatprep.mubr.bf16.mxu0 0
      %7056 = vmatmul.mubr.bf16.gmra.mrb[0].mxu0 %v6886
      %v7057 = vpop.f32.mrb[0].mxu0
      %v7058 = vadd.f32 %v6801, %v7057
      %v7059 = vpop.f32.mrb[0].mxu0
      %v7060 = vadd.f32 %v6802, %v7059
      %v7061 = vpop.f32.mrb[0].mxu0
      %v7062 = vadd.f32 %v6803, %v7061
      %v7063 = vpop.f32.mrb[0].mxu0
      %v7064 = vadd.f32 %v6804, %v7063
      %7065 = vmatprep.mubr.bf16.mxu0 0
      %7066 = vmatmul.mubr.bf16.gmra.mrb[0].mxu0 %v6889
      %v7067 = vpop.f32.mrb[0].mxu0
      %v7068 = vadd.f32 %v6805, %v7067
      %v7069 = vpop.f32.mrb[0].mxu0
      %v7070 = vadd.f32 %v6806, %v7069
      %v7071 = vpop.f32.mrb[0].mxu0
      %v7072 = vadd.f32 %v6807, %v7071
      %v7073 = vpop.f32.mrb[0].mxu0
      %v7074 = vadd.f32 %v6808, %v7073
      %7075 = vmatprep.mubr.bf16.mxu0 0
      %7076 = vmatmul.mubr.bf16.gmra.mrb[0].mxu0 %v6892
      %v7077 = vpop.f32.mrb[0].mxu0
      %v7078 = vadd.f32 %v6809, %v7077
      %v7079 = vpop.f32.mrb[0].mxu0
      %v7080 = vadd.f32 %v6810, %v7079
      %v7081 = vpop.f32.mrb[0].mxu0
      %v7082 = vadd.f32 %v6811, %v7081
      %v7083 = vpop.f32.mrb[0].mxu0
      %v7084 = vadd.f32 %v6812, %v7083
      %7085 = vmatprep.mubr.bf16.mxu0 0
      %7086 = vmatmul.mubr.bf16.gmra.mrb[0].mxu0 %v6895
      %v7087 = vpop.f32.mrb[0].mxu0
      %v7088 = vadd.f32 %v6813, %v7087
      %v7089 = vpop.f32.mrb[0].mxu0
      %v7090 = vadd.f32 %v6814, %v7089
      %v7091 = vpop.f32.mrb[0].mxu0
      %v7092 = vadd.f32 %v6815, %v7091
      %v7093 = vpop.f32.mrb[0].mxu0
      %v7094 = vadd.f32 %v6816, %v7093
      %7095 = vdwg.mxu0
      %v7096 = vmax.f32 %v6938, %v6940
      %7097 = vmax.xlane.f32.xlu0 %v7096
      %v7098 = vpop.xlane.xlu0 %7097
      %v7099 = vmax.f32 %v6942, %v6944
      %7100 = vmax.xlane.f32.xlu0 %v7099
      %v7101 = vpop.xlane.xlu0 %7100
      %v7102 = vmax.f32 %v6948, %v6950
      %7103 = vmax.xlane.f32.xlu0 %v7102
      %v7104 = vpop.xlane.xlu0 %7103
      %v7105 = vmax.f32 %v6952, %v6954
      %7106 = vmax.xlane.f32.xlu0 %v7105
      %v7107 = vpop.xlane.xlu0 %7106
      %v7108 = vmax.f32 %v6958, %v6960
      %7109 = vmax.xlane.f32.xlu0 %v7108
      %v7110 = vpop.xlane.xlu0 %7109
      %v7111 = vmax.f32 %v6962, %v6964
      %7112 = vmax.xlane.f32.xlu0 %v7111
      %v7113 = vpop.xlane.xlu0 %7112
      %v7114 = vmax.f32 %v6968, %v6970
      %7115 = vmax.xlane.f32.xlu0 %v7114
      %v7116 = vpop.xlane.xlu0 %7115
      %v7117 = vmax.f32 %v6972, %v6974
      %7118 = vmax.xlane.f32.xlu0 %v7117
      %v7119 = vpop.xlane.xlu0 %7118
      %v7120 = vmax.f32 %v6978, %v6980
      %7121 = vmax.xlane.f32.xlu0 %v7120
      %v7122 = vpop.xlane.xlu0 %7121
      %v7123 = vmax.f32 %v6982, %v6984
      %7124 = vmax.xlane.f32.xlu0 %v7123
      %v7125 = vpop.xlane.xlu0 %7124
      %v7126 = vmax.f32 %v6988, %v6990
      %7127 = vmax.xlane.f32.xlu0 %v7126
      %v7128 = vpop.xlane.xlu0 %7127
      %v7129 = vmax.f32 %v6992, %v6994
      %7130 = vmax.xlane.f32.xlu0 %v7129
      %v7131 = vpop.xlane.xlu0 %7130
      %v7132 = vmax.f32 %v6998, %v7000
      %7133 = vmax.xlane.f32.xlu0 %v7132
      %v7134 = vpop.xlane.xlu0 %7133
      %v7135 = vmax.f32 %v7002, %v7004
      %7136 = vmax.xlane.f32.xlu0 %v7135
      %v7137 = vpop.xlane.xlu0 %7136
      %v7138 = vmax.f32 %v7008, %v7010
      %7139 = vmax.xlane.f32.xlu0 %v7138
      %v7140 = vpop.xlane.xlu0 %7139
      %v7141 = vmax.f32 %v7012, %v7014
      %7142 = vmax.xlane.f32.xlu0 %v7141
      %v7143 = vpop.xlane.xlu0 %7142
      %v7144 = vmax.f32 %v7018, %v7020
      %7145 = vmax.xlane.f32.xlu0 %v7144
      %v7146 = vpop.xlane.xlu0 %7145
      %v7147 = vmax.f32 %v7022, %v7024
      %7148 = vmax.xlane.f32.xlu0 %v7147
      %v7149 = vpop.xlane.xlu0 %7148
      %v7150 = vmax.f32 %v7028, %v7030
      %7151 = vmax.xlane.f32.xlu0 %v7150
      %v7152 = vpop.xlane.xlu0 %7151
      %v7153 = vmax.f32 %v7032, %v7034
      %7154 = vmax.xlane.f32.xlu0 %v7153
      %v7155 = vpop.xlane.xlu0 %7154
      %v7156 = vmax.f32 %v7038, %v7040
      %7157 = vmax.xlane.f32.xlu0 %v7156
      %v7158 = vpop.xlane.xlu0 %7157
      %v7159 = vmax.f32 %v7042, %v7044
      %7160 = vmax.xlane.f32.xlu0 %v7159
      %v7161 = vpop.xlane.xlu0 %7160
      %v7162 = vmax.f32 %v7048, %v7050
      %7163 = vmax.xlane.f32.xlu0 %v7162
      %v7164 = vpop.xlane.xlu0 %7163
      %v7165 = vmax.f32 %v7052, %v7054
      %7166 = vmax.xlane.f32.xlu0 %v7165
      %v7167 = vpop.xlane.xlu0 %7166
      %v7168 = vmax.f32 %v7058, %v7060
      %7169 = vmax.xlane.f32.xlu0 %v7168
      %v7170 = vpop.xlane.xlu0 %7169
      %v7171 = vmax.f32 %v7062, %v7064
      %7172 = vmax.xlane.f32.xlu0 %v7171
      %v7173 = vpop.xlane.xlu0 %7172
      %v7174 = vmax.f32 %v7068, %v7070
      %7175 = vmax.xlane.f32.xlu0 %v7174
      %v7176 = vpop.xlane.xlu0 %7175
      %v7177 = vmax.f32 %v7072, %v7074
      %7178 = vmax.xlane.f32.xlu0 %v7177
      %v7179 = vpop.xlane.xlu0 %7178
      %v7180 = vmax.f32 %v7078, %v7080
      %7181 = vmax.xlane.f32.xlu0 %v7180
      %v7182 = vpop.xlane.xlu0 %7181
      %v7183 = vmax.f32 %v7082, %v7084
      %7184 = vmax.xlane.f32.xlu0 %v7183
      %v7185 = vpop.xlane.xlu0 %7184
      %v7186 = vmax.f32 %v7088, %v7090
      %7187 = vmax.xlane.f32.xlu0 %v7186
      %v7188 = vpop.xlane.xlu0 %7187
      %v7189 = vmax.f32 %v7092, %v7094
      %7190 = vmax.xlane.f32.xlu0 %v7189
      %v7191 = vpop.xlane.xlu0 %7190
      %v7192 = vsub.f32 %v6938, %v7098
      %v7193 = vsub.f32 %v6940, %v7098
      %v7194 = vsub.f32 %v6942, %v7101
      %v7195 = vsub.f32 %v6944, %v7101
      %v7196 = vsub.f32 %v6948, %v7104
      %v7197 = vsub.f32 %v6950, %v7104
      %v7198 = vsub.f32 %v6952, %v7107
      %v7199 = vsub.f32 %v6954, %v7107
      %v7200 = vsub.f32 %v6958, %v7110
      %v7201 = vsub.f32 %v6960, %v7110
      %v7202 = vsub.f32 %v6962, %v7113
      %v7203 = vsub.f32 %v6964, %v7113
      %v7204 = vsub.f32 %v6968, %v7116
      %v7205 = vsub.f32 %v6970, %v7116
      %v7206 = vsub.f32 %v6972, %v7119
      %v7207 = vsub.f32 %v6974, %v7119
      %v7208 = vsub.f32 %v6978, %v7122
      %v7209 = vsub.f32 %v6980, %v7122
      %v7210 = vsub.f32 %v6982, %v7125
      %v7211 = vsub.f32 %v6984, %v7125
      %v7212 = vsub.f32 %v6988, %v7128
      %v7213 = vsub.f32 %v6990, %v7128
      %v7214 = vsub.f32 %v6992, %v7131
      %v7215 = vsub.f32 %v6994, %v7131
      %v7216 = vsub.f32 %v6998, %v7134
      %v7217 = vsub.f32 %v7000, %v7134
      %v7218 = vsub.f32 %v7002, %v7137
      %v7219 = vsub.f32 %v7004, %v7137
      %v7220 = vsub.f32 %v7008, %v7140
      %v7221 = vsub.f32 %v7010, %v7140
      %v7222 = vsub.f32 %v7012, %v7143
      %v7223 = vsub.f32 %v7014, %v7143
      %v7224 = vsub.f32 %v7018, %v7146
      %v7225 = vsub.f32 %v7020, %v7146
      %v7226 = vsub.f32 %v7022, %v7149
      %v7227 = vsub.f32 %v7024, %v7149
      %v7228 = vsub.f32 %v7028, %v7152
      %v7229 = vsub.f32 %v7030, %v7152
      %v7230 = vsub.f32 %v7032, %v7155
      %v7231 = vsub.f32 %v7034, %v7155
      %v7232 = vsub.f32 %v7038, %v7158
      %v7233 = vsub.f32 %v7040, %v7158
      %v7234 = vsub.f32 %v7042, %v7161
      %v7235 = vsub.f32 %v7044, %v7161
      %v7236 = vsub.f32 %v7048, %v7164
      %v7237 = vsub.f32 %v7050, %v7164
      %v7238 = vsub.f32 %v7052, %v7167
      %v7239 = vsub.f32 %v7054, %v7167
      %v7240 = vsub.f32 %v7058, %v7170
      %v7241 = vsub.f32 %v7060, %v7170
      %v7242 = vsub.f32 %v7062, %v7173
      %v7243 = vsub.f32 %v7064, %v7173
      %v7244 = vsub.f32 %v7068, %v7176
      %v7245 = vsub.f32 %v7070, %v7176
      %v7246 = vsub.f32 %v7072, %v7179
      %v7247 = vsub.f32 %v7074, %v7179
      %v7248 = vsub.f32 %v7078, %v7182
      %v7249 = vsub.f32 %v7080, %v7182
      %v7250 = vsub.f32 %v7082, %v7185
      %v7251 = vsub.f32 %v7084, %v7185
      %v7252 = vsub.f32 %v7088, %v7188
      %v7253 = vsub.f32 %v7090, %v7188
      %v7254 = vsub.f32 %v7092, %v7191
      %v7255 = vsub.f32 %v7094, %v7191
      %v7256 = vmul.f32 %v7192, 1.442695
      %v7257 = vpow.pop %v7256
      %v7258 = vmul.f32 %v7193, 1.442695
      %v7259 = vpow.pop %v7258
      %v7260 = vmul.f32 %v7194, 1.442695
      %v7261 = vpow.pop %v7260
      %v7262 = vmul.f32 %v7195, 1.442695
      %v7263 = vpow.pop %v7262
      %v7264 = vmul.f32 %v7196, 1.442695
      %v7265 = vpow.pop %v7264
      %v7266 = vmul.f32 %v7197, 1.442695
      %v7267 = vpow.pop %v7266
      %v7268 = vmul.f32 %v7198, 1.442695
      %v7269 = vpow.pop %v7268
      %v7270 = vmul.f32 %v7199, 1.442695
      %v7271 = vpow.pop %v7270
      %v7272 = vmul.f32 %v7200, 1.442695
      %v7273 = vpow.pop %v7272
      %v7274 = vmul.f32 %v7201, 1.442695
      %v7275 = vpow.pop %v7274
      %v7276 = vmul.f32 %v7202, 1.442695
      %v7277 = vpow.pop %v7276
      %v7278 = vmul.f32 %v7203, 1.442695
      %v7279 = vpow.pop %v7278
      %v7280 = vmul.f32 %v7204, 1.442695
      %v7281 = vpow.pop %v7280
      %v7282 = vmul.f32 %v7205, 1.442695
      %v7283 = vpow.pop %v7282
      %v7284 = vmul.f32 %v7206, 1.442695
      %v7285 = vpow.pop %v7284
      %v7286 = vmul.f32 %v7207, 1.442695
      %v7287 = vpow.pop %v7286
      %v7288 = vmul.f32 %v7208, 1.442695
      %v7289 = vpow.pop %v7288
      %v7290 = vmul.f32 %v7209, 1.442695
      %v7291 = vpow.pop %v7290
      %v7292 = vmul.f32 %v7210, 1.442695
      %v7293 = vpow.pop %v7292
      %v7294 = vmul.f32 %v7211, 1.442695
      %v7295 = vpow.pop %v7294
      %v7296 = vmul.f32 %v7212, 1.442695
      %v7297 = vpow.pop %v7296
      %v7298 = vmul.f32 %v7213, 1.442695
      %v7299 = vpow.pop %v7298
      %v7300 = vmul.f32 %v7214, 1.442695
      %v7301 = vpow.pop %v7300
      %v7302 = vmul.f32 %v7215, 1.442695
      %v7303 = vpow.pop %v7302
      %v7304 = vmul.f32 %v7216, 1.442695
      %v7305 = vpow.pop %v7304
      %v7306 = vmul.f32 %v7217, 1.442695
      %v7307 = vpow.pop %v7306
      %v7308 = vmul.f32 %v7218, 1.442695
      %v7309 = vpow.pop %v7308
      %v7310 = vmul.f32 %v7219, 1.442695
      %v7311 = vpow.pop %v7310
      %v7312 = vmul.f32 %v7220, 1.442695
      %v7313 = vpow.pop %v7312
      %v7314 = vmul.f32 %v7221, 1.442695
      %v7315 = vpow.pop %v7314
      %v7316 = vmul.f32 %v7222, 1.442695
      %v7317 = vpow.pop %v7316
      %v7318 = vmul.f32 %v7223, 1.442695
      %v7319 = vpow.pop %v7318
      %v7320 = vmul.f32 %v7224, 1.442695
      %v7321 = vpow.pop %v7320
      %v7322 = vmul.f32 %v7225, 1.442695
      %v7323 = vpow.pop %v7322
      %v7324 = vmul.f32 %v7226, 1.442695
      %v7325 = vpow.pop %v7324
      %v7326 = vmul.f32 %v7227, 1.442695
      %v7327 = vpow.pop %v7326
      %v7328 = vmul.f32 %v7228, 1.442695
      %v7329 = vpow.pop %v7328
      %v7330 = vmul.f32 %v7229, 1.442695
      %v7331 = vpow.pop %v7330
      %v7332 = vmul.f32 %v7230, 1.442695
      %v7333 = vpow.pop %v7332
      %v7334 = vmul.f32 %v7231, 1.442695
      %v7335 = vpow.pop %v7334
      %v7336 = vmul.f32 %v7232, 1.442695
      %v7337 = vpow.pop %v7336
      %v7338 = vmul.f32 %v7233, 1.442695
      %v7339 = vpow.pop %v7338
      %v7340 = vmul.f32 %v7234, 1.442695
      %v7341 = vpow.pop %v7340
      %v7342 = vmul.f32 %v7235, 1.442695
      %v7343 = vpow.pop %v7342
      %v7344 = vmul.f32 %v7236, 1.442695
      %v7345 = vpow.pop %v7344
      %v7346 = vmul.f32 %v7237, 1.442695
      %v7347 = vpow.pop %v7346
      %v7348 = vmul.f32 %v7238, 1.442695
      %v7349 = vpow.pop %v7348
      %v7350 = vmul.f32 %v7239, 1.442695
      %v7351 = vpow.pop %v7350
      %v7352 = vmul.f32 %v7240, 1.442695
      %v7353 = vpow.pop %v7352
      %v7354 = vmul.f32 %v7241, 1.442695
      %v7355 = vpow.pop %v7354
      %v7356 = vmul.f32 %v7242, 1.442695
      %v7357 = vpow.pop %v7356
      %v7358 = vmul.f32 %v7243, 1.442695
      %v7359 = vpow.pop %v7358
      %v7360 = vmul.f32 %v7244, 1.442695
      %v7361 = vpow.pop %v7360
      %v7362 = vmul.f32 %v7245, 1.442695
      %v7363 = vpow.pop %v7362
      %v7364 = vmul.f32 %v7246, 1.442695
      %v7365 = vpow.pop %v7364
      %v7366 = vmul.f32 %v7247, 1.442695
      %v7367 = vpow.pop %v7366
      %v7368 = vmul.f32 %v7248, 1.442695
      %v7369 = vpow.pop %v7368
      %v7370 = vmul.f32 %v7249, 1.442695
      %v7371 = vpow.pop %v7370
      %v7372 = vmul.f32 %v7250, 1.442695
      %v7373 = vpow.pop %v7372
      %v7374 = vmul.f32 %v7251, 1.442695
      %v7375 = vpow.pop %v7374
      %v7376 = vmul.f32 %v7252, 1.442695
      %v7377 = vpow.pop %v7376
      %v7378 = vmul.f32 %v7253, 1.442695
      %v7379 = vpow.pop %v7378
      %v7380 = vmul.f32 %v7254, 1.442695
      %v7381 = vpow.pop %v7380
      %v7382 = vmul.f32 %v7255, 1.442695
      %v7383 = vpow.pop %v7382
      %v7384 = vpack.c.bf16 %v7261, %v7257
      %v7385 = vpack.c.bf16 %v7263, %v7259
      %v7386 = vpack.c.bf16 %v7269, %v7265
      %v7387 = vpack.c.bf16 %v7271, %v7267
      %v7388 = vpack.c.bf16 %v7277, %v7273
      %v7389 = vpack.c.bf16 %v7279, %v7275
      %v7390 = vpack.c.bf16 %v7285, %v7281
      %v7391 = vpack.c.bf16 %v7287, %v7283
      %v7392 = vpack.c.bf16 %v7293, %v7289
      %v7393 = vpack.c.bf16 %v7295, %v7291
      %v7394 = vpack.c.bf16 %v7301, %v7297
      %v7395 = vpack.c.bf16 %v7303, %v7299
      %v7396 = vpack.c.bf16 %v7309, %v7305
      %v7397 = vpack.c.bf16 %v7311, %v7307
      %v7398 = vpack.c.bf16 %v7317, %v7313
      %v7399 = vpack.c.bf16 %v7319, %v7315
      %v7400 = vpack.c.bf16 %v7325, %v7321
      %v7401 = vpack.c.bf16 %v7327, %v7323
      %v7402 = vpack.c.bf16 %v7333, %v7329
      %v7403 = vpack.c.bf16 %v7335, %v7331
      %v7404 = vpack.c.bf16 %v7341, %v7337
      %v7405 = vpack.c.bf16 %v7343, %v7339
      %v7406 = vpack.c.bf16 %v7349, %v7345
      %v7407 = vpack.c.bf16 %v7351, %v7347
      %v7408 = vpack.c.bf16 %v7357, %v7353
      %v7409 = vpack.c.bf16 %v7359, %v7355
      %v7410 = vpack.c.bf16 %v7365, %v7361
      %v7411 = vpack.c.bf16 %v7367, %v7363
      %v7412 = vpack.c.bf16 %v7373, %v7369
      %v7413 = vpack.c.bf16 %v7375, %v7371
      %v7414 = vpack.c.bf16 %v7381, %v7377
      %v7415 = vpack.c.bf16 %v7383, %v7379
      %7416 = vmatprep.subr.bf16.mxu0 %v7385
      %7417 = vmatpush1.bf16.xpose.msra.mxu0 %v7384
      %7418 = vmatprep.subr.bf16.mxu0 %v7387
      %7419 = vmatpush1.bf16.xpose.msra.mxu0 %v7386
      %7420 = vmatprep.subr.bf16.mxu0 %v7389
      %7421 = vmatpush1.bf16.xpose.msra.mxu0 %v7388
      %7422 = vmatprep.subr.bf16.mxu0 %v7391
      %7423 = vmatpush1.bf16.xpose.msra.mxu0 %v7390
      %7424 = vmatprep.subr.bf16.mxu0 %v7393
      %7425 = vmatpush1.bf16.xpose.msra.mxu0 %v7392
      %7426 = vmatprep.subr.bf16.mxu0 %v7395
      %7427 = vmatpush1.bf16.xpose.msra.mxu0 %v7394
      %7428 = vmatprep.subr.bf16.mxu0 %v7397
      %7429 = vmatpush1.bf16.xpose.msra.mxu0 %v7396
      %7430 = vmatprep.subr.bf16.mxu0 %v7399
      %7431 = vmatpush1.bf16.xpose.msra.mxu0 %v7398
      %7432 = vmatprep.subr.bf16.mxu0 %v7401
      %7433 = vmatpush1.bf16.xpose.msra.mxu0 %v7400
      %7434 = vmatprep.subr.bf16.mxu0 %v7403
      %7435 = vmatpush1.bf16.xpose.msra.mxu0 %v7402
      %7436 = vmatprep.subr.bf16.mxu0 %v7405
      %7437 = vmatpush1.bf16.xpose.msra.mxu0 %v7404
      %7438 = vmatprep.subr.bf16.mxu0 %v7407
      %7439 = vmatpush1.bf16.xpose.msra.mxu0 %v7406
      %7440 = vmatprep.subr.bf16.mxu0 %v7409
      %7441 = vmatpush1.bf16.xpose.msra.mxu0 %v7408
      %7442 = vmatprep.subr.bf16.mxu0 %v7411
      %7443 = vmatpush1.bf16.xpose.msra.mxu0 %v7410
      %7444 = vmatprep.subr.bf16.mxu0 %v7413
      %7445 = vmatpush1.bf16.xpose.msra.mxu0 %v7412
      %7446 = vmatprep.subr.bf16.mxu0 %v7415
      %7447 = vmatpush1.bf16.xpose.msra.mxu0 %v7414
      %7448 = vmatprep.mubr.bf16.mxu0 %v6719
      %7449 = vmatmul.mubr.bf16.gmra.mrb[0].mxu0 %v6718
      %v7450 = vpop.f32.mrb[0].mxu0
      %v7451 = vadd.f32 0.0, %v7450
      %v7452 = vpop.f32.mrb[0].mxu0
      %v7453 = vadd.f32 0.0, %v7452
      %v7454 = vpop.f32.mrb[0].mxu0
      %v7455 = vpop.f32.mrb[0].mxu0
      %7456 = vdwg.mxu0
      %7457 = vmatprep.subr.bf16.mxu0 %v7385
      %7458 = vmatpush1.bf16.xpose.msra.mxu0 %v7384
      %7459 = vmatprep.subr.bf16.mxu0 %v7387
      %7460 = vmatpush1.bf16.xpose.msra.mxu0 %v7386
      %7461 = vmatprep.subr.bf16.mxu0 %v7389
      %7462 = vmatpush1.bf16.xpose.msra.mxu0 %v7388
      %7463 = vmatprep.subr.bf16.mxu0 %v7391
      %7464 = vmatpush1.bf16.xpose.msra.mxu0 %v7390
      %7465 = vmatprep.subr.bf16.mxu0 %v7393
      %7466 = vmatpush1.bf16.xpose.msra.mxu0 %v7392
      %7467 = vmatprep.subr.bf16.mxu0 %v7395
      %7468 = vmatpush1.bf16.xpose.msra.mxu0 %v7394
      %7469 = vmatprep.subr.bf16.mxu0 %v7397
      %7470 = vmatpush1.bf16.xpose.msra.mxu0 %v7396
      %7471 = vmatprep.subr.bf16.mxu0 %v7399
      %7472 = vmatpush1.bf16.xpose.msra.mxu0 %v7398
      %7473 = vmatprep.subr.bf16.mxu0 %v7401
      %7474 = vmatpush1.bf16.xpose.msra.mxu0 %v7400
      %7475 = vmatprep.subr.bf16.mxu0 %v7403
      %7476 = vmatpush1.bf16.xpose.msra.mxu0 %v7402
      %7477 = vmatprep.subr.bf16.mxu0 %v7405
      %7478 = vmatpush1.bf16.xpose.msra.mxu0 %v7404
      %7479 = vmatprep.subr.bf16.mxu0 %v7407
      %7480 = vmatpush1.bf16.xpose.msra.mxu0 %v7406
      %7481 = vmatprep.subr.bf16.mxu0 %v7409
      %7482 = vmatpush1.bf16.xpose.msra.mxu0 %v7408
      %7483 = vmatprep.subr.bf16.mxu0 %v7411
      %7484 = vmatpush1.bf16.xpose.msra.mxu0 %v7410
      %7485 = vmatprep.subr.bf16.mxu0 %v7413
      %7486 = vmatpush1.bf16.xpose.msra.mxu0 %v7412
      %7487 = vmatprep.subr.bf16.mxu0 %v7415
      %7488 = vmatpush1.bf16.xpose.msra.mxu0 %v7414
      %7489 = vmatprep.mubr.bf16.mxu0 1065369472
      %7490 = vmatmul.mubr.bf16.gmra.mrb[0].mxu0 1065369472
      %v7491 = vpop.f32.mrb[0].mxu0
      %v7492 = vadd.f32 0.0, %v7491
      %v7493 = vpop.f32.mrb[0].mxu0
      %v7494 = vadd.f32 0.0, %v7493
      %v7495 = vpop.f32.mrb[0].mxu0
      %v7496 = vpop.f32.mrb[0].mxu0
      %7497 = vdwg.mxu0
      %v7498 = vrcp.pop %v7492
      %v7499 = vrcp.pop %v7494
      %v7500 = vlaneseq
      %v7501 = vshrl.u32 %v7500, 7
      %v7502 = vsub.s32 0, %v7501
      %v7503 = vrot.slane %v7498, %v7502
      %v7504 = vlaneseq
      %v7505 = vshrl.u32 %v7504, 7
      %v7506 = vsub.s32 0, %v7505
      %v7507 = vrot.slane %v7499, %v7506
      %v7508 = vmul.f32 %v7451, %v7503
      %v7509 = vmul.f32 %v7453, %v7507
      %s7510 = scalar_lea.vmem %s29, 768
      %v7511 = vld [vmem:[%s7510] sm:$0xff]
      %v7512 = vld [vmem:[%s7510 + $0x8] sm:$0xff]
      %v7513 = vld [vmem:[%s7510 + $0x10] sm:$0xff]
      %v7514 = vld [vmem:[%s7510 + $0x18] sm:$0xff]
      %v7515 = vld [vmem:[%s7510 + $0x20] sm:$0xff]
      %v7516 = vld [vmem:[%s7510 + $0x28] sm:$0xff]
      %v7517 = vld [vmem:[%s7510 + $0x30] sm:$0xff]
      %v7518 = vld [vmem:[%s7510 + $0x38] sm:$0xff]
      %v7519 = vld [vmem:[%s7510 + $0x40] sm:$0xff]
      %v7520 = vld [vmem:[%s7510 + $0x48] sm:$0xff]
      %v7521 = vld [vmem:[%s7510 + $0x50] sm:$0xff]
      %v7522 = vld [vmem:[%s7510 + $0x58] sm:$0xff]
      %v7523 = vld [vmem:[%s7510 + $0x60] sm:$0xff]
      %v7524 = vld [vmem:[%s7510 + $0x68] sm:$0xff]
      %v7525 = vld [vmem:[%s7510 + $0x70] sm:$0xff]
      %v7526 = vld [vmem:[%s7510 + $0x78] sm:$0xff]
      %v7527 = vld [vmem:[%s7510 + $0x80] sm:$0xff]
      %v7528 = vld [vmem:[%s7510 + $0x88] sm:$0xff]
      %v7529 = vld [vmem:[%s7510 + $0x90] sm:$0xff]
      %v7530 = vld [vmem:[%s7510 + $0x98] sm:$0xff]
      %v7531 = vld [vmem:[%s7510 + $0xa0] sm:$0xff]
      %v7532 = vld [vmem:[%s7510 + $0xa8] sm:$0xff]
      %v7533 = vld [vmem:[%s7510 + $0xb0] sm:$0xff]
      %v7534 = vld [vmem:[%s7510 + $0xb8] sm:$0xff]
      %v7535 = vld [vmem:[%s7510 + $0xc0] sm:$0xff]
      %v7536 = vld [vmem:[%s7510 + $0xc8] sm:$0xff]
      %v7537 = vld [vmem:[%s7510 + $0xd0] sm:$0xff]
      %v7538 = vld [vmem:[%s7510 + $0xd8] sm:$0xff]
      %v7539 = vld [vmem:[%s7510 + $0xe0] sm:$0xff]
      %v7540 = vld [vmem:[%s7510 + $0xe8] sm:$0xff]
      %v7541 = vld [vmem:[%s7510 + $0xf0] sm:$0xff]
      %v7542 = vld [vmem:[%s7510 + $0xf8] sm:$0xff]
      %v7543 = vunpack.c.l.bf16 %v7511
      %v7544 = vunpack.c.h.bf16 %v7511
      %v7545 = vunpack.c.l.bf16 %v7512
      %v7546 = vunpack.c.h.bf16 %v7512
      %v7547 = vunpack.c.l.bf16 %v7513
      %v7548 = vunpack.c.h.bf16 %v7513
      %v7549 = vunpack.c.l.bf16 %v7514
      %v7550 = vunpack.c.h.bf16 %v7514
      %v7551 = vunpack.c.l.bf16 %v7515
      %v7552 = vunpack.c.h.bf16 %v7515
      %v7553 = vunpack.c.l.bf16 %v7516
      %v7554 = vunpack.c.h.bf16 %v7516
      %v7555 = vunpack.c.l.bf16 %v7517
      %v7556 = vunpack.c.h.bf16 %v7517
      %v7557 = vunpack.c.l.bf16 %v7518
      %v7558 = vunpack.c.h.bf16 %v7518
      %v7559 = vunpack.c.l.bf16 %v7519
      %v7560 = vunpack.c.h.bf16 %v7519
      %v7561 = vunpack.c.l.bf16 %v7520
      %v7562 = vunpack.c.h.bf16 %v7520
      %v7563 = vunpack.c.l.bf16 %v7521
      %v7564 = vunpack.c.h.bf16 %v7521
      %v7565 = vunpack.c.l.bf16 %v7522
      %v7566 = vunpack.c.h.bf16 %v7522
      %v7567 = vunpack.c.l.bf16 %v7523
      %v7568 = vunpack.c.h.bf16 %v7523
      %v7569 = vunpack.c.l.bf16 %v7524
      %v7570 = vunpack.c.h.bf16 %v7524
      %v7571 = vunpack.c.l.bf16 %v7525
      %v7572 = vunpack.c.h.bf16 %v7525
      %v7573 = vunpack.c.l.bf16 %v7526
      %v7574 = vunpack.c.h.bf16 %v7526
      %v7575 = vunpack.c.l.bf16 %v7527
      %v7576 = vunpack.c.h.bf16 %v7527
      %v7577 = vunpack.c.l.bf16 %v7528
      %v7578 = vunpack.c.h.bf16 %v7528
      %v7579 = vunpack.c.l.bf16 %v7529
      %v7580 = vunpack.c.h.bf16 %v7529
      %v7581 = vunpack.c.l.bf16 %v7530
      %v7582 = vunpack.c.h.bf16 %v7530
      %v7583 = vunpack.c.l.bf16 %v7531
      %v7584 = vunpack.c.h.bf16 %v7531
      %v7585 = vunpack.c.l.bf16 %v7532
      %v7586 = vunpack.c.h.bf16 %v7532
      %v7587 = vunpack.c.l.bf16 %v7533
      %v7588 = vunpack.c.h.bf16 %v7533
      %v7589 = vunpack.c.l.bf16 %v7534
      %v7590 = vunpack.c.h.bf16 %v7534
      %v7591 = vunpack.c.l.bf16 %v7535
      %v7592 = vunpack.c.h.bf16 %v7535
      %v7593 = vunpack.c.l.bf16 %v7536
      %v7594 = vunpack.c.h.bf16 %v7536
      %v7595 = vunpack.c.l.bf16 %v7537
      %v7596 = vunpack.c.h.bf16 %v7537
      %v7597 = vunpack.c.l.bf16 %v7538
      %v7598 = vunpack.c.h.bf16 %v7538
      %v7599 = vunpack.c.l.bf16 %v7539
      %v7600 = vunpack.c.h.bf16 %v7539
      %v7601 = vunpack.c.l.bf16 %v7540
      %v7602 = vunpack.c.h.bf16 %v7540
      %v7603 = vunpack.c.l.bf16 %v7541
      %v7604 = vunpack.c.h.bf16 %v7541
      %v7605 = vunpack.c.l.bf16 %v7542
      %v7606 = vunpack.c.h.bf16 %v7542
      %7607 = vrot.lane.b32.xlu0 %v5123, 116
      %v7608 = vpop.permute.xlu0 %7607
      %7609 = vrot.lane.b32.xlu0 %v5124, 116
      %v7610 = vpop.permute.xlu0 %7609
      %7611 = vrot.lane.b32.xlu0 %v5125, 116
      %v7612 = vpop.permute.xlu0 %7611
      %7613 = vrot.lane.b32.xlu0 %v5126, 116
      %v7614 = vpop.permute.xlu0 %7613
      %7615 = vrot.lane.b32.xlu0 %v5127, 116
      %v7616 = vpop.permute.xlu0 %7615
      %7617 = vrot.lane.b32.xlu0 %v5128, 116
      %v7618 = vpop.permute.xlu0 %7617
      %7619 = vrot.lane.b32.xlu0 %v5129, 116
      %v7620 = vpop.permute.xlu0 %7619
      %7621 = vrot.lane.b32.xlu0 %v5130, 116
      %v7622 = vpop.permute.xlu0 %7621
      %7623 = vrot.lane.b32.xlu0 %v5131, 116
      %v7624 = vpop.permute.xlu0 %7623
      %7625 = vrot.lane.b32.xlu0 %v5132, 116
      %v7626 = vpop.permute.xlu0 %7625
      %7627 = vrot.lane.b32.xlu0 %v5133, 116
      %v7628 = vpop.permute.xlu0 %7627
      %7629 = vrot.lane.b32.xlu0 %v5134, 116
      %v7630 = vpop.permute.xlu0 %7629
      %7631 = vrot.lane.b32.xlu0 %v5135, 116
      %v7632 = vpop.permute.xlu0 %7631
      %7633 = vrot.lane.b32.xlu0 %v5136, 116
      %v7634 = vpop.permute.xlu0 %7633
      %7635 = vrot.lane.b32.xlu0 %v5137, 116
      %v7636 = vpop.permute.xlu0 %7635
      %7637 = vrot.lane.b32.xlu0 %v5138, 116
      %v7638 = vpop.permute.xlu0 %7637
      %v7641 = vrot.slane %v6716, 2
      %v7642 = vrot.slane %v6717, 2
      %v7644 = vsel %vm1221, %v7608, 0
      %v7647 = vsel %vm1221, %v7610, 0
      %v7650 = vsel %vm1221, %v7612, 0
      %v7653 = vsel %vm1221, %v7614, 0
      %v7656 = vsel %vm1221, %v7616, 0
      %v7659 = vsel %vm1221, %v7618, 0
      %v7662 = vsel %vm1221, %v7620, 0
      %v7665 = vsel %vm1221, %v7622, 0
      %v7668 = vsel %vm1221, %v7624, 0
      %v7671 = vsel %vm1221, %v7626, 0
      %v7674 = vsel %vm1221, %v7628, 0
      %v7677 = vsel %vm1221, %v7630, 0
      %v7680 = vsel %vm1221, %v7632, 0
      %v7683 = vsel %vm1221, %v7634, 0
      %v7686 = vsel %vm1221, %v7636, 0
      %v7689 = vsel %vm1221, %v7638, 0
      %v7692 = vsel %vm1270, %v7641, 0
      %v7695 = vsel %vm1270, %v7642, 0
      %7697 = vmatprep.subr.bf16.mxu0 %v7695
      %7698 = vmatpush1.bf16.msra.mxu0 %v7692
      %7699 = vmatprep.subr.bf16.mxu0 0
      %7700 = vmatpush1.bf16.msra.mxu0 0
      %7701 = vmatprep.subr.bf16.mxu0 0
      %7702 = vmatpush1.bf16.msra.mxu0 0
      %7703 = vmatprep.subr.bf16.mxu0 0
      %7704 = vmatpush1.bf16.msra.mxu0 0
      %7705 = vmatprep.subr.bf16.mxu0 0
      %7706 = vmatpush1.bf16.msra.mxu0 0
      %7707 = vmatprep.subr.bf16.mxu0 0
      %7708 = vmatpush1.bf16.msra.mxu0 0
      %7709 = vmatprep.subr.bf16.mxu0 0
      %7710 = vmatpush1.bf16.msra.mxu0 0
      %7711 = vmatprep.subr.bf16.mxu0 0
      %7712 = vmatpush1.bf16.msra.mxu0 0
      %7713 = vmatprep.subr.bf16.mxu0 0
      %7714 = vmatpush1.bf16.msra.mxu0 0
      %7715 = vmatprep.subr.bf16.mxu0 0
      %7716 = vmatpush1.bf16.msra.mxu0 0
      %7717 = vmatprep.subr.bf16.mxu0 0
      %7718 = vmatpush1.bf16.msra.mxu0 0
      %7719 = vmatprep.subr.bf16.mxu0 0
      %7720 = vmatpush1.bf16.msra.mxu0 0
      %7721 = vmatprep.subr.bf16.mxu0 0
      %7722 = vmatpush1.bf16.msra.mxu0 0
      %7723 = vmatprep.subr.bf16.mxu0 0
      %7724 = vmatpush1.bf16.msra.mxu0 0
      %7725 = vmatprep.subr.bf16.mxu0 0
      %7726 = vmatpush1.bf16.msra.mxu0 0
      %7727 = vmatprep.subr.bf16.mxu0 0
      %7728 = vmatpush1.bf16.msra.mxu0 0
      %7729 = vmatprep.mubr.bf16.mxu0 0
      %7730 = vmatmul.mubr.bf16.gmra.mrb[0].mxu0 %v7644
      %v7731 = vpop.f32.mrb[0].mxu0
      %v7732 = vadd.f32 %v7543, %v7731
      %v7733 = vpop.f32.mrb[0].mxu0
      %v7734 = vadd.f32 %v7544, %v7733
      %v7735 = vpop.f32.mrb[0].mxu0
      %v7736 = vadd.f32 %v7545, %v7735
      %v7737 = vpop.f32.mrb[0].mxu0
      %v7738 = vadd.f32 %v7546, %v7737
      %7739 = vmatprep.mubr.bf16.mxu0 0
      %7740 = vmatmul.mubr.bf16.gmra.mrb[0].mxu0 %v7647
      %v7741 = vpop.f32.mrb[0].mxu0
      %v7742 = vadd.f32 %v7547, %v7741
      %v7743 = vpop.f32.mrb[0].mxu0
      %v7744 = vadd.f32 %v7548, %v7743
      %v7745 = vpop.f32.mrb[0].mxu0
      %v7746 = vadd.f32 %v7549, %v7745
      %v7747 = vpop.f32.mrb[0].mxu0
      %v7748 = vadd.f32 %v7550, %v7747
      %7749 = vmatprep.mubr.bf16.mxu0 0
      %7750 = vmatmul.mubr.bf16.gmra.mrb[0].mxu0 %v7650
      %v7751 = vpop.f32.mrb[0].mxu0
      %v7752 = vadd.f32 %v7551, %v7751
      %v7753 = vpop.f32.mrb[0].mxu0
      %v7754 = vadd.f32 %v7552, %v7753
      %v7755 = vpop.f32.mrb[0].mxu0
      %v7756 = vadd.f32 %v7553, %v7755
      %v7757 = vpop.f32.mrb[0].mxu0
      %v7758 = vadd.f32 %v7554, %v7757
      %7759 = vmatprep.mubr.bf16.mxu0 0
      %7760 = vmatmul.mubr.bf16.gmra.mrb[0].mxu0 %v7653
      %v7761 = vpop.f32.mrb[0].mxu0
      %v7762 = vadd.f32 %v7555, %v7761
      %v7763 = vpop.f32.mrb[0].mxu0
      %v7764 = vadd.f32 %v7556, %v7763
      %v7765 = vpop.f32.mrb[0].mxu0
      %v7766 = vadd.f32 %v7557, %v7765
      %v7767 = vpop.f32.mrb[0].mxu0
      %v7768 = vadd.f32 %v7558, %v7767
      %7769 = vmatprep.mubr.bf16.mxu0 0
      %7770 = vmatmul.mubr.bf16.gmra.mrb[0].mxu0 %v7656
      %v7771 = vpop.f32.mrb[0].mxu0
      %v7772 = vadd.f32 %v7559, %v7771
      %v7773 = vpop.f32.mrb[0].mxu0
      %v7774 = vadd.f32 %v7560, %v7773
      %v7775 = vpop.f32.mrb[0].mxu0
      %v7776 = vadd.f32 %v7561, %v7775
      %v7777 = vpop.f32.mrb[0].mxu0
      %v7778 = vadd.f32 %v7562, %v7777
      %7779 = vmatprep.mubr.bf16.mxu0 0
      %7780 = vmatmul.mubr.bf16.gmra.mrb[0].mxu0 %v7659
      %v7781 = vpop.f32.mrb[0].mxu0
      %v7782 = vadd.f32 %v7563, %v7781
      %v7783 = vpop.f32.mrb[0].mxu0
      %v7784 = vadd.f32 %v7564, %v7783
      %v7785 = vpop.f32.mrb[0].mxu0
      %v7786 = vadd.f32 %v7565, %v7785
      %v7787 = vpop.f32.mrb[0].mxu0
      %v7788 = vadd.f32 %v7566, %v7787
      %7789 = vmatprep.mubr.bf16.mxu0 0
      %7790 = vmatmul.mubr.bf16.gmra.mrb[0].mxu0 %v7662
      %v7791 = vpop.f32.mrb[0].mxu0
      %v7792 = vadd.f32 %v7567, %v7791
      %v7793 = vpop.f32.mrb[0].mxu0
      %v7794 = vadd.f32 %v7568, %v7793
      %v7795 = vpop.f32.mrb[0].mxu0
      %v7796 = vadd.f32 %v7569, %v7795
      %v7797 = vpop.f32.mrb[0].mxu0
      %v7798 = vadd.f32 %v7570, %v7797
      %7799 = vmatprep.mubr.bf16.mxu0 0
      %7800 = vmatmul.mubr.bf16.gmra.mrb[0].mxu0 %v7665
      %v7801 = vpop.f32.mrb[0].mxu0
      %v7802 = vadd.f32 %v7571, %v7801
      %v7803 = vpop.f32.mrb[0].mxu0
      %v7804 = vadd.f32 %v7572, %v7803
      %v7805 = vpop.f32.mrb[0].mxu0
      %v7806 = vadd.f32 %v7573, %v7805
      %v7807 = vpop.f32.mrb[0].mxu0
      %v7808 = vadd.f32 %v7574, %v7807
      %7809 = vmatprep.mubr.bf16.mxu0 0
      %7810 = vmatmul.mubr.bf16.gmra.mrb[0].mxu0 %v7668
      %v7811 = vpop.f32.mrb[0].mxu0
      %v7812 = vadd.f32 %v7575, %v7811
      %v7813 = vpop.f32.mrb[0].mxu0
      %v7814 = vadd.f32 %v7576, %v7813
      %v7815 = vpop.f32.mrb[0].mxu0
      %v7816 = vadd.f32 %v7577, %v7815
      %v7817 = vpop.f32.mrb[0].mxu0
      %v7818 = vadd.f32 %v7578, %v7817
      %7819 = vmatprep.mubr.bf16.mxu0 0
      %7820 = vmatmul.mubr.bf16.gmra.mrb[0].mxu0 %v7671
      %v7821 = vpop.f32.mrb[0].mxu0
      %v7822 = vadd.f32 %v7579, %v7821
      %v7823 = vpop.f32.mrb[0].mxu0
      %v7824 = vadd.f32 %v7580, %v7823
      %v7825 = vpop.f32.mrb[0].mxu0
      %v7826 = vadd.f32 %v7581, %v7825
      %v7827 = vpop.f32.mrb[0].mxu0
      %v7828 = vadd.f32 %v7582, %v7827
      %7829 = vmatprep.mubr.bf16.mxu0 0
      %7830 = vmatmul.mubr.bf16.gmra.mrb[0].mxu0 %v7674
      %v7831 = vpop.f32.mrb[0].mxu0
      %v7832 = vadd.f32 %v7583, %v7831
      %v7833 = vpop.f32.mrb[0].mxu0
      %v7834 = vadd.f32 %v7584, %v7833
      %v7835 = vpop.f32.mrb[0].mxu0
      %v7836 = vadd.f32 %v7585, %v7835
      %v7837 = vpop.f32.mrb[0].mxu0
      %v7838 = vadd.f32 %v7586, %v7837
      %7839 = vmatprep.mubr.bf16.mxu0 0
      %7840 = vmatmul.mubr.bf16.gmra.mrb[0].mxu0 %v7677
      %v7841 = vpop.f32.mrb[0].mxu0
      %v7842 = vadd.f32 %v7587, %v7841
      %v7843 = vpop.f32.mrb[0].mxu0
      %v7844 = vadd.f32 %v7588, %v7843
      %v7845 = vpop.f32.mrb[0].mxu0
      %v7846 = vadd.f32 %v7589, %v7845
      %v7847 = vpop.f32.mrb[0].mxu0
      %v7848 = vadd.f32 %v7590, %v7847
      %7849 = vmatprep.mubr.bf16.mxu0 0
      %7850 = vmatmul.mubr.bf16.gmra.mrb[0].mxu0 %v7680
      %v7851 = vpop.f32.mrb[0].mxu0
      %v7852 = vadd.f32 %v7591, %v7851
      %v7853 = vpop.f32.mrb[0].mxu0
      %v7854 = vadd.f32 %v7592, %v7853
      %v7855 = vpop.f32.mrb[0].mxu0
      %v7856 = vadd.f32 %v7593, %v7855
      %v7857 = vpop.f32.mrb[0].mxu0
      %v7858 = vadd.f32 %v7594, %v7857
      %7859 = vmatprep.mubr.bf16.mxu0 0
      %7860 = vmatmul.mubr.bf16.gmra.mrb[0].mxu0 %v7683
      %v7861 = vpop.f32.mrb[0].mxu0
      %v7862 = vadd.f32 %v7595, %v7861
      %v7863 = vpop.f32.mrb[0].mxu0
      %v7864 = vadd.f32 %v7596, %v7863
      %v7865 = vpop.f32.mrb[0].mxu0
      %v7866 = vadd.f32 %v7597, %v7865
      %v7867 = vpop.f32.mrb[0].mxu0
      %v7868 = vadd.f32 %v7598, %v7867
      %7869 = vmatprep.mubr.bf16.mxu0 0
      %7870 = vmatmul.mubr.bf16.gmra.mrb[0].mxu0 %v7686
      %v7871 = vpop.f32.mrb[0].mxu0
      %v7872 = vadd.f32 %v7599, %v7871
      %v7873 = vpop.f32.mrb[0].mxu0
      %v7874 = vadd.f32 %v7600, %v7873
      %v7875 = vpop.f32.mrb[0].mxu0
      %v7876 = vadd.f32 %v7601, %v7875
      %v7877 = vpop.f32.mrb[0].mxu0
      %v7878 = vadd.f32 %v7602, %v7877
      %7879 = vmatprep.mubr.bf16.mxu0 0
      %7880 = vmatmul.mubr.bf16.gmra.mrb[0].mxu0 %v7689
      %v7881 = vpop.f32.mrb[0].mxu0
      %v7882 = vadd.f32 %v7603, %v7881
      %v7883 = vpop.f32.mrb[0].mxu0
      %v7884 = vadd.f32 %v7604, %v7883
      %v7885 = vpop.f32.mrb[0].mxu0
      %v7886 = vadd.f32 %v7605, %v7885
      %v7887 = vpop.f32.mrb[0].mxu0
      %v7888 = vadd.f32 %v7606, %v7887
      %7889 = vdwg.mxu0
      %v7890 = vmax.f32 %v7732, %v7734
      %7891 = vmax.xlane.f32.xlu0 %v7890
      %v7892 = vpop.xlane.xlu0 %7891
      %v7893 = vmax.f32 %v7736, %v7738
      %7894 = vmax.xlane.f32.xlu0 %v7893
      %v7895 = vpop.xlane.xlu0 %7894
      %v7896 = vmax.f32 %v7742, %v7744
      %7897 = vmax.xlane.f32.xlu0 %v7896
      %v7898 = vpop.xlane.xlu0 %7897
      %v7899 = vmax.f32 %v7746, %v7748
      %7900 = vmax.xlane.f32.xlu0 %v7899
      %v7901 = vpop.xlane.xlu0 %7900
      %v7902 = vmax.f32 %v7752, %v7754
      %7903 = vmax.xlane.f32.xlu0 %v7902
      %v7904 = vpop.xlane.xlu0 %7903
      %v7905 = vmax.f32 %v7756, %v7758
      %7906 = vmax.xlane.f32.xlu0 %v7905
      %v7907 = vpop.xlane.xlu0 %7906
      %v7908 = vmax.f32 %v7762, %v7764
      %7909 = vmax.xlane.f32.xlu0 %v7908
      %v7910 = vpop.xlane.xlu0 %7909
      %v7911 = vmax.f32 %v7766, %v7768
      %7912 = vmax.xlane.f32.xlu0 %v7911
      %v7913 = vpop.xlane.xlu0 %7912
      %v7914 = vmax.f32 %v7772, %v7774
      %7915 = vmax.xlane.f32.xlu0 %v7914
      %v7916 = vpop.xlane.xlu0 %7915
      %v7917 = vmax.f32 %v7776, %v7778
      %7918 = vmax.xlane.f32.xlu0 %v7917
      %v7919 = vpop.xlane.xlu0 %7918
      %v7920 = vmax.f32 %v7782, %v7784
      %7921 = vmax.xlane.f32.xlu0 %v7920
      %v7922 = vpop.xlane.xlu0 %7921
      %v7923 = vmax.f32 %v7786, %v7788
      %7924 = vmax.xlane.f32.xlu0 %v7923
      %v7925 = vpop.xlane.xlu0 %7924
      %v7926 = vmax.f32 %v7792, %v7794
      %7927 = vmax.xlane.f32.xlu0 %v7926
      %v7928 = vpop.xlane.xlu0 %7927
      %v7929 = vmax.f32 %v7796, %v7798
      %7930 = vmax.xlane.f32.xlu0 %v7929
      %v7931 = vpop.xlane.xlu0 %7930
      %v7932 = vmax.f32 %v7802, %v7804
      %7933 = vmax.xlane.f32.xlu0 %v7932
      %v7934 = vpop.xlane.xlu0 %7933
      %v7935 = vmax.f32 %v7806, %v7808
      %7936 = vmax.xlane.f32.xlu0 %v7935
      %v7937 = vpop.xlane.xlu0 %7936
      %v7938 = vmax.f32 %v7812, %v7814
      %7939 = vmax.xlane.f32.xlu0 %v7938
      %v7940 = vpop.xlane.xlu0 %7939
      %v7941 = vmax.f32 %v7816, %v7818
      %7942 = vmax.xlane.f32.xlu0 %v7941
      %v7943 = vpop.xlane.xlu0 %7942
      %v7944 = vmax.f32 %v7822, %v7824
      %7945 = vmax.xlane.f32.xlu0 %v7944
      %v7946 = vpop.xlane.xlu0 %7945
      %v7947 = vmax.f32 %v7826, %v7828
      %7948 = vmax.xlane.f32.xlu0 %v7947
      %v7949 = vpop.xlane.xlu0 %7948
      %v7950 = vmax.f32 %v7832, %v7834
      %7951 = vmax.xlane.f32.xlu0 %v7950
      %v7952 = vpop.xlane.xlu0 %7951
      %v7953 = vmax.f32 %v7836, %v7838
      %7954 = vmax.xlane.f32.xlu0 %v7953
      %v7955 = vpop.xlane.xlu0 %7954
      %v7956 = vmax.f32 %v7842, %v7844
      %7957 = vmax.xlane.f32.xlu0 %v7956
      %v7958 = vpop.xlane.xlu0 %7957
      %v7959 = vmax.f32 %v7846, %v7848
      %7960 = vmax.xlane.f32.xlu0 %v7959
      %v7961 = vpop.xlane.xlu0 %7960
      %v7962 = vmax.f32 %v7852, %v7854
      %7963 = vmax.xlane.f32.xlu0 %v7962
      %v7964 = vpop.xlane.xlu0 %7963
      %v7965 = vmax.f32 %v7856, %v7858
      %7966 = vmax.xlane.f32.xlu0 %v7965
      %v7967 = vpop.xlane.xlu0 %7966
      %v7968 = vmax.f32 %v7862, %v7864
      %7969 = vmax.xlane.f32.xlu0 %v7968
      %v7970 = vpop.xlane.xlu0 %7969
      %v7971 = vmax.f32 %v7866, %v7868
      %7972 = vmax.xlane.f32.xlu0 %v7971
      %v7973 = vpop.xlane.xlu0 %7972
      %v7974 = vmax.f32 %v7872, %v7874
      %7975 = vmax.xlane.f32.xlu0 %v7974
      %v7976 = vpop.xlane.xlu0 %7975
      %v7977 = vmax.f32 %v7876, %v7878
      %7978 = vmax.xlane.f32.xlu0 %v7977
      %v7979 = vpop.xlane.xlu0 %7978
      %v7980 = vmax.f32 %v7882, %v7884
      %7981 = vmax.xlane.f32.xlu0 %v7980
      %v7982 = vpop.xlane.xlu0 %7981
      %v7983 = vmax.f32 %v7886, %v7888
      %7984 = vmax.xlane.f32.xlu0 %v7983
      %v7985 = vpop.xlane.xlu0 %7984
      %v7986 = vsub.f32 %v7732, %v7892
      %v7987 = vsub.f32 %v7734, %v7892
      %v7988 = vsub.f32 %v7736, %v7895
      %v7989 = vsub.f32 %v7738, %v7895
      %v7990 = vsub.f32 %v7742, %v7898
      %v7991 = vsub.f32 %v7744, %v7898
      %v7992 = vsub.f32 %v7746, %v7901
      %v7993 = vsub.f32 %v7748, %v7901
      %v7994 = vsub.f32 %v7752, %v7904
      %v7995 = vsub.f32 %v7754, %v7904
      %v7996 = vsub.f32 %v7756, %v7907
      %v7997 = vsub.f32 %v7758, %v7907
      %v7998 = vsub.f32 %v7762, %v7910
      %v7999 = vsub.f32 %v7764, %v7910
      %v8000 = vsub.f32 %v7766, %v7913
      %v8001 = vsub.f32 %v7768, %v7913
      %v8002 = vsub.f32 %v7772, %v7916
      %v8003 = vsub.f32 %v7774, %v7916
      %v8004 = vsub.f32 %v7776, %v7919
      %v8005 = vsub.f32 %v7778, %v7919
      %v8006 = vsub.f32 %v7782, %v7922
      %v8007 = vsub.f32 %v7784, %v7922
      %v8008 = vsub.f32 %v7786, %v7925
      %v8009 = vsub.f32 %v7788, %v7925
      %v8010 = vsub.f32 %v7792, %v7928
      %v8011 = vsub.f32 %v7794, %v7928
      %v8012 = vsub.f32 %v7796, %v7931
      %v8013 = vsub.f32 %v7798, %v7931
      %v8014 = vsub.f32 %v7802, %v7934
      %v8015 = vsub.f32 %v7804, %v7934
      %v8016 = vsub.f32 %v7806, %v7937
      %v8017 = vsub.f32 %v7808, %v7937
      %v8018 = vsub.f32 %v7812, %v7940
      %v8019 = vsub.f32 %v7814, %v7940
      %v8020 = vsub.f32 %v7816, %v7943
      %v8021 = vsub.f32 %v7818, %v7943
      %v8022 = vsub.f32 %v7822, %v7946
      %v8023 = vsub.f32 %v7824, %v7946
      %v8024 = vsub.f32 %v7826, %v7949
      %v8025 = vsub.f32 %v7828, %v7949
      %v8026 = vsub.f32 %v7832, %v7952
      %v8027 = vsub.f32 %v7834, %v7952
      %v8028 = vsub.f32 %v7836, %v7955
      %v8029 = vsub.f32 %v7838, %v7955
      %v8030 = vsub.f32 %v7842, %v7958
      %v8031 = vsub.f32 %v7844, %v7958
      %v8032 = vsub.f32 %v7846, %v7961
      %v8033 = vsub.f32 %v7848, %v7961
      %v8034 = vsub.f32 %v7852, %v7964
      %v8035 = vsub.f32 %v7854, %v7964
      %v8036 = vsub.f32 %v7856, %v7967
      %v8037 = vsub.f32 %v7858, %v7967
      %v8038 = vsub.f32 %v7862, %v7970
      %v8039 = vsub.f32 %v7864, %v7970
      %v8040 = vsub.f32 %v7866, %v7973
      %v8041 = vsub.f32 %v7868, %v7973
      %v8042 = vsub.f32 %v7872, %v7976
      %v8043 = vsub.f32 %v7874, %v7976
      %v8044 = vsub.f32 %v7876, %v7979
      %v8045 = vsub.f32 %v7878, %v7979
      %v8046 = vsub.f32 %v7882, %v7982
      %v8047 = vsub.f32 %v7884, %v7982
      %v8048 = vsub.f32 %v7886, %v7985
      %v8049 = vsub.f32 %v7888, %v7985
      %v8050 = vmul.f32 %v7986, 1.442695
      %v8051 = vpow.pop %v8050
      %v8052 = vmul.f32 %v7987, 1.442695
      %v8053 = vpow.pop %v8052
      %v8054 = vmul.f32 %v7988, 1.442695
      %v8055 = vpow.pop %v8054
      %v8056 = vmul.f32 %v7989, 1.442695
      %v8057 = vpow.pop %v8056
      %v8058 = vmul.f32 %v7990, 1.442695
      %v8059 = vpow.pop %v8058
      %v8060 = vmul.f32 %v7991, 1.442695
      %v8061 = vpow.pop %v8060
      %v8062 = vmul.f32 %v7992, 1.442695
      %v8063 = vpow.pop %v8062
      %v8064 = vmul.f32 %v7993, 1.442695
      %v8065 = vpow.pop %v8064
      %v8066 = vmul.f32 %v7994, 1.442695
      %v8067 = vpow.pop %v8066
      %v8068 = vmul.f32 %v7995, 1.442695
      %v8069 = vpow.pop %v8068
      %v8070 = vmul.f32 %v7996, 1.442695
      %v8071 = vpow.pop %v8070
      %v8072 = vmul.f32 %v7997, 1.442695
      %v8073 = vpow.pop %v8072
      %v8074 = vmul.f32 %v7998, 1.442695
      %v8075 = vpow.pop %v8074
      %v8076 = vmul.f32 %v7999, 1.442695
      %v8077 = vpow.pop %v8076
      %v8078 = vmul.f32 %v8000, 1.442695
      %v8079 = vpow.pop %v8078
      %v8080 = vmul.f32 %v8001, 1.442695
      %v8081 = vpow.pop %v8080
      %v8082 = vmul.f32 %v8002, 1.442695
      %v8083 = vpow.pop %v8082
      %v8084 = vmul.f32 %v8003, 1.442695
      %v8085 = vpow.pop %v8084
      %v8086 = vmul.f32 %v8004, 1.442695
      %v8087 = vpow.pop %v8086
      %v8088 = vmul.f32 %v8005, 1.442695
      %v8089 = vpow.pop %v8088
      %v8090 = vmul.f32 %v8006, 1.442695
      %v8091 = vpow.pop %v8090
      %v8092 = vmul.f32 %v8007, 1.442695
      %v8093 = vpow.pop %v8092
      %v8094 = vmul.f32 %v8008, 1.442695
      %v8095 = vpow.pop %v8094
      %v8096 = vmul.f32 %v8009, 1.442695
      %v8097 = vpow.pop %v8096
      %v8098 = vmul.f32 %v8010, 1.442695
      %v8099 = vpow.pop %v8098
      %v8100 = vmul.f32 %v8011, 1.442695
      %v8101 = vpow.pop %v8100
      %v8102 = vmul.f32 %v8012, 1.442695
      %v8103 = vpow.pop %v8102
      %v8104 = vmul.f32 %v8013, 1.442695
      %v8105 = vpow.pop %v8104
      %v8106 = vmul.f32 %v8014, 1.442695
      %v8107 = vpow.pop %v8106
      %v8108 = vmul.f32 %v8015, 1.442695
      %v8109 = vpow.pop %v8108
      %v8110 = vmul.f32 %v8016, 1.442695
      %v8111 = vpow.pop %v8110
      %v8112 = vmul.f32 %v8017, 1.442695
      %v8113 = vpow.pop %v8112
      %v8114 = vmul.f32 %v8018, 1.442695
      %v8115 = vpow.pop %v8114
      %v8116 = vmul.f32 %v8019, 1.442695
      %v8117 = vpow.pop %v8116
      %v8118 = vmul.f32 %v8020, 1.442695
      %v8119 = vpow.pop %v8118
      %v8120 = vmul.f32 %v8021, 1.442695
      %v8121 = vpow.pop %v8120
      %v8122 = vmul.f32 %v8022, 1.442695
      %v8123 = vpow.pop %v8122
      %v8124 = vmul.f32 %v8023, 1.442695
      %v8125 = vpow.pop %v8124
      %v8126 = vmul.f32 %v8024, 1.442695
      %v8127 = vpow.pop %v8126
      %v8128 = vmul.f32 %v8025, 1.442695
      %v8129 = vpow.pop %v8128
      %v8130 = vmul.f32 %v8026, 1.442695
      %v8131 = vpow.pop %v8130
      %v8132 = vmul.f32 %v8027, 1.442695
      %v8133 = vpow.pop %v8132
      %v8134 = vmul.f32 %v8028, 1.442695
      %v8135 = vpow.pop %v8134
      %v8136 = vmul.f32 %v8029, 1.442695
      %v8137 = vpow.pop %v8136
      %v8138 = vmul.f32 %v8030, 1.442695
      %v8139 = vpow.pop %v8138
      %v8140 = vmul.f32 %v8031, 1.442695
      %v8141 = vpow.pop %v8140
      %v8142 = vmul.f32 %v8032, 1.442695
      %v8143 = vpow.pop %v8142
      %v8144 = vmul.f32 %v8033, 1.442695
      %v8145 = vpow.pop %v8144
      %v8146 = vmul.f32 %v8034, 1.442695
      %v8147 = vpow.pop %v8146
      %v8148 = vmul.f32 %v8035, 1.442695
      %v8149 = vpow.pop %v8148
      %v8150 = vmul.f32 %v8036, 1.442695
      %v8151 = vpow.pop %v8150
      %v8152 = vmul.f32 %v8037, 1.442695
      %v8153 = vpow.pop %v8152
      %v8154 = vmul.f32 %v8038, 1.442695
      %v8155 = vpow.pop %v8154
      %v8156 = vmul.f32 %v8039, 1.442695
      %v8157 = vpow.pop %v8156
      %v8158 = vmul.f32 %v8040, 1.442695
      %v8159 = vpow.pop %v8158
      %v8160 = vmul.f32 %v8041, 1.442695
      %v8161 = vpow.pop %v8160
      %v8162 = vmul.f32 %v8042, 1.442695
      %v8163 = vpow.pop %v8162
      %v8164 = vmul.f32 %v8043, 1.442695
      %v8165 = vpow.pop %v8164
      %v8166 = vmul.f32 %v8044, 1.442695
      %v8167 = vpow.pop %v8166
      %v8168 = vmul.f32 %v8045, 1.442695
      %v8169 = vpow.pop %v8168
      %v8170 = vmul.f32 %v8046, 1.442695
      %v8171 = vpow.pop %v8170
      %v8172 = vmul.f32 %v8047, 1.442695
      %v8173 = vpow.pop %v8172
      %v8174 = vmul.f32 %v8048, 1.442695
      %v8175 = vpow.pop %v8174
      %v8176 = vmul.f32 %v8049, 1.442695
      %v8177 = vpow.pop %v8176
      %v8178 = vpack.c.bf16 %v8055, %v8051
      %v8179 = vpack.c.bf16 %v8057, %v8053
      %v8180 = vpack.c.bf16 %v8063, %v8059
      %v8181 = vpack.c.bf16 %v8065, %v8061
      %v8182 = vpack.c.bf16 %v8071, %v8067
      %v8183 = vpack.c.bf16 %v8073, %v8069
      %v8184 = vpack.c.bf16 %v8079, %v8075
      %v8185 = vpack.c.bf16 %v8081, %v8077
      %v8186 = vpack.c.bf16 %v8087, %v8083
      %v8187 = vpack.c.bf16 %v8089, %v8085
      %v8188 = vpack.c.bf16 %v8095, %v8091
      %v8189 = vpack.c.bf16 %v8097, %v8093
      %v8190 = vpack.c.bf16 %v8103, %v8099
      %v8191 = vpack.c.bf16 %v8105, %v8101
      %v8192 = vpack.c.bf16 %v8111, %v8107
      %v8193 = vpack.c.bf16 %v8113, %v8109
      %v8194 = vpack.c.bf16 %v8119, %v8115
      %v8195 = vpack.c.bf16 %v8121, %v8117
      %v8196 = vpack.c.bf16 %v8127, %v8123
      %v8197 = vpack.c.bf16 %v8129, %v8125
      %v8198 = vpack.c.bf16 %v8135, %v8131
      %v8199 = vpack.c.bf16 %v8137, %v8133
      %v8200 = vpack.c.bf16 %v8143, %v8139
      %v8201 = vpack.c.bf16 %v8145, %v8141
      %v8202 = vpack.c.bf16 %v8151, %v8147
      %v8203 = vpack.c.bf16 %v8153, %v8149
      %v8204 = vpack.c.bf16 %v8159, %v8155
      %v8205 = vpack.c.bf16 %v8161, %v8157
      %v8206 = vpack.c.bf16 %v8167, %v8163
      %v8207 = vpack.c.bf16 %v8169, %v8165
      %v8208 = vpack.c.bf16 %v8175, %v8171
      %v8209 = vpack.c.bf16 %v8177, %v8173
      %v8212 = vrot.slane %v6718, 2
      %v8213 = vrot.slane %v6719, 2
      %8216 = vmatprep.subr.bf16.mxu0 %v8179
      %8217 = vmatpush1.bf16.xpose.msra.mxu0 %v8178
      %8218 = vmatprep.subr.bf16.mxu0 %v8181
      %8219 = vmatpush1.bf16.xpose.msra.mxu0 %v8180
      %8220 = vmatprep.subr.bf16.mxu0 %v8183
      %8221 = vmatpush1.bf16.xpose.msra.mxu0 %v8182
      %8222 = vmatprep.subr.bf16.mxu0 %v8185
      %8223 = vmatpush1.bf16.xpose.msra.mxu0 %v8184
      %8224 = vmatprep.subr.bf16.mxu0 %v8187
      %8225 = vmatpush1.bf16.xpose.msra.mxu0 %v8186
      %8226 = vmatprep.subr.bf16.mxu0 %v8189
      %8227 = vmatpush1.bf16.xpose.msra.mxu0 %v8188
      %8228 = vmatprep.subr.bf16.mxu0 %v8191
      %8229 = vmatpush1.bf16.xpose.msra.mxu0 %v8190
      %8230 = vmatprep.subr.bf16.mxu0 %v8193
      %8231 = vmatpush1.bf16.xpose.msra.mxu0 %v8192
      %8232 = vmatprep.subr.bf16.mxu0 %v8195
      %8233 = vmatpush1.bf16.xpose.msra.mxu0 %v8194
      %8234 = vmatprep.subr.bf16.mxu0 %v8197
      %8235 = vmatpush1.bf16.xpose.msra.mxu0 %v8196
      %8236 = vmatprep.subr.bf16.mxu0 %v8199
      %8237 = vmatpush1.bf16.xpose.msra.mxu0 %v8198
      %8238 = vmatprep.subr.bf16.mxu0 %v8201
      %8239 = vmatpush1.bf16.xpose.msra.mxu0 %v8200
      %8240 = vmatprep.subr.bf16.mxu0 %v8203
      %8241 = vmatpush1.bf16.xpose.msra.mxu0 %v8202
      %8242 = vmatprep.subr.bf16.mxu0 %v8205
      %8243 = vmatpush1.bf16.xpose.msra.mxu0 %v8204
      %8244 = vmatprep.subr.bf16.mxu0 %v8207
      %8245 = vmatpush1.bf16.xpose.msra.mxu0 %v8206
      %8246 = vmatprep.subr.bf16.mxu0 %v8209
      %8247 = vmatpush1.bf16.xpose.msra.mxu0 %v8208
      %8248 = vmatprep.mubr.bf16.mxu0 %v8213
      %8249 = vmatmul.mubr.bf16.gmra.mrb[0].mxu0 %v8212
      %v8250 = vpop.f32.mrb[0].mxu0
      %v8251 = vadd.f32 0.0, %v8250
      %v8252 = vpop.f32.mrb[0].mxu0
      %v8253 = vadd.f32 0.0, %v8252
      %v8254 = vpop.f32.mrb[0].mxu0
      %v8255 = vpop.f32.mrb[0].mxu0
      %8256 = vdwg.mxu0
      %8257 = vmatprep.subr.bf16.mxu0 %v8179
      %8258 = vmatpush1.bf16.xpose.msra.mxu0 %v8178
      %8259 = vmatprep.subr.bf16.mxu0 %v8181
      %8260 = vmatpush1.bf16.xpose.msra.mxu0 %v8180
      %8261 = vmatprep.subr.bf16.mxu0 %v8183
      %8262 = vmatpush1.bf16.xpose.msra.mxu0 %v8182
      %8263 = vmatprep.subr.bf16.mxu0 %v8185
      %8264 = vmatpush1.bf16.xpose.msra.mxu0 %v8184
      %8265 = vmatprep.subr.bf16.mxu0 %v8187
      %8266 = vmatpush1.bf16.xpose.msra.mxu0 %v8186
      %8267 = vmatprep.subr.bf16.mxu0 %v8189
      %8268 = vmatpush1.bf16.xpose.msra.mxu0 %v8188
      %8269 = vmatprep.subr.bf16.mxu0 %v8191
      %8270 = vmatpush1.bf16.xpose.msra.mxu0 %v8190
      %8271 = vmatprep.subr.bf16.mxu0 %v8193
      %8272 = vmatpush1.bf16.xpose.msra.mxu0 %v8192
      %8273 = vmatprep.subr.bf16.mxu0 %v8195
      %8274 = vmatpush1.bf16.xpose.msra.mxu0 %v8194
      %8275 = vmatprep.subr.bf16.mxu0 %v8197
      %8276 = vmatpush1.bf16.xpose.msra.mxu0 %v8196
      %8277 = vmatprep.subr.bf16.mxu0 %v8199
      %8278 = vmatpush1.bf16.xpose.msra.mxu0 %v8198
      %8279 = vmatprep.subr.bf16.mxu0 %v8201
      %8280 = vmatpush1.bf16.xpose.msra.mxu0 %v8200
      %8281 = vmatprep.subr.bf16.mxu0 %v8203
      %8282 = vmatpush1.bf16.xpose.msra.mxu0 %v8202
      %8283 = vmatprep.subr.bf16.mxu0 %v8205
      %8284 = vmatpush1.bf16.xpose.msra.mxu0 %v8204
      %8285 = vmatprep.subr.bf16.mxu0 %v8207
      %8286 = vmatpush1.bf16.xpose.msra.mxu0 %v8206
      %8287 = vmatprep.subr.bf16.mxu0 %v8209
      %8288 = vmatpush1.bf16.xpose.msra.mxu0 %v8208
      %8289 = vmatprep.mubr.bf16.mxu0 1065369472
      %8290 = vmatmul.mubr.bf16.gmra.mrb[0].mxu0 1065369472
      %v8291 = vpop.f32.mrb[0].mxu0
      %v8292 = vadd.f32 0.0, %v8291
      %v8293 = vpop.f32.mrb[0].mxu0
      %v8294 = vadd.f32 0.0, %v8293
      %v8295 = vpop.f32.mrb[0].mxu0
      %v8296 = vpop.f32.mrb[0].mxu0
      %8297 = vdwg.mxu0
      %v8298 = vrcp.pop %v8292
      %v8299 = vrcp.pop %v8294
      %v8300 = vlaneseq
      %v8301 = vshrl.u32 %v8300, 7
      %v8302 = vsub.s32 0, %v8301
      %v8303 = vrot.slane %v8298, %v8302
      %v8304 = vlaneseq
      %v8305 = vshrl.u32 %v8304, 7
      %v8306 = vsub.s32 0, %v8305
      %v8307 = vrot.slane %v8299, %v8306
      %v8308 = vmul.f32 %v8251, %v8303
      %v8309 = vmul.f32 %v8253, %v8307
      %v8312 = vrot.slane %v6714, 4
      %v8313 = vrot.slane %v6715, 4
      %v8318 = vrot.slane %v8308, 4
      %v8319 = vrot.slane %v8309, 4
      %v8322 = vsel %vm4306, %v5898, %v8312
      %v8323 = vsel %vm4306, %v5899, %v8313
      %v8324 = vsel %vm4306, %v7508, %v8318
      %v8325 = vsel %vm4306, %v7509, %v8319
      %v8326 = vld [vmem:[%s35] sm:$0xf]
      %v8327 = vld [vmem:[%s35 + $0x4] sm:$0xf]
      %v8328 = vpack.c.bf16 %v8324, %v8322
      %v8329 = vpack.c.bf16 %v8325, %v8323
      %v8330 = vld [vmem:[%s37] sm:$0xff]
      %v8331 = vld [vmem:[%s37 + $0x8] sm:$0xff]
      %8333 = vset.pattern.permute.xlu0 0
      %8334 = vperm.xlu0 %8333, %v8330
      %v8335 = vpop.permute.xlu0 %8334
      %8338 = vset.pattern.permute.xlu0 0
      %8339 = vperm.xlu0 %8338, %v8331
      %v8340 = vpop.permute.xlu0 %8339
      %v8344 = vunpack.c.l.b16 %v8326
      %v8345 = vunpack.c.l.b16 %v8327
      %v8346 = vpack.c.b16 %v8345, %v8344
      %v8348 = vsel %vm968, %v8346, 0
      %8350 = vmatprep.subr.bf16.mxu0 %v8329
      %8351 = vmatpush1.bf16.msra.mxu0 %v8328
      %8352 = vmatprep.subr.bf16.mxu0 0
      %8353 = vmatpush1.bf16.msra.mxu0 0
      %8354 = vmatprep.subr.bf16.mxu0 0
      %8355 = vmatpush1.bf16.msra.mxu0 0
      %8356 = vmatprep.subr.bf16.mxu0 0
      %8357 = vmatpush1.bf16.msra.mxu0 0
      %8358 = vmatprep.subr.bf16.mxu0 0
      %8359 = vmatpush1.bf16.msra.mxu0 0
      %8360 = vmatprep.subr.bf16.mxu0 0
      %8361 = vmatpush1.bf16.msra.mxu0 0
      %8362 = vmatprep.subr.bf16.mxu0 0
      %8363 = vmatpush1.bf16.msra.mxu0 0
      %8364 = vmatprep.subr.bf16.mxu0 0
      %8365 = vmatpush1.bf16.msra.mxu0 0
      %8366 = vmatprep.subr.bf16.mxu0 0
      %8367 = vmatpush1.bf16.msra.mxu0 0
      %8368 = vmatprep.subr.bf16.mxu0 0
      %8369 = vmatpush1.bf16.msra.mxu0 0
      %8370 = vmatprep.subr.bf16.mxu0 0
      %8371 = vmatpush1.bf16.msra.mxu0 0
      %8372 = vmatprep.subr.bf16.mxu0 0
      %8373 = vmatpush1.bf16.msra.mxu0 0
      %8374 = vmatprep.subr.bf16.mxu0 0
      %8375 = vmatpush1.bf16.msra.mxu0 0
      %8376 = vmatprep.subr.bf16.mxu0 0
      %8377 = vmatpush1.bf16.msra.mxu0 0
      %8378 = vmatprep.subr.bf16.mxu0 0
      %8379 = vmatpush1.bf16.msra.mxu0 0
      %8380 = vmatprep.subr.bf16.mxu0 0
      %8381 = vmatpush1.bf16.msra.mxu0 0
      %8382 = vmatprep.mubr.bf16.mxu0 0
      %8383 = vmatmul.mubr.bf16.gmra.mrb[0].mxu0 %v8348
      %v8384 = vpop.f32.mrb[0].mxu0
      %v8385 = vadd.f32 %v8335, %v8384
      %v8386 = vpop.f32.mrb[0].mxu0
      %v8387 = vadd.f32 %v8335, %v8386
      %v8388 = vpop.f32.mrb[0].mxu0
      %v8389 = vadd.f32 %v8340, %v8388
      %v8390 = vpop.f32.mrb[0].mxu0
      %v8391 = vadd.f32 %v8340, %v8390
      %8392 = vdwg.mxu0
      %v8393 = vadd.f32 %v8385, %v8389
      %v8394 = vrot.slane %v8393, 4
      %v8395 = vadd.f32 %v8393, %v8394
      %v8396 = vrot.slane %v8395, 2
      %v8397 = vadd.f32 %v8395, %v8396
      %v8398 = vrot.slane %v8397, 1
      %v8399 = vadd.f32 %v8397, %v8398
      %v8400 = vadd.f32 %v8387, %v8391
      %v8401 = vrot.slane %v8400, 4
      %v8402 = vadd.f32 %v8400, %v8401
      %v8403 = vrot.slane %v8402, 2
      %v8404 = vadd.f32 %v8402, %v8403
      %v8405 = vrot.slane %v8404, 1
      %v8406 = vadd.f32 %v8404, %v8405
      %v8407 = vmul.f32 %v8399, %v4392
      %v8408 = vmul.f32 %v8406, %v4392
      %v8409 = vsub.f32 %v8385, %v8407
      %v8410 = vsub.f32 %v8387, %v8408
      %v8411 = vsub.f32 %v8389, %v8407
      %v8412 = vsub.f32 %v8391, %v8408
      %v8413 = vmul.f32 %v8409, %v8409
      %v8414 = vmul.f32 %v8410, %v8410
      %v8415 = vmul.f32 %v8411, %v8411
      %v8416 = vmul.f32 %v8412, %v8412
      %v8417 = vadd.f32 %v8413, %v8415
      %v8418 = vrot.slane %v8417, 4
      %v8419 = vadd.f32 %v8417, %v8418
      %v8420 = vrot.slane %v8419, 2
      %v8421 = vadd.f32 %v8419, %v8420
      %v8422 = vrot.slane %v8421, 1
      %v8423 = vadd.f32 %v8421, %v8422
      %v8424 = vadd.f32 %v8414, %v8416
      %v8425 = vrot.slane %v8424, 4
      %v8426 = vadd.f32 %v8424, %v8425
      %v8427 = vrot.slane %v8426, 2
      %v8428 = vadd.f32 %v8426, %v8427
      %v8429 = vrot.slane %v8428, 1
      %v8430 = vadd.f32 %v8428, %v8429
      %v8431 = vmul.f32 %v8423, %v4392
      %v8432 = vmul.f32 %v8430, %v4392
      %v8433 = vadd.f32 %v8431, 1e-05
      %v8434 = vadd.f32 %v8432, 1e-05
      %v8435 = vrsqrt.pop %v8433
      %v8436 = vrsqrt.pop %v8434
      %v8437 = vmul.f32 %v8409, %v8435
      %v8438 = vmul.f32 %v8410, %v8436
      %v8439 = vmul.f32 %v8411, %v8435
      %v8440 = vmul.f32 %v8412, %v8436
      %v8441 = vld [vmem:[%s39] sm:$0xff]
      %v8442 = vld [vmem:[%s39 + $0x8] sm:$0xff]
      %8444 = vset.pattern.permute.xlu0 0
      %8445 = vperm.xlu0 %8444, %v8441
      %v8446 = vpop.permute.xlu0 %8445
      %8449 = vset.pattern.permute.xlu0 0
      %8450 = vperm.xlu0 %8449, %v8442
      %v8451 = vpop.permute.xlu0 %8450
      %v8453 = vmul.f32 %v8437, %v8446
      %v8454 = vmul.f32 %v8438, %v8446
      %v8455 = vmul.f32 %v8439, %v8451
      %v8456 = vmul.f32 %v8440, %v8451
      %v8457 = vld [vmem:[%s41] sm:$0xff]
      %v8458 = vld [vmem:[%s41 + $0x8] sm:$0xff]
      %8460 = vset.pattern.permute.xlu0 0
      %8461 = vperm.xlu0 %8460, %v8457
      %v8462 = vpop.permute.xlu0 %8461
      %8465 = vset.pattern.permute.xlu0 0
      %8466 = vperm.xlu0 %8465, %v8458
      %v8467 = vpop.permute.xlu0 %8466
      %v8469 = vadd.f32 %v8453, %v8462
      %v8470 = vadd.f32 %v8454, %v8462
      %v8471 = vadd.f32 %v8455, %v8467
      %v8472 = vadd.f32 %v8456, %v8467
      %v8473 = vadd.f32 %v4924, %v8469
      %v8474 = vadd.f32 %v4925, %v8470
      %v8475 = vadd.f32 %v4926, %v8471
      %v8476 = vadd.f32 %v4927, %v8472
      %v8477 = vld [vmem:[%s43] sm:$0xf]
      %v8478 = vld [vmem:[%s43 + $0x4] sm:$0xf]
      %v8479 = vld [vmem:[%s43 + $0x8] sm:$0xf]
      %v8480 = vld [vmem:[%s43 + $0xc] sm:$0xf]
      %v8481 = vld [vmem:[%s43 + $0x10] sm:$0xf]
      %v8482 = vld [vmem:[%s43 + $0x14] sm:$0xf]
      %v8483 = vld [vmem:[%s43 + $0x18] sm:$0xf]
      %v8484 = vld [vmem:[%s43 + $0x1c] sm:$0xf]
      %v8485 = vpack.c.bf16 %v8475, %v8473
      %v8486 = vpack.c.bf16 %v8476, %v8474
      %v8487 = vld [vmem:[%s45] sm:$0xff]
      %v8488 = vld [vmem:[%s45 + $0x8] sm:$0xff]
      %v8489 = vld [vmem:[%s45 + $0x10] sm:$0xff]
      %v8490 = vld [vmem:[%s45 + $0x18] sm:$0xff]
      %v8491 = vld [vmem:[%s45 + $0x20] sm:$0xff]
      %v8492 = vld [vmem:[%s45 + $0x28] sm:$0xff]
      %v8493 = vld [vmem:[%s45 + $0x30] sm:$0xff]
      %v8494 = vld [vmem:[%s45 + $0x38] sm:$0xff]
      %8496 = vset.pattern.permute.xlu0 0
      %8497 = vperm.xlu0 %8496, %v8487
      %v8498 = vpop.permute.xlu0 %8497
      %8501 = vset.pattern.permute.xlu0 0
      %8502 = vperm.xlu0 %8501, %v8488
      %v8503 = vpop.permute.xlu0 %8502
      %8506 = vset.pattern.permute.xlu0 0
      %8507 = vperm.xlu0 %8506, %v8489
      %v8508 = vpop.permute.xlu0 %8507
      %8511 = vset.pattern.permute.xlu0 0
      %8512 = vperm.xlu0 %8511, %v8490
      %v8513 = vpop.permute.xlu0 %8512
      %8516 = vset.pattern.permute.xlu0 0
      %8517 = vperm.xlu0 %8516, %v8491
      %v8518 = vpop.permute.xlu0 %8517
      %8521 = vset.pattern.permute.xlu0 0
      %8522 = vperm.xlu0 %8521, %v8492
      %v8523 = vpop.permute.xlu0 %8522
      %8526 = vset.pattern.permute.xlu0 0
      %8527 = vperm.xlu0 %8526, %v8493
      %v8528 = vpop.permute.xlu0 %8527
      %8531 = vset.pattern.permute.xlu0 0
      %8532 = vperm.xlu0 %8531, %v8494
      %v8533 = vpop.permute.xlu0 %8532
      %v8543 = vunpack.c.l.b16 %v8477
      %v8544 = vunpack.c.l.b16 %v8478
      %v8545 = vunpack.c.l.b16 %v8479
      %v8546 = vunpack.c.l.b16 %v8480
      %v8547 = vunpack.c.l.b16 %v8481
      %v8548 = vunpack.c.l.b16 %v8482
      %v8549 = vunpack.c.l.b16 %v8483
      %v8550 = vunpack.c.l.b16 %v8484
      %v8551 = vpack.c.b16 %v8544, %v8543
      %v8552 = vpack.c.b16 %v8546, %v8545
      %v8553 = vpack.c.b16 %v8548, %v8547
      %v8554 = vpack.c.b16 %v8550, %v8549
      %v8556 = vsel %vm968, %v8551, 0
      %v8559 = vsel %vm968, %v8552, 0
      %v8562 = vsel %vm968, %v8553, 0
      %v8565 = vsel %vm968, %v8554, 0
      %8567 = vmatprep.subr.bf16.mxu0 %v8486
      %8568 = vmatpush1.bf16.msra.mxu0 %v8485
      %8569 = vmatprep.subr.bf16.mxu0 0
      %8570 = vmatpush1.bf16.msra.mxu0 0
      %8571 = vmatprep.subr.bf16.mxu0 0
      %8572 = vmatpush1.bf16.msra.mxu0 0
      %8573 = vmatprep.subr.bf16.mxu0 0
      %8574 = vmatpush1.bf16.msra.mxu0 0
      %8575 = vmatprep.subr.bf16.mxu0 0
      %8576 = vmatpush1.bf16.msra.mxu0 0
      %8577 = vmatprep.subr.bf16.mxu0 0
      %8578 = vmatpush1.bf16.msra.mxu0 0
      %8579 = vmatprep.subr.bf16.mxu0 0
      %8580 = vmatpush1.bf16.msra.mxu0 0
      %8581 = vmatprep.subr.bf16.mxu0 0
      %8582 = vmatpush1.bf16.msra.mxu0 0
      %8583 = vmatprep.subr.bf16.mxu0 0
      %8584 = vmatpush1.bf16.msra.mxu0 0
      %8585 = vmatprep.subr.bf16.mxu0 0
      %8586 = vmatpush1.bf16.msra.mxu0 0
      %8587 = vmatprep.subr.bf16.mxu0 0
      %8588 = vmatpush1.bf16.msra.mxu0 0
      %8589 = vmatprep.subr.bf16.mxu0 0
      %8590 = vmatpush1.bf16.msra.mxu0 0
      %8591 = vmatprep.subr.bf16.mxu0 0
      %8592 = vmatpush1.bf16.msra.mxu0 0
      %8593 = vmatprep.subr.bf16.mxu0 0
      %8594 = vmatpush1.bf16.msra.mxu0 0
      %8595 = vmatprep.subr.bf16.mxu0 0
      %8596 = vmatpush1.bf16.msra.mxu0 0
      %8597 = vmatprep.subr.bf16.mxu0 0
      %8598 = vmatpush1.bf16.msra.mxu0 0
      %8599 = vmatprep.mubr.bf16.mxu0 0
      %8600 = vmatmul.mubr.bf16.gmra.mrb[0].mxu0 %v8556
      %v8601 = vpop.f32.mrb[0].mxu0
      %v8602 = vadd.f32 %v8498, %v8601
      %v8603 = vpop.f32.mrb[0].mxu0
      %v8604 = vadd.f32 %v8498, %v8603
      %v8605 = vpop.f32.mrb[0].mxu0
      %v8606 = vadd.f32 %v8503, %v8605
      %v8607 = vpop.f32.mrb[0].mxu0
      %v8608 = vadd.f32 %v8503, %v8607
      %8609 = vmatprep.mubr.bf16.mxu0 0
      %8610 = vmatmul.mubr.bf16.gmra.mrb[0].mxu0 %v8559
      %v8611 = vpop.f32.mrb[0].mxu0
      %v8612 = vadd.f32 %v8508, %v8611
      %v8613 = vpop.f32.mrb[0].mxu0
      %v8614 = vadd.f32 %v8508, %v8613
      %v8615 = vpop.f32.mrb[0].mxu0
      %v8616 = vadd.f32 %v8513, %v8615
      %v8617 = vpop.f32.mrb[0].mxu0
      %v8618 = vadd.f32 %v8513, %v8617
      %8619 = vmatprep.mubr.bf16.mxu0 0
      %8620 = vmatmul.mubr.bf16.gmra.mrb[0].mxu0 %v8562
      %v8621 = vpop.f32.mrb[0].mxu0
      %v8622 = vadd.f32 %v8518, %v8621
      %v8623 = vpop.f32.mrb[0].mxu0
      %v8624 = vadd.f32 %v8518, %v8623
      %v8625 = vpop.f32.mrb[0].mxu0
      %v8626 = vadd.f32 %v8523, %v8625
      %v8627 = vpop.f32.mrb[0].mxu0
      %v8628 = vadd.f32 %v8523, %v8627
      %8629 = vmatprep.mubr.bf16.mxu0 0
      %8630 = vmatmul.mubr.bf16.gmra.mrb[0].mxu0 %v8565
      %v8631 = vpop.f32.mrb[0].mxu0
      %v8632 = vadd.f32 %v8528, %v8631
      %v8633 = vpop.f32.mrb[0].mxu0
      %v8634 = vadd.f32 %v8528, %v8633
      %v8635 = vpop.f32.mrb[0].mxu0
      %v8636 = vadd.f32 %v8533, %v8635
      %v8637 = vpop.f32.mrb[0].mxu0
      %v8638 = vadd.f32 %v8533, %v8637
      %8639 = vdwg.mxu0
      %v8640 = vmul.f32 %v8602, 0.5
      %v8641 = vmul.f32 %v8604, 0.5
      %v8642 = vmul.f32 %v8606, 0.5
      %v8643 = vmul.f32 %v8608, 0.5
      %v8644 = vmul.f32 %v8612, 0.5
      %v8645 = vmul.f32 %v8614, 0.5
      %v8646 = vmul.f32 %v8616, 0.5
      %v8647 = vmul.f32 %v8618, 0.5
      %v8648 = vmul.f32 %v8622, 0.5
      %v8649 = vmul.f32 %v8624, 0.5
      %v8650 = vmul.f32 %v8626, 0.5
      %v8651 = vmul.f32 %v8628, 0.5
      %v8652 = vmul.f32 %v8632, 0.5
      %v8653 = vmul.f32 %v8634, 0.5
      %v8654 = vmul.f32 %v8636, 0.5
      %v8655 = vmul.f32 %v8638, 0.5
      %v8656 = vmul.f32 %v8602, %v8602
      %v8657 = vmul.f32 %v8604, %v8604
      %v8658 = vmul.f32 %v8606, %v8606
      %v8659 = vmul.f32 %v8608, %v8608
      %v8660 = vmul.f32 %v8612, %v8612
      %v8661 = vmul.f32 %v8614, %v8614
      %v8662 = vmul.f32 %v8616, %v8616
      %v8663 = vmul.f32 %v8618, %v8618
      %v8664 = vmul.f32 %v8622, %v8622
      %v8665 = vmul.f32 %v8624, %v8624
      %v8666 = vmul.f32 %v8626, %v8626
      %v8667 = vmul.f32 %v8628, %v8628
      %v8668 = vmul.f32 %v8632, %v8632
      %v8669 = vmul.f32 %v8634, %v8634
      %v8670 = vmul.f32 %v8636, %v8636
      %v8671 = vmul.f32 %v8638, %v8638
      %v8672 = vmul.f32 %v8656, %v8602
      %v8673 = vmul.f32 %v8657, %v8604
      %v8674 = vmul.f32 %v8658, %v8606
      %v8675 = vmul.f32 %v8659, %v8608
      %v8676 = vmul.f32 %v8660, %v8612
      %v8677 = vmul.f32 %v8661, %v8614
      %v8678 = vmul.f32 %v8662, %v8616
      %v8679 = vmul.f32 %v8663, %v8618
      %v8680 = vmul.f32 %v8664, %v8622
      %v8681 = vmul.f32 %v8665, %v8624
      %v8682 = vmul.f32 %v8666, %v8626
      %v8683 = vmul.f32 %v8667, %v8628
      %v8684 = vmul.f32 %v8668, %v8632
      %v8685 = vmul.f32 %v8669, %v8634
      %v8686 = vmul.f32 %v8670, %v8636
      %v8687 = vmul.f32 %v8671, %v8638
      %v8688 = vmul.f32 %v8672, 0.044715
      %v8689 = vmul.f32 %v8673, 0.044715
      %v8690 = vmul.f32 %v8674, 0.044715
      %v8691 = vmul.f32 %v8675, 0.044715
      %v8692 = vmul.f32 %v8676, 0.044715
      %v8693 = vmul.f32 %v8677, 0.044715
      %v8694 = vmul.f32 %v8678, 0.044715
      %v8695 = vmul.f32 %v8679, 0.044715
      %v8696 = vmul.f32 %v8680, 0.044715
      %v8697 = vmul.f32 %v8681, 0.044715
      %v8698 = vmul.f32 %v8682, 0.044715
      %v8699 = vmul.f32 %v8683, 0.044715
      %v8700 = vmul.f32 %v8684, 0.044715
      %v8701 = vmul.f32 %v8685, 0.044715
      %v8702 = vmul.f32 %v8686, 0.044715
      %v8703 = vmul.f32 %v8687, 0.044715
      %v8704 = vadd.f32 %v8602, %v8688
      %v8705 = vadd.f32 %v8604, %v8689
      %v8706 = vadd.f32 %v8606, %v8690
      %v8707 = vadd.f32 %v8608, %v8691
      %v8708 = vadd.f32 %v8612, %v8692
      %v8709 = vadd.f32 %v8614, %v8693
      %v8710 = vadd.f32 %v8616, %v8694
      %v8711 = vadd.f32 %v8618, %v8695
      %v8712 = vadd.f32 %v8622, %v8696
      %v8713 = vadd.f32 %v8624, %v8697
      %v8714 = vadd.f32 %v8626, %v8698
      %v8715 = vadd.f32 %v8628, %v8699
      %v8716 = vadd.f32 %v8632, %v8700
      %v8717 = vadd.f32 %v8634, %v8701
      %v8718 = vadd.f32 %v8636, %v8702
      %v8719 = vadd.f32 %v8638, %v8703
      %v8720 = vmul.f32 %v8704, 0.7978846
      %v8721 = vmul.f32 %v8705, 0.7978846
      %v8722 = vmul.f32 %v8706, 0.7978846
      %v8723 = vmul.f32 %v8707, 0.7978846
      %v8724 = vmul.f32 %v8708, 0.7978846
      %v8725 = vmul.f32 %v8709, 0.7978846
      %v8726 = vmul.f32 %v8710, 0.7978846
      %v8727 = vmul.f32 %v8711, 0.7978846
      %v8728 = vmul.f32 %v8712, 0.7978846
      %v8729 = vmul.f32 %v8713, 0.7978846
      %v8730 = vmul.f32 %v8714, 0.7978846
      %v8731 = vmul.f32 %v8715, 0.7978846
      %v8732 = vmul.f32 %v8716, 0.7978846
      %v8733 = vmul.f32 %v8717, 0.7978846
      %v8734 = vmul.f32 %v8718, 0.7978846
      %v8735 = vmul.f32 %v8719, 0.7978846
      %v8736 = vtanh.pop %v8720
      %v8737 = vtanh.pop %v8721
      %v8738 = vtanh.pop %v8722
      %v8739 = vtanh.pop %v8723
      %v8740 = vtanh.pop %v8724
      %v8741 = vtanh.pop %v8725
      %v8742 = vtanh.pop %v8726
      %v8743 = vtanh.pop %v8727
      %v8744 = vtanh.pop %v8728
      %v8745 = vtanh.pop %v8729
      %v8746 = vtanh.pop %v8730
      %v8747 = vtanh.pop %v8731
      %v8748 = vtanh.pop %v8732
      %v8749 = vtanh.pop %v8733
      %v8750 = vtanh.pop %v8734
      %v8751 = vtanh.pop %v8735
      %v8752 = vadd.f32 %v8736, 1.0
      %v8753 = vadd.f32 %v8737, 1.0
      %v8754 = vadd.f32 %v8738, 1.0
      %v8755 = vadd.f32 %v8739, 1.0
      %v8756 = vadd.f32 %v8740, 1.0
      %v8757 = vadd.f32 %v8741, 1.0
      %v8758 = vadd.f32 %v8742, 1.0
      %v8759 = vadd.f32 %v8743, 1.0
      %v8760 = vadd.f32 %v8744, 1.0
      %v8761 = vadd.f32 %v8745, 1.0
      %v8762 = vadd.f32 %v8746, 1.0
      %v8763 = vadd.f32 %v8747, 1.0
      %v8764 = vadd.f32 %v8748, 1.0
      %v8765 = vadd.f32 %v8749, 1.0
      %v8766 = vadd.f32 %v8750, 1.0
      %v8767 = vadd.f32 %v8751, 1.0
      %v8768 = vmul.f32 %v8640, %v8752
      %v8769 = vmul.f32 %v8641, %v8753
      %v8770 = vmul.f32 %v8642, %v8754
      %v8771 = vmul.f32 %v8643, %v8755
      %v8772 = vmul.f32 %v8644, %v8756
      %v8773 = vmul.f32 %v8645, %v8757
      %v8774 = vmul.f32 %v8646, %v8758
      %v8775 = vmul.f32 %v8647, %v8759
      %v8776 = vmul.f32 %v8648, %v8760
      %v8777 = vmul.f32 %v8649, %v8761
      %v8778 = vmul.f32 %v8650, %v8762
      %v8779 = vmul.f32 %v8651, %v8763
      %v8780 = vmul.f32 %v8652, %v8764
      %v8781 = vmul.f32 %v8653, %v8765
      %v8782 = vmul.f32 %v8654, %v8766
      %v8783 = vmul.f32 %v8655, %v8767
      %v8784 = vld [vmem:[%s47] sm:$0xf]
      %v8785 = vld [vmem:[%s47 + $0x4] sm:$0xf]
      %v8786 = vpack.c.bf16 %v8770, %v8768
      %v8787 = vpack.c.bf16 %v8771, %v8769
      %v8788 = vpack.c.bf16 %v8774, %v8772
      %v8789 = vpack.c.bf16 %v8775, %v8773
      %v8790 = vpack.c.bf16 %v8778, %v8776
      %v8791 = vpack.c.bf16 %v8779, %v8777
      %v8792 = vpack.c.bf16 %v8782, %v8780
      %v8793 = vpack.c.bf16 %v8783, %v8781
      %v8794 = vld [vmem:[%s49] sm:$0xff]
      %v8795 = vld [vmem:[%s49 + $0x8] sm:$0xff]
      %8797 = vset.pattern.permute.xlu0 0
      %8798 = vperm.xlu0 %8797, %v8794
      %v8799 = vpop.permute.xlu0 %8798
      %8802 = vset.pattern.permute.xlu0 0
      %8803 = vperm.xlu0 %8802, %v8795
      %v8804 = vpop.permute.xlu0 %8803
      %v8808 = vunpack.c.l.b16 %v8784
      %v8809 = vunpack.c.l.b16 %v8785
      %v8810 = vpack.c.b16 %v8809, %v8808
      %v8812 = vsel %vm4797, %v8810, 0
      %8814 = vmatprep.subr.bf16.mxu0 %v8787
      %8815 = vmatpush1.bf16.msra.mxu0 %v8786
      %8816 = vmatprep.subr.bf16.mxu0 %v8789
      %8817 = vmatpush1.bf16.msra.mxu0 %v8788
      %8818 = vmatprep.subr.bf16.mxu0 %v8791
      %8819 = vmatpush1.bf16.msra.mxu0 %v8790
      %8820 = vmatprep.subr.bf16.mxu0 %v8793
      %8821 = vmatpush1.bf16.msra.mxu0 %v8792
      %8822 = vmatprep.subr.bf16.mxu0 0
      %8823 = vmatpush1.bf16.msra.mxu0 0
      %8824 = vmatprep.subr.bf16.mxu0 0
      %8825 = vmatpush1.bf16.msra.mxu0 0
      %8826 = vmatprep.subr.bf16.mxu0 0
      %8827 = vmatpush1.bf16.msra.mxu0 0
      %8828 = vmatprep.subr.bf16.mxu0 0
      %8829 = vmatpush1.bf16.msra.mxu0 0
      %8830 = vmatprep.subr.bf16.mxu0 0
      %8831 = vmatpush1.bf16.msra.mxu0 0
      %8832 = vmatprep.subr.bf16.mxu0 0
      %8833 = vmatpush1.bf16.msra.mxu0 0
      %8834 = vmatprep.subr.bf16.mxu0 0
      %8835 = vmatpush1.bf16.msra.mxu0 0
      %8836 = vmatprep.subr.bf16.mxu0 0
      %8837 = vmatpush1.bf16.msra.mxu0 0
      %8838 = vmatprep.subr.bf16.mxu0 0
      %8839 = vmatpush1.bf16.msra.mxu0 0
      %8840 = vmatprep.subr.bf16.mxu0 0
      %8841 = vmatpush1.bf16.msra.mxu0 0
      %8842 = vmatprep.subr.bf16.mxu0 0
      %8843 = vmatpush1.bf16.msra.mxu0 0
      %8844 = vmatprep.subr.bf16.mxu0 0
      %8845 = vmatpush1.bf16.msra.mxu0 0
      %8846 = vmatprep.mubr.bf16.mxu0 0
      %8847 = vmatmul.mubr.bf16.gmra.mrb[0].mxu0 %v8812
      %v8848 = vpop.f32.mrb[0].mxu0
      %v8849 = vadd.f32 %v8799, %v8848
      %v8850 = vpop.f32.mrb[0].mxu0
      %v8851 = vadd.f32 %v8799, %v8850
      %v8852 = vpop.f32.mrb[0].mxu0
      %v8853 = vadd.f32 %v8804, %v8852
      %v8854 = vpop.f32.mrb[0].mxu0
      %v8855 = vadd.f32 %v8804, %v8854
      %8856 = vdwg.mxu0
      %v8857 = vadd.f32 %v8849, %v8853
      %v8858 = vrot.slane %v8857, 4
      %v8859 = vadd.f32 %v8857, %v8858
      %v8860 = vrot.slane %v8859, 2
      %v8861 = vadd.f32 %v8859, %v8860
      %v8862 = vrot.slane %v8861, 1
      %v8863 = vadd.f32 %v8861, %v8862
      %v8864 = vadd.f32 %v8851, %v8855
      %v8865 = vrot.slane %v8864, 4
      %v8866 = vadd.f32 %v8864, %v8865
      %v8867 = vrot.slane %v8866, 2
      %v8868 = vadd.f32 %v8866, %v8867
      %v8869 = vrot.slane %v8868, 1
      %v8870 = vadd.f32 %v8868, %v8869
      %v8871 = vmul.f32 %v8863, %v4392
      %v8872 = vmul.f32 %v8870, %v4392
      %v8873 = vsub.f32 %v8849, %v8871
      %v8874 = vsub.f32 %v8851, %v8872
      %v8875 = vsub.f32 %v8853, %v8871
      %v8876 = vsub.f32 %v8855, %v8872
      %v8877 = vmul.f32 %v8873, %v8873
      %v8878 = vmul.f32 %v8874, %v8874
      %v8879 = vmul.f32 %v8875, %v8875
      %v8880 = vmul.f32 %v8876, %v8876
      %v8881 = vadd.f32 %v8877, %v8879
      %v8882 = vrot.slane %v8881, 4
      %v8883 = vadd.f32 %v8881, %v8882
      %v8884 = vrot.slane %v8883, 2
      %v8885 = vadd.f32 %v8883, %v8884
      %v8886 = vrot.slane %v8885, 1
      %v8887 = vadd.f32 %v8885, %v8886
      %v8888 = vadd.f32 %v8878, %v8880
      %v8889 = vrot.slane %v8888, 4
      %v8890 = vadd.f32 %v8888, %v8889
      %v8891 = vrot.slane %v8890, 2
      %v8892 = vadd.f32 %v8890, %v8891
      %v8893 = vrot.slane %v8892, 1
      %v8894 = vadd.f32 %v8892, %v8893
      %v8895 = vmul.f32 %v8887, %v4392
      %v8896 = vmul.f32 %v8894, %v4392
      %v8897 = vadd.f32 %v8895, 1e-05
      %v8898 = vadd.f32 %v8896, 1e-05
      %v8899 = vrsqrt.pop %v8897
      %v8900 = vrsqrt.pop %v8898
      %v8901 = vmul.f32 %v8873, %v8899
      %v8902 = vmul.f32 %v8874, %v8900
      %v8903 = vmul.f32 %v8875, %v8899
      %v8904 = vmul.f32 %v8876, %v8900
      %v8905 = vld [vmem:[%s51] sm:$0xff]
      %v8906 = vld [vmem:[%s51 + $0x8] sm:$0xff]
      %8908 = vset.pattern.permute.xlu0 0
      %8909 = vperm.xlu0 %8908, %v8905
      %v8910 = vpop.permute.xlu0 %8909
      %8913 = vset.pattern.permute.xlu0 0
      %8914 = vperm.xlu0 %8913, %v8906
      %v8915 = vpop.permute.xlu0 %8914
      %v8917 = vmul.f32 %v8901, %v8910
      %v8918 = vmul.f32 %v8902, %v8910
      %v8919 = vmul.f32 %v8903, %v8915
      %v8920 = vmul.f32 %v8904, %v8915
      %v8921 = vld [vmem:[%s53] sm:$0xff]
      %v8922 = vld [vmem:[%s53 + $0x8] sm:$0xff]
      %8924 = vset.pattern.permute.xlu0 0
      %8925 = vperm.xlu0 %8924, %v8921
      %v8926 = vpop.permute.xlu0 %8925
      %8929 = vset.pattern.permute.xlu0 0
      %8930 = vperm.xlu0 %8929, %v8922
      %v8931 = vpop.permute.xlu0 %8930
      %v8933 = vadd.f32 %v8917, %v8926
      %v8934 = vadd.f32 %v8918, %v8926
      %v8935 = vadd.f32 %v8919, %v8931
      %v8936 = vadd.f32 %v8920, %v8931
      %v8937 = vadd.f32 %v8473, %v8933
      %v8938 = vadd.f32 %v8474, %v8934
      %v8939 = vadd.f32 %v8475, %v8935
      %v8940 = vadd.f32 %v8476, %v8936
      %v8941 = vld [vmem:[%s55] sm:$0xf]
      %v8942 = vld [vmem:[%s55 + $0x4] sm:$0xf]
      %v8943 = vld [vmem:[%s55 + $0x8] sm:$0xf]
      %v8944 = vld [vmem:[%s55 + $0xc] sm:$0xf]
      %v8945 = vpack.c.bf16 %v8939, %v8937
      %v8946 = vpack.c.bf16 %v8940, %v8938
      %v8947 = vld [vmem:[%s57] sm:$0xff]
      %v8948 = vld [vmem:[%s57 + $0x8] sm:$0xff]
      %v8949 = vld [vmem:[%s57 + $0x10] sm:$0xff]
      %v8950 = vld [vmem:[%s57 + $0x18] sm:$0xff]
      %8952 = vset.pattern.permute.xlu0 0
      %8953 = vperm.xlu0 %8952, %v8947
      %v8954 = vpop.permute.xlu0 %8953
      %8957 = vset.pattern.permute.xlu0 0
      %8958 = vperm.xlu0 %8957, %v8948
      %v8959 = vpop.permute.xlu0 %8958
      %8962 = vset.pattern.permute.xlu0 0
      %8963 = vperm.xlu0 %8962, %v8949
      %v8964 = vpop.permute.xlu0 %8963
      %8967 = vset.pattern.permute.xlu0 0
      %8968 = vperm.xlu0 %8967, %v8950
      %v8969 = vpop.permute.xlu0 %8968
      %v8975 = vunpack.c.l.b16 %v8941
      %v8976 = vunpack.c.l.b16 %v8942
      %v8977 = vunpack.c.l.b16 %v8943
      %v8978 = vunpack.c.l.b16 %v8944
      %v8979 = vpack.c.b16 %v8976, %v8975
      %v8980 = vpack.c.b16 %v8978, %v8977
      %v8982 = vsel %vm968, %v8979, 0
      %v8985 = vsel %vm968, %v8980, 0
      %8987 = vmatprep.subr.bf16.mxu0 %v8946
      %8988 = vmatpush1.bf16.msra.mxu0 %v8945
      %8989 = vmatprep.subr.bf16.mxu0 0
      %8990 = vmatpush1.bf16.msra.mxu0 0
      %8991 = vmatprep.subr.bf16.mxu0 0
      %8992 = vmatpush1.bf16.msra.mxu0 0
      %8993 = vmatprep.subr.bf16.mxu0 0
      %8994 = vmatpush1.bf16.msra.mxu0 0
      %8995 = vmatprep.subr.bf16.mxu0 0
      %8996 = vmatpush1.bf16.msra.mxu0 0
      %8997 = vmatprep.subr.bf16.mxu0 0
      %8998 = vmatpush1.bf16.msra.mxu0 0
      %8999 = vmatprep.subr.bf16.mxu0 0
      %9000 = vmatpush1.bf16.msra.mxu0 0
      %9001 = vmatprep.subr.bf16.mxu0 0
      %9002 = vmatpush1.bf16.msra.mxu0 0
      %9003 = vmatprep.subr.bf16.mxu0 0
      %9004 = vmatpush1.bf16.msra.mxu0 0
      %9005 = vmatprep.subr.bf16.mxu0 0
      %9006 = vmatpush1.bf16.msra.mxu0 0
      %9007 = vmatprep.subr.bf16.mxu0 0
      %9008 = vmatpush1.bf16.msra.mxu0 0
      %9009 = vmatprep.subr.bf16.mxu0 0
      %9010 = vmatpush1.bf16.msra.mxu0 0
      %9011 = vmatprep.subr.bf16.mxu0 0
      %9012 = vmatpush1.bf16.msra.mxu0 0
      %9013 = vmatprep.subr.bf16.mxu0 0
      %9014 = vmatpush1.bf16.msra.mxu0 0
      %9015 = vmatprep.subr.bf16.mxu0 0
      %9016 = vmatpush1.bf16.msra.mxu0 0
      %9017 = vmatprep.subr.bf16.mxu0 0
      %9018 = vmatpush1.bf16.msra.mxu0 0
      %9019 = vmatprep.mubr.bf16.mxu0 0
      %9020 = vmatmul.mubr.bf16.gmra.mrb[0].mxu0 %v8982
      %v9021 = vpop.f32.mrb[0].mxu0
      %v9022 = vadd.f32 %v8954, %v9021
      %v9023 = vpop.f32.mrb[0].mxu0
      %v9024 = vadd.f32 %v8954, %v9023
      %v9025 = vpop.f32.mrb[0].mxu0
      %v9026 = vadd.f32 %v8959, %v9025
      %v9027 = vpop.f32.mrb[0].mxu0
      %v9028 = vadd.f32 %v8959, %v9027
      %9029 = vmatprep.mubr.bf16.mxu0 0
      %9030 = vmatmul.mubr.bf16.gmra.mrb[0].mxu0 %v8985
      %v9031 = vpop.f32.mrb[0].mxu0
      %v9032 = vadd.f32 %v8964, %v9031
      %v9033 = vpop.f32.mrb[0].mxu0
      %v9034 = vadd.f32 %v8964, %v9033
      %v9035 = vpop.f32.mrb[0].mxu0
      %v9036 = vadd.f32 %v8969, %v9035
      %v9037 = vpop.f32.mrb[0].mxu0
      %v9038 = vadd.f32 %v8969, %v9037
      %9039 = vdwg.mxu0
      %9040 = vst [vmem:[%s902] sm:$0xff] %v9022
      %9041 = vst [vmem:[%s902 + $0x8] sm:$0xff] %v9024
      %9042 = vst [vmem:[%s902 + $0x10] sm:$0xff] %v9026
      %9043 = vst [vmem:[%s902 + $0x18] sm:$0xff] %v9028
      %9044 = vst [vmem:[%s902 + $0x20] sm:$0xff] %v9032
      %9045 = vst [vmem:[%s902 + $0x28] sm:$0xff] %v9034
      %9046 = vst [vmem:[%s902 + $0x30] sm:$0xff] %v9036
      %9047 = vst [vmem:[%s902 + $0x38] sm:$0xff] %v9038
      %p9048 = scmp.lt.s32.totalorder %s70, 1
      %s9049 = scalar_select %p9048, %s70, 1
      %s9050 = smul.addr %s9049, 8
      %s9051 = smul.addr %s9050, 8
      %s9052 = scalar_lea.vmem %s59, %s9051
      // Predicated region
      $region137: #{swin_t_forward.1} parent=135 // pred_check
        %p9053 = pneg %p702
      $region138: #{swin_t_forward.1} parent=135 // pred_check_branch
        %9055 = sbr.rel (%p9053) target = $region140
      $region139: #{swin_t_forward.1} parent=135 // pred_region
        _
      $region140: #{swin_t_forward.1} parent=135 // pred_fallthru
        _
    $region136: #{swin_t_forward.1} parent=5 // pred_fallthru
      _
    %p9056 = scmp.le.s32.totalorder 2, %s65
    // Predicated region
    $region141: #{swin_t_forward.1} parent=5 // pred_check
      %p9057 = pneg %p9056
    $region142: #{swin_t_forward.1} parent=5 // pred_check_branch
      %9059 = sbr.rel (%p9057) target = $region144
    $region143: #{swin_t_forward.1} parent=5 // pred_region
      %s9060 = ssub.s32 %s65, 2
      // Predicated region
      $region145: #{swin_t_forward.1} parent=143 // pred_check
        %p9061 = pneg %p708
      $region146: #{swin_t_forward.1} parent=143 // pred_check_branch
        %9063 = sbr.rel (%p9061) target = $region148
      $region147: #{swin_t_forward.1} parent=143 // pred_region
        %p9064 = scmp.lt.s32.totalorder %s71, 1
        %s9065 = scalar_select %p9064, %s71, 1
        %s9066 = smul.addr %s9065, 8
        %s9067 = smul.addr %s9066, 8
        %s9068 = scalar_lea.vmem %s59, %s9067
      $region148: #{swin_t_forward.1} parent=143 // pred_fallthru
        _
    $region144: #{swin_t_forward.1} parent=5 // pred_fallthru
      _
  $region6: #{swin_t_forward.1} parent=0 // loop_footer
    %s69 = sadd.s32 1, %s65
  $region7: #{swin_t_forward.1} parent=0 // loop_footer_branch
    %64 = sbr.rel target = $region3
  $region8: #{swin_t_forward.1} parent=0 // loop_exit
    _

</llo_original>
